<compile_context>
chip_gen: v7x
topology: tpu7x:2x2x1
jax: 0.10.0
libtpu: 0.0.40
codegen_flags: <defaults>
</compile_context>

<pallas_src>
import numpy as np
import jax
import jax.numpy as jnp
from jax import lax
from jax.experimental import pallas as pl
from jax.experimental.pallas import tpu as pltpu

# ----------------------------- configuration --------------------------------
N, IN_DIM, H, W = 2, 32, 16, 16            # small synthetic shapes
HIDDEN = 8
HD = HIDDEN
CLS_P, CLS_H, CLS_F = 7, 3, 2
UPPER = [1, 2, 3, 4]
LOWER = [5, 6]
HW = H * W                                 # lanes per image (multiple of 128)
M = N * HW
NPARTS = CLS_P - 1
N_U, N_L = len(UPPER), len(LOWER)

# deterministic adjacency over the 6 part nodes: bidirectional chain
ADJ = np.zeros((NPARTS, NPARTS), np.int32)
for _i in range(NPARTS - 1):
    ADJ[_i, _i + 1] = 1
    ADJ[_i + 1, _i] = 1
EDGES = [(int(r), int(c)) for r, c in np.argwhere(ADJ)]       # torch.nonzero order
NEDGES = len(EDGES)
PART_LIST_LIST = [[i] for i in range(NPARTS)]
for (_a, _b) in EDGES:
    PART_LIST_LIST[_b].append(_a)
GROUP_SIZES = tuple(len(PART_LIST_LIST[i]) + 1 for i in range(NPARTS))
EDGE_LOCAL = tuple(1 + PART_LIST_LIST[u].index(v) for (u, v) in EDGES)
IN_COUNT = tuple(sum(1 for (_u, _v) in EDGES if _v == i) for i in range(NPARTS))
ATT_ROWS = sum(GROUP_SIZES)                                   # 22
AOFF = tuple(int(x) for x in np.cumsum((0,) + GROUP_SIZES[:-1]))

# stacked embedding layout [80, HW]: bg | p(6x8) | h(2x8) | f(1x8)
R_BG, R_P = 0, HD
R_H = R_P + NPARTS * HD
R_F = R_H + (CLS_H - 1) * HD
EMB_ROWS = R_F + (CLS_F - 1) * HD                             # 80
SEG_ROWS = CLS_P + CLS_H + CLS_F                              # 12
MAP_ROWS = (N_U + 1) + (N_L + 1) + 3                          # 11

# packed output layout (8-aligned section starts)
O_SEG, O_SEGN, O_MAP, O_ATT = 0, 16, 32, 48
OUT_ROWS = 72


def generate_spatial_batch(featmap_H, featmap_W):
    # TODO(synk): the original module hardcodes a 60x60 coord grid; we generate it at the
    # actual feature resolution so the 1x1-conv channel counts stay consistent.
    sp = np.zeros((1, featmap_H, featmap_W, 8), dtype=np.float32)
    for h in range(featmap_H):
        for w in range(featmap_W):
            xmin = w / featmap_W * 2 - 1
            xmax = (w + 1) / featmap_W * 2 - 1
            xctr = (xmin + xmax) / 2
            ymin = h / featmap_H * 2 - 1
            ymax = (h + 1) / featmap_H * 2 - 1
            yctr = (ymin + ymax) / 2
            sp[:, h, w, :] = [xmin, ymin, xmax, ymax, xctr, yctr,
                              1 / featmap_W, 1 / featmap_H]
    return sp


# --------------------------- in-kernel helpers -------------------------------
def _dot(a, b):
    return jnp.dot(a, b, preferred_element_type=jnp.float32)


def _softmax_rows(x):
    m = jnp.max(x, axis=0, keepdims=True)
    e = jnp.exp(x - m)
    return e * pl.reciprocal(jnp.sum(e, axis=0, keepdims=True), approx=True)


def _sigmoid(x):
    return pl.reciprocal(1.0 + jnp.exp(-x), approx=True)


def _compose(base, parts_scaled, w1a_rep, w1b_bd, w2_bd, n):
    # Composition: msg = sum_i relu(W2 @ relu(W1a@base + W1b@(part_i*com_att)))
    # (weights shared across parts -> vertically tiled / block-diagonal)
    y1 = jnp.maximum(_dot(w1a_rep, base) + _dot(w1b_bd, parts_scaled), 0.0)
    y2 = jnp.maximum(_dot(w2_bd, y1), 0.0)
    msg = y2[0:HD]
    for i in range(1, n):
        msg = msg + y2[i * HD:(i + 1) * HD]
    return msg


def _decompose(xsrc, att, parts_block, w1a_bd, w1b_bd, w2_bd, n):
    # Decomposition: per part i: relu(W2 @ relu(W1a@(xsrc*att[i+1]) + W1b@part_i))
    scaled = jnp.concatenate([xsrc * att[i + 1:i + 2] for i in range(n)], axis=0)
    y1 = jnp.maximum(_dot(w1a_bd, scaled) + _dot(w1b_bd, parts_block), 0.0)
    return jnp.maximum(_dot(w2_bd, y1), 0.0)


def _gru_combine(g, h, msgs, gammas):
    # ConvGRU combine given this node's gate rows (inputs_num+2 rows).
    ni = len(msgs)
    cc = h * (1.0 - g[ni:ni + 1])
    for i in range(ni):
        cc = cc + msgs[i] * g[i:i + 1] * gammas[i]
    upd = g[ni + 1:ni + 2]
    return (1.0 - upd) * h + upd * jnp.tanh(cc)


# ------------------------------ fused kernel ---------------------------------
def _gnn_fused_kernel(
        xp_ref, xh_ref, xf_ref, coord_ref,
        w_emb_ref, w_cls_ref, b_cls_ref,
        w_da_ref, b_da_ref,
        dfh_w1a_ref, dfh_w1b_ref, dfh_w2_ref,
        dpu_w1a_ref, dpu_w1b_ref, dpu_w2_ref,
        dpl_w1a_ref, dpl_w1b_ref, dpl_w2_ref,
        ch_w1a_ref, ch_w1b_ref, ch_w2_ref,
        cu_w1a_ref, cu_w1b_ref, cu_w2_ref,
        cl_w1a_ref, cl_w1b_ref, cl_w2_ref,
        w_qk_ref, w_proj_ref, w_att_ref, b_att_ref,
        pd_w1a_ref, pd_w1b_ref, pd_w2_ref, pd_scat_ref,
        gruf_w_ref, gruf_b_ref, gruh_w_ref, gruh_b_ref, grup_w_ref, grup_b_ref,
        gam_ref,
        out_ref):
    xp = xp_ref[...]
    xh = xh_ref[...]
    xf = xf_ref[...]
    coord = coord_ref[...]

    # ---- node embeddings (p/h/f/bg): one block-structured matmul -------------
    x3 = jnp.concatenate([xp, xh, xf], axis=0)                    # [96, HW]
    emb = jnp.maximum(_dot(w_emb_ref[...], x3), 0.0)              # [80, HW]
    bg_node = emb[R_BG:R_BG + HD]
    p_conv = emb[R_P:R_P + NPARTS * HD]
    h_conv = emb[R_H:R_H + 2 * HD]
    f_node = emb[R_F:R_F + HD]
    h0 = h_conv[0:HD]
    h1 = h_conv[HD:2 * HD]

    # ---- initial classification (bg + grouped p/h/f heads, one matmul) -------
    w_cls = w_cls_ref[...]
    b_cls = b_cls_ref[...]
    seg = _dot(w_cls, emb) + b_cls                                # [12, HW]
    p_seg = seg[0:CLS_P]
    h_seg = seg[CLS_P:CLS_P + CLS_H]
    p_att = _softmax_rows(p_seg)
    h_att = _softmax_rows(h_seg)
    # f_att is computed-and-unused by the reference graph -> skipped.

    # ---- full graph: composition(f <- halves) + ConvGRU(1 msg) ---------------
    com_att_h = h_att[1:2] + h_att[2:3]
    comp_h = _compose(f_node, h_conv * com_att_h,
                      ch_w1a_ref[...], ch_w1b_ref[...], ch_w2_ref[...], 2)
    gf = _sigmoid(_dot(gruf_w_ref[...], jnp.concatenate([comp_h, f_node], axis=0))
                  + gruf_b_ref[...])
    xf_new = _gru_combine(gf, f_node, [comp_h], [gam_ref[0]])

    # ---- the three decomposition attention convs in one matmul ---------------
    maps = _dot(w_da_ref[...], emb[R_H:EMB_ROWS]) + b_da_ref[...]  # [11, HW]
    pu_att = _softmax_rows(maps[0:N_U + 1])
    pl_att = _softmax_rows(maps[N_U + 1:N_U + N_L + 2])
    fh_att = _softmax_rows(maps[N_U + N_L + 2:MAP_ROWS])

    # ---- half graph -----------------------------------------------------------
    decomp_fh = _decompose(f_node, fh_att, h_conv,
                           dfh_w1a_ref[...], dfh_w1b_ref[...], dfh_w2_ref[...], 2)
    com_att_u = jnp.sum(p_att[1:1 + N_U], axis=0, keepdims=True)
    com_att_l = jnp.sum(p_att[1 + N_U:CLS_P], axis=0, keepdims=True)
    comp_u = _compose(h0, p_conv[0:N_U * HD] * com_att_u,
                      cu_w1a_ref[...], cu_w1b_ref[...], cu_w2_ref[...], N_U)
    comp_l = _compose(h1, p_conv[N_U * HD:NPARTS * HD] * com_att_l,
                      cl_w1a_ref[...], cl_w1b_ref[...], cl_w2_ref[...], N_L)
    m1_h = jnp.concatenate([comp_u, comp_l], axis=0)
    gh = _sigmoid(_dot(gruh_w_ref[...],
                       jnp.concatenate([decomp_fh, m1_h, h_conv], axis=0))
                  + gruh_b_ref[...])                              # [8, HW]
    xh_new = jnp.concatenate([
        _gru_combine(gh[4 * i:4 * i + 4], h_conv[HD * i:HD * (i + 1)],
                     [decomp_fh[HD * i:HD * (i + 1)], m1_h[HD * i:HD * (i + 1)]],
                     [gam_ref[1 + 2 * i], gam_ref[2 + 2 * i]])
        for i in range(2)], axis=0)

    # ---- part graph: decompositions -------------------------------------------
    decomp_pu = _decompose(h0, pu_att, p_conv[0:N_U * HD],
                           dpu_w1a_ref[...], dpu_w1b_ref[...], dpu_w2_ref[...], N_U)
    decomp_pl = _decompose(h1, pl_att, p_conv[N_U * HD:NPARTS * HD],
                           dpl_w1a_ref[...], dpl_w1b_ref[...], dpl_w2_ref[...], N_L)
    decomp_p = jnp.concatenate([decomp_pu, decomp_pl], axis=0)    # [48, HW]

    # ---- Dep_Context + shared F_cont + per-node att + Part_Dependency ---------
    cross = jnp.concatenate([p_conv, xp, coord], axis=0)          # [88, HW]
    qk = jnp.maximum(_dot(w_qk_ref[...], cross), 0.0)             # [64, HW]
    q = qk[0:IN_DIM]
    k = qk[IN_DIM:2 * IN_DIM]
    # energy[i, j] = sum_c q[c, i] k[c, j]; torch softmax(dim=1) == axis 0 here.
    energy = lax.dot_general(q, k, (((0,), (0,)), ((), ())),
                             preferred_element_type=jnp.float32)  # [HW, HW]
    exp_e = jnp.exp(energy - jnp.max(energy, axis=0, keepdims=True))
    denom = jnp.sum(exp_e, axis=0, keepdims=True)
    # deferred normalization: scale the [32,HW] co instead of the [HW,HW] attention
    co = _dot(xp, exp_e) * pl.reciprocal(denom, approx=True)      # [32, HW]
    fdep = jnp.maximum(_dot(w_proj_ref[...], co), 0.0)            # [8, HW] shared F_cont
    att_raw = _dot(w_att_ref[...], fdep) + b_att_ref[...]         # [22, HW]
    sm = [_softmax_rows(att_raw[AOFF[u]:AOFF[u] + GROUP_SIZES[u]]) for u in range(NPARTS)]

    x1 = jnp.concatenate(
        [fdep * sm[u][EDGE_LOCAL[e_idx]:EDGE_LOCAL[e_idx] + 1]
         for e_idx, (u, _v) in enumerate(EDGES)], axis=0)         # [E*8, HW]
    y1 = jnp.maximum(_dot(pd_w1a_ref[...], x1) + _dot(pd_w1b_ref[...], p_conv), 0.0)
    y2 = jnp.maximum(_dot(pd_w2_ref[...], y1), 0.0)               # [E*8, HW]
    dp = _dot(pd_scat_ref[...], y2)                               # [48, HW] mean over incoming

    # ---- part ConvGRUs (one gate matmul + per-node combine) -------------------
    gp = _sigmoid(_dot(grup_w_ref[...],
                       jnp.concatenate([decomp_p, dp, p_conv], axis=0))
                  + grup_b_ref[...])                              # [24, HW]
    xp_new = jnp.concatenate([
        _gru_combine(gp[4 * i:4 * i + 4], p_conv[HD * i:HD * (i + 1)],
                     [decomp_p[HD * i:HD * (i + 1)], dp[HD * i:HD * (i + 1)]],
                     [gam_ref[5 + 2 * i], gam_ref[6 + 2 * i]])
        for i in range(NPARTS)], axis=0)

    # ---- re-classification (same cls weights; bg_node unchanged -> same bg row) -
    emb_new = jnp.concatenate([bg_node, xp_new, xh_new, xf_new], axis=0)
    seg_new = _dot(w_cls, emb_new) + b_cls

    # ---- pack all outputs into one lane-dense buffer (8-aligned section starts) -
    out_ref[...] = jnp.zeros((OUT_ROWS, HW), jnp.float32)
    out_ref[O_SEG:O_SEG + SEG_ROWS, :] = seg
    out_ref[O_SEGN:O_SEGN + SEG_ROWS, :] = seg_new
    out_ref[O_MAP:O_MAP + MAP_ROWS, :] = maps
    out_ref[O_ATT:O_ATT + ATT_ROWS, :] = att_raw


# ------------------------------ Pallas wrapper -------------------------------
_SMEM = pl.BlockSpec(memory_space=pltpu.MemorySpace.SMEM)

WEIGHT_ORDER = ("w_emb", "w_cls", "b_cls", "w_da", "b_da",
                "dfh_w1a", "dfh_w1b", "dfh_w2",
                "dpu_w1a", "dpu_w1b", "dpu_w2",
                "dpl_w1a", "dpl_w1b", "dpl_w2",
                "ch_w1a", "ch_w1b", "ch_w2",
                "cu_w1a", "cu_w1b", "cu_w2",
                "cl_w1a", "cl_w1b", "cl_w2",
                "w_qk", "w_proj", "w_att", "b_att",
                "pd_w1a", "pd_w1b", "pd_w2", "pd_scat",
                "gruf_w", "gruf_b", "gruh_w", "gruh_b", "grup_w", "grup_b")


def _wspec(arr):
    return pl.BlockSpec(arr.shape, lambda b: (0, 0))


def gnn_infer_forward(params, xp, xh, xf, xl):
    # xp, xh, xf, xl: NCHW [N, IN_DIM, H, W]; xl is unused by the reference forward.
    del xl
    n, _, h, w = xp.shape
    hw = h * w
    m = n * hw
    to_cm = lambda a: a.transpose(1, 0, 2, 3).reshape(a.shape[1], -1)
    xp_cm, xh_cm, xf_cm = to_cm(xp), to_cm(xh), to_cm(xf)

    coord = jnp.asarray(
        generate_spatial_batch(h, w)[0].transpose(2, 0, 1).reshape(8, hw), jnp.float32)

    weights = [params[kname] for kname in WEIGHT_ORDER]
    act_spec = lambda c: pl.BlockSpec((c, hw), lambda b: (0, b))

    out = pl.pallas_call(
        _gnn_fused_kernel,
        out_shape=jax.ShapeDtypeStruct((OUT_ROWS, m), jnp.float32),
        grid=(n,),
        in_specs=[act_spec(IN_DIM)] * 3
                 + [pl.BlockSpec((8, hw), lambda b: (0, 0))]
                 + [_wspec(wt) for wt in weights]
                 + [_SMEM],
        out_specs=pl.BlockSpec((OUT_ROWS, hw), lambda b: (0, b)),
        compiler_params=pltpu.CompilerParams(dimension_semantics=("parallel",)),
    )(xp_cm, xh_cm, xf_cm, coord, *weights, params["gam"])

    def to_nchw(a):
        return a.reshape(a.shape[0], n, h, w).transpose(1, 0, 2, 3)

    seg = out[O_SEG:O_SEG + SEG_ROWS]
    seg_new = out[O_SEGN:O_SEGN + SEG_ROWS]
    maps = out[O_MAP:O_MAP + MAP_ROWS]
    att = out[O_ATT:O_ATT + ATT_ROWS]

    p_seg_out = [to_nchw(seg[0:CLS_P]), to_nchw(seg_new[0:CLS_P])]
    h_seg_out = [to_nchw(seg[CLS_P:CLS_P + CLS_H]), to_nchw(seg_new[CLS_P:CLS_P + CLS_H])]
    f_seg_out = [to_nchw(seg[CLS_P + CLS_H:SEG_ROWS]),
                 to_nchw(seg_new[CLS_P + CLS_H:SEG_ROWS])]
    decomp_up_out = [to_nchw(maps[0:N_U + 1])]
    decomp_lp_out = [to_nchw(maps[N_U + 1:N_U + N_L + 2])]
    decomp_fh_out = [to_nchw(maps[N_U + N_L + 2:MAP_ROWS])]
    fdep_out = [[to_nchw(att[AOFF[u]:AOFF[u] + GROUP_SIZES[u]]) for u in range(NPARTS)]]
    return (p_seg_out, h_seg_out, f_seg_out,
            decomp_fh_out, decomp_up_out, decomp_lp_out, fdep_out)


# --------------------------- parameter construction --------------------------
class KeyGen:
    def __init__(self, seed):
        self.key = jax.random.PRNGKey(seed)

    def __call__(self):
        self.key, k = jax.random.split(self.key)
        return k


def _w(kg, cout, cin):
    return np.asarray(jax.random.normal(kg(), (cout, cin), jnp.float32)) / np.sqrt(cin)


def _b(kg, cout):
    return 0.1 * np.asarray(jax.random.normal(kg(), (cout, 1), jnp.float32))


def _block_diag(blocks):
    rows = sum(b.shape[0] for b in blocks)
    cols = sum(b.shape[1] for b in blocks)
    out = np.zeros((rows, cols), np.float32)
    r = c = 0
    for b in blocks:
        out[r:r + b.shape[0], c:c + b.shape[1]] = b
        r += b.shape[0]
        c += b.shape[1]
    return out


def _seq2_split(kg, hd):
    # Conv(2h->2h,no bias)+BN+ReLU, Conv(2h->h,no bias)+BN+ReLU; fresh-init InPlaceABNSync
    # (weight=1,bias=0,mean=0,var=1) folded into the conv weights.
    w1 = _w(kg, 2 * hd, 2 * hd)
    return w1[:, :hd], w1[:, hd:], _w(kg, hd, 2 * hd)


def _comp_pack(kg, hd, n):
    # Composition: all part branches share one seq2 (ModuleList of the same module).
    w1a, w1b, w2 = _seq2_split(kg, hd)
    return np.tile(w1a, (n, 1)), _block_diag([w1b] * n), _block_diag([w2] * n)


def _dec_pack(kg, hd, n):
    w1a, w1b, w2 = _seq2_split(kg, hd)
    return _block_diag([w1a] * n), _block_diag([w1b] * n), _block_diag([w2] * n)


def _gru_pack(kg, hd, nodes, inputs_num):
    # per-node gate conv [inputs+2, (inputs+1)*hd] block-placed so one matmul against
    # RHS = [m0_stack; m1_stack; ...; h_stack] produces every node's gates at once.
    gates = inputs_num + 2
    wmat = np.zeros((nodes * gates, (inputs_num + 1) * nodes * hd), np.float32)
    for i in range(nodes):
        wi = _w(kg, gates, (inputs_num + 1) * hd)
        for j in range(inputs_num + 1):
            wmat[i * gates:(i + 1) * gates,
                 j * nodes * hd + i * hd:j * nodes * hd + (i + 1) * hd] = \
                wi[:, j * hd:(j + 1) * hd]
    return wmat, np.zeros((nodes * gates, 1), np.float32)


def init_params(kg, d, hd):
    p = {}
    # node embedding: bg (3d->hd over cat(xp,xh,xf)) + p/h/f (d->k*hd) in one [80,3d] weight
    w_emb = np.zeros((EMB_ROWS, 3 * d), np.float32)
    w_emb[R_BG:R_BG + hd, :] = _w(kg, hd, 3 * d)
    w_emb[R_P:R_P + NPARTS * hd, 0:d] = _w(kg, NPARTS * hd, d)
    w_emb[R_H:R_H + (CLS_H - 1) * hd, d:2 * d] = _w(kg, (CLS_H - 1) * hd, d)
    w_emb[R_F:R_F + (CLS_F - 1) * hd, 2 * d:3 * d] = _w(kg, (CLS_F - 1) * hd, d)
    p["w_emb"] = w_emb

    # classifiers: bg (hd->1) + grouped p/h/f heads packed into one [12,80] matmul;
    # the same weights are reused for re-classification (as in the reference).
    w_cls = np.zeros((SEG_ROWS, EMB_ROWS), np.float32)
    b_cls = np.zeros((SEG_ROWS, 1), np.float32)
    w_bgc, b_bgc = _w(kg, 1, hd), _b(kg, 1)
    for r in (0, CLS_P, CLS_P + CLS_H):
        w_cls[r, R_BG:R_BG + hd] = w_bgc[0]
        b_cls[r] = b_bgc[0]
    for j in range(CLS_P - 1):
        w_cls[1 + j, R_P + j * hd:R_P + (j + 1) * hd] = _w(kg, 1, hd)[0]
        b_cls[1 + j] = _b(kg, 1)[0]
    for j in range(CLS_H - 1):
        w_cls[CLS_P + 1 + j, R_H + j * hd:R_H + (j + 1) * hd] = _w(kg, 1, hd)[0]
        b_cls[CLS_P + 1 + j] = _b(kg, 1)[0]
    for j in range(CLS_F - 1):
        w_cls[CLS_P + CLS_H + 1 + j, R_F + j * hd:R_F + (j + 1) * hd] = _w(kg, 1, hd)[0]
        b_cls[CLS_P + CLS_H + 1 + j] = _b(kg, 1)[0]
    p["w_cls"], p["b_cls"] = w_cls, b_cls

    # the three Decomp_att convs (pu on h0, pl on h1, fh on f) in one [11,24] weight
    w_da = np.zeros((MAP_ROWS, 3 * hd), np.float32)
    b_da = np.zeros((MAP_ROWS, 1), np.float32)
    w_da[0:N_U + 1, 0:hd] = _w(kg, N_U + 1, hd)
    b_da[0:N_U + 1] = _b(kg, N_U + 1)
    w_da[N_U + 1:N_U + N_L + 2, hd:2 * hd] = _w(kg, N_L + 1, hd)
    b_da[N_U + 1:N_U + N_L + 2] = _b(kg, N_L + 1)
    w_da[N_U + N_L + 2:, 2 * hd:3 * hd] = _w(kg, 3, hd)
    b_da[N_U + N_L + 2:] = _b(kg, 3)
    p["w_da"], p["b_da"] = w_da, b_da

    p["dfh_w1a"], p["dfh_w1b"], p["dfh_w2"] = _dec_pack(kg, hd, 2)
    p["dpu_w1a"], p["dpu_w1b"], p["dpu_w2"] = _dec_pack(kg, hd, N_U)
    p["dpl_w1a"], p["dpl_w1b"], p["dpl_w2"] = _dec_pack(kg, hd, N_L)
    p["ch_w1a"], p["ch_w1b"], p["ch_w2"] = _comp_pack(kg, hd, 2)
    p["cu_w1a"], p["cu_w1b"], p["cu_w2"] = _comp_pack(kg, hd, N_U)
    p["cl_w1a"], p["cl_w1b"], p["cl_w2"] = _comp_pack(kg, hd, N_L)

    # contexture: q/k convs over [p_conv; xp; coord] stacked into one weight,
    # shared F_cont projection, and the 6 per-node att convs stacked.
    cin = NPARTS * hd + d + 8
    p["w_qk"] = np.concatenate([_w(kg, d, cin), _w(kg, d, cin)], axis=0)
    p["w_proj"] = _w(kg, hd, d)
    w_att = np.zeros((ATT_ROWS, hd), np.float32)
    b_att = np.zeros((ATT_ROWS, 1), np.float32)
    for u in range(NPARTS):
        gs = GROUP_SIZES[u]
        w_att[AOFF[u]:AOFF[u] + gs] = _w(kg, gs, hd)
        b_att[AOFF[u]:AOFF[u] + gs] = _b(kg, gs)
    p["w_att"], p["b_att"] = w_att, b_att

    # Part_Dependency: per-edge seq2 packed block-diagonally; the hv half of w1 is placed at
    # the target node's p_conv columns; scatter matrix averages messages into each node.
    w1a_blocks, w2_blocks = [], []
    pd_w1b = np.zeros((NEDGES * 2 * hd, NPARTS * hd), np.float32)
    pd_scat = np.zeros((NPARTS * hd, NEDGES * hd), np.float32)
    for e_idx, (u, v) in enumerate(EDGES):
        w1a, w1b, w2 = _seq2_split(kg, hd)
        w1a_blocks.append(w1a)
        w2_blocks.append(w2)
        pd_w1b[e_idx * 2 * hd:(e_idx + 1) * 2 * hd, v * hd:(v + 1) * hd] = w1b
        pd_scat[v * hd:(v + 1) * hd, e_idx * hd:(e_idx + 1) * hd] = (
            np.eye(hd, dtype=np.float32) / IN_COUNT[v])
    p["pd_w1a"] = _block_diag(w1a_blocks)
    p["pd_w1b"] = pd_w1b
    p["pd_w2"] = _block_diag(w2_blocks)
    p["pd_scat"] = pd_scat

    # ConvGRU gate convs (bias init 0, gammas init 1, as in the reference)
    p["gruf_w"], p["gruf_b"] = _gru_pack(kg, hd, 1, 1)
    p["gruh_w"], p["gruh_b"] = _gru_pack(kg, hd, 2, 2)
    p["grup_w"], p["grup_b"] = _gru_pack(kg, hd, NPARTS, 2)
    p["gam"] = np.ones((1 + 2 * 2 + 2 * NPARTS,), np.float32)

    return {k: jnp.asarray(v) for k, v in p.items()}


# ----------------------------------- main ------------------------------------
if __name__ == "__main__":
    kg = KeyGen(0)
    params = init_params(kg, IN_DIM, HIDDEN)

    ik = jax.random.split(jax.random.PRNGKey(0), 4)
    xp = jax.random.normal(ik[0], (N, IN_DIM, H, W), jnp.float32)
    xh = jax.random.normal(ik[1], (N, IN_DIM, H, W), jnp.float32)
    xf = jax.random.normal(ik[2], (N, IN_DIM, H, W), jnp.float32)
    xl = jax.random.normal(ik[3], (N, IN_DIM, H, W), jnp.float32)   # unused, as in reference

    fwd = jax.jit(gnn_infer_forward)
    outputs = fwd(params, xp, xh, xf, xl)
    jax.block_until_ready(outputs)

    # light sanity checks on shapes
    assert outputs[0][0].shape == (N, CLS_P, H, W)
    assert outputs[0][1].shape == (N, CLS_P, H, W)
    assert outputs[1][1].shape == (N, CLS_H, H, W)
    assert outputs[2][1].shape == (N, CLS_F, H, W)
    assert outputs[3][0].shape == (N, 3, H, W)
    assert outputs[4][0].shape == (N, N_U + 1, H, W)
    assert outputs[5][0].shape == (N, N_L + 1, H, W)
    assert outputs[6][0][0].shape == (N, GROUP_SIZES[0], H, W)
    print("KERNEL_OK")
</pallas_src>

<mosaic_0001>
module attributes {stable_mosaic.version = 11 : i64} {
  func.func @_gnn_fused_kernel(%arg0: i32, %arg1: memref<32x256xf32, #tpu.memory_space<vmem>>, %arg2: memref<32x256xf32, #tpu.memory_space<vmem>>, %arg3: memref<32x256xf32, #tpu.memory_space<vmem>>, %arg4: memref<8x256xf32, #tpu.memory_space<vmem>>, %arg5: memref<80x96xf32, #tpu.memory_space<vmem>>, %arg6: memref<12x80xf32, #tpu.memory_space<vmem>>, %arg7: memref<12x1xf32, #tpu.memory_space<vmem>>, %arg8: memref<11x24xf32, #tpu.memory_space<vmem>>, %arg9: memref<11x1xf32, #tpu.memory_space<vmem>>, %arg10: memref<32x16xf32, #tpu.memory_space<vmem>>, %arg11: memref<32x16xf32, #tpu.memory_space<vmem>>, %arg12: memref<16x32xf32, #tpu.memory_space<vmem>>, %arg13: memref<64x32xf32, #tpu.memory_space<vmem>>, %arg14: memref<64x32xf32, #tpu.memory_space<vmem>>, %arg15: memref<32x64xf32, #tpu.memory_space<vmem>>, %arg16: memref<32x16xf32, #tpu.memory_space<vmem>>, %arg17: memref<32x16xf32, #tpu.memory_space<vmem>>, %arg18: memref<16x32xf32, #tpu.memory_space<vmem>>, %arg19: memref<32x8xf32, #tpu.memory_space<vmem>>, %arg20: memref<32x16xf32, #tpu.memory_space<vmem>>, %arg21: memref<16x32xf32, #tpu.memory_space<vmem>>, %arg22: memref<64x8xf32, #tpu.memory_space<vmem>>, %arg23: memref<64x32xf32, #tpu.memory_space<vmem>>, %arg24: memref<32x64xf32, #tpu.memory_space<vmem>>, %arg25: memref<32x8xf32, #tpu.memory_space<vmem>>, %arg26: memref<32x16xf32, #tpu.memory_space<vmem>>, %arg27: memref<16x32xf32, #tpu.memory_space<vmem>>, %arg28: memref<64x88xf32, #tpu.memory_space<vmem>>, %arg29: memref<8x32xf32, #tpu.memory_space<vmem>>, %arg30: memref<22x8xf32, #tpu.memory_space<vmem>>, %arg31: memref<22x1xf32, #tpu.memory_space<vmem>>, %arg32: memref<160x80xf32, #tpu.memory_space<vmem>>, %arg33: memref<160x48xf32, #tpu.memory_space<vmem>>, %arg34: memref<80x160xf32, #tpu.memory_space<vmem>>, %arg35: memref<48x80xf32, #tpu.memory_space<vmem>>, %arg36: memref<3x16xf32, #tpu.memory_space<vmem>>, %arg37: memref<3x1xf32, #tpu.memory_space<vmem>>, %arg38: memref<8x48xf32, #tpu.memory_space<vmem>>, %arg39: memref<8x1xf32, #tpu.memory_space<vmem>>, %arg40: memref<24x144xf32, #tpu.memory_space<vmem>>, %arg41: memref<24x1xf32, #tpu.memory_space<vmem>>, %arg42: memref<17xf32, #tpu.memory_space<smem>>, %arg43: memref<72x256xf32, #tpu.memory_space<vmem>>) attributes {dimension_semantics = [#tpu.dimension_semantics<parallel>], iteration_bounds = array<i64: 2>, scalar_prefetch = 0 : i64, scratch_operands = 0 : i64, tpu.core_type = #tpu.core_type<tc>, window_params = [{transform_indices = @transform_0, window_bounds = array<i64: 32, 256>}, {transform_indices = @transform_1, window_bounds = array<i64: 32, 256>}, {transform_indices = @transform_2, window_bounds = array<i64: 32, 256>}, {pipeline_mode = #tpu.pipeline_mode<synchronous>, transform_indices = @transform_3, window_bounds = array<i64: 8, 256>}, {pipeline_mode = #tpu.pipeline_mode<synchronous>, transform_indices = @transform_4, window_bounds = array<i64: 80, 96>}, {pipeline_mode = #tpu.pipeline_mode<synchronous>, transform_indices = @transform_5, window_bounds = array<i64: 12, 80>}, {pipeline_mode = #tpu.pipeline_mode<synchronous>, transform_indices = @transform_6, window_bounds = array<i64: 12, 1>}, {pipeline_mode = #tpu.pipeline_mode<synchronous>, transform_indices = @transform_7, window_bounds = array<i64: 11, 24>}, {pipeline_mode = #tpu.pipeline_mode<synchronous>, transform_indices = @transform_8, window_bounds = array<i64: 11, 1>}, {pipeline_mode = #tpu.pipeline_mode<synchronous>, transform_indices = @transform_9, window_bounds = array<i64: 32, 16>}, {pipeline_mode = #tpu.pipeline_mode<synchronous>, transform_indices = @transform_10, window_bounds = array<i64: 32, 16>}, {pipeline_mode = #tpu.pipeline_mode<synchronous>, transform_indices = @transform_11, window_bounds = array<i64: 16, 32>}, {pipeline_mode = #tpu.pipeline_mode<synchronous>, transform_indices = @transform_12, window_bounds = array<i64: 64, 32>}, {pipeline_mode = #tpu.pipeline_mode<synchronous>, transform_indices = @transform_13, window_bounds = array<i64: 64, 32>}, {pipeline_mode = #tpu.pipeline_mode<synchronous>, transform_indices = @transform_14, window_bounds = array<i64: 32, 64>}, {pipeline_mode = #tpu.pipeline_mode<synchronous>, transform_indices = @transform_15, window_bounds = array<i64: 32, 16>}, {pipeline_mode = #tpu.pipeline_mode<synchronous>, transform_indices = @transform_16, window_bounds = array<i64: 32, 16>}, {pipeline_mode = #tpu.pipeline_mode<synchronous>, transform_indices = @transform_17, window_bounds = array<i64: 16, 32>}, {pipeline_mode = #tpu.pipeline_mode<synchronous>, transform_indices = @transform_18, window_bounds = array<i64: 32, 8>}, {pipeline_mode = #tpu.pipeline_mode<synchronous>, transform_indices = @transform_19, window_bounds = array<i64: 32, 16>}, {pipeline_mode = #tpu.pipeline_mode<synchronous>, transform_indices = @transform_20, window_bounds = array<i64: 16, 32>}, {pipeline_mode = #tpu.pipeline_mode<synchronous>, transform_indices = @transform_21, window_bounds = array<i64: 64, 8>}, {pipeline_mode = #tpu.pipeline_mode<synchronous>, transform_indices = @transform_22, window_bounds = array<i64: 64, 32>}, {pipeline_mode = #tpu.pipeline_mode<synchronous>, transform_indices = @transform_23, window_bounds = array<i64: 32, 64>}, {pipeline_mode = #tpu.pipeline_mode<synchronous>, transform_indices = @transform_24, window_bounds = array<i64: 32, 8>}, {pipeline_mode = #tpu.pipeline_mode<synchronous>, transform_indices = @transform_25, window_bounds = array<i64: 32, 16>}, {pipeline_mode = #tpu.pipeline_mode<synchronous>, transform_indices = @transform_26, window_bounds = array<i64: 16, 32>}, {pipeline_mode = #tpu.pipeline_mode<synchronous>, transform_indices = @transform_27, window_bounds = array<i64: 64, 88>}, {pipeline_mode = #tpu.pipeline_mode<synchronous>, transform_indices = @transform_28, window_bounds = array<i64: 8, 32>}, {pipeline_mode = #tpu.pipeline_mode<synchronous>, transform_indices = @transform_29, window_bounds = array<i64: 22, 8>}, {pipeline_mode = #tpu.pipeline_mode<synchronous>, transform_indices = @transform_30, window_bounds = array<i64: 22, 1>}, {pipeline_mode = #tpu.pipeline_mode<synchronous>, transform_indices = @transform_31, window_bounds = array<i64: 160, 80>}, {pipeline_mode = #tpu.pipeline_mode<synchronous>, transform_indices = @transform_32, window_bounds = array<i64: 160, 48>}, {pipeline_mode = #tpu.pipeline_mode<synchronous>, transform_indices = @transform_33, window_bounds = array<i64: 80, 160>}, {pipeline_mode = #tpu.pipeline_mode<synchronous>, transform_indices = @transform_34, window_bounds = array<i64: 48, 80>}, {pipeline_mode = #tpu.pipeline_mode<synchronous>, transform_indices = @transform_35, window_bounds = array<i64: 3, 16>}, {pipeline_mode = #tpu.pipeline_mode<synchronous>, transform_indices = @transform_36, window_bounds = array<i64: 3, 1>}, {pipeline_mode = #tpu.pipeline_mode<synchronous>, transform_indices = @transform_37, window_bounds = array<i64: 8, 48>}, {pipeline_mode = #tpu.pipeline_mode<synchronous>, transform_indices = @transform_38, window_bounds = array<i64: 8, 1>}, {pipeline_mode = #tpu.pipeline_mode<synchronous>, transform_indices = @transform_39, window_bounds = array<i64: 24, 144>}, {pipeline_mode = #tpu.pipeline_mode<synchronous>, transform_indices = @transform_40, window_bounds = array<i64: 24, 1>}, {transform_indices = @transform_41, window_bounds = array<i64: 17>}, {transform_indices = @transform_42, window_bounds = array<i64: 72, 256>}]} {
    %c0 = arith.constant 0 : index
    %c0_0 = arith.constant 0 : index
    %0 = vector.load %arg1[%c0, %c0_0] : memref<32x256xf32, #tpu.memory_space<vmem>>, vector<32x256xf32>
    %c0_1 = arith.constant 0 : index
    %c0_2 = arith.constant 0 : index
    %1 = vector.load %arg2[%c0_1, %c0_2] : memref<32x256xf32, #tpu.memory_space<vmem>>, vector<32x256xf32>
    %c0_3 = arith.constant 0 : index
    %c0_4 = arith.constant 0 : index
    %2 = vector.load %arg3[%c0_3, %c0_4] : memref<32x256xf32, #tpu.memory_space<vmem>>, vector<32x256xf32>
    %c0_5 = arith.constant 0 : index
    %c0_6 = arith.constant 0 : index
    %3 = vector.load %arg4[%c0_5, %c0_6] : memref<8x256xf32, #tpu.memory_space<vmem>>, vector<8x256xf32>
    %4 = tpu.concatenate %0, %1, %2 in 0 : vector<32x256xf32>, vector<32x256xf32>, vector<32x256xf32> -> vector<96x256xf32>
    %c0_7 = arith.constant 0 : index
    %c0_8 = arith.constant 0 : index
    %5 = vector.load %arg5[%c0_7, %c0_8] : memref<80x96xf32, #tpu.memory_space<vmem>>, vector<80x96xf32>
    %cst = arith.constant dense<0.000000e+00> : vector<80x256xf32>
    %6 = tpu.matmul %5, %4, %cst {dimension_numbers = #tpu.dot_dimension_numbers<[1], [0], [0], [1], [0, 0, 1, 1], [], []>} : vector<80x96xf32>, vector<96x256xf32>, vector<80x256xf32> -> vector<80x256xf32>
    %cst_9 = arith.constant 0.000000e+00 : f32
    %7 = vector.broadcast %cst_9 : f32 to vector<80x256xf32>
    %8 = arith.maximumf %6, %7 : vector<80x256xf32>
    %9 = vector.extract_strided_slice %8 {offsets = [0, 0], sizes = [8, 256], strides = [1, 1]} : vector<80x256xf32> to vector<8x256xf32>
    %10 = vector.extract_strided_slice %8 {offsets = [8, 0], sizes = [48, 256], strides = [1, 1]} : vector<80x256xf32> to vector<48x256xf32>
    %11 = vector.extract_strided_slice %8 {offsets = [56, 0], sizes = [16, 256], strides = [1, 1]} : vector<80x256xf32> to vector<16x256xf32>
    %12 = vector.extract_strided_slice %8 {offsets = [72, 0], sizes = [8, 256], strides = [1, 1]} : vector<80x256xf32> to vector<8x256xf32>
    %13 = vector.extract_strided_slice %11 {offsets = [0, 0], sizes = [8, 256], strides = [1, 1]} : vector<16x256xf32> to vector<8x256xf32>
    %14 = vector.extract_strided_slice %11 {offsets = [8, 0], sizes = [8, 256], strides = [1, 1]} : vector<16x256xf32> to vector<8x256xf32>
    %c0_10 = arith.constant 0 : index
    %c0_11 = arith.constant 0 : index
    %15 = vector.load %arg6[%c0_10, %c0_11] : memref<12x80xf32, #tpu.memory_space<vmem>>, vector<12x80xf32>
    %c0_12 = arith.constant 0 : index
    %c0_13 = arith.constant 0 : index
    %16 = vector.load %arg7[%c0_12, %c0_13] : memref<12x1xf32, #tpu.memory_space<vmem>>, vector<12x1xf32>
    %cst_14 = arith.constant dense<0.000000e+00> : vector<12x256xf32>
    %17 = tpu.matmul %15, %8, %cst_14 {dimension_numbers = #tpu.dot_dimension_numbers<[1], [0], [0], [1], [0, 0, 1, 1], [], []>} : vector<12x80xf32>, vector<80x256xf32>, vector<12x256xf32> -> vector<12x256xf32>
    %18 = vector.broadcast %16 : vector<12x1xf32> to vector<12x256xf32>
    %19 = arith.addf %17, %18 : vector<12x256xf32>
    %20 = vector.extract_strided_slice %19 {offsets = [0, 0], sizes = [7, 256], strides = [1, 1]} : vector<12x256xf32> to vector<7x256xf32>
    %21 = vector.extract_strided_slice %19 {offsets = [7, 0], sizes = [3, 256], strides = [1, 1]} : vector<12x256xf32> to vector<3x256xf32>
    %cst_15 = arith.constant dense<0xFF800000> : vector<256xf32>
    %22 = vector.multi_reduction <maximumf>, %20, %cst_15 [0] : vector<7x256xf32> to vector<256xf32>
    %23 = vector.shape_cast %22 : vector<256xf32> to vector<1x256xf32>
    %24 = vector.broadcast %23 : vector<1x256xf32> to vector<7x256xf32>
    %25 = arith.subf %20, %24 : vector<7x256xf32>
    %26 = math.exp %25 : vector<7x256xf32>
    %cst_16 = arith.constant dense<0.000000e+00> : vector<256xf32>
    %27 = vector.multi_reduction <add>, %26, %cst_16 [0] : vector<7x256xf32> to vector<256xf32>
    %28 = vector.shape_cast %27 : vector<256xf32> to vector<1x256xf32>
    %29 = tpu.reciprocal %28 {approx = true} : vector<1x256xf32> -> vector<1x256xf32>
    %30 = vector.broadcast %29 : vector<1x256xf32> to vector<7x256xf32>
    %31 = arith.mulf %26, %30 : vector<7x256xf32>
    %cst_17 = arith.constant dense<0xFF800000> : vector<256xf32>
    %32 = vector.multi_reduction <maximumf>, %21, %cst_17 [0] : vector<3x256xf32> to vector<256xf32>
    %33 = vector.shape_cast %32 : vector<256xf32> to vector<1x256xf32>
    %34 = vector.broadcast %33 : vector<1x256xf32> to vector<3x256xf32>
    %35 = arith.subf %21, %34 : vector<3x256xf32>
    %36 = math.exp %35 : vector<3x256xf32>
    %cst_18 = arith.constant dense<0.000000e+00> : vector<256xf32>
    %37 = vector.multi_reduction <add>, %36, %cst_18 [0] : vector<3x256xf32> to vector<256xf32>
    %38 = vector.shape_cast %37 : vector<256xf32> to vector<1x256xf32>
    %39 = tpu.reciprocal %38 {approx = true} : vector<1x256xf32> -> vector<1x256xf32>
    %40 = vector.broadcast %39 : vector<1x256xf32> to vector<3x256xf32>
    %41 = arith.mulf %36, %40 : vector<3x256xf32>
    %42 = vector.extract_strided_slice %41 {offsets = [1, 0], sizes = [1, 256], strides = [1, 1]} : vector<3x256xf32> to vector<1x256xf32>
    %43 = vector.extract_strided_slice %41 {offsets = [2, 0], sizes = [1, 256], strides = [1, 1]} : vector<3x256xf32> to vector<1x256xf32>
    %44 = arith.addf %42, %43 : vector<1x256xf32>
    %45 = vector.broadcast %44 : vector<1x256xf32> to vector<16x256xf32>
    %46 = arith.mulf %11, %45 : vector<16x256xf32>
    %c0_19 = arith.constant 0 : index
    %c0_20 = arith.constant 0 : index
    %47 = vector.load %arg19[%c0_19, %c0_20] : memref<32x8xf32, #tpu.memory_space<vmem>>, vector<32x8xf32>
    %c0_21 = arith.constant 0 : index
    %c0_22 = arith.constant 0 : index
    %48 = vector.load %arg20[%c0_21, %c0_22] : memref<32x16xf32, #tpu.memory_space<vmem>>, vector<32x16xf32>
    %c0_23 = arith.constant 0 : index
    %c0_24 = arith.constant 0 : index
    %49 = vector.load %arg21[%c0_23, %c0_24] : memref<16x32xf32, #tpu.memory_space<vmem>>, vector<16x32xf32>
    %cst_25 = arith.constant dense<0.000000e+00> : vector<32x256xf32>
    %50 = tpu.matmul %47, %12, %cst_25 {dimension_numbers = #tpu.dot_dimension_numbers<[1], [0], [0], [1], [0, 0, 1, 1], [], []>} : vector<32x8xf32>, vector<8x256xf32>, vector<32x256xf32> -> vector<32x256xf32>
    %cst_26 = arith.constant dense<0.000000e+00> : vector<32x256xf32>
    %51 = tpu.matmul %48, %46, %cst_26 {dimension_numbers = #tpu.dot_dimension_numbers<[1], [0], [0], [1], [0, 0, 1, 1], [], []>} : vector<32x16xf32>, vector<16x256xf32>, vector<32x256xf32> -> vector<32x256xf32>
    %52 = arith.addf %50, %51 : vector<32x256xf32>
    %cst_27 = arith.constant 0.000000e+00 : f32
    %53 = vector.broadcast %cst_27 : f32 to vector<32x256xf32>
    %54 = arith.maximumf %52, %53 : vector<32x256xf32>
    %cst_28 = arith.constant dense<0.000000e+00> : vector<16x256xf32>
    %55 = tpu.matmul %49, %54, %cst_28 {dimension_numbers = #tpu.dot_dimension_numbers<[1], [0], [0], [1], [0, 0, 1, 1], [], []>} : vector<16x32xf32>, vector<32x256xf32>, vector<16x256xf32> -> vector<16x256xf32>
    %cst_29 = arith.constant 0.000000e+00 : f32
    %56 = vector.broadcast %cst_29 : f32 to vector<16x256xf32>
    %57 = arith.maximumf %55, %56 : vector<16x256xf32>
    %58 = vector.extract_strided_slice %57 {offsets = [0, 0], sizes = [8, 256], strides = [1, 1]} : vector<16x256xf32> to vector<8x256xf32>
    %59 = vector.extract_strided_slice %57 {offsets = [8, 0], sizes = [8, 256], strides = [1, 1]} : vector<16x256xf32> to vector<8x256xf32>
    %60 = arith.addf %58, %59 : vector<8x256xf32>
    %c0_30 = arith.constant 0 : index
    %c0_31 = arith.constant 0 : index
    %61 = vector.load %arg36[%c0_30, %c0_31] : memref<3x16xf32, #tpu.memory_space<vmem>>, vector<3x16xf32>
    %62 = tpu.concatenate %60, %12 in 0 : vector<8x256xf32>, vector<8x256xf32> -> vector<16x256xf32>
    %cst_32 = arith.constant dense<0.000000e+00> : vector<3x256xf32>
    %63 = tpu.matmul %61, %62, %cst_32 {dimension_numbers = #tpu.dot_dimension_numbers<[1], [0], [0], [1], [0, 0, 1, 1], [], []>} : vector<3x16xf32>, vector<16x256xf32>, vector<3x256xf32> -> vector<3x256xf32>
    %c0_33 = arith.constant 0 : index
    %c0_34 = arith.constant 0 : index
    %64 = vector.load %arg37[%c0_33, %c0_34] : memref<3x1xf32, #tpu.memory_space<vmem>>, vector<3x1xf32>
    %65 = vector.broadcast %64 : vector<3x1xf32> to vector<3x256xf32>
    %66 = arith.addf %63, %65 : vector<3x256xf32>
    %cst_35 = arith.constant 0.000000e+00 : f32
    %67 = vector.broadcast %cst_35 : f32 to vector<3x256xf32>
    %68 = arith.subf %67, %66 : vector<3x256xf32>
    %69 = math.exp %68 : vector<3x256xf32>
    %cst_36 = arith.constant 1.000000e+00 : f32
    %70 = vector.broadcast %cst_36 : f32 to vector<3x256xf32>
    %71 = arith.addf %70, %69 : vector<3x256xf32>
    %72 = tpu.reciprocal %71 {approx = true} : vector<3x256xf32> -> vector<3x256xf32>
    %c0_37 = arith.constant 0 : index
    %73 = memref.load %arg42[%c0_37] : memref<17xf32, #tpu.memory_space<smem>>
    %74 = vector.extract_strided_slice %72 {offsets = [1, 0], sizes = [1, 256], strides = [1, 1]} : vector<3x256xf32> to vector<1x256xf32>
    %cst_38 = arith.constant 1.000000e+00 : f32
    %75 = vector.broadcast %cst_38 : f32 to vector<1x256xf32>
    %76 = arith.subf %75, %74 : vector<1x256xf32>
    %77 = vector.broadcast %76 : vector<1x256xf32> to vector<8x256xf32>
    %78 = arith.mulf %12, %77 : vector<8x256xf32>
    %79 = vector.extract_strided_slice %72 {offsets = [0, 0], sizes = [1, 256], strides = [1, 1]} : vector<3x256xf32> to vector<1x256xf32>
    %80 = vector.broadcast %79 : vector<1x256xf32> to vector<8x256xf32>
    %81 = arith.mulf %60, %80 : vector<8x256xf32>
    %82 = vector.broadcast %73 : f32 to vector<8x256xf32>
    %83 = arith.mulf %81, %82 : vector<8x256xf32>
    %84 = arith.addf %78, %83 : vector<8x256xf32>
    %85 = vector.extract_strided_slice %72 {offsets = [2, 0], sizes = [1, 256], strides = [1, 1]} : vector<3x256xf32> to vector<1x256xf32>
    %cst_39 = arith.constant 1.000000e+00 : f32
    %86 = vector.broadcast %cst_39 : f32 to vector<1x256xf32>
    %87 = arith.subf %86, %85 : vector<1x256xf32>
    %88 = vector.broadcast %87 : vector<1x256xf32> to vector<8x256xf32>
    %89 = arith.mulf %88, %12 : vector<8x256xf32>
    %90 = math.tanh %84 : vector<8x256xf32>
    %91 = vector.broadcast %85 : vector<1x256xf32> to vector<8x256xf32>
    %92 = arith.mulf %91, %90 : vector<8x256xf32>
    %93 = arith.addf %89, %92 : vector<8x256xf32>
    %c0_40 = arith.constant 0 : index
    %c0_41 = arith.constant 0 : index
    %94 = vector.load %arg8[%c0_40, %c0_41] : memref<11x24xf32, #tpu.memory_space<vmem>>, vector<11x24xf32>
    %95 = vector.extract_strided_slice %8 {offsets = [56, 0], sizes = [24, 256], strides = [1, 1]} : vector<80x256xf32> to vector<24x256xf32>
    %cst_42 = arith.constant dense<0.000000e+00> : vector<11x256xf32>
    %96 = tpu.matmul %94, %95, %cst_42 {dimension_numbers = #tpu.dot_dimension_numbers<[1], [0], [0], [1], [0, 0, 1, 1], [], []>} : vector<11x24xf32>, vector<24x256xf32>, vector<11x256xf32> -> vector<11x256xf32>
    %c0_43 = arith.constant 0 : index
    %c0_44 = arith.constant 0 : index
    %97 = vector.load %arg9[%c0_43, %c0_44] : memref<11x1xf32, #tpu.memory_space<vmem>>, vector<11x1xf32>
    %98 = vector.broadcast %97 : vector<11x1xf32> to vector<11x256xf32>
    %99 = arith.addf %96, %98 : vector<11x256xf32>
    %100 = vector.extract_strided_slice %99 {offsets = [0, 0], sizes = [5, 256], strides = [1, 1]} : vector<11x256xf32> to vector<5x256xf32>
    %cst_45 = arith.constant dense<0xFF800000> : vector<256xf32>
    %101 = vector.multi_reduction <maximumf>, %100, %cst_45 [0] : vector<5x256xf32> to vector<256xf32>
    %102 = vector.shape_cast %101 : vector<256xf32> to vector<1x256xf32>
    %103 = vector.broadcast %102 : vector<1x256xf32> to vector<5x256xf32>
    %104 = arith.subf %100, %103 : vector<5x256xf32>
    %105 = math.exp %104 : vector<5x256xf32>
    %cst_46 = arith.constant dense<0.000000e+00> : vector<256xf32>
    %106 = vector.multi_reduction <add>, %105, %cst_46 [0] : vector<5x256xf32> to vector<256xf32>
    %107 = vector.shape_cast %106 : vector<256xf32> to vector<1x256xf32>
    %108 = tpu.reciprocal %107 {approx = true} : vector<1x256xf32> -> vector<1x256xf32>
    %109 = vector.broadcast %108 : vector<1x256xf32> to vector<5x256xf32>
    %110 = arith.mulf %105, %109 : vector<5x256xf32>
    %111 = vector.extract_strided_slice %99 {offsets = [5, 0], sizes = [3, 256], strides = [1, 1]} : vector<11x256xf32> to vector<3x256xf32>
    %cst_47 = arith.constant dense<0xFF800000> : vector<256xf32>
    %112 = vector.multi_reduction <maximumf>, %111, %cst_47 [0] : vector<3x256xf32> to vector<256xf32>
    %113 = vector.shape_cast %112 : vector<256xf32> to vector<1x256xf32>
    %114 = vector.broadcast %113 : vector<1x256xf32> to vector<3x256xf32>
    %115 = arith.subf %111, %114 : vector<3x256xf32>
    %116 = math.exp %115 : vector<3x256xf32>
    %cst_48 = arith.constant dense<0.000000e+00> : vector<256xf32>
    %117 = vector.multi_reduction <add>, %116, %cst_48 [0] : vector<3x256xf32> to vector<256xf32>
    %118 = vector.shape_cast %117 : vector<256xf32> to vector<1x256xf32>
    %119 = tpu.reciprocal %118 {approx = true} : vector<1x256xf32> -> vector<1x256xf32>
    %120 = vector.broadcast %119 : vector<1x256xf32> to vector<3x256xf32>
    %121 = arith.mulf %116, %120 : vector<3x256xf32>
    %122 = vector.extract_strided_slice %99 {offsets = [8, 0], sizes = [3, 256], strides = [1, 1]} : vector<11x256xf32> to vector<3x256xf32>
    %cst_49 = arith.constant dense<0xFF800000> : vector<256xf32>
    %123 = vector.multi_reduction <maximumf>, %122, %cst_49 [0] : vector<3x256xf32> to vector<256xf32>
    %124 = vector.shape_cast %123 : vector<256xf32> to vector<1x256xf32>
    %125 = vector.broadcast %124 : vector<1x256xf32> to vector<3x256xf32>
    %126 = arith.subf %122, %125 : vector<3x256xf32>
    %127 = math.exp %126 : vector<3x256xf32>
    %cst_50 = arith.constant dense<0.000000e+00> : vector<256xf32>
    %128 = vector.multi_reduction <add>, %127, %cst_50 [0] : vector<3x256xf32> to vector<256xf32>
    %129 = vector.shape_cast %128 : vector<256xf32> to vector<1x256xf32>
    %130 = tpu.reciprocal %129 {approx = true} : vector<1x256xf32> -> vector<1x256xf32>
    %131 = vector.broadcast %130 : vector<1x256xf32> to vector<3x256xf32>
    %132 = arith.mulf %127, %131 : vector<3x256xf32>
    %c0_51 = arith.constant 0 : index
    %c0_52 = arith.constant 0 : index
    %133 = vector.load %arg10[%c0_51, %c0_52] : memref<32x16xf32, #tpu.memory_space<vmem>>, vector<32x16xf32>
    %c0_53 = arith.constant 0 : index
    %c0_54 = arith.constant 0 : index
    %134 = vector.load %arg11[%c0_53, %c0_54] : memref<32x16xf32, #tpu.memory_space<vmem>>, vector<32x16xf32>
    %c0_55 = arith.constant 0 : index
    %c0_56 = arith.constant 0 : index
    %135 = vector.load %arg12[%c0_55, %c0_56] : memref<16x32xf32, #tpu.memory_space<vmem>>, vector<16x32xf32>
    %136 = vector.extract_strided_slice %132 {offsets = [1, 0], sizes = [1, 256], strides = [1, 1]} : vector<3x256xf32> to vector<1x256xf32>
    %137 = vector.broadcast %136 : vector<1x256xf32> to vector<8x256xf32>
    %138 = arith.mulf %12, %137 : vector<8x256xf32>
    %139 = vector.extract_strided_slice %132 {offsets = [2, 0], sizes = [1, 256], strides = [1, 1]} : vector<3x256xf32> to vector<1x256xf32>
    %140 = vector.broadcast %139 : vector<1x256xf32> to vector<8x256xf32>
    %141 = arith.mulf %12, %140 : vector<8x256xf32>
    %142 = tpu.concatenate %138, %141 in 0 : vector<8x256xf32>, vector<8x256xf32> -> vector<16x256xf32>
    %cst_57 = arith.constant dense<0.000000e+00> : vector<32x256xf32>
    %143 = tpu.matmul %133, %142, %cst_57 {dimension_numbers = #tpu.dot_dimension_numbers<[1], [0], [0], [1], [0, 0, 1, 1], [], []>} : vector<32x16xf32>, vector<16x256xf32>, vector<32x256xf32> -> vector<32x256xf32>
    %cst_58 = arith.constant dense<0.000000e+00> : vector<32x256xf32>
    %144 = tpu.matmul %134, %11, %cst_58 {dimension_numbers = #tpu.dot_dimension_numbers<[1], [0], [0], [1], [0, 0, 1, 1], [], []>} : vector<32x16xf32>, vector<16x256xf32>, vector<32x256xf32> -> vector<32x256xf32>
    %145 = arith.addf %143, %144 : vector<32x256xf32>
    %cst_59 = arith.constant 0.000000e+00 : f32
    %146 = vector.broadcast %cst_59 : f32 to vector<32x256xf32>
    %147 = arith.maximumf %145, %146 : vector<32x256xf32>
    %cst_60 = arith.constant dense<0.000000e+00> : vector<16x256xf32>
    %148 = tpu.matmul %135, %147, %cst_60 {dimension_numbers = #tpu.dot_dimension_numbers<[1], [0], [0], [1], [0, 0, 1, 1], [], []>} : vector<16x32xf32>, vector<32x256xf32>, vector<16x256xf32> -> vector<16x256xf32>
    %cst_61 = arith.constant 0.000000e+00 : f32
    %149 = vector.broadcast %cst_61 : f32 to vector<16x256xf32>
    %150 = arith.maximumf %148, %149 : vector<16x256xf32>
    %151 = vector.extract_strided_slice %31 {offsets = [1, 0], sizes = [4, 256], strides = [1, 1]} : vector<7x256xf32> to vector<4x256xf32>
    %cst_62 = arith.constant dense<0.000000e+00> : vector<256xf32>
    %152 = vector.multi_reduction <add>, %151, %cst_62 [0] : vector<4x256xf32> to vector<256xf32>
    %153 = vector.shape_cast %152 : vector<256xf32> to vector<1x256xf32>
    %154 = vector.extract_strided_slice %31 {offsets = [5, 0], sizes = [2, 256], strides = [1, 1]} : vector<7x256xf32> to vector<2x256xf32>
    %cst_63 = arith.constant dense<0.000000e+00> : vector<256xf32>
    %155 = vector.multi_reduction <add>, %154, %cst_63 [0] : vector<2x256xf32> to vector<256xf32>
    %156 = vector.shape_cast %155 : vector<256xf32> to vector<1x256xf32>
    %157 = vector.extract_strided_slice %10 {offsets = [0, 0], sizes = [32, 256], strides = [1, 1]} : vector<48x256xf32> to vector<32x256xf32>
    %158 = vector.broadcast %153 : vector<1x256xf32> to vector<32x256xf32>
    %159 = arith.mulf %157, %158 : vector<32x256xf32>
    %c0_64 = arith.constant 0 : index
    %c0_65 = arith.constant 0 : index
    %160 = vector.load %arg22[%c0_64, %c0_65] : memref<64x8xf32, #tpu.memory_space<vmem>>, vector<64x8xf32>
    %c0_66 = arith.constant 0 : index
    %c0_67 = arith.constant 0 : index
    %161 = vector.load %arg23[%c0_66, %c0_67] : memref<64x32xf32, #tpu.memory_space<vmem>>, vector<64x32xf32>
    %c0_68 = arith.constant 0 : index
    %c0_69 = arith.constant 0 : index
    %162 = vector.load %arg24[%c0_68, %c0_69] : memref<32x64xf32, #tpu.memory_space<vmem>>, vector<32x64xf32>
    %cst_70 = arith.constant dense<0.000000e+00> : vector<64x256xf32>
    %163 = tpu.matmul %160, %13, %cst_70 {dimension_numbers = #tpu.dot_dimension_numbers<[1], [0], [0], [1], [0, 0, 1, 1], [], []>} : vector<64x8xf32>, vector<8x256xf32>, vector<64x256xf32> -> vector<64x256xf32>
    %cst_71 = arith.constant dense<0.000000e+00> : vector<64x256xf32>
    %164 = tpu.matmul %161, %159, %cst_71 {dimension_numbers = #tpu.dot_dimension_numbers<[1], [0], [0], [1], [0, 0, 1, 1], [], []>} : vector<64x32xf32>, vector<32x256xf32>, vector<64x256xf32> -> vector<64x256xf32>
    %165 = arith.addf %163, %164 : vector<64x256xf32>
    %cst_72 = arith.constant 0.000000e+00 : f32
    %166 = vector.broadcast %cst_72 : f32 to vector<64x256xf32>
    %167 = arith.maximumf %165, %166 : vector<64x256xf32>
    %cst_73 = arith.constant dense<0.000000e+00> : vector<32x256xf32>
    %168 = tpu.matmul %162, %167, %cst_73 {dimension_numbers = #tpu.dot_dimension_numbers<[1], [0], [0], [1], [0, 0, 1, 1], [], []>} : vector<32x64xf32>, vector<64x256xf32>, vector<32x256xf32> -> vector<32x256xf32>
    %cst_74 = arith.constant 0.000000e+00 : f32
    %169 = vector.broadcast %cst_74 : f32 to vector<32x256xf32>
    %170 = arith.maximumf %168, %169 : vector<32x256xf32>
    %171 = vector.extract_strided_slice %170 {offsets = [0, 0], sizes = [8, 256], strides = [1, 1]} : vector<32x256xf32> to vector<8x256xf32>
    %172 = vector.extract_strided_slice %170 {offsets = [8, 0], sizes = [8, 256], strides = [1, 1]} : vector<32x256xf32> to vector<8x256xf32>
    %173 = arith.addf %171, %172 : vector<8x256xf32>
    %174 = vector.extract_strided_slice %170 {offsets = [16, 0], sizes = [8, 256], strides = [1, 1]} : vector<32x256xf32> to vector<8x256xf32>
    %175 = arith.addf %173, %174 : vector<8x256xf32>
    %176 = vector.extract_strided_slice %170 {offsets = [24, 0], sizes = [8, 256], strides = [1, 1]} : vector<32x256xf32> to vector<8x256xf32>
    %177 = arith.addf %175, %176 : vector<8x256xf32>
    %178 = vector.extract_strided_slice %10 {offsets = [32, 0], sizes = [16, 256], strides = [1, 1]} : vector<48x256xf32> to vector<16x256xf32>
    %179 = vector.broadcast %156 : vector<1x256xf32> to vector<16x256xf32>
    %180 = arith.mulf %178, %179 : vector<16x256xf32>
    %c0_75 = arith.constant 0 : index
    %c0_76 = arith.constant 0 : index
    %181 = vector.load %arg25[%c0_75, %c0_76] : memref<32x8xf32, #tpu.memory_space<vmem>>, vector<32x8xf32>
    %c0_77 = arith.constant 0 : index
    %c0_78 = arith.constant 0 : index
    %182 = vector.load %arg26[%c0_77, %c0_78] : memref<32x16xf32, #tpu.memory_space<vmem>>, vector<32x16xf32>
    %c0_79 = arith.constant 0 : index
    %c0_80 = arith.constant 0 : index
    %183 = vector.load %arg27[%c0_79, %c0_80] : memref<16x32xf32, #tpu.memory_space<vmem>>, vector<16x32xf32>
    %cst_81 = arith.constant dense<0.000000e+00> : vector<32x256xf32>
    %184 = tpu.matmul %181, %14, %cst_81 {dimension_numbers = #tpu.dot_dimension_numbers<[1], [0], [0], [1], [0, 0, 1, 1], [], []>} : vector<32x8xf32>, vector<8x256xf32>, vector<32x256xf32> -> vector<32x256xf32>
    %cst_82 = arith.constant dense<0.000000e+00> : vector<32x256xf32>
    %185 = tpu.matmul %182, %180, %cst_82 {dimension_numbers = #tpu.dot_dimension_numbers<[1], [0], [0], [1], [0, 0, 1, 1], [], []>} : vector<32x16xf32>, vector<16x256xf32>, vector<32x256xf32> -> vector<32x256xf32>
    %186 = arith.addf %184, %185 : vector<32x256xf32>
    %cst_83 = arith.constant 0.000000e+00 : f32
    %187 = vector.broadcast %cst_83 : f32 to vector<32x256xf32>
    %188 = arith.maximumf %186, %187 : vector<32x256xf32>
    %cst_84 = arith.constant dense<0.000000e+00> : vector<16x256xf32>
    %189 = tpu.matmul %183, %188, %cst_84 {dimension_numbers = #tpu.dot_dimension_numbers<[1], [0], [0], [1], [0, 0, 1, 1], [], []>} : vector<16x32xf32>, vector<32x256xf32>, vector<16x256xf32> -> vector<16x256xf32>
    %cst_85 = arith.constant 0.000000e+00 : f32
    %190 = vector.broadcast %cst_85 : f32 to vector<16x256xf32>
    %191 = arith.maximumf %189, %190 : vector<16x256xf32>
    %192 = vector.extract_strided_slice %191 {offsets = [0, 0], sizes = [8, 256], strides = [1, 1]} : vector<16x256xf32> to vector<8x256xf32>
    %193 = vector.extract_strided_slice %191 {offsets = [8, 0], sizes = [8, 256], strides = [1, 1]} : vector<16x256xf32> to vector<8x256xf32>
    %194 = arith.addf %192, %193 : vector<8x256xf32>
    %195 = tpu.concatenate %177, %194 in 0 : vector<8x256xf32>, vector<8x256xf32> -> vector<16x256xf32>
    %c0_86 = arith.constant 0 : index
    %c0_87 = arith.constant 0 : index
    %196 = vector.load %arg38[%c0_86, %c0_87] : memref<8x48xf32, #tpu.memory_space<vmem>>, vector<8x48xf32>
    %197 = tpu.concatenate %150, %195, %11 in 0 : vector<16x256xf32>, vector<16x256xf32>, vector<16x256xf32> -> vector<48x256xf32>
    %cst_88 = arith.constant dense<0.000000e+00> : vector<8x256xf32>
    %198 = tpu.matmul %196, %197, %cst_88 {dimension_numbers = #tpu.dot_dimension_numbers<[1], [0], [0], [1], [0, 0, 1, 1], [], []>} : vector<8x48xf32>, vector<48x256xf32>, vector<8x256xf32> -> vector<8x256xf32>
    %c0_89 = arith.constant 0 : index
    %c0_90 = arith.constant 0 : index
    %199 = vector.load %arg39[%c0_89, %c0_90] : memref<8x1xf32, #tpu.memory_space<vmem>>, vector<8x1xf32>
    %200 = vector.broadcast %199 : vector<8x1xf32> to vector<8x256xf32>
    %201 = arith.addf %198, %200 : vector<8x256xf32>
    %cst_91 = arith.constant 0.000000e+00 : f32
    %202 = vector.broadcast %cst_91 : f32 to vector<8x256xf32>
    %203 = arith.subf %202, %201 : vector<8x256xf32>
    %204 = math.exp %203 : vector<8x256xf32>
    %cst_92 = arith.constant 1.000000e+00 : f32
    %205 = vector.broadcast %cst_92 : f32 to vector<8x256xf32>
    %206 = arith.addf %205, %204 : vector<8x256xf32>
    %207 = tpu.reciprocal %206 {approx = true} : vector<8x256xf32> -> vector<8x256xf32>
    %208 = vector.extract_strided_slice %207 {offsets = [0, 0], sizes = [4, 256], strides = [1, 1]} : vector<8x256xf32> to vector<4x256xf32>
    %209 = vector.extract_strided_slice %11 {offsets = [0, 0], sizes = [8, 256], strides = [1, 1]} : vector<16x256xf32> to vector<8x256xf32>
    %210 = vector.extract_strided_slice %150 {offsets = [0, 0], sizes = [8, 256], strides = [1, 1]} : vector<16x256xf32> to vector<8x256xf32>
    %211 = vector.extract_strided_slice %195 {offsets = [0, 0], sizes = [8, 256], strides = [1, 1]} : vector<16x256xf32> to vector<8x256xf32>
    %c1 = arith.constant 1 : index
    %212 = memref.load %arg42[%c1] : memref<17xf32, #tpu.memory_space<smem>>
    %c2 = arith.constant 2 : index
    %213 = memref.load %arg42[%c2] : memref<17xf32, #tpu.memory_space<smem>>
    %214 = vector.extract_strided_slice %208 {offsets = [2, 0], sizes = [1, 256], strides = [1, 1]} : vector<4x256xf32> to vector<1x256xf32>
    %cst_93 = arith.constant 1.000000e+00 : f32
    %215 = vector.broadcast %cst_93 : f32 to vector<1x256xf32>
    %216 = arith.subf %215, %214 : vector<1x256xf32>
    %217 = vector.broadcast %216 : vector<1x256xf32> to vector<8x256xf32>
    %218 = arith.mulf %209, %217 : vector<8x256xf32>
    %219 = vector.extract_strided_slice %208 {offsets = [0, 0], sizes = [1, 256], strides = [1, 1]} : vector<4x256xf32> to vector<1x256xf32>
    %220 = vector.broadcast %219 : vector<1x256xf32> to vector<8x256xf32>
    %221 = arith.mulf %210, %220 : vector<8x256xf32>
    %222 = vector.broadcast %212 : f32 to vector<8x256xf32>
    %223 = arith.mulf %221, %222 : vector<8x256xf32>
    %224 = arith.addf %218, %223 : vector<8x256xf32>
    %225 = vector.extract_strided_slice %208 {offsets = [1, 0], sizes = [1, 256], strides = [1, 1]} : vector<4x256xf32> to vector<1x256xf32>
    %226 = vector.broadcast %225 : vector<1x256xf32> to vector<8x256xf32>
    %227 = arith.mulf %211, %226 : vector<8x256xf32>
    %228 = vector.broadcast %213 : f32 to vector<8x256xf32>
    %229 = arith.mulf %227, %228 : vector<8x256xf32>
    %230 = arith.addf %224, %229 : vector<8x256xf32>
    %231 = vector.extract_strided_slice %208 {offsets = [3, 0], sizes = [1, 256], strides = [1, 1]} : vector<4x256xf32> to vector<1x256xf32>
    %cst_94 = arith.constant 1.000000e+00 : f32
    %232 = vector.broadcast %cst_94 : f32 to vector<1x256xf32>
    %233 = arith.subf %232, %231 : vector<1x256xf32>
    %234 = vector.broadcast %233 : vector<1x256xf32> to vector<8x256xf32>
    %235 = arith.mulf %234, %209 : vector<8x256xf32>
    %236 = math.tanh %230 : vector<8x256xf32>
    %237 = vector.broadcast %231 : vector<1x256xf32> to vector<8x256xf32>
    %238 = arith.mulf %237, %236 : vector<8x256xf32>
    %239 = arith.addf %235, %238 : vector<8x256xf32>
    %240 = vector.extract_strided_slice %207 {offsets = [4, 0], sizes = [4, 256], strides = [1, 1]} : vector<8x256xf32> to vector<4x256xf32>
    %241 = vector.extract_strided_slice %11 {offsets = [8, 0], sizes = [8, 256], strides = [1, 1]} : vector<16x256xf32> to vector<8x256xf32>
    %242 = vector.extract_strided_slice %150 {offsets = [8, 0], sizes = [8, 256], strides = [1, 1]} : vector<16x256xf32> to vector<8x256xf32>
    %243 = vector.extract_strided_slice %195 {offsets = [8, 0], sizes = [8, 256], strides = [1, 1]} : vector<16x256xf32> to vector<8x256xf32>
    %c3 = arith.constant 3 : index
    %244 = memref.load %arg42[%c3] : memref<17xf32, #tpu.memory_space<smem>>
    %c4 = arith.constant 4 : index
    %245 = memref.load %arg42[%c4] : memref<17xf32, #tpu.memory_space<smem>>
    %246 = vector.extract_strided_slice %240 {offsets = [2, 0], sizes = [1, 256], strides = [1, 1]} : vector<4x256xf32> to vector<1x256xf32>
    %cst_95 = arith.constant 1.000000e+00 : f32
    %247 = vector.broadcast %cst_95 : f32 to vector<1x256xf32>
    %248 = arith.subf %247, %246 : vector<1x256xf32>
    %249 = vector.broadcast %248 : vector<1x256xf32> to vector<8x256xf32>
    %250 = arith.mulf %241, %249 : vector<8x256xf32>
    %251 = vector.extract_strided_slice %240 {offsets = [0, 0], sizes = [1, 256], strides = [1, 1]} : vector<4x256xf32> to vector<1x256xf32>
    %252 = vector.broadcast %251 : vector<1x256xf32> to vector<8x256xf32>
    %253 = arith.mulf %242, %252 : vector<8x256xf32>
    %254 = vector.broadcast %244 : f32 to vector<8x256xf32>
    %255 = arith.mulf %253, %254 : vector<8x256xf32>
    %256 = arith.addf %250, %255 : vector<8x256xf32>
    %257 = vector.extract_strided_slice %240 {offsets = [1, 0], sizes = [1, 256], strides = [1, 1]} : vector<4x256xf32> to vector<1x256xf32>
    %258 = vector.broadcast %257 : vector<1x256xf32> to vector<8x256xf32>
    %259 = arith.mulf %243, %258 : vector<8x256xf32>
    %260 = vector.broadcast %245 : f32 to vector<8x256xf32>
    %261 = arith.mulf %259, %260 : vector<8x256xf32>
    %262 = arith.addf %256, %261 : vector<8x256xf32>
    %263 = vector.extract_strided_slice %240 {offsets = [3, 0], sizes = [1, 256], strides = [1, 1]} : vector<4x256xf32> to vector<1x256xf32>
    %cst_96 = arith.constant 1.000000e+00 : f32
    %264 = vector.broadcast %cst_96 : f32 to vector<1x256xf32>
    %265 = arith.subf %264, %263 : vector<1x256xf32>
    %266 = vector.broadcast %265 : vector<1x256xf32> to vector<8x256xf32>
    %267 = arith.mulf %266, %241 : vector<8x256xf32>
    %268 = math.tanh %262 : vector<8x256xf32>
    %269 = vector.broadcast %263 : vector<1x256xf32> to vector<8x256xf32>
    %270 = arith.mulf %269, %268 : vector<8x256xf32>
    %271 = arith.addf %267, %270 : vector<8x256xf32>
    %272 = tpu.concatenate %239, %271 in 0 : vector<8x256xf32>, vector<8x256xf32> -> vector<16x256xf32>
    %273 = vector.extract_strided_slice %10 {offsets = [0, 0], sizes = [32, 256], strides = [1, 1]} : vector<48x256xf32> to vector<32x256xf32>
    %c0_97 = arith.constant 0 : index
    %c0_98 = arith.constant 0 : index
    %274 = vector.load %arg13[%c0_97, %c0_98] : memref<64x32xf32, #tpu.memory_space<vmem>>, vector<64x32xf32>
    %c0_99 = arith.constant 0 : index
    %c0_100 = arith.constant 0 : index
    %275 = vector.load %arg14[%c0_99, %c0_100] : memref<64x32xf32, #tpu.memory_space<vmem>>, vector<64x32xf32>
    %c0_101 = arith.constant 0 : index
    %c0_102 = arith.constant 0 : index
    %276 = vector.load %arg15[%c0_101, %c0_102] : memref<32x64xf32, #tpu.memory_space<vmem>>, vector<32x64xf32>
    %277 = vector.extract_strided_slice %110 {offsets = [1, 0], sizes = [1, 256], strides = [1, 1]} : vector<5x256xf32> to vector<1x256xf32>
    %278 = vector.broadcast %277 : vector<1x256xf32> to vector<8x256xf32>
    %279 = arith.mulf %13, %278 : vector<8x256xf32>
    %280 = vector.extract_strided_slice %110 {offsets = [2, 0], sizes = [1, 256], strides = [1, 1]} : vector<5x256xf32> to vector<1x256xf32>
    %281 = vector.broadcast %280 : vector<1x256xf32> to vector<8x256xf32>
    %282 = arith.mulf %13, %281 : vector<8x256xf32>
    %283 = vector.extract_strided_slice %110 {offsets = [3, 0], sizes = [1, 256], strides = [1, 1]} : vector<5x256xf32> to vector<1x256xf32>
    %284 = vector.broadcast %283 : vector<1x256xf32> to vector<8x256xf32>
    %285 = arith.mulf %13, %284 : vector<8x256xf32>
    %286 = vector.extract_strided_slice %110 {offsets = [4, 0], sizes = [1, 256], strides = [1, 1]} : vector<5x256xf32> to vector<1x256xf32>
    %287 = vector.broadcast %286 : vector<1x256xf32> to vector<8x256xf32>
    %288 = arith.mulf %13, %287 : vector<8x256xf32>
    %289 = tpu.concatenate %279, %282, %285, %288 in 0 : vector<8x256xf32>, vector<8x256xf32>, vector<8x256xf32>, vector<8x256xf32> -> vector<32x256xf32>
    %cst_103 = arith.constant dense<0.000000e+00> : vector<64x256xf32>
    %290 = tpu.matmul %274, %289, %cst_103 {dimension_numbers = #tpu.dot_dimension_numbers<[1], [0], [0], [1], [0, 0, 1, 1], [], []>} : vector<64x32xf32>, vector<32x256xf32>, vector<64x256xf32> -> vector<64x256xf32>
    %cst_104 = arith.constant dense<0.000000e+00> : vector<64x256xf32>
    %291 = tpu.matmul %275, %273, %cst_104 {dimension_numbers = #tpu.dot_dimension_numbers<[1], [0], [0], [1], [0, 0, 1, 1], [], []>} : vector<64x32xf32>, vector<32x256xf32>, vector<64x256xf32> -> vector<64x256xf32>
    %292 = arith.addf %290, %291 : vector<64x256xf32>
    %cst_105 = arith.constant 0.000000e+00 : f32
    %293 = vector.broadcast %cst_105 : f32 to vector<64x256xf32>
    %294 = arith.maximumf %292, %293 : vector<64x256xf32>
    %cst_106 = arith.constant dense<0.000000e+00> : vector<32x256xf32>
    %295 = tpu.matmul %276, %294, %cst_106 {dimension_numbers = #tpu.dot_dimension_numbers<[1], [0], [0], [1], [0, 0, 1, 1], [], []>} : vector<32x64xf32>, vector<64x256xf32>, vector<32x256xf32> -> vector<32x256xf32>
    %cst_107 = arith.constant 0.000000e+00 : f32
    %296 = vector.broadcast %cst_107 : f32 to vector<32x256xf32>
    %297 = arith.maximumf %295, %296 : vector<32x256xf32>
    %298 = vector.extract_strided_slice %10 {offsets = [32, 0], sizes = [16, 256], strides = [1, 1]} : vector<48x256xf32> to vector<16x256xf32>
    %c0_108 = arith.constant 0 : index
    %c0_109 = arith.constant 0 : index
    %299 = vector.load %arg16[%c0_108, %c0_109] : memref<32x16xf32, #tpu.memory_space<vmem>>, vector<32x16xf32>
    %c0_110 = arith.constant 0 : index
    %c0_111 = arith.constant 0 : index
    %300 = vector.load %arg17[%c0_110, %c0_111] : memref<32x16xf32, #tpu.memory_space<vmem>>, vector<32x16xf32>
    %c0_112 = arith.constant 0 : index
    %c0_113 = arith.constant 0 : index
    %301 = vector.load %arg18[%c0_112, %c0_113] : memref<16x32xf32, #tpu.memory_space<vmem>>, vector<16x32xf32>
    %302 = vector.extract_strided_slice %121 {offsets = [1, 0], sizes = [1, 256], strides = [1, 1]} : vector<3x256xf32> to vector<1x256xf32>
    %303 = vector.broadcast %302 : vector<1x256xf32> to vector<8x256xf32>
    %304 = arith.mulf %14, %303 : vector<8x256xf32>
    %305 = vector.extract_strided_slice %121 {offsets = [2, 0], sizes = [1, 256], strides = [1, 1]} : vector<3x256xf32> to vector<1x256xf32>
    %306 = vector.broadcast %305 : vector<1x256xf32> to vector<8x256xf32>
    %307 = arith.mulf %14, %306 : vector<8x256xf32>
    %308 = tpu.concatenate %304, %307 in 0 : vector<8x256xf32>, vector<8x256xf32> -> vector<16x256xf32>
    %cst_114 = arith.constant dense<0.000000e+00> : vector<32x256xf32>
    %309 = tpu.matmul %299, %308, %cst_114 {dimension_numbers = #tpu.dot_dimension_numbers<[1], [0], [0], [1], [0, 0, 1, 1], [], []>} : vector<32x16xf32>, vector<16x256xf32>, vector<32x256xf32> -> vector<32x256xf32>
    %cst_115 = arith.constant dense<0.000000e+00> : vector<32x256xf32>
    %310 = tpu.matmul %300, %298, %cst_115 {dimension_numbers = #tpu.dot_dimension_numbers<[1], [0], [0], [1], [0, 0, 1, 1], [], []>} : vector<32x16xf32>, vector<16x256xf32>, vector<32x256xf32> -> vector<32x256xf32>
    %311 = arith.addf %309, %310 : vector<32x256xf32>
    %cst_116 = arith.constant 0.000000e+00 : f32
    %312 = vector.broadcast %cst_116 : f32 to vector<32x256xf32>
    %313 = arith.maximumf %311, %312 : vector<32x256xf32>
    %cst_117 = arith.constant dense<0.000000e+00> : vector<16x256xf32>
    %314 = tpu.matmul %301, %313, %cst_117 {dimension_numbers = #tpu.dot_dimension_numbers<[1], [0], [0], [1], [0, 0, 1, 1], [], []>} : vector<16x32xf32>, vector<32x256xf32>, vector<16x256xf32> -> vector<16x256xf32>
    %cst_118 = arith.constant 0.000000e+00 : f32
    %315 = vector.broadcast %cst_118 : f32 to vector<16x256xf32>
    %316 = arith.maximumf %314, %315 : vector<16x256xf32>
    %317 = tpu.concatenate %297, %316 in 0 : vector<32x256xf32>, vector<16x256xf32> -> vector<48x256xf32>
    %318 = tpu.concatenate %10, %0, %3 in 0 : vector<48x256xf32>, vector<32x256xf32>, vector<8x256xf32> -> vector<88x256xf32>
    %c0_119 = arith.constant 0 : index
    %c0_120 = arith.constant 0 : index
    %319 = vector.load %arg28[%c0_119, %c0_120] : memref<64x88xf32, #tpu.memory_space<vmem>>, vector<64x88xf32>
    %cst_121 = arith.constant dense<0.000000e+00> : vector<64x256xf32>
    %320 = tpu.matmul %319, %318, %cst_121 {dimension_numbers = #tpu.dot_dimension_numbers<[1], [0], [0], [1], [0, 0, 1, 1], [], []>} : vector<64x88xf32>, vector<88x256xf32>, vector<64x256xf32> -> vector<64x256xf32>
    %cst_122 = arith.constant 0.000000e+00 : f32
    %321 = vector.broadcast %cst_122 : f32 to vector<64x256xf32>
    %322 = arith.maximumf %320, %321 : vector<64x256xf32>
    %323 = vector.extract_strided_slice %322 {offsets = [0, 0], sizes = [32, 256], strides = [1, 1]} : vector<64x256xf32> to vector<32x256xf32>
    %324 = vector.extract_strided_slice %322 {offsets = [32, 0], sizes = [32, 256], strides = [1, 1]} : vector<64x256xf32> to vector<32x256xf32>
    %cst_123 = arith.constant dense<0.000000e+00> : vector<256x256xf32>
    %325 = tpu.matmul %323, %324, %cst_123 {dimension_numbers = #tpu.dot_dimension_numbers<[0], [0], [1], [1], [0, 1, 1, 1], [], []>} : vector<32x256xf32>, vector<32x256xf32>, vector<256x256xf32> -> vector<256x256xf32>
    %cst_124 = arith.constant dense<0xFF800000> : vector<256xf32>
    %326 = vector.multi_reduction <maximumf>, %325, %cst_124 [0] : vector<256x256xf32> to vector<256xf32>
    %327 = vector.shape_cast %326 : vector<256xf32> to vector<1x256xf32>
    %328 = vector.broadcast %327 : vector<1x256xf32> to vector<256x256xf32>
    %329 = arith.subf %325, %328 : vector<256x256xf32>
    %330 = math.exp %329 : vector<256x256xf32>
    %cst_125 = arith.constant dense<0.000000e+00> : vector<256xf32>
    %331 = vector.multi_reduction <add>, %330, %cst_125 [0] : vector<256x256xf32> to vector<256xf32>
    %332 = vector.shape_cast %331 : vector<256xf32> to vector<1x256xf32>
    %cst_126 = arith.constant dense<0.000000e+00> : vector<32x256xf32>
    %333 = tpu.matmul %0, %330, %cst_126 {dimension_numbers = #tpu.dot_dimension_numbers<[1], [0], [0], [1], [0, 0, 1, 1], [], []>} : vector<32x256xf32>, vector<256x256xf32>, vector<32x256xf32> -> vector<32x256xf32>
    %334 = tpu.reciprocal %332 {approx = true} : vector<1x256xf32> -> vector<1x256xf32>
    %335 = vector.broadcast %334 : vector<1x256xf32> to vector<32x256xf32>
    %336 = arith.mulf %333, %335 : vector<32x256xf32>
    %c0_127 = arith.constant 0 : index
    %c0_128 = arith.constant 0 : index
    %337 = vector.load %arg29[%c0_127, %c0_128] : memref<8x32xf32, #tpu.memory_space<vmem>>, vector<8x32xf32>
    %cst_129 = arith.constant dense<0.000000e+00> : vector<8x256xf32>
    %338 = tpu.matmul %337, %336, %cst_129 {dimension_numbers = #tpu.dot_dimension_numbers<[1], [0], [0], [1], [0, 0, 1, 1], [], []>} : vector<8x32xf32>, vector<32x256xf32>, vector<8x256xf32> -> vector<8x256xf32>
    %cst_130 = arith.constant 0.000000e+00 : f32
    %339 = vector.broadcast %cst_130 : f32 to vector<8x256xf32>
    %340 = arith.maximumf %338, %339 : vector<8x256xf32>
    %c0_131 = arith.constant 0 : index
    %c0_132 = arith.constant 0 : index
    %341 = vector.load %arg30[%c0_131, %c0_132] : memref<22x8xf32, #tpu.memory_space<vmem>>, vector<22x8xf32>
    %cst_133 = arith.constant dense<0.000000e+00> : vector<22x256xf32>
    %342 = tpu.matmul %341, %340, %cst_133 {dimension_numbers = #tpu.dot_dimension_numbers<[1], [0], [0], [1], [0, 0, 1, 1], [], []>} : vector<22x8xf32>, vector<8x256xf32>, vector<22x256xf32> -> vector<22x256xf32>
    %c0_134 = arith.constant 0 : index
    %c0_135 = arith.constant 0 : index
    %343 = vector.load %arg31[%c0_134, %c0_135] : memref<22x1xf32, #tpu.memory_space<vmem>>, vector<22x1xf32>
    %344 = vector.broadcast %343 : vector<22x1xf32> to vector<22x256xf32>
    %345 = arith.addf %342, %344 : vector<22x256xf32>
    %346 = vector.extract_strided_slice %345 {offsets = [0, 0], sizes = [3, 256], strides = [1, 1]} : vector<22x256xf32> to vector<3x256xf32>
    %cst_136 = arith.constant dense<0xFF800000> : vector<256xf32>
    %347 = vector.multi_reduction <maximumf>, %346, %cst_136 [0] : vector<3x256xf32> to vector<256xf32>
    %348 = vector.shape_cast %347 : vector<256xf32> to vector<1x256xf32>
    %349 = vector.broadcast %348 : vector<1x256xf32> to vector<3x256xf32>
    %350 = arith.subf %346, %349 : vector<3x256xf32>
    %351 = math.exp %350 : vector<3x256xf32>
    %cst_137 = arith.constant dense<0.000000e+00> : vector<256xf32>
    %352 = vector.multi_reduction <add>, %351, %cst_137 [0] : vector<3x256xf32> to vector<256xf32>
    %353 = vector.shape_cast %352 : vector<256xf32> to vector<1x256xf32>
    %354 = tpu.reciprocal %353 {approx = true} : vector<1x256xf32> -> vector<1x256xf32>
    %355 = vector.broadcast %354 : vector<1x256xf32> to vector<3x256xf32>
    %356 = arith.mulf %351, %355 : vector<3x256xf32>
    %357 = vector.extract_strided_slice %345 {offsets = [3, 0], sizes = [4, 256], strides = [1, 1]} : vector<22x256xf32> to vector<4x256xf32>
    %cst_138 = arith.constant dense<0xFF800000> : vector<256xf32>
    %358 = vector.multi_reduction <maximumf>, %357, %cst_138 [0] : vector<4x256xf32> to vector<256xf32>
    %359 = vector.shape_cast %358 : vector<256xf32> to vector<1x256xf32>
    %360 = vector.broadcast %359 : vector<1x256xf32> to vector<4x256xf32>
    %361 = arith.subf %357, %360 : vector<4x256xf32>
    %362 = math.exp %361 : vector<4x256xf32>
    %cst_139 = arith.constant dense<0.000000e+00> : vector<256xf32>
    %363 = vector.multi_reduction <add>, %362, %cst_139 [0] : vector<4x256xf32> to vector<256xf32>
    %364 = vector.shape_cast %363 : vector<256xf32> to vector<1x256xf32>
    %365 = tpu.reciprocal %364 {approx = true} : vector<1x256xf32> -> vector<1x256xf32>
    %366 = vector.broadcast %365 : vector<1x256xf32> to vector<4x256xf32>
    %367 = arith.mulf %362, %366 : vector<4x256xf32>
    %368 = vector.extract_strided_slice %345 {offsets = [7, 0], sizes = [4, 256], strides = [1, 1]} : vector<22x256xf32> to vector<4x256xf32>
    %cst_140 = arith.constant dense<0xFF800000> : vector<256xf32>
    %369 = vector.multi_reduction <maximumf>, %368, %cst_140 [0] : vector<4x256xf32> to vector<256xf32>
    %370 = vector.shape_cast %369 : vector<256xf32> to vector<1x256xf32>
    %371 = vector.broadcast %370 : vector<1x256xf32> to vector<4x256xf32>
    %372 = arith.subf %368, %371 : vector<4x256xf32>
    %373 = math.exp %372 : vector<4x256xf32>
    %cst_141 = arith.constant dense<0.000000e+00> : vector<256xf32>
    %374 = vector.multi_reduction <add>, %373, %cst_141 [0] : vector<4x256xf32> to vector<256xf32>
    %375 = vector.shape_cast %374 : vector<256xf32> to vector<1x256xf32>
    %376 = tpu.reciprocal %375 {approx = true} : vector<1x256xf32> -> vector<1x256xf32>
    %377 = vector.broadcast %376 : vector<1x256xf32> to vector<4x256xf32>
    %378 = arith.mulf %373, %377 : vector<4x256xf32>
    %379 = vector.extract_strided_slice %345 {offsets = [11, 0], sizes = [4, 256], strides = [1, 1]} : vector<22x256xf32> to vector<4x256xf32>
    %cst_142 = arith.constant dense<0xFF800000> : vector<256xf32>
    %380 = vector.multi_reduction <maximumf>, %379, %cst_142 [0] : vector<4x256xf32> to vector<256xf32>
    %381 = vector.shape_cast %380 : vector<256xf32> to vector<1x256xf32>
    %382 = vector.broadcast %381 : vector<1x256xf32> to vector<4x256xf32>
    %383 = arith.subf %379, %382 : vector<4x256xf32>
    %384 = math.exp %383 : vector<4x256xf32>
    %cst_143 = arith.constant dense<0.000000e+00> : vector<256xf32>
    %385 = vector.multi_reduction <add>, %384, %cst_143 [0] : vector<4x256xf32> to vector<256xf32>
    %386 = vector.shape_cast %385 : vector<256xf32> to vector<1x256xf32>
    %387 = tpu.reciprocal %386 {approx = true} : vector<1x256xf32> -> vector<1x256xf32>
    %388 = vector.broadcast %387 : vector<1x256xf32> to vector<4x256xf32>
    %389 = arith.mulf %384, %388 : vector<4x256xf32>
    %390 = vector.extract_strided_slice %345 {offsets = [15, 0], sizes = [4, 256], strides = [1, 1]} : vector<22x256xf32> to vector<4x256xf32>
    %cst_144 = arith.constant dense<0xFF800000> : vector<256xf32>
    %391 = vector.multi_reduction <maximumf>, %390, %cst_144 [0] : vector<4x256xf32> to vector<256xf32>
    %392 = vector.shape_cast %391 : vector<256xf32> to vector<1x256xf32>
    %393 = vector.broadcast %392 : vector<1x256xf32> to vector<4x256xf32>
    %394 = arith.subf %390, %393 : vector<4x256xf32>
    %395 = math.exp %394 : vector<4x256xf32>
    %cst_145 = arith.constant dense<0.000000e+00> : vector<256xf32>
    %396 = vector.multi_reduction <add>, %395, %cst_145 [0] : vector<4x256xf32> to vector<256xf32>
    %397 = vector.shape_cast %396 : vector<256xf32> to vector<1x256xf32>
    %398 = tpu.reciprocal %397 {approx = true} : vector<1x256xf32> -> vector<1x256xf32>
    %399 = vector.broadcast %398 : vector<1x256xf32> to vector<4x256xf32>
    %400 = arith.mulf %395, %399 : vector<4x256xf32>
    %401 = vector.extract_strided_slice %345 {offsets = [19, 0], sizes = [3, 256], strides = [1, 1]} : vector<22x256xf32> to vector<3x256xf32>
    %cst_146 = arith.constant dense<0xFF800000> : vector<256xf32>
    %402 = vector.multi_reduction <maximumf>, %401, %cst_146 [0] : vector<3x256xf32> to vector<256xf32>
    %403 = vector.shape_cast %402 : vector<256xf32> to vector<1x256xf32>
    %404 = vector.broadcast %403 : vector<1x256xf32> to vector<3x256xf32>
    %405 = arith.subf %401, %404 : vector<3x256xf32>
    %406 = math.exp %405 : vector<3x256xf32>
    %cst_147 = arith.constant dense<0.000000e+00> : vector<256xf32>
    %407 = vector.multi_reduction <add>, %406, %cst_147 [0] : vector<3x256xf32> to vector<256xf32>
    %408 = vector.shape_cast %407 : vector<256xf32> to vector<1x256xf32>
    %409 = tpu.reciprocal %408 {approx = true} : vector<1x256xf32> -> vector<1x256xf32>
    %410 = vector.broadcast %409 : vector<1x256xf32> to vector<3x256xf32>
    %411 = arith.mulf %406, %410 : vector<3x256xf32>
    %412 = vector.extract_strided_slice %356 {offsets = [2, 0], sizes = [1, 256], strides = [1, 1]} : vector<3x256xf32> to vector<1x256xf32>
    %413 = vector.broadcast %412 : vector<1x256xf32> to vector<8x256xf32>
    %414 = arith.mulf %340, %413 : vector<8x256xf32>
    %415 = vector.extract_strided_slice %367 {offsets = [2, 0], sizes = [1, 256], strides = [1, 1]} : vector<4x256xf32> to vector<1x256xf32>
    %416 = vector.broadcast %415 : vector<1x256xf32> to vector<8x256xf32>
    %417 = arith.mulf %340, %416 : vector<8x256xf32>
    %418 = vector.extract_strided_slice %367 {offsets = [3, 0], sizes = [1, 256], strides = [1, 1]} : vector<4x256xf32> to vector<1x256xf32>
    %419 = vector.broadcast %418 : vector<1x256xf32> to vector<8x256xf32>
    %420 = arith.mulf %340, %419 : vector<8x256xf32>
    %421 = vector.extract_strided_slice %378 {offsets = [2, 0], sizes = [1, 256], strides = [1, 1]} : vector<4x256xf32> to vector<1x256xf32>
    %422 = vector.broadcast %421 : vector<1x256xf32> to vector<8x256xf32>
    %423 = arith.mulf %340, %422 : vector<8x256xf32>
    %424 = vector.extract_strided_slice %378 {offsets = [3, 0], sizes = [1, 256], strides = [1, 1]} : vector<4x256xf32> to vector<1x256xf32>
    %425 = vector.broadcast %424 : vector<1x256xf32> to vector<8x256xf32>
    %426 = arith.mulf %340, %425 : vector<8x256xf32>
    %427 = vector.extract_strided_slice %389 {offsets = [2, 0], sizes = [1, 256], strides = [1, 1]} : vector<4x256xf32> to vector<1x256xf32>
    %428 = vector.broadcast %427 : vector<1x256xf32> to vector<8x256xf32>
    %429 = arith.mulf %340, %428 : vector<8x256xf32>
    %430 = vector.extract_strided_slice %389 {offsets = [3, 0], sizes = [1, 256], strides = [1, 1]} : vector<4x256xf32> to vector<1x256xf32>
    %431 = vector.broadcast %430 : vector<1x256xf32> to vector<8x256xf32>
    %432 = arith.mulf %340, %431 : vector<8x256xf32>
    %433 = vector.extract_strided_slice %400 {offsets = [2, 0], sizes = [1, 256], strides = [1, 1]} : vector<4x256xf32> to vector<1x256xf32>
    %434 = vector.broadcast %433 : vector<1x256xf32> to vector<8x256xf32>
    %435 = arith.mulf %340, %434 : vector<8x256xf32>
    %436 = vector.extract_strided_slice %400 {offsets = [3, 0], sizes = [1, 256], strides = [1, 1]} : vector<4x256xf32> to vector<1x256xf32>
    %437 = vector.broadcast %436 : vector<1x256xf32> to vector<8x256xf32>
    %438 = arith.mulf %340, %437 : vector<8x256xf32>
    %439 = vector.extract_strided_slice %411 {offsets = [2, 0], sizes = [1, 256], strides = [1, 1]} : vector<3x256xf32> to vector<1x256xf32>
    %440 = vector.broadcast %439 : vector<1x256xf32> to vector<8x256xf32>
    %441 = arith.mulf %340, %440 : vector<8x256xf32>
    %442 = tpu.concatenate %414, %417, %420, %423, %426, %429, %432, %435, %438, %441 in 0 : vector<8x256xf32>, vector<8x256xf32>, vector<8x256xf32>, vector<8x256xf32>, vector<8x256xf32>, vector<8x256xf32>, vector<8x256xf32>, vector<8x256xf32>, vector<8x256xf32>, vector<8x256xf32> -> vector<80x256xf32>
    %c0_148 = arith.constant 0 : index
    %c0_149 = arith.constant 0 : index
    %443 = vector.load %arg32[%c0_148, %c0_149] : memref<160x80xf32, #tpu.memory_space<vmem>>, vector<160x80xf32>
    %cst_150 = arith.constant dense<0.000000e+00> : vector<160x256xf32>
    %444 = tpu.matmul %443, %442, %cst_150 {dimension_numbers = #tpu.dot_dimension_numbers<[1], [0], [0], [1], [0, 0, 1, 1], [], []>} : vector<160x80xf32>, vector<80x256xf32>, vector<160x256xf32> -> vector<160x256xf32>
    %c0_151 = arith.constant 0 : index
    %c0_152 = arith.constant 0 : index
    %445 = vector.load %arg33[%c0_151, %c0_152] : memref<160x48xf32, #tpu.memory_space<vmem>>, vector<160x48xf32>
    %cst_153 = arith.constant dense<0.000000e+00> : vector<160x256xf32>
    %446 = tpu.matmul %445, %10, %cst_153 {dimension_numbers = #tpu.dot_dimension_numbers<[1], [0], [0], [1], [0, 0, 1, 1], [], []>} : vector<160x48xf32>, vector<48x256xf32>, vector<160x256xf32> -> vector<160x256xf32>
    %447 = arith.addf %444, %446 : vector<160x256xf32>
    %cst_154 = arith.constant 0.000000e+00 : f32
    %448 = vector.broadcast %cst_154 : f32 to vector<160x256xf32>
    %449 = arith.maximumf %447, %448 : vector<160x256xf32>
    %c0_155 = arith.constant 0 : index
    %c0_156 = arith.constant 0 : index
    %450 = vector.load %arg34[%c0_155, %c0_156] : memref<80x160xf32, #tpu.memory_space<vmem>>, vector<80x160xf32>
    %cst_157 = arith.constant dense<0.000000e+00> : vector<80x256xf32>
    %451 = tpu.matmul %450, %449, %cst_157 {dimension_numbers = #tpu.dot_dimension_numbers<[1], [0], [0], [1], [0, 0, 1, 1], [], []>} : vector<80x160xf32>, vector<160x256xf32>, vector<80x256xf32> -> vector<80x256xf32>
    %cst_158 = arith.constant 0.000000e+00 : f32
    %452 = vector.broadcast %cst_158 : f32 to vector<80x256xf32>
    %453 = arith.maximumf %451, %452 : vector<80x256xf32>
    %c0_159 = arith.constant 0 : index
    %c0_160 = arith.constant 0 : index
    %454 = vector.load %arg35[%c0_159, %c0_160] : memref<48x80xf32, #tpu.memory_space<vmem>>, vector<48x80xf32>
    %cst_161 = arith.constant dense<0.000000e+00> : vector<48x256xf32>
    %455 = tpu.matmul %454, %453, %cst_161 {dimension_numbers = #tpu.dot_dimension_numbers<[1], [0], [0], [1], [0, 0, 1, 1], [], []>} : vector<48x80xf32>, vector<80x256xf32>, vector<48x256xf32> -> vector<48x256xf32>
    %c0_162 = arith.constant 0 : index
    %c0_163 = arith.constant 0 : index
    %456 = vector.load %arg40[%c0_162, %c0_163] : memref<24x144xf32, #tpu.memory_space<vmem>>, vector<24x144xf32>
    %457 = tpu.concatenate %317, %455, %10 in 0 : vector<48x256xf32>, vector<48x256xf32>, vector<48x256xf32> -> vector<144x256xf32>
    %cst_164 = arith.constant dense<0.000000e+00> : vector<24x256xf32>
    %458 = tpu.matmul %456, %457, %cst_164 {dimension_numbers = #tpu.dot_dimension_numbers<[1], [0], [0], [1], [0, 0, 1, 1], [], []>} : vector<24x144xf32>, vector<144x256xf32>, vector<24x256xf32> -> vector<24x256xf32>
    %c0_165 = arith.constant 0 : index
    %c0_166 = arith.constant 0 : index
    %459 = vector.load %arg41[%c0_165, %c0_166] : memref<24x1xf32, #tpu.memory_space<vmem>>, vector<24x1xf32>
    %460 = vector.broadcast %459 : vector<24x1xf32> to vector<24x256xf32>
    %461 = arith.addf %458, %460 : vector<24x256xf32>
    %cst_167 = arith.constant 0.000000e+00 : f32
    %462 = vector.broadcast %cst_167 : f32 to vector<24x256xf32>
    %463 = arith.subf %462, %461 : vector<24x256xf32>
    %464 = math.exp %463 : vector<24x256xf32>
    %cst_168 = arith.constant 1.000000e+00 : f32
    %465 = vector.broadcast %cst_168 : f32 to vector<24x256xf32>
    %466 = arith.addf %465, %464 : vector<24x256xf32>
    %467 = tpu.reciprocal %466 {approx = true} : vector<24x256xf32> -> vector<24x256xf32>
    %468 = vector.extract_strided_slice %467 {offsets = [0, 0], sizes = [4, 256], strides = [1, 1]} : vector<24x256xf32> to vector<4x256xf32>
    %469 = vector.extract_strided_slice %10 {offsets = [0, 0], sizes = [8, 256], strides = [1, 1]} : vector<48x256xf32> to vector<8x256xf32>
    %470 = vector.extract_strided_slice %317 {offsets = [0, 0], sizes = [8, 256], strides = [1, 1]} : vector<48x256xf32> to vector<8x256xf32>
    %471 = vector.extract_strided_slice %455 {offsets = [0, 0], sizes = [8, 256], strides = [1, 1]} : vector<48x256xf32> to vector<8x256xf32>
    %c5 = arith.constant 5 : index
    %472 = memref.load %arg42[%c5] : memref<17xf32, #tpu.memory_space<smem>>
    %c6 = arith.constant 6 : index
    %473 = memref.load %arg42[%c6] : memref<17xf32, #tpu.memory_space<smem>>
    %474 = vector.extract_strided_slice %468 {offsets = [2, 0], sizes = [1, 256], strides = [1, 1]} : vector<4x256xf32> to vector<1x256xf32>
    %cst_169 = arith.constant 1.000000e+00 : f32
    %475 = vector.broadcast %cst_169 : f32 to vector<1x256xf32>
    %476 = arith.subf %475, %474 : vector<1x256xf32>
    %477 = vector.broadcast %476 : vector<1x256xf32> to vector<8x256xf32>
    %478 = arith.mulf %469, %477 : vector<8x256xf32>
    %479 = vector.extract_strided_slice %468 {offsets = [0, 0], sizes = [1, 256], strides = [1, 1]} : vector<4x256xf32> to vector<1x256xf32>
    %480 = vector.broadcast %479 : vector<1x256xf32> to vector<8x256xf32>
    %481 = arith.mulf %470, %480 : vector<8x256xf32>
    %482 = vector.broadcast %472 : f32 to vector<8x256xf32>
    %483 = arith.mulf %481, %482 : vector<8x256xf32>
    %484 = arith.addf %478, %483 : vector<8x256xf32>
    %485 = vector.extract_strided_slice %468 {offsets = [1, 0], sizes = [1, 256], strides = [1, 1]} : vector<4x256xf32> to vector<1x256xf32>
    %486 = vector.broadcast %485 : vector<1x256xf32> to vector<8x256xf32>
    %487 = arith.mulf %471, %486 : vector<8x256xf32>
    %488 = vector.broadcast %473 : f32 to vector<8x256xf32>
    %489 = arith.mulf %487, %488 : vector<8x256xf32>
    %490 = arith.addf %484, %489 : vector<8x256xf32>
    %491 = vector.extract_strided_slice %468 {offsets = [3, 0], sizes = [1, 256], strides = [1, 1]} : vector<4x256xf32> to vector<1x256xf32>
    %cst_170 = arith.constant 1.000000e+00 : f32
    %492 = vector.broadcast %cst_170 : f32 to vector<1x256xf32>
    %493 = arith.subf %492, %491 : vector<1x256xf32>
    %494 = vector.broadcast %493 : vector<1x256xf32> to vector<8x256xf32>
    %495 = arith.mulf %494, %469 : vector<8x256xf32>
    %496 = math.tanh %490 : vector<8x256xf32>
    %497 = vector.broadcast %491 : vector<1x256xf32> to vector<8x256xf32>
    %498 = arith.mulf %497, %496 : vector<8x256xf32>
    %499 = arith.addf %495, %498 : vector<8x256xf32>
    %500 = vector.extract_strided_slice %467 {offsets = [4, 0], sizes = [4, 256], strides = [1, 1]} : vector<24x256xf32> to vector<4x256xf32>
    %501 = vector.extract_strided_slice %10 {offsets = [8, 0], sizes = [8, 256], strides = [1, 1]} : vector<48x256xf32> to vector<8x256xf32>
    %502 = vector.extract_strided_slice %317 {offsets = [8, 0], sizes = [8, 256], strides = [1, 1]} : vector<48x256xf32> to vector<8x256xf32>
    %503 = vector.extract_strided_slice %455 {offsets = [8, 0], sizes = [8, 256], strides = [1, 1]} : vector<48x256xf32> to vector<8x256xf32>
    %c7 = arith.constant 7 : index
    %504 = memref.load %arg42[%c7] : memref<17xf32, #tpu.memory_space<smem>>
    %c8 = arith.constant 8 : index
    %505 = memref.load %arg42[%c8] : memref<17xf32, #tpu.memory_space<smem>>
    %506 = vector.extract_strided_slice %500 {offsets = [2, 0], sizes = [1, 256], strides = [1, 1]} : vector<4x256xf32> to vector<1x256xf32>
    %cst_171 = arith.constant 1.000000e+00 : f32
    %507 = vector.broadcast %cst_171 : f32 to vector<1x256xf32>
    %508 = arith.subf %507, %506 : vector<1x256xf32>
    %509 = vector.broadcast %508 : vector<1x256xf32> to vector<8x256xf32>
    %510 = arith.mulf %501, %509 : vector<8x256xf32>
    %511 = vector.extract_strided_slice %500 {offsets = [0, 0], sizes = [1, 256], strides = [1, 1]} : vector<4x256xf32> to vector<1x256xf32>
    %512 = vector.broadcast %511 : vector<1x256xf32> to vector<8x256xf32>
    %513 = arith.mulf %502, %512 : vector<8x256xf32>
    %514 = vector.broadcast %504 : f32 to vector<8x256xf32>
    %515 = arith.mulf %513, %514 : vector<8x256xf32>
    %516 = arith.addf %510, %515 : vector<8x256xf32>
    %517 = vector.extract_strided_slice %500 {offsets = [1, 0], sizes = [1, 256], strides = [1, 1]} : vector<4x256xf32> to vector<1x256xf32>
    %518 = vector.broadcast %517 : vector<1x256xf32> to vector<8x256xf32>
    %519 = arith.mulf %503, %518 : vector<8x256xf32>
    %520 = vector.broadcast %505 : f32 to vector<8x256xf32>
    %521 = arith.mulf %519, %520 : vector<8x256xf32>
    %522 = arith.addf %516, %521 : vector<8x256xf32>
    %523 = vector.extract_strided_slice %500 {offsets = [3, 0], sizes = [1, 256], strides = [1, 1]} : vector<4x256xf32> to vector<1x256xf32>
    %cst_172 = arith.constant 1.000000e+00 : f32
    %524 = vector.broadcast %cst_172 : f32 to vector<1x256xf32>
    %525 = arith.subf %524, %523 : vector<1x256xf32>
    %526 = vector.broadcast %525 : vector<1x256xf32> to vector<8x256xf32>
    %527 = arith.mulf %526, %501 : vector<8x256xf32>
    %528 = math.tanh %522 : vector<8x256xf32>
    %529 = vector.broadcast %523 : vector<1x256xf32> to vector<8x256xf32>
    %530 = arith.mulf %529, %528 : vector<8x256xf32>
    %531 = arith.addf %527, %530 : vector<8x256xf32>
    %532 = vector.extract_strided_slice %467 {offsets = [8, 0], sizes = [4, 256], strides = [1, 1]} : vector<24x256xf32> to vector<4x256xf32>
    %533 = vector.extract_strided_slice %10 {offsets = [16, 0], sizes = [8, 256], strides = [1, 1]} : vector<48x256xf32> to vector<8x256xf32>
    %534 = vector.extract_strided_slice %317 {offsets = [16, 0], sizes = [8, 256], strides = [1, 1]} : vector<48x256xf32> to vector<8x256xf32>
    %535 = vector.extract_strided_slice %455 {offsets = [16, 0], sizes = [8, 256], strides = [1, 1]} : vector<48x256xf32> to vector<8x256xf32>
    %c9 = arith.constant 9 : index
    %536 = memref.load %arg42[%c9] : memref<17xf32, #tpu.memory_space<smem>>
    %c10 = arith.constant 10 : index
    %537 = memref.load %arg42[%c10] : memref<17xf32, #tpu.memory_space<smem>>
    %538 = vector.extract_strided_slice %532 {offsets = [2, 0], sizes = [1, 256], strides = [1, 1]} : vector<4x256xf32> to vector<1x256xf32>
    %cst_173 = arith.constant 1.000000e+00 : f32
    %539 = vector.broadcast %cst_173 : f32 to vector<1x256xf32>
    %540 = arith.subf %539, %538 : vector<1x256xf32>
    %541 = vector.broadcast %540 : vector<1x256xf32> to vector<8x256xf32>
    %542 = arith.mulf %533, %541 : vector<8x256xf32>
    %543 = vector.extract_strided_slice %532 {offsets = [0, 0], sizes = [1, 256], strides = [1, 1]} : vector<4x256xf32> to vector<1x256xf32>
    %544 = vector.broadcast %543 : vector<1x256xf32> to vector<8x256xf32>
    %545 = arith.mulf %534, %544 : vector<8x256xf32>
    %546 = vector.broadcast %536 : f32 to vector<8x256xf32>
    %547 = arith.mulf %545, %546 : vector<8x256xf32>
    %548 = arith.addf %542, %547 : vector<8x256xf32>
    %549 = vector.extract_strided_slice %532 {offsets = [1, 0], sizes = [1, 256], strides = [1, 1]} : vector<4x256xf32> to vector<1x256xf32>
    %550 = vector.broadcast %549 : vector<1x256xf32> to vector<8x256xf32>
    %551 = arith.mulf %535, %550 : vector<8x256xf32>
    %552 = vector.broadcast %537 : f32 to vector<8x256xf32>
    %553 = arith.mulf %551, %552 : vector<8x256xf32>
    %554 = arith.addf %548, %553 : vector<8x256xf32>
    %555 = vector.extract_strided_slice %532 {offsets = [3, 0], sizes = [1, 256], strides = [1, 1]} : vector<4x256xf32> to vector<1x256xf32>
    %cst_174 = arith.constant 1.000000e+00 : f32
    %556 = vector.broadcast %cst_174 : f32 to vector<1x256xf32>
    %557 = arith.subf %556, %555 : vector<1x256xf32>
    %558 = vector.broadcast %557 : vector<1x256xf32> to vector<8x256xf32>
    %559 = arith.mulf %558, %533 : vector<8x256xf32>
    %560 = math.tanh %554 : vector<8x256xf32>
    %561 = vector.broadcast %555 : vector<1x256xf32> to vector<8x256xf32>
    %562 = arith.mulf %561, %560 : vector<8x256xf32>
    %563 = arith.addf %559, %562 : vector<8x256xf32>
    %564 = vector.extract_strided_slice %467 {offsets = [12, 0], sizes = [4, 256], strides = [1, 1]} : vector<24x256xf32> to vector<4x256xf32>
    %565 = vector.extract_strided_slice %10 {offsets = [24, 0], sizes = [8, 256], strides = [1, 1]} : vector<48x256xf32> to vector<8x256xf32>
    %566 = vector.extract_strided_slice %317 {offsets = [24, 0], sizes = [8, 256], strides = [1, 1]} : vector<48x256xf32> to vector<8x256xf32>
    %567 = vector.extract_strided_slice %455 {offsets = [24, 0], sizes = [8, 256], strides = [1, 1]} : vector<48x256xf32> to vector<8x256xf32>
    %c11 = arith.constant 11 : index
    %568 = memref.load %arg42[%c11] : memref<17xf32, #tpu.memory_space<smem>>
    %c12 = arith.constant 12 : index
    %569 = memref.load %arg42[%c12] : memref<17xf32, #tpu.memory_space<smem>>
    %570 = vector.extract_strided_slice %564 {offsets = [2, 0], sizes = [1, 256], strides = [1, 1]} : vector<4x256xf32> to vector<1x256xf32>
    %cst_175 = arith.constant 1.000000e+00 : f32
    %571 = vector.broadcast %cst_175 : f32 to vector<1x256xf32>
    %572 = arith.subf %571, %570 : vector<1x256xf32>
    %573 = vector.broadcast %572 : vector<1x256xf32> to vector<8x256xf32>
    %574 = arith.mulf %565, %573 : vector<8x256xf32>
    %575 = vector.extract_strided_slice %564 {offsets = [0, 0], sizes = [1, 256], strides = [1, 1]} : vector<4x256xf32> to vector<1x256xf32>
    %576 = vector.broadcast %575 : vector<1x256xf32> to vector<8x256xf32>
    %577 = arith.mulf %566, %576 : vector<8x256xf32>
    %578 = vector.broadcast %568 : f32 to vector<8x256xf32>
    %579 = arith.mulf %577, %578 : vector<8x256xf32>
    %580 = arith.addf %574, %579 : vector<8x256xf32>
    %581 = vector.extract_strided_slice %564 {offsets = [1, 0], sizes = [1, 256], strides = [1, 1]} : vector<4x256xf32> to vector<1x256xf32>
    %582 = vector.broadcast %581 : vector<1x256xf32> to vector<8x256xf32>
    %583 = arith.mulf %567, %582 : vector<8x256xf32>
    %584 = vector.broadcast %569 : f32 to vector<8x256xf32>
    %585 = arith.mulf %583, %584 : vector<8x256xf32>
    %586 = arith.addf %580, %585 : vector<8x256xf32>
    %587 = vector.extract_strided_slice %564 {offsets = [3, 0], sizes = [1, 256], strides = [1, 1]} : vector<4x256xf32> to vector<1x256xf32>
    %cst_176 = arith.constant 1.000000e+00 : f32
    %588 = vector.broadcast %cst_176 : f32 to vector<1x256xf32>
    %589 = arith.subf %588, %587 : vector<1x256xf32>
    %590 = vector.broadcast %589 : vector<1x256xf32> to vector<8x256xf32>
    %591 = arith.mulf %590, %565 : vector<8x256xf32>
    %592 = math.tanh %586 : vector<8x256xf32>
    %593 = vector.broadcast %587 : vector<1x256xf32> to vector<8x256xf32>
    %594 = arith.mulf %593, %592 : vector<8x256xf32>
    %595 = arith.addf %591, %594 : vector<8x256xf32>
    %596 = vector.extract_strided_slice %467 {offsets = [16, 0], sizes = [4, 256], strides = [1, 1]} : vector<24x256xf32> to vector<4x256xf32>
    %597 = vector.extract_strided_slice %10 {offsets = [32, 0], sizes = [8, 256], strides = [1, 1]} : vector<48x256xf32> to vector<8x256xf32>
    %598 = vector.extract_strided_slice %317 {offsets = [32, 0], sizes = [8, 256], strides = [1, 1]} : vector<48x256xf32> to vector<8x256xf32>
    %599 = vector.extract_strided_slice %455 {offsets = [32, 0], sizes = [8, 256], strides = [1, 1]} : vector<48x256xf32> to vector<8x256xf32>
    %c13 = arith.constant 13 : index
    %600 = memref.load %arg42[%c13] : memref<17xf32, #tpu.memory_space<smem>>
    %c14 = arith.constant 14 : index
    %601 = memref.load %arg42[%c14] : memref<17xf32, #tpu.memory_space<smem>>
    %602 = vector.extract_strided_slice %596 {offsets = [2, 0], sizes = [1, 256], strides = [1, 1]} : vector<4x256xf32> to vector<1x256xf32>
    %cst_177 = arith.constant 1.000000e+00 : f32
    %603 = vector.broadcast %cst_177 : f32 to vector<1x256xf32>
    %604 = arith.subf %603, %602 : vector<1x256xf32>
    %605 = vector.broadcast %604 : vector<1x256xf32> to vector<8x256xf32>
    %606 = arith.mulf %597, %605 : vector<8x256xf32>
    %607 = vector.extract_strided_slice %596 {offsets = [0, 0], sizes = [1, 256], strides = [1, 1]} : vector<4x256xf32> to vector<1x256xf32>
    %608 = vector.broadcast %607 : vector<1x256xf32> to vector<8x256xf32>
    %609 = arith.mulf %598, %608 : vector<8x256xf32>
    %610 = vector.broadcast %600 : f32 to vector<8x256xf32>
    %611 = arith.mulf %609, %610 : vector<8x256xf32>
    %612 = arith.addf %606, %611 : vector<8x256xf32>
    %613 = vector.extract_strided_slice %596 {offsets = [1, 0], sizes = [1, 256], strides = [1, 1]} : vector<4x256xf32> to vector<1x256xf32>
    %614 = vector.broadcast %613 : vector<1x256xf32> to vector<8x256xf32>
    %615 = arith.mulf %599, %614 : vector<8x256xf32>
    %616 = vector.broadcast %601 : f32 to vector<8x256xf32>
    %617 = arith.mulf %615, %616 : vector<8x256xf32>
    %618 = arith.addf %612, %617 : vector<8x256xf32>
    %619 = vector.extract_strided_slice %596 {offsets = [3, 0], sizes = [1, 256], strides = [1, 1]} : vector<4x256xf32> to vector<1x256xf32>
    %cst_178 = arith.constant 1.000000e+00 : f32
    %620 = vector.broadcast %cst_178 : f32 to vector<1x256xf32>
    %621 = arith.subf %620, %619 : vector<1x256xf32>
    %622 = vector.broadcast %621 : vector<1x256xf32> to vector<8x256xf32>
    %623 = arith.mulf %622, %597 : vector<8x256xf32>
    %624 = math.tanh %618 : vector<8x256xf32>
    %625 = vector.broadcast %619 : vector<1x256xf32> to vector<8x256xf32>
    %626 = arith.mulf %625, %624 : vector<8x256xf32>
    %627 = arith.addf %623, %626 : vector<8x256xf32>
    %628 = vector.extract_strided_slice %467 {offsets = [20, 0], sizes = [4, 256], strides = [1, 1]} : vector<24x256xf32> to vector<4x256xf32>
    %629 = vector.extract_strided_slice %10 {offsets = [40, 0], sizes = [8, 256], strides = [1, 1]} : vector<48x256xf32> to vector<8x256xf32>
    %630 = vector.extract_strided_slice %317 {offsets = [40, 0], sizes = [8, 256], strides = [1, 1]} : vector<48x256xf32> to vector<8x256xf32>
    %631 = vector.extract_strided_slice %455 {offsets = [40, 0], sizes = [8, 256], strides = [1, 1]} : vector<48x256xf32> to vector<8x256xf32>
    %c15 = arith.constant 15 : index
    %632 = memref.load %arg42[%c15] : memref<17xf32, #tpu.memory_space<smem>>
    %c16 = arith.constant 16 : index
    %633 = memref.load %arg42[%c16] : memref<17xf32, #tpu.memory_space<smem>>
    %634 = vector.extract_strided_slice %628 {offsets = [2, 0], sizes = [1, 256], strides = [1, 1]} : vector<4x256xf32> to vector<1x256xf32>
    %cst_179 = arith.constant 1.000000e+00 : f32
    %635 = vector.broadcast %cst_179 : f32 to vector<1x256xf32>
    %636 = arith.subf %635, %634 : vector<1x256xf32>
    %637 = vector.broadcast %636 : vector<1x256xf32> to vector<8x256xf32>
    %638 = arith.mulf %629, %637 : vector<8x256xf32>
    %639 = vector.extract_strided_slice %628 {offsets = [0, 0], sizes = [1, 256], strides = [1, 1]} : vector<4x256xf32> to vector<1x256xf32>
    %640 = vector.broadcast %639 : vector<1x256xf32> to vector<8x256xf32>
    %641 = arith.mulf %630, %640 : vector<8x256xf32>
    %642 = vector.broadcast %632 : f32 to vector<8x256xf32>
    %643 = arith.mulf %641, %642 : vector<8x256xf32>
    %644 = arith.addf %638, %643 : vector<8x256xf32>
    %645 = vector.extract_strided_slice %628 {offsets = [1, 0], sizes = [1, 256], strides = [1, 1]} : vector<4x256xf32> to vector<1x256xf32>
    %646 = vector.broadcast %645 : vector<1x256xf32> to vector<8x256xf32>
    %647 = arith.mulf %631, %646 : vector<8x256xf32>
    %648 = vector.broadcast %633 : f32 to vector<8x256xf32>
    %649 = arith.mulf %647, %648 : vector<8x256xf32>
    %650 = arith.addf %644, %649 : vector<8x256xf32>
    %651 = vector.extract_strided_slice %628 {offsets = [3, 0], sizes = [1, 256], strides = [1, 1]} : vector<4x256xf32> to vector<1x256xf32>
    %cst_180 = arith.constant 1.000000e+00 : f32
    %652 = vector.broadcast %cst_180 : f32 to vector<1x256xf32>
    %653 = arith.subf %652, %651 : vector<1x256xf32>
    %654 = vector.broadcast %653 : vector<1x256xf32> to vector<8x256xf32>
    %655 = arith.mulf %654, %629 : vector<8x256xf32>
    %656 = math.tanh %650 : vector<8x256xf32>
    %657 = vector.broadcast %651 : vector<1x256xf32> to vector<8x256xf32>
    %658 = arith.mulf %657, %656 : vector<8x256xf32>
    %659 = arith.addf %655, %658 : vector<8x256xf32>
    %660 = tpu.concatenate %499, %531, %563, %595, %627, %659 in 0 : vector<8x256xf32>, vector<8x256xf32>, vector<8x256xf32>, vector<8x256xf32>, vector<8x256xf32>, vector<8x256xf32> -> vector<48x256xf32>
    %661 = tpu.concatenate %9, %660, %272, %93 in 0 : vector<8x256xf32>, vector<48x256xf32>, vector<16x256xf32>, vector<8x256xf32> -> vector<80x256xf32>
    %cst_181 = arith.constant dense<0.000000e+00> : vector<12x256xf32>
    %662 = tpu.matmul %15, %661, %cst_181 {dimension_numbers = #tpu.dot_dimension_numbers<[1], [0], [0], [1], [0, 0, 1, 1], [], []>} : vector<12x80xf32>, vector<80x256xf32>, vector<12x256xf32> -> vector<12x256xf32>
    %663 = vector.broadcast %16 : vector<12x1xf32> to vector<12x256xf32>
    %664 = arith.addf %662, %663 : vector<12x256xf32>
    %cst_182 = arith.constant 0.000000e+00 : f32
    %665 = vector.broadcast %cst_182 : f32 to vector<72x256xf32>
    %c0_183 = arith.constant 0 : index
    %c0_184 = arith.constant 0 : index
    %666 = vector.load %arg43[%c0_183, %c0_184] : memref<72x256xf32, #tpu.memory_space<vmem>>, vector<72x256xf32>
    tpu.vector_store %arg43[%c0_183, %c0_184], %665 {strides = array<i32>} : memref<72x256xf32, #tpu.memory_space<vmem>>, vector<72x256xf32>,
    %c0_185 = arith.constant 0 : index
    %c0_186 = arith.constant 0 : index
    %667 = vector.load %arg43[%c0_185, %c0_186] : memref<72x256xf32, #tpu.memory_space<vmem>>, vector<12x256xf32>
    tpu.vector_store %arg43[%c0_185, %c0_186], %19 {strides = array<i32>} : memref<72x256xf32, #tpu.memory_space<vmem>>, vector<12x256xf32>,
    %c16_187 = arith.constant 16 : index
    %c0_188 = arith.constant 0 : index
    %668 = vector.load %arg43[%c16_187, %c0_188] : memref<72x256xf32, #tpu.memory_space<vmem>>, vector<12x256xf32>
    tpu.vector_store %arg43[%c16_187, %c0_188], %664 {strides = array<i32>} : memref<72x256xf32, #tpu.memory_space<vmem>>, vector<12x256xf32>,
    %c32 = arith.constant 32 : index
    %c0_189 = arith.constant 0 : index
    %669 = vector.load %arg43[%c32, %c0_189] : memref<72x256xf32, #tpu.memory_space<vmem>>, vector<11x256xf32>
    tpu.vector_store %arg43[%c32, %c0_189], %99 {strides = array<i32>} : memref<72x256xf32, #tpu.memory_space<vmem>>, vector<11x256xf32>,
    %c48 = arith.constant 48 : index
    %c0_190 = arith.constant 0 : index
    %670 = vector.load %arg43[%c48, %c0_190] : memref<72x256xf32, #tpu.memory_space<vmem>>, vector<22x256xf32>
    tpu.vector_store %arg43[%c48, %c0_190], %345 {strides = array<i32>} : memref<72x256xf32, #tpu.memory_space<vmem>>, vector<22x256xf32>,
    return
  }
  func.func @transform_0(%arg0: i32) -> (i32, i32) {
    %c0_i32 = arith.constant 0 : i32
    %c0_i32_0 = arith.constant 0 : i32
    return %c0_i32, %arg0 : i32, i32
  }
  func.func @transform_1(%arg0: i32) -> (i32, i32) {
    %c0_i32 = arith.constant 0 : i32
    %c0_i32_0 = arith.constant 0 : i32
    return %c0_i32, %arg0 : i32, i32
  }
  func.func @transform_2(%arg0: i32) -> (i32, i32) {
    %c0_i32 = arith.constant 0 : i32
    %c0_i32_0 = arith.constant 0 : i32
    return %c0_i32, %arg0 : i32, i32
  }
  func.func @transform_3(%arg0: i32) -> (i32, i32) {
    %c0_i32 = arith.constant 0 : i32
    %c0_i32_0 = arith.constant 0 : i32
    %c0_i32_1 = arith.constant 0 : i32
    return %c0_i32, %c0_i32_0 : i32, i32
  }
  func.func @transform_4(%arg0: i32) -> (i32, i32) {
    %c0_i32 = arith.constant 0 : i32
    %c0_i32_0 = arith.constant 0 : i32
    %c0_i32_1 = arith.constant 0 : i32
    return %c0_i32, %c0_i32_0 : i32, i32
  }
  func.func @transform_5(%arg0: i32) -> (i32, i32) {
    %c0_i32 = arith.constant 0 : i32
    %c0_i32_0 = arith.constant 0 : i32
    %c0_i32_1 = arith.constant 0 : i32
    return %c0_i32, %c0_i32_0 : i32, i32
  }
  func.func @transform_6(%arg0: i32) -> (i32, i32) {
    %c0_i32 = arith.constant 0 : i32
    %c0_i32_0 = arith.constant 0 : i32
    %c0_i32_1 = arith.constant 0 : i32
    return %c0_i32, %c0_i32_0 : i32, i32
  }
  func.func @transform_7(%arg0: i32) -> (i32, i32) {
    %c0_i32 = arith.constant 0 : i32
    %c0_i32_0 = arith.constant 0 : i32
    %c0_i32_1 = arith.constant 0 : i32
    return %c0_i32, %c0_i32_0 : i32, i32
  }
  func.func @transform_8(%arg0: i32) -> (i32, i32) {
    %c0_i32 = arith.constant 0 : i32
    %c0_i32_0 = arith.constant 0 : i32
    %c0_i32_1 = arith.constant 0 : i32
    return %c0_i32, %c0_i32_0 : i32, i32
  }
  func.func @transform_9(%arg0: i32) -> (i32, i32) {
    %c0_i32 = arith.constant 0 : i32
    %c0_i32_0 = arith.constant 0 : i32
    %c0_i32_1 = arith.constant 0 : i32
    return %c0_i32, %c0_i32_0 : i32, i32
  }
  func.func @transform_10(%arg0: i32) -> (i32, i32) {
    %c0_i32 = arith.constant 0 : i32
    %c0_i32_0 = arith.constant 0 : i32
    %c0_i32_1 = arith.constant 0 : i32
    return %c0_i32, %c0_i32_0 : i32, i32
  }
  func.func @transform_11(%arg0: i32) -> (i32, i32) {
    %c0_i32 = arith.constant 0 : i32
    %c0_i32_0 = arith.constant 0 : i32
    %c0_i32_1 = arith.constant 0 : i32
    return %c0_i32, %c0_i32_0 : i32, i32
  }
  func.func @transform_12(%arg0: i32) -> (i32, i32) {
    %c0_i32 = arith.constant 0 : i32
    %c0_i32_0 = arith.constant 0 : i32
    %c0_i32_1 = arith.constant 0 : i32
    return %c0_i32, %c0_i32_0 : i32, i32
  }
  func.func @transform_13(%arg0: i32) -> (i32, i32) {
    %c0_i32 = arith.constant 0 : i32
    %c0_i32_0 = arith.constant 0 : i32
    %c0_i32_1 = arith.constant 0 : i32
    return %c0_i32, %c0_i32_0 : i32, i32
  }
  func.func @transform_14(%arg0: i32) -> (i32, i32) {
    %c0_i32 = arith.constant 0 : i32
    %c0_i32_0 = arith.constant 0 : i32
    %c0_i32_1 = arith.constant 0 : i32
    return %c0_i32, %c0_i32_0 : i32, i32
  }
  func.func @transform_15(%arg0: i32) -> (i32, i32) {
    %c0_i32 = arith.constant 0 : i32
    %c0_i32_0 = arith.constant 0 : i32
    %c0_i32_1 = arith.constant 0 : i32
    return %c0_i32, %c0_i32_0 : i32, i32
  }
  func.func @transform_16(%arg0: i32) -> (i32, i32) {
    %c0_i32 = arith.constant 0 : i32
    %c0_i32_0 = arith.constant 0 : i32
    %c0_i32_1 = arith.constant 0 : i32
    return %c0_i32, %c0_i32_0 : i32, i32
  }
  func.func @transform_17(%arg0: i32) -> (i32, i32) {
    %c0_i32 = arith.constant 0 : i32
    %c0_i32_0 = arith.constant 0 : i32
    %c0_i32_1 = arith.constant 0 : i32
    return %c0_i32, %c0_i32_0 : i32, i32
  }
  func.func @transform_18(%arg0: i32) -> (i32, i32) {
    %c0_i32 = arith.constant 0 : i32
    %c0_i32_0 = arith.constant 0 : i32
    %c0_i32_1 = arith.constant 0 : i32
    return %c0_i32, %c0_i32_0 : i32, i32
  }
  func.func @transform_19(%arg0: i32) -> (i32, i32) {
    %c0_i32 = arith.constant 0 : i32
    %c0_i32_0 = arith.constant 0 : i32
    %c0_i32_1 = arith.constant 0 : i32
    return %c0_i32, %c0_i32_0 : i32, i32
  }
  func.func @transform_20(%arg0: i32) -> (i32, i32) {
    %c0_i32 = arith.constant 0 : i32
    %c0_i32_0 = arith.constant 0 : i32
    %c0_i32_1 = arith.constant 0 : i32
    return %c0_i32, %c0_i32_0 : i32, i32
  }
  func.func @transform_21(%arg0: i32) -> (i32, i32) {
    %c0_i32 = arith.constant 0 : i32
    %c0_i32_0 = arith.constant 0 : i32
    %c0_i32_1 = arith.constant 0 : i32
    return %c0_i32, %c0_i32_0 : i32, i32
  }
  func.func @transform_22(%arg0: i32) -> (i32, i32) {
    %c0_i32 = arith.constant 0 : i32
    %c0_i32_0 = arith.constant 0 : i32
    %c0_i32_1 = arith.constant 0 : i32
    return %c0_i32, %c0_i32_0 : i32, i32
  }
  func.func @transform_23(%arg0: i32) -> (i32, i32) {
    %c0_i32 = arith.constant 0 : i32
    %c0_i32_0 = arith.constant 0 : i32
    %c0_i32_1 = arith.constant 0 : i32
    return %c0_i32, %c0_i32_0 : i32, i32
  }
  func.func @transform_24(%arg0: i32) -> (i32, i32) {
    %c0_i32 = arith.constant 0 : i32
    %c0_i32_0 = arith.constant 0 : i32
    %c0_i32_1 = arith.constant 0 : i32
    return %c0_i32, %c0_i32_0 : i32, i32
  }
  func.func @transform_25(%arg0: i32) -> (i32, i32) {
    %c0_i32 = arith.constant 0 : i32
    %c0_i32_0 = arith.constant 0 : i32
    %c0_i32_1 = arith.constant 0 : i32
    return %c0_i32, %c0_i32_0 : i32, i32
  }
  func.func @transform_26(%arg0: i32) -> (i32, i32) {
    %c0_i32 = arith.constant 0 : i32
    %c0_i32_0 = arith.constant 0 : i32
    %c0_i32_1 = arith.constant 0 : i32
    return %c0_i32, %c0_i32_0 : i32, i32
  }
  func.func @transform_27(%arg0: i32) -> (i32, i32) {
    %c0_i32 = arith.constant 0 : i32
    %c0_i32_0 = arith.constant 0 : i32
    %c0_i32_1 = arith.constant 0 : i32
    return %c0_i32, %c0_i32_0 : i32, i32
  }
  func.func @transform_28(%arg0: i32) -> (i32, i32) {
    %c0_i32 = arith.constant 0 : i32
    %c0_i32_0 = arith.constant 0 : i32
    %c0_i32_1 = arith.constant 0 : i32
    return %c0_i32, %c0_i32_0 : i32, i32
  }
  func.func @transform_29(%arg0: i32) -> (i32, i32) {
    %c0_i32 = arith.constant 0 : i32
    %c0_i32_0 = arith.constant 0 : i32
    %c0_i32_1 = arith.constant 0 : i32
    return %c0_i32, %c0_i32_0 : i32, i32
  }
  func.func @transform_30(%arg0: i32) -> (i32, i32) {
    %c0_i32 = arith.constant 0 : i32
    %c0_i32_0 = arith.constant 0 : i32
    %c0_i32_1 = arith.constant 0 : i32
    return %c0_i32, %c0_i32_0 : i32, i32
  }
  func.func @transform_31(%arg0: i32) -> (i32, i32) {
    %c0_i32 = arith.constant 0 : i32
    %c0_i32_0 = arith.constant 0 : i32
    %c0_i32_1 = arith.constant 0 : i32
    return %c0_i32, %c0_i32_0 : i32, i32
  }
  func.func @transform_32(%arg0: i32) -> (i32, i32) {
    %c0_i32 = arith.constant 0 : i32
    %c0_i32_0 = arith.constant 0 : i32
    %c0_i32_1 = arith.constant 0 : i32
    return %c0_i32, %c0_i32_0 : i32, i32
  }
  func.func @transform_33(%arg0: i32) -> (i32, i32) {
    %c0_i32 = arith.constant 0 : i32
    %c0_i32_0 = arith.constant 0 : i32
    %c0_i32_1 = arith.constant 0 : i32
    return %c0_i32, %c0_i32_0 : i32, i32
  }
  func.func @transform_34(%arg0: i32) -> (i32, i32) {
    %c0_i32 = arith.constant 0 : i32
    %c0_i32_0 = arith.constant 0 : i32
    %c0_i32_1 = arith.constant 0 : i32
    return %c0_i32, %c0_i32_0 : i32, i32
  }
  func.func @transform_35(%arg0: i32) -> (i32, i32) {
    %c0_i32 = arith.constant 0 : i32
    %c0_i32_0 = arith.constant 0 : i32
    %c0_i32_1 = arith.constant 0 : i32
    return %c0_i32, %c0_i32_0 : i32, i32
  }
  func.func @transform_36(%arg0: i32) -> (i32, i32) {
    %c0_i32 = arith.constant 0 : i32
    %c0_i32_0 = arith.constant 0 : i32
    %c0_i32_1 = arith.constant 0 : i32
    return %c0_i32, %c0_i32_0 : i32, i32
  }
  func.func @transform_37(%arg0: i32) -> (i32, i32) {
    %c0_i32 = arith.constant 0 : i32
    %c0_i32_0 = arith.constant 0 : i32
    %c0_i32_1 = arith.constant 0 : i32
    return %c0_i32, %c0_i32_0 : i32, i32
  }
  func.func @transform_38(%arg0: i32) -> (i32, i32) {
    %c0_i32 = arith.constant 0 : i32
    %c0_i32_0 = arith.constant 0 : i32
    %c0_i32_1 = arith.constant 0 : i32
    return %c0_i32, %c0_i32_0 : i32, i32
  }
  func.func @transform_39(%arg0: i32) -> (i32, i32) {
    %c0_i32 = arith.constant 0 : i32
    %c0_i32_0 = arith.constant 0 : i32
    %c0_i32_1 = arith.constant 0 : i32
    return %c0_i32, %c0_i32_0 : i32, i32
  }
  func.func @transform_40(%arg0: i32) -> (i32, i32) {
    %c0_i32 = arith.constant 0 : i32
    %c0_i32_0 = arith.constant 0 : i32
    %c0_i32_1 = arith.constant 0 : i32
    return %c0_i32, %c0_i32_0 : i32, i32
  }
  func.func @transform_41(%arg0: i32) -> i32 {
    %c0_i32 = arith.constant 0 : i32
    %c0_i32_0 = arith.constant 0 : i32
    return %c0_i32 : i32
  }
  func.func @transform_42(%arg0: i32) -> (i32, i32) {
    %c0_i32 = arith.constant 0 : i32
    %c0_i32_0 = arith.constant 0 : i32
    return %c0_i32, %arg0 : i32, i32
  }
}

</mosaic_0001>

<llo_original>
// kernel: gnn_infer_forward.1
$region0: #{gnn_infer_forward.1}
  #allocation0 [shape = 'u32[]', space=smem, size = 0x4, offset = 0x4, fixed_abs, tag = 'smem constant byte address 0x4 - core index']
  #allocation1 [shape = 'u32[144,128]{1,0:T(1,128)}', space=vmem, size = 0x12000, scoped, tag = 'internal scratch']
  %s0 = inlined_call_operand.smem [shape: u32[43], index: -1, kind: input, shape index: {}]
  %s1 = sld [smem:[%s0]]
  %s2 = scalar_lea.smem %s0, 1
  %s3 = sld [smem:[%s2]]
  %s4 = scalar_lea.smem %s0, 2
  %s5 = sld [smem:[%s4]]
  %s6 = scalar_lea.smem %s0, 3
  %s7 = sld [smem:[%s6]]
  %s8 = scalar_lea.smem %s0, 4
  %s9 = sld [smem:[%s8]]
  %s10 = scalar_lea.smem %s0, 5
  %s11 = sld [smem:[%s10]]
  %s12 = scalar_lea.smem %s0, 6
  %s13 = sld [smem:[%s12]]
  %s14 = scalar_lea.smem %s0, 7
  %s15 = sld [smem:[%s14]]
  %s16 = scalar_lea.smem %s0, 8
  %s17 = sld [smem:[%s16]]
  %s18 = scalar_lea.smem %s0, 9
  %s19 = sld [smem:[%s18]]
  %s20 = scalar_lea.smem %s0, 10
  %s21 = sld [smem:[%s20]]
  %s22 = scalar_lea.smem %s0, 11
  %s23 = sld [smem:[%s22]]
  %s24 = scalar_lea.smem %s0, 12
  %s25 = sld [smem:[%s24]]
  %s26 = scalar_lea.smem %s0, 13
  %s27 = sld [smem:[%s26]]
  %s28 = scalar_lea.smem %s0, 14
  %s29 = sld [smem:[%s28]]
  %s30 = scalar_lea.smem %s0, 15
  %s31 = sld [smem:[%s30]]
  %s32 = scalar_lea.smem %s0, 16
  %s33 = sld [smem:[%s32]]
  %s34 = scalar_lea.smem %s0, 17
  %s35 = sld [smem:[%s34]]
  %s36 = scalar_lea.smem %s0, 18
  %s37 = sld [smem:[%s36]]
  %s38 = scalar_lea.smem %s0, 19
  %s39 = sld [smem:[%s38]]
  %s40 = scalar_lea.smem %s0, 20
  %s41 = sld [smem:[%s40]]
  %s42 = scalar_lea.smem %s0, 21
  %s43 = sld [smem:[%s42]]
  %s44 = scalar_lea.smem %s0, 22
  %s45 = sld [smem:[%s44]]
  %s46 = scalar_lea.smem %s0, 23
  %s47 = sld [smem:[%s46]]
  %s48 = scalar_lea.smem %s0, 24
  %s49 = sld [smem:[%s48]]
  %s50 = scalar_lea.smem %s0, 25
  %s51 = sld [smem:[%s50]]
  %s52 = scalar_lea.smem %s0, 26
  %s53 = sld [smem:[%s52]]
  %s54 = scalar_lea.smem %s0, 27
  %s55 = sld [smem:[%s54]]
  %s56 = scalar_lea.smem %s0, 28
  %s57 = sld [smem:[%s56]]
  %s58 = scalar_lea.smem %s0, 29
  %s59 = sld [smem:[%s58]]
  %s60 = scalar_lea.smem %s0, 30
  %s61 = sld [smem:[%s60]]
  %s62 = scalar_lea.smem %s0, 31
  %s63 = sld [smem:[%s62]]
  %s64 = scalar_lea.smem %s0, 32
  %s65 = sld [smem:[%s64]]
  %s66 = scalar_lea.smem %s0, 33
  %s67 = sld [smem:[%s66]]
  %s68 = scalar_lea.smem %s0, 34
  %s69 = sld [smem:[%s68]]
  %s70 = scalar_lea.smem %s0, 35
  %s71 = sld [smem:[%s70]]
  %s72 = scalar_lea.smem %s0, 36
  %s73 = sld [smem:[%s72]]
  %s74 = scalar_lea.smem %s0, 37
  %s75 = sld [smem:[%s74]]
  %s76 = scalar_lea.smem %s0, 38
  %s77 = sld [smem:[%s76]]
  %s78 = scalar_lea.smem %s0, 39
  %s79 = sld [smem:[%s78]]
  %s80 = scalar_lea.smem %s0, 40
  %s81 = sld [smem:[%s80]]
  %s82 = scalar_lea.smem %s0, 41
  %s83 = sld [smem:[%s82]]
  %s84 = scalar_lea.smem %s0, 42
  %s85 = sld [smem:[%s84]]
  %s86 = sld [smem:[#allocation0]]
  $region293: #{gnn_infer_forward.1} parent=0
    _
  %s88 = ssub.s32 1, %s86
  %s89 = scalar_select 0, %s88, %s86
  $region1: #{gnn_infer_forward.1} parent=0
    #allocation2 [shape = 'u8[65536]{0}', space=vmem, size = 0x10000, scoped, tag = 'input window, operand 0']
    #allocation3 [shape = 'u8[65536]{0}', space=vmem, size = 0x10000, scoped, tag = 'input window, operand 1']
    #allocation4 [shape = 'u8[65536]{0}', space=vmem, size = 0x10000, scoped, tag = 'input window, operand 2']
    #allocation5 [shape = 'u8[512]{0}', space=smem, size = 0x200, scoped, tag = 'input window, operand 41, single buffered']
    #allocation6 [shape = 's32[2]{0}', space=sflag, size = 0x8, scoped, tag = 'scoped memory for gnn_infer_forward.1']
    #allocation7 [shape = 'u8[147456]{0}', space=vmem, size = 0x24000, scoped, tag = 'output window, operand 0']
    %90 = vsyncpa [#allocation6], 0
    loop: start=0, step=1, limit=4
    $region2: #{gnn_infer_forward.1} parent=1 // loop_pre_header
      _
    $region3: #{gnn_infer_forward.1} parent=1 // loop_header
      %s92 = sphi 0, %s96
      %p93 = scmp.ge.s32.totalorder %s92, 4
      %s102 = sphi 0, %s104
      %s105 = sphi 0, %s102
      %s106 = sphi 0, %s105
      %s122 = sphi 0, %s106
      %s128 = sphi 0, %s130
      %s131 = sphi 0, %s128
      %s132 = sphi 0, %s131
      %s148 = sphi 0, %s132
      %s154 = sphi 0, %s156
      %s157 = sphi 0, %s154
      %s158 = sphi 0, %s157
      %s174 = sphi 0, %s158
      %s178 = sphi 0, %s178
      %s180 = sphi 0, %s178
      %s181 = sphi 0, %s180
      %s195 = sphi 0, %s181
      %s199 = sphi 0, %s199
      %s201 = sphi 0, %s199
      %s202 = sphi 0, %s201
      %s216 = sphi 0, %s202
      %s220 = sphi 0, %s220
      %s222 = sphi 0, %s220
      %s223 = sphi 0, %s222
      %s237 = sphi 0, %s223
      %s241 = sphi 0, %s241
      %s243 = sphi 0, %s241
      %s244 = sphi 0, %s243
      %s258 = sphi 0, %s244
      %s262 = sphi 0, %s262
      %s264 = sphi 0, %s262
      %s265 = sphi 0, %s264
      %s279 = sphi 0, %s265
      %s283 = sphi 0, %s283
      %s285 = sphi 0, %s283
      %s286 = sphi 0, %s285
      %s300 = sphi 0, %s286
      %s304 = sphi 0, %s304
      %s306 = sphi 0, %s304
      %s307 = sphi 0, %s306
      %s321 = sphi 0, %s307
      %s325 = sphi 0, %s325
      %s327 = sphi 0, %s325
      %s328 = sphi 0, %s327
      %s342 = sphi 0, %s328
      %s346 = sphi 0, %s346
      %s348 = sphi 0, %s346
      %s349 = sphi 0, %s348
      %s363 = sphi 0, %s349
      %s367 = sphi 0, %s367
      %s369 = sphi 0, %s367
      %s370 = sphi 0, %s369
      %s384 = sphi 0, %s370
      %s388 = sphi 0, %s388
      %s390 = sphi 0, %s388
      %s391 = sphi 0, %s390
      %s405 = sphi 0, %s391
      %s409 = sphi 0, %s409
      %s411 = sphi 0, %s409
      %s412 = sphi 0, %s411
      %s426 = sphi 0, %s412
      %s430 = sphi 0, %s430
      %s432 = sphi 0, %s430
      %s433 = sphi 0, %s432
      %s447 = sphi 0, %s433
      %s451 = sphi 0, %s451
      %s453 = sphi 0, %s451
      %s454 = sphi 0, %s453
      %s468 = sphi 0, %s454
      %s472 = sphi 0, %s472
      %s474 = sphi 0, %s472
      %s475 = sphi 0, %s474
      %s489 = sphi 0, %s475
      %s493 = sphi 0, %s493
      %s495 = sphi 0, %s493
      %s496 = sphi 0, %s495
      %s510 = sphi 0, %s496
      %s514 = sphi 0, %s514
      %s516 = sphi 0, %s514
      %s517 = sphi 0, %s516
      %s531 = sphi 0, %s517
      %s535 = sphi 0, %s535
      %s537 = sphi 0, %s535
      %s538 = sphi 0, %s537
      %s552 = sphi 0, %s538
      %s556 = sphi 0, %s556
      %s558 = sphi 0, %s556
      %s559 = sphi 0, %s558
      %s573 = sphi 0, %s559
      %s577 = sphi 0, %s577
      %s579 = sphi 0, %s577
      %s580 = sphi 0, %s579
      %s594 = sphi 0, %s580
      %s598 = sphi 0, %s598
      %s600 = sphi 0, %s598
      %s601 = sphi 0, %s600
      %s615 = sphi 0, %s601
      %s619 = sphi 0, %s619
      %s621 = sphi 0, %s619
      %s622 = sphi 0, %s621
      %s636 = sphi 0, %s622
      %s640 = sphi 0, %s640
      %s642 = sphi 0, %s640
      %s643 = sphi 0, %s642
      %s657 = sphi 0, %s643
      %s661 = sphi 0, %s661
      %s663 = sphi 0, %s661
      %s664 = sphi 0, %s663
      %s678 = sphi 0, %s664
      %s682 = sphi 0, %s682
      %s684 = sphi 0, %s682
      %s685 = sphi 0, %s684
      %s699 = sphi 0, %s685
      %s703 = sphi 0, %s703
      %s705 = sphi 0, %s703
      %s706 = sphi 0, %s705
      %s720 = sphi 0, %s706
      %s724 = sphi 0, %s724
      %s726 = sphi 0, %s724
      %s727 = sphi 0, %s726
      %s741 = sphi 0, %s727
      %s745 = sphi 0, %s745
      %s747 = sphi 0, %s745
      %s748 = sphi 0, %s747
      %s762 = sphi 0, %s748
      %s766 = sphi 0, %s766
      %s768 = sphi 0, %s766
      %s769 = sphi 0, %s768
      %s783 = sphi 0, %s769
      %s787 = sphi 0, %s787
      %s789 = sphi 0, %s787
      %s790 = sphi 0, %s789
      %s804 = sphi 0, %s790
      %s808 = sphi 0, %s808
      %s810 = sphi 0, %s808
      %s811 = sphi 0, %s810
      %s825 = sphi 0, %s811
      %s829 = sphi 0, %s829
      %s831 = sphi 0, %s829
      %s832 = sphi 0, %s831
      %s846 = sphi 0, %s832
      %s850 = sphi 0, %s850
      %s852 = sphi 0, %s850
      %s853 = sphi 0, %s852
      %s867 = sphi 0, %s853
      %s871 = sphi 0, %s871
      %s873 = sphi 0, %s871
      %s874 = sphi 0, %s873
      %s888 = sphi 0, %s874
      %s892 = sphi 0, %s892
      %s894 = sphi 0, %s892
      %s895 = sphi 0, %s894
      %s909 = sphi 0, %s895
      %s913 = sphi 0, %s913
      %s915 = sphi 0, %s913
      %s916 = sphi 0, %s915
      %s930 = sphi 0, %s916
      %s934 = sphi 0, %s934
      %s936 = sphi 0, %s934
      %s937 = sphi 0, %s936
      %s951 = sphi 0, %s937
      %s955 = sphi 0, %s955
      %s957 = sphi 0, %s955
      %s958 = sphi 0, %s957
      %s972 = sphi 0, %s958
      %s976 = sphi 0, %s976
      %s978 = sphi 0, %s976
      %s979 = sphi 0, %s978
      %s993 = sphi 0, %s979
      %s999 = sphi 0, %s1001
      %s1002 = sphi 0, %s999
      %s1003 = sphi 0, %s1002
      %s1019 = sphi 0, %s1003
    $region4: #{gnn_infer_forward.1} parent=1 // loop_header_branch
      %95 = sbr.rel (%p93) target = $region8
    $region5: #{gnn_infer_forward.1} parent=1 // loop_body
      %s97 = ssub.s32 %s92, 1
      %s98 = ssub.s32 %s92, 2
      %s99 = sadd.s32 %s92, 1
      %s100 = ssub.s32 %s92, %s99
      %p101 = scmp.eq.s32.totalorder %s100, 0
      %s103 = sadd.s32 %s102, 1
      %s104 = scalar_select %p101, %s102, %s103
      %p107 = pneg %p101
      %p108 = scmp.eq.s32.totalorder %s92, 1
      %p109 = por %p107, %p108
      %p110 = scmp.ne.s32.totalorder %s102, %s105
      %p111 = scmp.eq.s32.totalorder %s92, 0
      %p112 = por %p110, %p111
      %p113 = scmp.ne.s32.totalorder %s102, %s105
      %p114 = scmp.eq.s32.totalorder %s97, 1
      %p115 = por %p113, %p114
      %p116 = scmp.ne.s32.totalorder %s105, %s106
      %p117 = scmp.eq.s32.totalorder %s97, 0
      %p118 = por %p116, %p117
      %p119 = scmp.ne.s32.totalorder %s105, %s106
      %p120 = scmp.eq.s32.totalorder %s98, 1
      %p121 = por %p119, %p120
      %p123 = scmp.ne.s32.totalorder %s106, %s122
      %p124 = scmp.eq.s32.totalorder %s98, 0
      %p125 = por %p123, %p124
      %s126 = ssub.s32 %s92, %s99
      %p127 = scmp.eq.s32.totalorder %s126, 0
      %s129 = sadd.s32 %s128, 1
      %s130 = scalar_select %p127, %s128, %s129
      %p133 = pneg %p127
      %p134 = scmp.eq.s32.totalorder %s92, 1
      %p135 = por %p133, %p134
      %p136 = scmp.ne.s32.totalorder %s128, %s131
      %p137 = scmp.eq.s32.totalorder %s92, 0
      %p138 = por %p136, %p137
      %p139 = scmp.ne.s32.totalorder %s128, %s131
      %p140 = scmp.eq.s32.totalorder %s97, 1
      %p141 = por %p139, %p140
      %p142 = scmp.ne.s32.totalorder %s131, %s132
      %p143 = scmp.eq.s32.totalorder %s97, 0
      %p144 = por %p142, %p143
      %p145 = scmp.ne.s32.totalorder %s131, %s132
      %p146 = scmp.eq.s32.totalorder %s98, 1
      %p147 = por %p145, %p146
      %p149 = scmp.ne.s32.totalorder %s132, %s148
      %p150 = scmp.eq.s32.totalorder %s98, 0
      %p151 = por %p149, %p150
      %s152 = ssub.s32 %s92, %s99
      %p153 = scmp.eq.s32.totalorder %s152, 0
      %s155 = sadd.s32 %s154, 1
      %s156 = scalar_select %p153, %s154, %s155
      %p159 = pneg %p153
      %p160 = scmp.eq.s32.totalorder %s92, 1
      %p161 = por %p159, %p160
      %p162 = scmp.ne.s32.totalorder %s154, %s157
      %p163 = scmp.eq.s32.totalorder %s92, 0
      %p164 = por %p162, %p163
      %p165 = scmp.ne.s32.totalorder %s154, %s157
      %p166 = scmp.eq.s32.totalorder %s97, 1
      %p167 = por %p165, %p166
      %p168 = scmp.ne.s32.totalorder %s157, %s158
      %p169 = scmp.eq.s32.totalorder %s97, 0
      %p170 = por %p168, %p169
      %p171 = scmp.ne.s32.totalorder %s157, %s158
      %p172 = scmp.eq.s32.totalorder %s98, 1
      %p173 = por %p171, %p172
      %p175 = scmp.ne.s32.totalorder %s158, %s174
      %p176 = scmp.eq.s32.totalorder %s98, 0
      %p177 = por %p175, %p176
      %s179 = sadd.s32 %s178, 1
      %p182 = scmp.eq.s32.totalorder %s92, 1
      %p183 = scmp.ne.s32.totalorder %s178, %s180
      %p184 = scmp.eq.s32.totalorder %s92, 0
      %p185 = por %p183, %p184
      %p186 = scmp.ne.s32.totalorder %s178, %s180
      %p187 = scmp.eq.s32.totalorder %s97, 1
      %p188 = por %p186, %p187
      %p189 = scmp.ne.s32.totalorder %s180, %s181
      %p190 = scmp.eq.s32.totalorder %s97, 0
      %p191 = por %p189, %p190
      %p192 = scmp.ne.s32.totalorder %s180, %s181
      %p193 = scmp.eq.s32.totalorder %s98, 1
      %p194 = por %p192, %p193
      %p196 = scmp.ne.s32.totalorder %s181, %s195
      %p197 = scmp.eq.s32.totalorder %s98, 0
      %p198 = por %p196, %p197
      %s200 = sadd.s32 %s199, 1
      %p203 = scmp.eq.s32.totalorder %s92, 1
      %p204 = scmp.ne.s32.totalorder %s199, %s201
      %p205 = scmp.eq.s32.totalorder %s92, 0
      %p206 = por %p204, %p205
      %p207 = scmp.ne.s32.totalorder %s199, %s201
      %p208 = scmp.eq.s32.totalorder %s97, 1
      %p209 = por %p207, %p208
      %p210 = scmp.ne.s32.totalorder %s201, %s202
      %p211 = scmp.eq.s32.totalorder %s97, 0
      %p212 = por %p210, %p211
      %p213 = scmp.ne.s32.totalorder %s201, %s202
      %p214 = scmp.eq.s32.totalorder %s98, 1
      %p215 = por %p213, %p214
      %p217 = scmp.ne.s32.totalorder %s202, %s216
      %p218 = scmp.eq.s32.totalorder %s98, 0
      %p219 = por %p217, %p218
      %s221 = sadd.s32 %s220, 1
      %p224 = scmp.eq.s32.totalorder %s92, 1
      %p225 = scmp.ne.s32.totalorder %s220, %s222
      %p226 = scmp.eq.s32.totalorder %s92, 0
      %p227 = por %p225, %p226
      %p228 = scmp.ne.s32.totalorder %s220, %s222
      %p229 = scmp.eq.s32.totalorder %s97, 1
      %p230 = por %p228, %p229
      %p231 = scmp.ne.s32.totalorder %s222, %s223
      %p232 = scmp.eq.s32.totalorder %s97, 0
      %p233 = por %p231, %p232
      %p234 = scmp.ne.s32.totalorder %s222, %s223
      %p235 = scmp.eq.s32.totalorder %s98, 1
      %p236 = por %p234, %p235
      %p238 = scmp.ne.s32.totalorder %s223, %s237
      %p239 = scmp.eq.s32.totalorder %s98, 0
      %p240 = por %p238, %p239
      %s242 = sadd.s32 %s241, 1
      %p245 = scmp.eq.s32.totalorder %s92, 1
      %p246 = scmp.ne.s32.totalorder %s241, %s243
      %p247 = scmp.eq.s32.totalorder %s92, 0
      %p248 = por %p246, %p247
      %p249 = scmp.ne.s32.totalorder %s241, %s243
      %p250 = scmp.eq.s32.totalorder %s97, 1
      %p251 = por %p249, %p250
      %p252 = scmp.ne.s32.totalorder %s243, %s244
      %p253 = scmp.eq.s32.totalorder %s97, 0
      %p254 = por %p252, %p253
      %p255 = scmp.ne.s32.totalorder %s243, %s244
      %p256 = scmp.eq.s32.totalorder %s98, 1
      %p257 = por %p255, %p256
      %p259 = scmp.ne.s32.totalorder %s244, %s258
      %p260 = scmp.eq.s32.totalorder %s98, 0
      %p261 = por %p259, %p260
      %s263 = sadd.s32 %s262, 1
      %p266 = scmp.eq.s32.totalorder %s92, 1
      %p267 = scmp.ne.s32.totalorder %s262, %s264
      %p268 = scmp.eq.s32.totalorder %s92, 0
      %p269 = por %p267, %p268
      %p270 = scmp.ne.s32.totalorder %s262, %s264
      %p271 = scmp.eq.s32.totalorder %s97, 1
      %p272 = por %p270, %p271
      %p273 = scmp.ne.s32.totalorder %s264, %s265
      %p274 = scmp.eq.s32.totalorder %s97, 0
      %p275 = por %p273, %p274
      %p276 = scmp.ne.s32.totalorder %s264, %s265
      %p277 = scmp.eq.s32.totalorder %s98, 1
      %p278 = por %p276, %p277
      %p280 = scmp.ne.s32.totalorder %s265, %s279
      %p281 = scmp.eq.s32.totalorder %s98, 0
      %p282 = por %p280, %p281
      %s284 = sadd.s32 %s283, 1
      %p287 = scmp.eq.s32.totalorder %s92, 1
      %p288 = scmp.ne.s32.totalorder %s283, %s285
      %p289 = scmp.eq.s32.totalorder %s92, 0
      %p290 = por %p288, %p289
      %p291 = scmp.ne.s32.totalorder %s283, %s285
      %p292 = scmp.eq.s32.totalorder %s97, 1
      %p293 = por %p291, %p292
      %p294 = scmp.ne.s32.totalorder %s285, %s286
      %p295 = scmp.eq.s32.totalorder %s97, 0
      %p296 = por %p294, %p295
      %p297 = scmp.ne.s32.totalorder %s285, %s286
      %p298 = scmp.eq.s32.totalorder %s98, 1
      %p299 = por %p297, %p298
      %p301 = scmp.ne.s32.totalorder %s286, %s300
      %p302 = scmp.eq.s32.totalorder %s98, 0
      %p303 = por %p301, %p302
      %s305 = sadd.s32 %s304, 1
      %p308 = scmp.eq.s32.totalorder %s92, 1
      %p309 = scmp.ne.s32.totalorder %s304, %s306
      %p310 = scmp.eq.s32.totalorder %s92, 0
      %p311 = por %p309, %p310
      %p312 = scmp.ne.s32.totalorder %s304, %s306
      %p313 = scmp.eq.s32.totalorder %s97, 1
      %p314 = por %p312, %p313
      %p315 = scmp.ne.s32.totalorder %s306, %s307
      %p316 = scmp.eq.s32.totalorder %s97, 0
      %p317 = por %p315, %p316
      %p318 = scmp.ne.s32.totalorder %s306, %s307
      %p319 = scmp.eq.s32.totalorder %s98, 1
      %p320 = por %p318, %p319
      %p322 = scmp.ne.s32.totalorder %s307, %s321
      %p323 = scmp.eq.s32.totalorder %s98, 0
      %p324 = por %p322, %p323
      %s326 = sadd.s32 %s325, 1
      %p329 = scmp.eq.s32.totalorder %s92, 1
      %p330 = scmp.ne.s32.totalorder %s325, %s327
      %p331 = scmp.eq.s32.totalorder %s92, 0
      %p332 = por %p330, %p331
      %p333 = scmp.ne.s32.totalorder %s325, %s327
      %p334 = scmp.eq.s32.totalorder %s97, 1
      %p335 = por %p333, %p334
      %p336 = scmp.ne.s32.totalorder %s327, %s328
      %p337 = scmp.eq.s32.totalorder %s97, 0
      %p338 = por %p336, %p337
      %p339 = scmp.ne.s32.totalorder %s327, %s328
      %p340 = scmp.eq.s32.totalorder %s98, 1
      %p341 = por %p339, %p340
      %p343 = scmp.ne.s32.totalorder %s328, %s342
      %p344 = scmp.eq.s32.totalorder %s98, 0
      %p345 = por %p343, %p344
      %s347 = sadd.s32 %s346, 1
      %p350 = scmp.eq.s32.totalorder %s92, 1
      %p351 = scmp.ne.s32.totalorder %s346, %s348
      %p352 = scmp.eq.s32.totalorder %s92, 0
      %p353 = por %p351, %p352
      %p354 = scmp.ne.s32.totalorder %s346, %s348
      %p355 = scmp.eq.s32.totalorder %s97, 1
      %p356 = por %p354, %p355
      %p357 = scmp.ne.s32.totalorder %s348, %s349
      %p358 = scmp.eq.s32.totalorder %s97, 0
      %p359 = por %p357, %p358
      %p360 = scmp.ne.s32.totalorder %s348, %s349
      %p361 = scmp.eq.s32.totalorder %s98, 1
      %p362 = por %p360, %p361
      %p364 = scmp.ne.s32.totalorder %s349, %s363
      %p365 = scmp.eq.s32.totalorder %s98, 0
      %p366 = por %p364, %p365
      %s368 = sadd.s32 %s367, 1
      %p371 = scmp.eq.s32.totalorder %s92, 1
      %p372 = scmp.ne.s32.totalorder %s367, %s369
      %p373 = scmp.eq.s32.totalorder %s92, 0
      %p374 = por %p372, %p373
      %p375 = scmp.ne.s32.totalorder %s367, %s369
      %p376 = scmp.eq.s32.totalorder %s97, 1
      %p377 = por %p375, %p376
      %p378 = scmp.ne.s32.totalorder %s369, %s370
      %p379 = scmp.eq.s32.totalorder %s97, 0
      %p380 = por %p378, %p379
      %p381 = scmp.ne.s32.totalorder %s369, %s370
      %p382 = scmp.eq.s32.totalorder %s98, 1
      %p383 = por %p381, %p382
      %p385 = scmp.ne.s32.totalorder %s370, %s384
      %p386 = scmp.eq.s32.totalorder %s98, 0
      %p387 = por %p385, %p386
      %s389 = sadd.s32 %s388, 1
      %p392 = scmp.eq.s32.totalorder %s92, 1
      %p393 = scmp.ne.s32.totalorder %s388, %s390
      %p394 = scmp.eq.s32.totalorder %s92, 0
      %p395 = por %p393, %p394
      %p396 = scmp.ne.s32.totalorder %s388, %s390
      %p397 = scmp.eq.s32.totalorder %s97, 1
      %p398 = por %p396, %p397
      %p399 = scmp.ne.s32.totalorder %s390, %s391
      %p400 = scmp.eq.s32.totalorder %s97, 0
      %p401 = por %p399, %p400
      %p402 = scmp.ne.s32.totalorder %s390, %s391
      %p403 = scmp.eq.s32.totalorder %s98, 1
      %p404 = por %p402, %p403
      %p406 = scmp.ne.s32.totalorder %s391, %s405
      %p407 = scmp.eq.s32.totalorder %s98, 0
      %p408 = por %p406, %p407
      %s410 = sadd.s32 %s409, 1
      %p413 = scmp.eq.s32.totalorder %s92, 1
      %p414 = scmp.ne.s32.totalorder %s409, %s411
      %p415 = scmp.eq.s32.totalorder %s92, 0
      %p416 = por %p414, %p415
      %p417 = scmp.ne.s32.totalorder %s409, %s411
      %p418 = scmp.eq.s32.totalorder %s97, 1
      %p419 = por %p417, %p418
      %p420 = scmp.ne.s32.totalorder %s411, %s412
      %p421 = scmp.eq.s32.totalorder %s97, 0
      %p422 = por %p420, %p421
      %p423 = scmp.ne.s32.totalorder %s411, %s412
      %p424 = scmp.eq.s32.totalorder %s98, 1
      %p425 = por %p423, %p424
      %p427 = scmp.ne.s32.totalorder %s412, %s426
      %p428 = scmp.eq.s32.totalorder %s98, 0
      %p429 = por %p427, %p428
      %s431 = sadd.s32 %s430, 1
      %p434 = scmp.eq.s32.totalorder %s92, 1
      %p435 = scmp.ne.s32.totalorder %s430, %s432
      %p436 = scmp.eq.s32.totalorder %s92, 0
      %p437 = por %p435, %p436
      %p438 = scmp.ne.s32.totalorder %s430, %s432
      %p439 = scmp.eq.s32.totalorder %s97, 1
      %p440 = por %p438, %p439
      %p441 = scmp.ne.s32.totalorder %s432, %s433
      %p442 = scmp.eq.s32.totalorder %s97, 0
      %p443 = por %p441, %p442
      %p444 = scmp.ne.s32.totalorder %s432, %s433
      %p445 = scmp.eq.s32.totalorder %s98, 1
      %p446 = por %p444, %p445
      %p448 = scmp.ne.s32.totalorder %s433, %s447
      %p449 = scmp.eq.s32.totalorder %s98, 0
      %p450 = por %p448, %p449
      %s452 = sadd.s32 %s451, 1
      %p455 = scmp.eq.s32.totalorder %s92, 1
      %p456 = scmp.ne.s32.totalorder %s451, %s453
      %p457 = scmp.eq.s32.totalorder %s92, 0
      %p458 = por %p456, %p457
      %p459 = scmp.ne.s32.totalorder %s451, %s453
      %p460 = scmp.eq.s32.totalorder %s97, 1
      %p461 = por %p459, %p460
      %p462 = scmp.ne.s32.totalorder %s453, %s454
      %p463 = scmp.eq.s32.totalorder %s97, 0
      %p464 = por %p462, %p463
      %p465 = scmp.ne.s32.totalorder %s453, %s454
      %p466 = scmp.eq.s32.totalorder %s98, 1
      %p467 = por %p465, %p466
      %p469 = scmp.ne.s32.totalorder %s454, %s468
      %p470 = scmp.eq.s32.totalorder %s98, 0
      %p471 = por %p469, %p470
      %s473 = sadd.s32 %s472, 1
      %p476 = scmp.eq.s32.totalorder %s92, 1
      %p477 = scmp.ne.s32.totalorder %s472, %s474
      %p478 = scmp.eq.s32.totalorder %s92, 0
      %p479 = por %p477, %p478
      %p480 = scmp.ne.s32.totalorder %s472, %s474
      %p481 = scmp.eq.s32.totalorder %s97, 1
      %p482 = por %p480, %p481
      %p483 = scmp.ne.s32.totalorder %s474, %s475
      %p484 = scmp.eq.s32.totalorder %s97, 0
      %p485 = por %p483, %p484
      %p486 = scmp.ne.s32.totalorder %s474, %s475
      %p487 = scmp.eq.s32.totalorder %s98, 1
      %p488 = por %p486, %p487
      %p490 = scmp.ne.s32.totalorder %s475, %s489
      %p491 = scmp.eq.s32.totalorder %s98, 0
      %p492 = por %p490, %p491
      %s494 = sadd.s32 %s493, 1
      %p497 = scmp.eq.s32.totalorder %s92, 1
      %p498 = scmp.ne.s32.totalorder %s493, %s495
      %p499 = scmp.eq.s32.totalorder %s92, 0
      %p500 = por %p498, %p499
      %p501 = scmp.ne.s32.totalorder %s493, %s495
      %p502 = scmp.eq.s32.totalorder %s97, 1
      %p503 = por %p501, %p502
      %p504 = scmp.ne.s32.totalorder %s495, %s496
      %p505 = scmp.eq.s32.totalorder %s97, 0
      %p506 = por %p504, %p505
      %p507 = scmp.ne.s32.totalorder %s495, %s496
      %p508 = scmp.eq.s32.totalorder %s98, 1
      %p509 = por %p507, %p508
      %p511 = scmp.ne.s32.totalorder %s496, %s510
      %p512 = scmp.eq.s32.totalorder %s98, 0
      %p513 = por %p511, %p512
      %s515 = sadd.s32 %s514, 1
      %p518 = scmp.eq.s32.totalorder %s92, 1
      %p519 = scmp.ne.s32.totalorder %s514, %s516
      %p520 = scmp.eq.s32.totalorder %s92, 0
      %p521 = por %p519, %p520
      %p522 = scmp.ne.s32.totalorder %s514, %s516
      %p523 = scmp.eq.s32.totalorder %s97, 1
      %p524 = por %p522, %p523
      %p525 = scmp.ne.s32.totalorder %s516, %s517
      %p526 = scmp.eq.s32.totalorder %s97, 0
      %p527 = por %p525, %p526
      %p528 = scmp.ne.s32.totalorder %s516, %s517
      %p529 = scmp.eq.s32.totalorder %s98, 1
      %p530 = por %p528, %p529
      %p532 = scmp.ne.s32.totalorder %s517, %s531
      %p533 = scmp.eq.s32.totalorder %s98, 0
      %p534 = por %p532, %p533
      %s536 = sadd.s32 %s535, 1
      %p539 = scmp.eq.s32.totalorder %s92, 1
      %p540 = scmp.ne.s32.totalorder %s535, %s537
      %p541 = scmp.eq.s32.totalorder %s92, 0
      %p542 = por %p540, %p541
      %p543 = scmp.ne.s32.totalorder %s535, %s537
      %p544 = scmp.eq.s32.totalorder %s97, 1
      %p545 = por %p543, %p544
      %p546 = scmp.ne.s32.totalorder %s537, %s538
      %p547 = scmp.eq.s32.totalorder %s97, 0
      %p548 = por %p546, %p547
      %p549 = scmp.ne.s32.totalorder %s537, %s538
      %p550 = scmp.eq.s32.totalorder %s98, 1
      %p551 = por %p549, %p550
      %p553 = scmp.ne.s32.totalorder %s538, %s552
      %p554 = scmp.eq.s32.totalorder %s98, 0
      %p555 = por %p553, %p554
      %s557 = sadd.s32 %s556, 1
      %p560 = scmp.eq.s32.totalorder %s92, 1
      %p561 = scmp.ne.s32.totalorder %s556, %s558
      %p562 = scmp.eq.s32.totalorder %s92, 0
      %p563 = por %p561, %p562
      %p564 = scmp.ne.s32.totalorder %s556, %s558
      %p565 = scmp.eq.s32.totalorder %s97, 1
      %p566 = por %p564, %p565
      %p567 = scmp.ne.s32.totalorder %s558, %s559
      %p568 = scmp.eq.s32.totalorder %s97, 0
      %p569 = por %p567, %p568
      %p570 = scmp.ne.s32.totalorder %s558, %s559
      %p571 = scmp.eq.s32.totalorder %s98, 1
      %p572 = por %p570, %p571
      %p574 = scmp.ne.s32.totalorder %s559, %s573
      %p575 = scmp.eq.s32.totalorder %s98, 0
      %p576 = por %p574, %p575
      %s578 = sadd.s32 %s577, 1
      %p581 = scmp.eq.s32.totalorder %s92, 1
      %p582 = scmp.ne.s32.totalorder %s577, %s579
      %p583 = scmp.eq.s32.totalorder %s92, 0
      %p584 = por %p582, %p583
      %p585 = scmp.ne.s32.totalorder %s577, %s579
      %p586 = scmp.eq.s32.totalorder %s97, 1
      %p587 = por %p585, %p586
      %p588 = scmp.ne.s32.totalorder %s579, %s580
      %p589 = scmp.eq.s32.totalorder %s97, 0
      %p590 = por %p588, %p589
      %p591 = scmp.ne.s32.totalorder %s579, %s580
      %p592 = scmp.eq.s32.totalorder %s98, 1
      %p593 = por %p591, %p592
      %p595 = scmp.ne.s32.totalorder %s580, %s594
      %p596 = scmp.eq.s32.totalorder %s98, 0
      %p597 = por %p595, %p596
      %s599 = sadd.s32 %s598, 1
      %p602 = scmp.eq.s32.totalorder %s92, 1
      %p603 = scmp.ne.s32.totalorder %s598, %s600
      %p604 = scmp.eq.s32.totalorder %s92, 0
      %p605 = por %p603, %p604
      %p606 = scmp.ne.s32.totalorder %s598, %s600
      %p607 = scmp.eq.s32.totalorder %s97, 1
      %p608 = por %p606, %p607
      %p609 = scmp.ne.s32.totalorder %s600, %s601
      %p610 = scmp.eq.s32.totalorder %s97, 0
      %p611 = por %p609, %p610
      %p612 = scmp.ne.s32.totalorder %s600, %s601
      %p613 = scmp.eq.s32.totalorder %s98, 1
      %p614 = por %p612, %p613
      %p616 = scmp.ne.s32.totalorder %s601, %s615
      %p617 = scmp.eq.s32.totalorder %s98, 0
      %p618 = por %p616, %p617
      %s620 = sadd.s32 %s619, 1
      %p623 = scmp.eq.s32.totalorder %s92, 1
      %p624 = scmp.ne.s32.totalorder %s619, %s621
      %p625 = scmp.eq.s32.totalorder %s92, 0
      %p626 = por %p624, %p625
      %p627 = scmp.ne.s32.totalorder %s619, %s621
      %p628 = scmp.eq.s32.totalorder %s97, 1
      %p629 = por %p627, %p628
      %p630 = scmp.ne.s32.totalorder %s621, %s622
      %p631 = scmp.eq.s32.totalorder %s97, 0
      %p632 = por %p630, %p631
      %p633 = scmp.ne.s32.totalorder %s621, %s622
      %p634 = scmp.eq.s32.totalorder %s98, 1
      %p635 = por %p633, %p634
      %p637 = scmp.ne.s32.totalorder %s622, %s636
      %p638 = scmp.eq.s32.totalorder %s98, 0
      %p639 = por %p637, %p638
      %s641 = sadd.s32 %s640, 1
      %p644 = scmp.eq.s32.totalorder %s92, 1
      %p645 = scmp.ne.s32.totalorder %s640, %s642
      %p646 = scmp.eq.s32.totalorder %s92, 0
      %p647 = por %p645, %p646
      %p648 = scmp.ne.s32.totalorder %s640, %s642
      %p649 = scmp.eq.s32.totalorder %s97, 1
      %p650 = por %p648, %p649
      %p651 = scmp.ne.s32.totalorder %s642, %s643
      %p652 = scmp.eq.s32.totalorder %s97, 0
      %p653 = por %p651, %p652
      %p654 = scmp.ne.s32.totalorder %s642, %s643
      %p655 = scmp.eq.s32.totalorder %s98, 1
      %p656 = por %p654, %p655
      %p658 = scmp.ne.s32.totalorder %s643, %s657
      %p659 = scmp.eq.s32.totalorder %s98, 0
      %p660 = por %p658, %p659
      %s662 = sadd.s32 %s661, 1
      %p665 = scmp.eq.s32.totalorder %s92, 1
      %p666 = scmp.ne.s32.totalorder %s661, %s663
      %p667 = scmp.eq.s32.totalorder %s92, 0
      %p668 = por %p666, %p667
      %p669 = scmp.ne.s32.totalorder %s661, %s663
      %p670 = scmp.eq.s32.totalorder %s97, 1
      %p671 = por %p669, %p670
      %p672 = scmp.ne.s32.totalorder %s663, %s664
      %p673 = scmp.eq.s32.totalorder %s97, 0
      %p674 = por %p672, %p673
      %p675 = scmp.ne.s32.totalorder %s663, %s664
      %p676 = scmp.eq.s32.totalorder %s98, 1
      %p677 = por %p675, %p676
      %p679 = scmp.ne.s32.totalorder %s664, %s678
      %p680 = scmp.eq.s32.totalorder %s98, 0
      %p681 = por %p679, %p680
      %s683 = sadd.s32 %s682, 1
      %p686 = scmp.eq.s32.totalorder %s92, 1
      %p687 = scmp.ne.s32.totalorder %s682, %s684
      %p688 = scmp.eq.s32.totalorder %s92, 0
      %p689 = por %p687, %p688
      %p690 = scmp.ne.s32.totalorder %s682, %s684
      %p691 = scmp.eq.s32.totalorder %s97, 1
      %p692 = por %p690, %p691
      %p693 = scmp.ne.s32.totalorder %s684, %s685
      %p694 = scmp.eq.s32.totalorder %s97, 0
      %p695 = por %p693, %p694
      %p696 = scmp.ne.s32.totalorder %s684, %s685
      %p697 = scmp.eq.s32.totalorder %s98, 1
      %p698 = por %p696, %p697
      %p700 = scmp.ne.s32.totalorder %s685, %s699
      %p701 = scmp.eq.s32.totalorder %s98, 0
      %p702 = por %p700, %p701
      %s704 = sadd.s32 %s703, 1
      %p707 = scmp.eq.s32.totalorder %s92, 1
      %p708 = scmp.ne.s32.totalorder %s703, %s705
      %p709 = scmp.eq.s32.totalorder %s92, 0
      %p710 = por %p708, %p709
      %p711 = scmp.ne.s32.totalorder %s703, %s705
      %p712 = scmp.eq.s32.totalorder %s97, 1
      %p713 = por %p711, %p712
      %p714 = scmp.ne.s32.totalorder %s705, %s706
      %p715 = scmp.eq.s32.totalorder %s97, 0
      %p716 = por %p714, %p715
      %p717 = scmp.ne.s32.totalorder %s705, %s706
      %p718 = scmp.eq.s32.totalorder %s98, 1
      %p719 = por %p717, %p718
      %p721 = scmp.ne.s32.totalorder %s706, %s720
      %p722 = scmp.eq.s32.totalorder %s98, 0
      %p723 = por %p721, %p722
      %s725 = sadd.s32 %s724, 1
      %p728 = scmp.eq.s32.totalorder %s92, 1
      %p729 = scmp.ne.s32.totalorder %s724, %s726
      %p730 = scmp.eq.s32.totalorder %s92, 0
      %p731 = por %p729, %p730
      %p732 = scmp.ne.s32.totalorder %s724, %s726
      %p733 = scmp.eq.s32.totalorder %s97, 1
      %p734 = por %p732, %p733
      %p735 = scmp.ne.s32.totalorder %s726, %s727
      %p736 = scmp.eq.s32.totalorder %s97, 0
      %p737 = por %p735, %p736
      %p738 = scmp.ne.s32.totalorder %s726, %s727
      %p739 = scmp.eq.s32.totalorder %s98, 1
      %p740 = por %p738, %p739
      %p742 = scmp.ne.s32.totalorder %s727, %s741
      %p743 = scmp.eq.s32.totalorder %s98, 0
      %p744 = por %p742, %p743
      %s746 = sadd.s32 %s745, 1
      %p749 = scmp.eq.s32.totalorder %s92, 1
      %p750 = scmp.ne.s32.totalorder %s745, %s747
      %p751 = scmp.eq.s32.totalorder %s92, 0
      %p752 = por %p750, %p751
      %p753 = scmp.ne.s32.totalorder %s745, %s747
      %p754 = scmp.eq.s32.totalorder %s97, 1
      %p755 = por %p753, %p754
      %p756 = scmp.ne.s32.totalorder %s747, %s748
      %p757 = scmp.eq.s32.totalorder %s97, 0
      %p758 = por %p756, %p757
      %p759 = scmp.ne.s32.totalorder %s747, %s748
      %p760 = scmp.eq.s32.totalorder %s98, 1
      %p761 = por %p759, %p760
      %p763 = scmp.ne.s32.totalorder %s748, %s762
      %p764 = scmp.eq.s32.totalorder %s98, 0
      %p765 = por %p763, %p764
      %s767 = sadd.s32 %s766, 1
      %p770 = scmp.eq.s32.totalorder %s92, 1
      %p771 = scmp.ne.s32.totalorder %s766, %s768
      %p772 = scmp.eq.s32.totalorder %s92, 0
      %p773 = por %p771, %p772
      %p774 = scmp.ne.s32.totalorder %s766, %s768
      %p775 = scmp.eq.s32.totalorder %s97, 1
      %p776 = por %p774, %p775
      %p777 = scmp.ne.s32.totalorder %s768, %s769
      %p778 = scmp.eq.s32.totalorder %s97, 0
      %p779 = por %p777, %p778
      %p780 = scmp.ne.s32.totalorder %s768, %s769
      %p781 = scmp.eq.s32.totalorder %s98, 1
      %p782 = por %p780, %p781
      %p784 = scmp.ne.s32.totalorder %s769, %s783
      %p785 = scmp.eq.s32.totalorder %s98, 0
      %p786 = por %p784, %p785
      %s788 = sadd.s32 %s787, 1
      %p791 = scmp.eq.s32.totalorder %s92, 1
      %p792 = scmp.ne.s32.totalorder %s787, %s789
      %p793 = scmp.eq.s32.totalorder %s92, 0
      %p794 = por %p792, %p793
      %p795 = scmp.ne.s32.totalorder %s787, %s789
      %p796 = scmp.eq.s32.totalorder %s97, 1
      %p797 = por %p795, %p796
      %p798 = scmp.ne.s32.totalorder %s789, %s790
      %p799 = scmp.eq.s32.totalorder %s97, 0
      %p800 = por %p798, %p799
      %p801 = scmp.ne.s32.totalorder %s789, %s790
      %p802 = scmp.eq.s32.totalorder %s98, 1
      %p803 = por %p801, %p802
      %p805 = scmp.ne.s32.totalorder %s790, %s804
      %p806 = scmp.eq.s32.totalorder %s98, 0
      %p807 = por %p805, %p806
      %s809 = sadd.s32 %s808, 1
      %p812 = scmp.eq.s32.totalorder %s92, 1
      %p813 = scmp.ne.s32.totalorder %s808, %s810
      %p814 = scmp.eq.s32.totalorder %s92, 0
      %p815 = por %p813, %p814
      %p816 = scmp.ne.s32.totalorder %s808, %s810
      %p817 = scmp.eq.s32.totalorder %s97, 1
      %p818 = por %p816, %p817
      %p819 = scmp.ne.s32.totalorder %s810, %s811
      %p820 = scmp.eq.s32.totalorder %s97, 0
      %p821 = por %p819, %p820
      %p822 = scmp.ne.s32.totalorder %s810, %s811
      %p823 = scmp.eq.s32.totalorder %s98, 1
      %p824 = por %p822, %p823
      %p826 = scmp.ne.s32.totalorder %s811, %s825
      %p827 = scmp.eq.s32.totalorder %s98, 0
      %p828 = por %p826, %p827
      %s830 = sadd.s32 %s829, 1
      %p833 = scmp.eq.s32.totalorder %s92, 1
      %p834 = scmp.ne.s32.totalorder %s829, %s831
      %p835 = scmp.eq.s32.totalorder %s92, 0
      %p836 = por %p834, %p835
      %p837 = scmp.ne.s32.totalorder %s829, %s831
      %p838 = scmp.eq.s32.totalorder %s97, 1
      %p839 = por %p837, %p838
      %p840 = scmp.ne.s32.totalorder %s831, %s832
      %p841 = scmp.eq.s32.totalorder %s97, 0
      %p842 = por %p840, %p841
      %p843 = scmp.ne.s32.totalorder %s831, %s832
      %p844 = scmp.eq.s32.totalorder %s98, 1
      %p845 = por %p843, %p844
      %p847 = scmp.ne.s32.totalorder %s832, %s846
      %p848 = scmp.eq.s32.totalorder %s98, 0
      %p849 = por %p847, %p848
      %s851 = sadd.s32 %s850, 1
      %p854 = scmp.eq.s32.totalorder %s92, 1
      %p855 = scmp.ne.s32.totalorder %s850, %s852
      %p856 = scmp.eq.s32.totalorder %s92, 0
      %p857 = por %p855, %p856
      %p858 = scmp.ne.s32.totalorder %s850, %s852
      %p859 = scmp.eq.s32.totalorder %s97, 1
      %p860 = por %p858, %p859
      %p861 = scmp.ne.s32.totalorder %s852, %s853
      %p862 = scmp.eq.s32.totalorder %s97, 0
      %p863 = por %p861, %p862
      %p864 = scmp.ne.s32.totalorder %s852, %s853
      %p865 = scmp.eq.s32.totalorder %s98, 1
      %p866 = por %p864, %p865
      %p868 = scmp.ne.s32.totalorder %s853, %s867
      %p869 = scmp.eq.s32.totalorder %s98, 0
      %p870 = por %p868, %p869
      %s872 = sadd.s32 %s871, 1
      %p875 = scmp.eq.s32.totalorder %s92, 1
      %p876 = scmp.ne.s32.totalorder %s871, %s873
      %p877 = scmp.eq.s32.totalorder %s92, 0
      %p878 = por %p876, %p877
      %p879 = scmp.ne.s32.totalorder %s871, %s873
      %p880 = scmp.eq.s32.totalorder %s97, 1
      %p881 = por %p879, %p880
      %p882 = scmp.ne.s32.totalorder %s873, %s874
      %p883 = scmp.eq.s32.totalorder %s97, 0
      %p884 = por %p882, %p883
      %p885 = scmp.ne.s32.totalorder %s873, %s874
      %p886 = scmp.eq.s32.totalorder %s98, 1
      %p887 = por %p885, %p886
      %p889 = scmp.ne.s32.totalorder %s874, %s888
      %p890 = scmp.eq.s32.totalorder %s98, 0
      %p891 = por %p889, %p890
      %s893 = sadd.s32 %s892, 1
      %p896 = scmp.eq.s32.totalorder %s92, 1
      %p897 = scmp.ne.s32.totalorder %s892, %s894
      %p898 = scmp.eq.s32.totalorder %s92, 0
      %p899 = por %p897, %p898
      %p900 = scmp.ne.s32.totalorder %s892, %s894
      %p901 = scmp.eq.s32.totalorder %s97, 1
      %p902 = por %p900, %p901
      %p903 = scmp.ne.s32.totalorder %s894, %s895
      %p904 = scmp.eq.s32.totalorder %s97, 0
      %p905 = por %p903, %p904
      %p906 = scmp.ne.s32.totalorder %s894, %s895
      %p907 = scmp.eq.s32.totalorder %s98, 1
      %p908 = por %p906, %p907
      %p910 = scmp.ne.s32.totalorder %s895, %s909
      %p911 = scmp.eq.s32.totalorder %s98, 0
      %p912 = por %p910, %p911
      %s914 = sadd.s32 %s913, 1
      %p917 = scmp.eq.s32.totalorder %s92, 1
      %p918 = scmp.ne.s32.totalorder %s913, %s915
      %p919 = scmp.eq.s32.totalorder %s92, 0
      %p920 = por %p918, %p919
      %p921 = scmp.ne.s32.totalorder %s913, %s915
      %p922 = scmp.eq.s32.totalorder %s97, 1
      %p923 = por %p921, %p922
      %p924 = scmp.ne.s32.totalorder %s915, %s916
      %p925 = scmp.eq.s32.totalorder %s97, 0
      %p926 = por %p924, %p925
      %p927 = scmp.ne.s32.totalorder %s915, %s916
      %p928 = scmp.eq.s32.totalorder %s98, 1
      %p929 = por %p927, %p928
      %p931 = scmp.ne.s32.totalorder %s916, %s930
      %p932 = scmp.eq.s32.totalorder %s98, 0
      %p933 = por %p931, %p932
      %s935 = sadd.s32 %s934, 1
      %p938 = scmp.eq.s32.totalorder %s92, 1
      %p939 = scmp.ne.s32.totalorder %s934, %s936
      %p940 = scmp.eq.s32.totalorder %s92, 0
      %p941 = por %p939, %p940
      %p942 = scmp.ne.s32.totalorder %s934, %s936
      %p943 = scmp.eq.s32.totalorder %s97, 1
      %p944 = por %p942, %p943
      %p945 = scmp.ne.s32.totalorder %s936, %s937
      %p946 = scmp.eq.s32.totalorder %s97, 0
      %p947 = por %p945, %p946
      %p948 = scmp.ne.s32.totalorder %s936, %s937
      %p949 = scmp.eq.s32.totalorder %s98, 1
      %p950 = por %p948, %p949
      %p952 = scmp.ne.s32.totalorder %s937, %s951
      %p953 = scmp.eq.s32.totalorder %s98, 0
      %p954 = por %p952, %p953
      %s956 = sadd.s32 %s955, 1
      %p959 = scmp.eq.s32.totalorder %s92, 1
      %p960 = scmp.ne.s32.totalorder %s955, %s957
      %p961 = scmp.eq.s32.totalorder %s92, 0
      %p962 = por %p960, %p961
      %p963 = scmp.ne.s32.totalorder %s955, %s957
      %p964 = scmp.eq.s32.totalorder %s97, 1
      %p965 = por %p963, %p964
      %p966 = scmp.ne.s32.totalorder %s957, %s958
      %p967 = scmp.eq.s32.totalorder %s97, 0
      %p968 = por %p966, %p967
      %p969 = scmp.ne.s32.totalorder %s957, %s958
      %p970 = scmp.eq.s32.totalorder %s98, 1
      %p971 = por %p969, %p970
      %p973 = scmp.ne.s32.totalorder %s958, %s972
      %p974 = scmp.eq.s32.totalorder %s98, 0
      %p975 = por %p973, %p974
      %s977 = sadd.s32 %s976, 1
      %p980 = scmp.eq.s32.totalorder %s92, 1
      %p981 = scmp.ne.s32.totalorder %s976, %s978
      %p982 = scmp.eq.s32.totalorder %s92, 0
      %p983 = por %p981, %p982
      %p984 = scmp.ne.s32.totalorder %s976, %s978
      %p985 = scmp.eq.s32.totalorder %s97, 1
      %p986 = por %p984, %p985
      %p987 = scmp.ne.s32.totalorder %s978, %s979
      %p988 = scmp.eq.s32.totalorder %s97, 0
      %p989 = por %p987, %p988
      %p990 = scmp.ne.s32.totalorder %s978, %s979
      %p991 = scmp.eq.s32.totalorder %s98, 1
      %p992 = por %p990, %p991
      %p994 = scmp.ne.s32.totalorder %s979, %s993
      %p995 = scmp.eq.s32.totalorder %s98, 0
      %p996 = por %p994, %p995
      %s997 = ssub.s32 %s92, %s99
      %p998 = scmp.eq.s32.totalorder %s997, 0
      %s1000 = sadd.s32 %s999, 1
      %s1001 = scalar_select %p998, %s999, %s1000
      %p1004 = pneg %p998
      %p1005 = scmp.eq.s32.totalorder %s92, 1
      %p1006 = por %p1004, %p1005
      %p1007 = scmp.ne.s32.totalorder %s999, %s1002
      %p1008 = scmp.eq.s32.totalorder %s92, 0
      %p1009 = por %p1007, %p1008
      %p1010 = scmp.ne.s32.totalorder %s999, %s1002
      %p1011 = scmp.eq.s32.totalorder %s97, 1
      %p1012 = por %p1010, %p1011
      %p1013 = scmp.ne.s32.totalorder %s1002, %s1003
      %p1014 = scmp.eq.s32.totalorder %s97, 0
      %p1015 = por %p1013, %p1014
      %p1016 = scmp.ne.s32.totalorder %s1002, %s1003
      %p1017 = scmp.eq.s32.totalorder %s98, 1
      %p1018 = por %p1016, %p1017
      %p1020 = scmp.ne.s32.totalorder %s1003, %s1019
      %p1021 = scmp.eq.s32.totalorder %s98, 0
      %p1022 = por %p1020, %p1021
      %p1023 = scmp.le.s32.totalorder 1, %s92
      %p1024 = scmp.lt.s32.totalorder %s92, 3
      %p1025 = pnand %p1023, %p1024
      %p1026 = pneg %p1025
      // Predicated region
      $region9: #{gnn_infer_forward.1} parent=5 // pred_check
        _
      $region10: #{gnn_infer_forward.1} parent=5 // pred_check_branch
        %1028 = sbr.rel (%p1025) target = $region12
      $region11: #{gnn_infer_forward.1} parent=5 // pred_region
        %s1029 = ssub.s32 %s92, 1
        // Predicated region
        $region13: #{gnn_infer_forward.1} parent=11 // pred_check
          %p1030 = pneg %p191
        $region14: #{gnn_infer_forward.1} parent=11 // pred_check_branch
          %1032 = sbr.rel (%p1030) target = $region16
        $region15: #{gnn_infer_forward.1} parent=11 // pred_region
          _
        $region16: #{gnn_infer_forward.1} parent=11 // pred_fallthru
          _
        // Predicated region
        $region17: #{gnn_infer_forward.1} parent=11 // pred_check
          %p1033 = pneg %p212
        $region18: #{gnn_infer_forward.1} parent=11 // pred_check_branch
          %1035 = sbr.rel (%p1033) target = $region20
        $region19: #{gnn_infer_forward.1} parent=11 // pred_region
          _
        $region20: #{gnn_infer_forward.1} parent=11 // pred_fallthru
          _
        // Predicated region
        $region21: #{gnn_infer_forward.1} parent=11 // pred_check
          %p1036 = pneg %p233
        $region22: #{gnn_infer_forward.1} parent=11 // pred_check_branch
          %1038 = sbr.rel (%p1036) target = $region24
        $region23: #{gnn_infer_forward.1} parent=11 // pred_region
          _
        $region24: #{gnn_infer_forward.1} parent=11 // pred_fallthru
          _
        // Predicated region
        $region25: #{gnn_infer_forward.1} parent=11 // pred_check
          %p1039 = pneg %p254
        $region26: #{gnn_infer_forward.1} parent=11 // pred_check_branch
          %1041 = sbr.rel (%p1039) target = $region28
        $region27: #{gnn_infer_forward.1} parent=11 // pred_region
          _
        $region28: #{gnn_infer_forward.1} parent=11 // pred_fallthru
          _
        // Predicated region
        $region29: #{gnn_infer_forward.1} parent=11 // pred_check
          %p1042 = pneg %p275
        $region30: #{gnn_infer_forward.1} parent=11 // pred_check_branch
          %1044 = sbr.rel (%p1042) target = $region32
        $region31: #{gnn_infer_forward.1} parent=11 // pred_region
          _
        $region32: #{gnn_infer_forward.1} parent=11 // pred_fallthru
          _
        // Predicated region
        $region33: #{gnn_infer_forward.1} parent=11 // pred_check
          %p1045 = pneg %p296
        $region34: #{gnn_infer_forward.1} parent=11 // pred_check_branch
          %1047 = sbr.rel (%p1045) target = $region36
        $region35: #{gnn_infer_forward.1} parent=11 // pred_region
          _
        $region36: #{gnn_infer_forward.1} parent=11 // pred_fallthru
          _
        // Predicated region
        $region37: #{gnn_infer_forward.1} parent=11 // pred_check
          %p1048 = pneg %p317
        $region38: #{gnn_infer_forward.1} parent=11 // pred_check_branch
          %1050 = sbr.rel (%p1048) target = $region40
        $region39: #{gnn_infer_forward.1} parent=11 // pred_region
          _
        $region40: #{gnn_infer_forward.1} parent=11 // pred_fallthru
          _
        // Predicated region
        $region41: #{gnn_infer_forward.1} parent=11 // pred_check
          %p1051 = pneg %p338
        $region42: #{gnn_infer_forward.1} parent=11 // pred_check_branch
          %1053 = sbr.rel (%p1051) target = $region44
        $region43: #{gnn_infer_forward.1} parent=11 // pred_region
          _
        $region44: #{gnn_infer_forward.1} parent=11 // pred_fallthru
          _
        // Predicated region
        $region45: #{gnn_infer_forward.1} parent=11 // pred_check
          %p1054 = pneg %p359
        $region46: #{gnn_infer_forward.1} parent=11 // pred_check_branch
          %1056 = sbr.rel (%p1054) target = $region48
        $region47: #{gnn_infer_forward.1} parent=11 // pred_region
          _
        $region48: #{gnn_infer_forward.1} parent=11 // pred_fallthru
          _
        // Predicated region
        $region49: #{gnn_infer_forward.1} parent=11 // pred_check
          %p1057 = pneg %p380
        $region50: #{gnn_infer_forward.1} parent=11 // pred_check_branch
          %1059 = sbr.rel (%p1057) target = $region52
        $region51: #{gnn_infer_forward.1} parent=11 // pred_region
          _
        $region52: #{gnn_infer_forward.1} parent=11 // pred_fallthru
          _
        // Predicated region
        $region53: #{gnn_infer_forward.1} parent=11 // pred_check
          %p1060 = pneg %p401
        $region54: #{gnn_infer_forward.1} parent=11 // pred_check_branch
          %1062 = sbr.rel (%p1060) target = $region56
        $region55: #{gnn_infer_forward.1} parent=11 // pred_region
          _
        $region56: #{gnn_infer_forward.1} parent=11 // pred_fallthru
          _
        // Predicated region
        $region57: #{gnn_infer_forward.1} parent=11 // pred_check
          %p1063 = pneg %p422
        $region58: #{gnn_infer_forward.1} parent=11 // pred_check_branch
          %1065 = sbr.rel (%p1063) target = $region60
        $region59: #{gnn_infer_forward.1} parent=11 // pred_region
          _
        $region60: #{gnn_infer_forward.1} parent=11 // pred_fallthru
          _
        // Predicated region
        $region61: #{gnn_infer_forward.1} parent=11 // pred_check
          %p1066 = pneg %p443
        $region62: #{gnn_infer_forward.1} parent=11 // pred_check_branch
          %1068 = sbr.rel (%p1066) target = $region64
        $region63: #{gnn_infer_forward.1} parent=11 // pred_region
          _
        $region64: #{gnn_infer_forward.1} parent=11 // pred_fallthru
          _
        // Predicated region
        $region65: #{gnn_infer_forward.1} parent=11 // pred_check
          %p1069 = pneg %p464
        $region66: #{gnn_infer_forward.1} parent=11 // pred_check_branch
          %1071 = sbr.rel (%p1069) target = $region68
        $region67: #{gnn_infer_forward.1} parent=11 // pred_region
          _
        $region68: #{gnn_infer_forward.1} parent=11 // pred_fallthru
          _
        // Predicated region
        $region69: #{gnn_infer_forward.1} parent=11 // pred_check
          %p1072 = pneg %p485
        $region70: #{gnn_infer_forward.1} parent=11 // pred_check_branch
          %1074 = sbr.rel (%p1072) target = $region72
        $region71: #{gnn_infer_forward.1} parent=11 // pred_region
          _
        $region72: #{gnn_infer_forward.1} parent=11 // pred_fallthru
          _
        // Predicated region
        $region73: #{gnn_infer_forward.1} parent=11 // pred_check
          %p1075 = pneg %p506
        $region74: #{gnn_infer_forward.1} parent=11 // pred_check_branch
          %1077 = sbr.rel (%p1075) target = $region76
        $region75: #{gnn_infer_forward.1} parent=11 // pred_region
          _
        $region76: #{gnn_infer_forward.1} parent=11 // pred_fallthru
          _
        // Predicated region
        $region77: #{gnn_infer_forward.1} parent=11 // pred_check
          %p1078 = pneg %p527
        $region78: #{gnn_infer_forward.1} parent=11 // pred_check_branch
          %1080 = sbr.rel (%p1078) target = $region80
        $region79: #{gnn_infer_forward.1} parent=11 // pred_region
          _
        $region80: #{gnn_infer_forward.1} parent=11 // pred_fallthru
          _
        // Predicated region
        $region81: #{gnn_infer_forward.1} parent=11 // pred_check
          %p1081 = pneg %p548
        $region82: #{gnn_infer_forward.1} parent=11 // pred_check_branch
          %1083 = sbr.rel (%p1081) target = $region84
        $region83: #{gnn_infer_forward.1} parent=11 // pred_region
          _
        $region84: #{gnn_infer_forward.1} parent=11 // pred_fallthru
          _
        // Predicated region
        $region85: #{gnn_infer_forward.1} parent=11 // pred_check
          %p1084 = pneg %p569
        $region86: #{gnn_infer_forward.1} parent=11 // pred_check_branch
          %1086 = sbr.rel (%p1084) target = $region88
        $region87: #{gnn_infer_forward.1} parent=11 // pred_region
          _
        $region88: #{gnn_infer_forward.1} parent=11 // pred_fallthru
          _
        // Predicated region
        $region89: #{gnn_infer_forward.1} parent=11 // pred_check
          %p1087 = pneg %p590
        $region90: #{gnn_infer_forward.1} parent=11 // pred_check_branch
          %1089 = sbr.rel (%p1087) target = $region92
        $region91: #{gnn_infer_forward.1} parent=11 // pred_region
          _
        $region92: #{gnn_infer_forward.1} parent=11 // pred_fallthru
          _
        // Predicated region
        $region93: #{gnn_infer_forward.1} parent=11 // pred_check
          %p1090 = pneg %p611
        $region94: #{gnn_infer_forward.1} parent=11 // pred_check_branch
          %1092 = sbr.rel (%p1090) target = $region96
        $region95: #{gnn_infer_forward.1} parent=11 // pred_region
          _
        $region96: #{gnn_infer_forward.1} parent=11 // pred_fallthru
          _
        // Predicated region
        $region97: #{gnn_infer_forward.1} parent=11 // pred_check
          %p1093 = pneg %p632
        $region98: #{gnn_infer_forward.1} parent=11 // pred_check_branch
          %1095 = sbr.rel (%p1093) target = $region100
        $region99: #{gnn_infer_forward.1} parent=11 // pred_region
          _
        $region100: #{gnn_infer_forward.1} parent=11 // pred_fallthru
          _
        // Predicated region
        $region101: #{gnn_infer_forward.1} parent=11 // pred_check
          %p1096 = pneg %p653
        $region102: #{gnn_infer_forward.1} parent=11 // pred_check_branch
          %1098 = sbr.rel (%p1096) target = $region104
        $region103: #{gnn_infer_forward.1} parent=11 // pred_region
          _
        $region104: #{gnn_infer_forward.1} parent=11 // pred_fallthru
          _
        // Predicated region
        $region105: #{gnn_infer_forward.1} parent=11 // pred_check
          %p1099 = pneg %p674
        $region106: #{gnn_infer_forward.1} parent=11 // pred_check_branch
          %1101 = sbr.rel (%p1099) target = $region108
        $region107: #{gnn_infer_forward.1} parent=11 // pred_region
          _
        $region108: #{gnn_infer_forward.1} parent=11 // pred_fallthru
          _
        // Predicated region
        $region109: #{gnn_infer_forward.1} parent=11 // pred_check
          %p1102 = pneg %p695
        $region110: #{gnn_infer_forward.1} parent=11 // pred_check_branch
          %1104 = sbr.rel (%p1102) target = $region112
        $region111: #{gnn_infer_forward.1} parent=11 // pred_region
          _
        $region112: #{gnn_infer_forward.1} parent=11 // pred_fallthru
          _
        // Predicated region
        $region113: #{gnn_infer_forward.1} parent=11 // pred_check
          %p1105 = pneg %p716
        $region114: #{gnn_infer_forward.1} parent=11 // pred_check_branch
          %1107 = sbr.rel (%p1105) target = $region116
        $region115: #{gnn_infer_forward.1} parent=11 // pred_region
          _
        $region116: #{gnn_infer_forward.1} parent=11 // pred_fallthru
          _
        // Predicated region
        $region117: #{gnn_infer_forward.1} parent=11 // pred_check
          %p1108 = pneg %p737
        $region118: #{gnn_infer_forward.1} parent=11 // pred_check_branch
          %1110 = sbr.rel (%p1108) target = $region120
        $region119: #{gnn_infer_forward.1} parent=11 // pred_region
          _
        $region120: #{gnn_infer_forward.1} parent=11 // pred_fallthru
          _
        // Predicated region
        $region121: #{gnn_infer_forward.1} parent=11 // pred_check
          %p1111 = pneg %p758
        $region122: #{gnn_infer_forward.1} parent=11 // pred_check_branch
          %1113 = sbr.rel (%p1111) target = $region124
        $region123: #{gnn_infer_forward.1} parent=11 // pred_region
          _
        $region124: #{gnn_infer_forward.1} parent=11 // pred_fallthru
          _
        // Predicated region
        $region125: #{gnn_infer_forward.1} parent=11 // pred_check
          %p1114 = pneg %p779
        $region126: #{gnn_infer_forward.1} parent=11 // pred_check_branch
          %1116 = sbr.rel (%p1114) target = $region128
        $region127: #{gnn_infer_forward.1} parent=11 // pred_region
          _
        $region128: #{gnn_infer_forward.1} parent=11 // pred_fallthru
          _
        // Predicated region
        $region129: #{gnn_infer_forward.1} parent=11 // pred_check
          %p1117 = pneg %p800
        $region130: #{gnn_infer_forward.1} parent=11 // pred_check_branch
          %1119 = sbr.rel (%p1117) target = $region132
        $region131: #{gnn_infer_forward.1} parent=11 // pred_region
          _
        $region132: #{gnn_infer_forward.1} parent=11 // pred_fallthru
          _
        // Predicated region
        $region133: #{gnn_infer_forward.1} parent=11 // pred_check
          %p1120 = pneg %p821
        $region134: #{gnn_infer_forward.1} parent=11 // pred_check_branch
          %1122 = sbr.rel (%p1120) target = $region136
        $region135: #{gnn_infer_forward.1} parent=11 // pred_region
          _
        $region136: #{gnn_infer_forward.1} parent=11 // pred_fallthru
          _
        // Predicated region
        $region137: #{gnn_infer_forward.1} parent=11 // pred_check
          %p1123 = pneg %p842
        $region138: #{gnn_infer_forward.1} parent=11 // pred_check_branch
          %1125 = sbr.rel (%p1123) target = $region140
        $region139: #{gnn_infer_forward.1} parent=11 // pred_region
          _
        $region140: #{gnn_infer_forward.1} parent=11 // pred_fallthru
          _
        // Predicated region
        $region141: #{gnn_infer_forward.1} parent=11 // pred_check
          %p1126 = pneg %p863
        $region142: #{gnn_infer_forward.1} parent=11 // pred_check_branch
          %1128 = sbr.rel (%p1126) target = $region144
        $region143: #{gnn_infer_forward.1} parent=11 // pred_region
          _
        $region144: #{gnn_infer_forward.1} parent=11 // pred_fallthru
          _
        // Predicated region
        $region145: #{gnn_infer_forward.1} parent=11 // pred_check
          %p1129 = pneg %p884
        $region146: #{gnn_infer_forward.1} parent=11 // pred_check_branch
          %1131 = sbr.rel (%p1129) target = $region148
        $region147: #{gnn_infer_forward.1} parent=11 // pred_region
          _
        $region148: #{gnn_infer_forward.1} parent=11 // pred_fallthru
          _
        // Predicated region
        $region149: #{gnn_infer_forward.1} parent=11 // pred_check
          %p1132 = pneg %p905
        $region150: #{gnn_infer_forward.1} parent=11 // pred_check_branch
          %1134 = sbr.rel (%p1132) target = $region152
        $region151: #{gnn_infer_forward.1} parent=11 // pred_region
          _
        $region152: #{gnn_infer_forward.1} parent=11 // pred_fallthru
          _
        // Predicated region
        $region153: #{gnn_infer_forward.1} parent=11 // pred_check
          %p1135 = pneg %p926
        $region154: #{gnn_infer_forward.1} parent=11 // pred_check_branch
          %1137 = sbr.rel (%p1135) target = $region156
        $region155: #{gnn_infer_forward.1} parent=11 // pred_region
          _
        $region156: #{gnn_infer_forward.1} parent=11 // pred_fallthru
          _
        // Predicated region
        $region157: #{gnn_infer_forward.1} parent=11 // pred_check
          %p1138 = pneg %p947
        $region158: #{gnn_infer_forward.1} parent=11 // pred_check_branch
          %1140 = sbr.rel (%p1138) target = $region160
        $region159: #{gnn_infer_forward.1} parent=11 // pred_region
          _
        $region160: #{gnn_infer_forward.1} parent=11 // pred_fallthru
          _
        // Predicated region
        $region161: #{gnn_infer_forward.1} parent=11 // pred_check
          %p1141 = pneg %p968
        $region162: #{gnn_infer_forward.1} parent=11 // pred_check_branch
          %1143 = sbr.rel (%p1141) target = $region164
        $region163: #{gnn_infer_forward.1} parent=11 // pred_region
          _
        $region164: #{gnn_infer_forward.1} parent=11 // pred_fallthru
          _
        // Predicated region
        $region165: #{gnn_infer_forward.1} parent=11 // pred_check
          %p1144 = pneg %p989
        $region166: #{gnn_infer_forward.1} parent=11 // pred_check_branch
          %1146 = sbr.rel (%p1144) target = $region168
        $region167: #{gnn_infer_forward.1} parent=11 // pred_region
          %s1148 = ssub.s32 16, 16
          %1149 = vsyncadd [#allocation6], %s1148
          %s1151 = sshll.u32 %s83, 4
          %s1152 = int_to_ptr.vmem [resolvable:$true] %s1151
          %1154 = dma.vmem_to_smem %s1152, 16, [#allocation5], [#allocation6]
        $region168: #{gnn_infer_forward.1} parent=11 // pred_fallthru
          _
      $region12: #{gnn_infer_forward.1} parent=5 // pred_fallthru
        _
      %p1155 = scmp.lt.s32.totalorder %s92, 2
      // Predicated region
      $region169: #{gnn_infer_forward.1} parent=5 // pred_check
        %p1156 = pneg %p1155
      $region170: #{gnn_infer_forward.1} parent=5 // pred_check_branch
        %1158 = sbr.rel (%p1156) target = $region172
      $region171: #{gnn_infer_forward.1} parent=5 // pred_region
        // Predicated region
        $region173: #{gnn_infer_forward.1} parent=171 // pred_check
          %p1159 = pneg %p112
        $region174: #{gnn_infer_forward.1} parent=171 // pred_check_branch
          %1161 = sbr.rel (%p1159) target = $region176
        $region175: #{gnn_infer_forward.1} parent=171 // pred_region
          %s1162 = sand.u32 %s102, 1
          %s1163 = sand.u32 %s102, 1
          %s1164 = smul.addr %s1163, 64
          %s1165 = scalar_lea.vmem [#allocation2], %s1164
          %s1166 = smul.u32 2, %s92
          %s1167 = smul.addr %s1166, 8
          %s1168 = scalar_lea.vmem %s1, %s1167
          // Predicated region
          $region177: #{gnn_infer_forward.1} parent=175 // pred_check
            _
          $region178: #{gnn_infer_forward.1} parent=175 // pred_check_branch
            %1170 = sbr.rel (0) target = $region180
          $region179: #{gnn_infer_forward.1} parent=175 // pred_region
            // Predicated region
            $region181: #{gnn_infer_forward.1} parent=179 // pred_check
              _
            $region182: #{gnn_infer_forward.1} parent=179 // pred_check_branch
              %1172 = sbr.rel (0) target = $region184
            $region183: #{gnn_infer_forward.1} parent=179 // pred_region
              loop: start=0, step=1, limit=1
              $region185: #{gnn_infer_forward.1} parent=183 // loop_pre_header
                _
              $region186: #{gnn_infer_forward.1} parent=183 // loop_header
                %s1174 = sphi 0, %s1178
                %p1175 = scmp.ge.s32.totalorder %s1174, 1
                %s1179 = sphi %s1168, %s1168
                %s1180 = sphi %s1165, %s1165
              $region187: #{gnn_infer_forward.1} parent=183 // loop_header_branch
                %1177 = sbr.rel (%p1175) target = $region191
              $region188: #{gnn_infer_forward.1} parent=183 // loop_body
                %v1181 = vld [vmem:[%s1179] sm:$0xff]
                %1182 = vst [vmem:[%s1180] sm:$0xff] %v1181
                %v1183 = vld [vmem:[%s1179 + $0x8] sm:$0xff]
                %1184 = vst [vmem:[%s1180 + $0x8] sm:$0xff] %v1183
                %v1185 = vld [vmem:[%s1179 + $0x20] sm:$0xff]
                %1186 = vst [vmem:[%s1180 + $0x10] sm:$0xff] %v1185
                %v1187 = vld [vmem:[%s1179 + $0x28] sm:$0xff]
                %1188 = vst [vmem:[%s1180 + $0x18] sm:$0xff] %v1187
                %v1189 = vld [vmem:[%s1179 + $0x40] sm:$0xff]
                %1190 = vst [vmem:[%s1180 + $0x20] sm:$0xff] %v1189
                %v1191 = vld [vmem:[%s1179 + $0x48] sm:$0xff]
                %1192 = vst [vmem:[%s1180 + $0x28] sm:$0xff] %v1191
                %v1193 = vld [vmem:[%s1179 + $0x60] sm:$0xff]
                %1194 = vst [vmem:[%s1180 + $0x30] sm:$0xff] %v1193
                %v1195 = vld [vmem:[%s1179 + $0x68] sm:$0xff]
                %1196 = vst [vmem:[%s1180 + $0x38] sm:$0xff] %v1195
              $region189: #{gnn_infer_forward.1} parent=183 // loop_footer
                %s1178 = sadd.s32 1, %s1174
              $region190: #{gnn_infer_forward.1} parent=183 // loop_footer_branch
                %1173 = sbr.rel target = $region186
              $region191: #{gnn_infer_forward.1} parent=183 // loop_exit
                _
            $region184: #{gnn_infer_forward.1} parent=179 // pred_fallthru
              _
            // Predicated region
            $region192: #{gnn_infer_forward.1} parent=179 // pred_check
              _
            $region193: #{gnn_infer_forward.1} parent=179 // pred_check_branch
              %1198 = sbr.rel target = $region195
            $region194: #{gnn_infer_forward.1} parent=179 // pred_region
              _
            $region195: #{gnn_infer_forward.1} parent=179 // pred_fallthru
              _
          $region180: #{gnn_infer_forward.1} parent=175 // pred_fallthru
            _
          %1199 = vnop
        $region176: #{gnn_infer_forward.1} parent=171 // pred_fallthru
          _
        // Predicated region
        $region196: #{gnn_infer_forward.1} parent=171 // pred_check
          %p1200 = pneg %p138
        $region197: #{gnn_infer_forward.1} parent=171 // pred_check_branch
          %1202 = sbr.rel (%p1200) target = $region199
        $region198: #{gnn_infer_forward.1} parent=171 // pred_region
          %s1203 = sand.u32 %s128, 1
          %s1204 = sand.u32 %s128, 1
          %s1205 = smul.addr %s1204, 64
          %s1206 = scalar_lea.vmem [#allocation3], %s1205
          %s1207 = smul.u32 2, %s92
          %s1208 = smul.addr %s1207, 8
          %s1209 = scalar_lea.vmem %s3, %s1208
          // Predicated region
          $region200: #{gnn_infer_forward.1} parent=198 // pred_check
            _
          $region201: #{gnn_infer_forward.1} parent=198 // pred_check_branch
            %1211 = sbr.rel (0) target = $region203
          $region202: #{gnn_infer_forward.1} parent=198 // pred_region
            // Predicated region
            $region204: #{gnn_infer_forward.1} parent=202 // pred_check
              _
            $region205: #{gnn_infer_forward.1} parent=202 // pred_check_branch
              %1213 = sbr.rel (0) target = $region207
            $region206: #{gnn_infer_forward.1} parent=202 // pred_region
              loop: start=0, step=1, limit=1
              $region208: #{gnn_infer_forward.1} parent=206 // loop_pre_header
                _
              $region209: #{gnn_infer_forward.1} parent=206 // loop_header
                %s1215 = sphi 0, %s1219
                %p1216 = scmp.ge.s32.totalorder %s1215, 1
                %s1220 = sphi %s1209, %s1209
                %s1221 = sphi %s1206, %s1206
              $region210: #{gnn_infer_forward.1} parent=206 // loop_header_branch
                %1218 = sbr.rel (%p1216) target = $region214
              $region211: #{gnn_infer_forward.1} parent=206 // loop_body
                %v1222 = vld [vmem:[%s1220] sm:$0xff]
                %1223 = vst [vmem:[%s1221] sm:$0xff] %v1222
                %v1224 = vld [vmem:[%s1220 + $0x8] sm:$0xff]
                %1225 = vst [vmem:[%s1221 + $0x8] sm:$0xff] %v1224
                %v1226 = vld [vmem:[%s1220 + $0x20] sm:$0xff]
                %1227 = vst [vmem:[%s1221 + $0x10] sm:$0xff] %v1226
                %v1228 = vld [vmem:[%s1220 + $0x28] sm:$0xff]
                %1229 = vst [vmem:[%s1221 + $0x18] sm:$0xff] %v1228
                %v1230 = vld [vmem:[%s1220 + $0x40] sm:$0xff]
                %1231 = vst [vmem:[%s1221 + $0x20] sm:$0xff] %v1230
                %v1232 = vld [vmem:[%s1220 + $0x48] sm:$0xff]
                %1233 = vst [vmem:[%s1221 + $0x28] sm:$0xff] %v1232
                %v1234 = vld [vmem:[%s1220 + $0x60] sm:$0xff]
                %1235 = vst [vmem:[%s1221 + $0x30] sm:$0xff] %v1234
                %v1236 = vld [vmem:[%s1220 + $0x68] sm:$0xff]
                %1237 = vst [vmem:[%s1221 + $0x38] sm:$0xff] %v1236
              $region212: #{gnn_infer_forward.1} parent=206 // loop_footer
                %s1219 = sadd.s32 1, %s1215
              $region213: #{gnn_infer_forward.1} parent=206 // loop_footer_branch
                %1214 = sbr.rel target = $region209
              $region214: #{gnn_infer_forward.1} parent=206 // loop_exit
                _
            $region207: #{gnn_infer_forward.1} parent=202 // pred_fallthru
              _
            // Predicated region
            $region215: #{gnn_infer_forward.1} parent=202 // pred_check
              _
            $region216: #{gnn_infer_forward.1} parent=202 // pred_check_branch
              %1239 = sbr.rel target = $region218
            $region217: #{gnn_infer_forward.1} parent=202 // pred_region
              _
            $region218: #{gnn_infer_forward.1} parent=202 // pred_fallthru
              _
          $region203: #{gnn_infer_forward.1} parent=198 // pred_fallthru
            _
          %1240 = vnop
        $region199: #{gnn_infer_forward.1} parent=171 // pred_fallthru
          _
        // Predicated region
        $region219: #{gnn_infer_forward.1} parent=171 // pred_check
          %p1241 = pneg %p164
        $region220: #{gnn_infer_forward.1} parent=171 // pred_check_branch
          %1243 = sbr.rel (%p1241) target = $region222
        $region221: #{gnn_infer_forward.1} parent=171 // pred_region
          %s1244 = sand.u32 %s154, 1
          %s1245 = sand.u32 %s154, 1
          %s1246 = smul.addr %s1245, 64
          %s1247 = scalar_lea.vmem [#allocation4], %s1246
          %s1248 = smul.u32 2, %s92
          %s1249 = smul.addr %s1248, 8
          %s1250 = scalar_lea.vmem %s5, %s1249
          // Predicated region
          $region223: #{gnn_infer_forward.1} parent=221 // pred_check
            _
          $region224: #{gnn_infer_forward.1} parent=221 // pred_check_branch
            %1252 = sbr.rel (0) target = $region226
          $region225: #{gnn_infer_forward.1} parent=221 // pred_region
            // Predicated region
            $region227: #{gnn_infer_forward.1} parent=225 // pred_check
              _
            $region228: #{gnn_infer_forward.1} parent=225 // pred_check_branch
              %1254 = sbr.rel (0) target = $region230
            $region229: #{gnn_infer_forward.1} parent=225 // pred_region
              loop: start=0, step=1, limit=1
              $region231: #{gnn_infer_forward.1} parent=229 // loop_pre_header
                _
              $region232: #{gnn_infer_forward.1} parent=229 // loop_header
                %s1256 = sphi 0, %s1260
                %p1257 = scmp.ge.s32.totalorder %s1256, 1
                %s1261 = sphi %s1250, %s1250
                %s1262 = sphi %s1247, %s1247
              $region233: #{gnn_infer_forward.1} parent=229 // loop_header_branch
                %1259 = sbr.rel (%p1257) target = $region237
              $region234: #{gnn_infer_forward.1} parent=229 // loop_body
                %v1263 = vld [vmem:[%s1261] sm:$0xff]
                %1264 = vst [vmem:[%s1262] sm:$0xff] %v1263
                %v1265 = vld [vmem:[%s1261 + $0x8] sm:$0xff]
                %1266 = vst [vmem:[%s1262 + $0x8] sm:$0xff] %v1265
                %v1267 = vld [vmem:[%s1261 + $0x20] sm:$0xff]
                %1268 = vst [vmem:[%s1262 + $0x10] sm:$0xff] %v1267
                %v1269 = vld [vmem:[%s1261 + $0x28] sm:$0xff]
                %1270 = vst [vmem:[%s1262 + $0x18] sm:$0xff] %v1269
                %v1271 = vld [vmem:[%s1261 + $0x40] sm:$0xff]
                %1272 = vst [vmem:[%s1262 + $0x20] sm:$0xff] %v1271
                %v1273 = vld [vmem:[%s1261 + $0x48] sm:$0xff]
                %1274 = vst [vmem:[%s1262 + $0x28] sm:$0xff] %v1273
                %v1275 = vld [vmem:[%s1261 + $0x60] sm:$0xff]
                %1276 = vst [vmem:[%s1262 + $0x30] sm:$0xff] %v1275
                %v1277 = vld [vmem:[%s1261 + $0x68] sm:$0xff]
                %1278 = vst [vmem:[%s1262 + $0x38] sm:$0xff] %v1277
              $region235: #{gnn_infer_forward.1} parent=229 // loop_footer
                %s1260 = sadd.s32 1, %s1256
              $region236: #{gnn_infer_forward.1} parent=229 // loop_footer_branch
                %1255 = sbr.rel target = $region232
              $region237: #{gnn_infer_forward.1} parent=229 // loop_exit
                _
            $region230: #{gnn_infer_forward.1} parent=225 // pred_fallthru
              _
            // Predicated region
            $region238: #{gnn_infer_forward.1} parent=225 // pred_check
              _
            $region239: #{gnn_infer_forward.1} parent=225 // pred_check_branch
              %1280 = sbr.rel target = $region241
            $region240: #{gnn_infer_forward.1} parent=225 // pred_region
              _
            $region241: #{gnn_infer_forward.1} parent=225 // pred_fallthru
              _
          $region226: #{gnn_infer_forward.1} parent=221 // pred_fallthru
            _
          %1281 = vnop
        $region222: #{gnn_infer_forward.1} parent=171 // pred_fallthru
          _
      $region172: #{gnn_infer_forward.1} parent=5 // pred_fallthru
        _
      %p1282 = scmp.le.s32.totalorder 1, %s92
      %p1283 = scmp.lt.s32.totalorder %s92, 3
      %p1284 = pnand %p1282, %p1283
      %p1285 = pneg %p1284
      // Predicated region
      $region242: #{gnn_infer_forward.1} parent=5 // pred_check
        _
      $region243: #{gnn_infer_forward.1} parent=5 // pred_check_branch
        %1287 = sbr.rel (%p1284) target = $region245
      $region244: #{gnn_infer_forward.1} parent=5 // pred_region
        %s1288 = ssub.s32 %s92, 1
        %s1289 = sand.u32 %s105, 1
        %s1290 = sand.u32 %s105, 1
        %s1291 = smul.addr %s1290, 64
        %s1292 = scalar_lea.vmem [#allocation2], %s1291
        // Predicated region
        $region246: #{gnn_infer_forward.1} parent=244 // pred_check
          %p1293 = pneg %p118
        $region247: #{gnn_infer_forward.1} parent=244 // pred_check_branch
          %1295 = sbr.rel (%p1293) target = $region249
        $region248: #{gnn_infer_forward.1} parent=244 // pred_region
          _
        $region249: #{gnn_infer_forward.1} parent=244 // pred_fallthru
          _
        %s1296 = sand.u32 %s131, 1
        %s1297 = sand.u32 %s131, 1
        %s1298 = smul.addr %s1297, 64
        %s1299 = scalar_lea.vmem [#allocation3], %s1298
        // Predicated region
        $region250: #{gnn_infer_forward.1} parent=244 // pred_check
          %p1300 = pneg %p144
        $region251: #{gnn_infer_forward.1} parent=244 // pred_check_branch
          %1302 = sbr.rel (%p1300) target = $region253
        $region252: #{gnn_infer_forward.1} parent=244 // pred_region
          _
        $region253: #{gnn_infer_forward.1} parent=244 // pred_fallthru
          _
        %s1303 = sand.u32 %s157, 1
        %s1304 = sand.u32 %s157, 1
        %s1305 = smul.addr %s1304, 64
        %s1306 = scalar_lea.vmem [#allocation4], %s1305
        // Predicated region
        $region254: #{gnn_infer_forward.1} parent=244 // pred_check
          %p1307 = pneg %p170
        $region255: #{gnn_infer_forward.1} parent=244 // pred_check_branch
          %1309 = sbr.rel (%p1307) target = $region257
        $region256: #{gnn_infer_forward.1} parent=244 // pred_region
          _
        $region257: #{gnn_infer_forward.1} parent=244 // pred_fallthru
          _
        // Predicated region
        $region258: #{gnn_infer_forward.1} parent=244 // pred_check
          %p1310 = pneg %p989
        $region259: #{gnn_infer_forward.1} parent=244 // pred_check_branch
          %1312 = sbr.rel (%p1310) target = $region261
        $region260: #{gnn_infer_forward.1} parent=244 // pred_region
          %1313 = dma.done [#allocation6], 16
        $region261: #{gnn_infer_forward.1} parent=244 // pred_fallthru
          _
        %1314 = sfence
        %s1315 = sand.u32 %s105, 1
        %s1316 = sand.u32 %s105, 1
        %s1317 = smul.addr %s1316, 64
        %s1318 = scalar_lea.vmem [#allocation2], %s1317
        %p1319 = pneg %p118
        %p1320 = pneg %p115
        %s1321 = sand.u32 %s131, 1
        %s1322 = sand.u32 %s131, 1
        %s1323 = smul.addr %s1322, 64
        %s1324 = scalar_lea.vmem [#allocation3], %s1323
        %p1325 = pneg %p144
        %p1326 = pneg %p141
        %s1327 = sand.u32 %s157, 1
        %s1328 = sand.u32 %s157, 1
        %s1329 = smul.addr %s1328, 64
        %s1330 = scalar_lea.vmem [#allocation4], %s1329
        %p1331 = pneg %p170
        %p1332 = pneg %p167
        %p1333 = pneg %p191
        %p1334 = pneg %p188
        %p1335 = pneg %p212
        %p1336 = pneg %p209
        %p1337 = pneg %p233
        %p1338 = pneg %p230
        %p1339 = pneg %p254
        %p1340 = pneg %p251
        %p1341 = pneg %p275
        %p1342 = pneg %p272
        %p1343 = pneg %p296
        %p1344 = pneg %p293
        %p1345 = pneg %p317
        %p1346 = pneg %p314
        %p1347 = pneg %p338
        %p1348 = pneg %p335
        %p1349 = pneg %p359
        %p1350 = pneg %p356
        %p1351 = pneg %p380
        %p1352 = pneg %p377
        %p1353 = pneg %p401
        %p1354 = pneg %p398
        %p1355 = pneg %p422
        %p1356 = pneg %p419
        %p1357 = pneg %p443
        %p1358 = pneg %p440
        %p1359 = pneg %p464
        %p1360 = pneg %p461
        %p1361 = pneg %p485
        %p1362 = pneg %p482
        %p1363 = pneg %p506
        %p1364 = pneg %p503
        %p1365 = pneg %p527
        %p1366 = pneg %p524
        %p1367 = pneg %p548
        %p1368 = pneg %p545
        %p1369 = pneg %p569
        %p1370 = pneg %p566
        %p1371 = pneg %p590
        %p1372 = pneg %p587
        %p1373 = pneg %p611
        %p1374 = pneg %p608
        %p1375 = pneg %p632
        %p1376 = pneg %p629
        %p1377 = pneg %p653
        %p1378 = pneg %p650
        %p1379 = pneg %p674
        %p1380 = pneg %p671
        %p1381 = pneg %p695
        %p1382 = pneg %p692
        %p1383 = pneg %p716
        %p1384 = pneg %p713
        %p1385 = pneg %p737
        %p1386 = pneg %p734
        %p1387 = pneg %p758
        %p1388 = pneg %p755
        %p1389 = pneg %p779
        %p1390 = pneg %p776
        %p1391 = pneg %p800
        %p1392 = pneg %p797
        %p1393 = pneg %p821
        %p1394 = pneg %p818
        %p1395 = pneg %p842
        %p1396 = pneg %p839
        %p1397 = pneg %p863
        %p1398 = pneg %p860
        %p1399 = pneg %p884
        %p1400 = pneg %p881
        %p1401 = pneg %p905
        %p1402 = pneg %p902
        %p1403 = pneg %p926
        %p1404 = pneg %p923
        %p1405 = pneg %p947
        %p1406 = pneg %p944
        %p1407 = pneg %p968
        %p1408 = pneg %p965
        %p1409 = pneg %p989
        %p1410 = pneg %p986
        %p1411 = pneg %p1015
        %p1412 = pneg %p1012
        %s1413 = sand.u32 %s1002, 1
        %s1414 = sand.u32 %s1002, 1
        %s1415 = smul.addr %s1414, 144
        %s1416 = scalar_lea.vmem [#allocation7], %s1415
        %s1417 = smul.u32 2, %s97
        %s1418 = smul.u32 2, %s97
        %s1419 = smul.u32 2, %s97
        %s1420 = smul.u32 2, %s97
        %v1421 = vld [vmem:[%s1292] sm:$0xff]
        %v1422 = vld [vmem:[%s1292 + $0x8] sm:$0xff]
        %v1423 = vld [vmem:[%s1292 + $0x10] sm:$0xff]
        %v1424 = vld [vmem:[%s1292 + $0x18] sm:$0xff]
        %v1425 = vld [vmem:[%s1292 + $0x20] sm:$0xff]
        %v1426 = vld [vmem:[%s1292 + $0x28] sm:$0xff]
        %v1427 = vld [vmem:[%s1292 + $0x30] sm:$0xff]
        %v1428 = vld [vmem:[%s1292 + $0x38] sm:$0xff]
        %v1429 = vld [vmem:[%s1299] sm:$0xff]
        %v1430 = vld [vmem:[%s1299 + $0x8] sm:$0xff]
        %v1431 = vld [vmem:[%s1299 + $0x10] sm:$0xff]
        %v1432 = vld [vmem:[%s1299 + $0x18] sm:$0xff]
        %v1433 = vld [vmem:[%s1299 + $0x20] sm:$0xff]
        %v1434 = vld [vmem:[%s1299 + $0x28] sm:$0xff]
        %v1435 = vld [vmem:[%s1299 + $0x30] sm:$0xff]
        %v1436 = vld [vmem:[%s1299 + $0x38] sm:$0xff]
        %v1437 = vld [vmem:[%s1306] sm:$0xff]
        %v1438 = vld [vmem:[%s1306 + $0x8] sm:$0xff]
        %v1439 = vld [vmem:[%s1306 + $0x10] sm:$0xff]
        %v1440 = vld [vmem:[%s1306 + $0x18] sm:$0xff]
        %v1441 = vld [vmem:[%s1306 + $0x20] sm:$0xff]
        %v1442 = vld [vmem:[%s1306 + $0x28] sm:$0xff]
        %v1443 = vld [vmem:[%s1306 + $0x30] sm:$0xff]
        %v1444 = vld [vmem:[%s1306 + $0x38] sm:$0xff]
        %v1445 = vld [vmem:[%s7] sm:$0xff]
        %v1446 = vld [vmem:[%s7 + $0x8] sm:$0xff]
        %v1447 = vld [vmem:[%s9] sm:$0xff]
        %v1448 = vld [vmem:[%s9 + $0x8] sm:$0xff]
        %v1449 = vld [vmem:[%s9 + $0x10] sm:$0xff]
        %v1450 = vld [vmem:[%s9 + $0x18] sm:$0xff]
        %v1451 = vld [vmem:[%s9 + $0x20] sm:$0xff]
        %v1452 = vld [vmem:[%s9 + $0x28] sm:$0xff]
        %v1453 = vld [vmem:[%s9 + $0x30] sm:$0xff]
        %v1454 = vld [vmem:[%s9 + $0x38] sm:$0xff]
        %v1455 = vld [vmem:[%s9 + $0x40] sm:$0xff]
        %v1456 = vld [vmem:[%s9 + $0x48] sm:$0xff]
        %vm1457 = vcmask 785408
        %v1459 = vsel %vm1457, %v1447, 0
        %v1462 = vsel %vm1457, %v1448, 0
        %v1465 = vsel %vm1457, %v1449, 0
        %v1468 = vsel %vm1457, %v1450, 0
        %v1471 = vsel %vm1457, %v1451, 0
        %v1474 = vsel %vm1457, %v1452, 0
        %v1477 = vsel %vm1457, %v1453, 0
        %v1480 = vsel %vm1457, %v1454, 0
        %v1483 = vsel %vm1457, %v1455, 0
        %v1486 = vsel %vm1457, %v1456, 0
        %1488 = vmatprep.subr.mxu0 %v1422
        %1489 = vmatpush1.msra.mxu0 %v1421
        %1490 = vmatprep.subr.mxu0 %v1424
        %1491 = vmatpush1.msra.mxu0 %v1423
        %1492 = vmatprep.subr.mxu0 %v1426
        %1493 = vmatpush1.msra.mxu0 %v1425
        %1494 = vmatprep.subr.mxu0 %v1428
        %1495 = vmatpush1.msra.mxu0 %v1427
        %1496 = vmatprep.subr.mxu0 %v1430
        %1497 = vmatpush1.msra.mxu0 %v1429
        %1498 = vmatprep.subr.mxu0 %v1432
        %1499 = vmatpush1.msra.mxu0 %v1431
        %1500 = vmatprep.subr.mxu0 %v1434
        %1501 = vmatpush1.msra.mxu0 %v1433
        %1502 = vmatprep.subr.mxu0 %v1436
        %1503 = vmatpush1.msra.mxu0 %v1435
        %1504 = vmatprep.subr.mxu0 %v1438
        %1505 = vmatpush1.msra.mxu0 %v1437
        %1506 = vmatprep.subr.mxu0 %v1440
        %1507 = vmatpush1.msra.mxu0 %v1439
        %1508 = vmatprep.subr.mxu0 %v1442
        %1509 = vmatpush1.msra.mxu0 %v1441
        %1510 = vmatprep.subr.mxu0 %v1444
        %1511 = vmatpush1.msra.mxu0 %v1443
        %1512 = vmatprep.subr.mxu0 0.0
        %1513 = vmatpush1.msra.mxu0 0.0
        %1514 = vmatprep.subr.mxu0 0.0
        %1515 = vmatpush1.msra.mxu0 0.0
        %1516 = vmatprep.subr.mxu0 0.0
        %1517 = vmatpush1.msra.mxu0 0.0
        %1518 = vmatprep.subr.mxu0 0.0
        %1519 = vmatpush1.msra.mxu0 0.0
        %1520 = vmatprep.subr.mxu0 0.0
        %1521 = vmatpush1.msra.mxu0 0.0
        %1522 = vmatprep.subr.mxu0 0.0
        %1523 = vmatpush1.msra.mxu0 0.0
        %1524 = vmatprep.subr.mxu0 0.0
        %1525 = vmatpush1.msra.mxu0 0.0
        %1526 = vmatprep.subr.mxu0 0.0
        %1527 = vmatpush1.msra.mxu0 0.0
        %1528 = vmatprep.subr.mxu0 0.0
        %1529 = vmatpush1.msra.mxu0 0.0
        %1530 = vmatprep.subr.mxu0 0.0
        %1531 = vmatpush1.msra.mxu0 0.0
        %1532 = vmatprep.subr.mxu0 0.0
        %1533 = vmatpush1.msra.mxu0 0.0
        %1534 = vmatprep.subr.mxu0 0.0
        %1535 = vmatpush1.msra.mxu0 0.0
        %1536 = vmatprep.subr.mxu0 0.0
        %1537 = vmatpush1.msra.mxu0 0.0
        %1538 = vmatprep.subr.mxu0 0.0
        %1539 = vmatpush1.msra.mxu0 0.0
        %1540 = vmatprep.subr.mxu0 0.0
        %1541 = vmatpush1.msra.mxu0 0.0
        %1542 = vmatprep.subr.mxu0 0.0
        %1543 = vmatpush1.msra.mxu0 0.0
        %1544 = vmatprep.subr.mxu0 0.0
        %1545 = vmatpush1.msra.mxu0 0.0
        %1546 = vmatprep.subr.mxu0 0.0
        %1547 = vmatpush1.msra.mxu0 0.0
        %1548 = vmatprep.subr.mxu0 0.0
        %1549 = vmatpush1.msra.mxu0 0.0
        %1550 = vmatprep.subr.mxu0 0.0
        %1551 = vmatpush1.msra.mxu0 0.0
        %1552 = vmatprep.mubr.f32.mxu0 0.0
        %1553 = vmatmul.mubr.f32.gmra.mrb[0].mxu0 %v1459
        %v1554 = vpop.f32.mrb[0].mxu0
        %v1555 = vadd.f32 0.0, %v1554
        %v1556 = vpop.f32.mrb[0].mxu0
        %v1557 = vadd.f32 0.0, %v1556
        %1558 = vmatprep.mubr.f32.mxu0 0.0
        %1559 = vmatmul.mubr.f32.gmra.mrb[0].mxu0 %v1462
        %v1560 = vpop.f32.mrb[0].mxu0
        %v1561 = vadd.f32 0.0, %v1560
        %v1562 = vpop.f32.mrb[0].mxu0
        %v1563 = vadd.f32 0.0, %v1562
        %1564 = vmatprep.mubr.f32.mxu0 0.0
        %1565 = vmatmul.mubr.f32.gmra.mrb[0].mxu0 %v1465
        %v1566 = vpop.f32.mrb[0].mxu0
        %v1567 = vadd.f32 0.0, %v1566
        %v1568 = vpop.f32.mrb[0].mxu0
        %v1569 = vadd.f32 0.0, %v1568
        %1570 = vmatprep.mubr.f32.mxu0 0.0
        %1571 = vmatmul.mubr.f32.gmra.mrb[0].mxu0 %v1468
        %v1572 = vpop.f32.mrb[0].mxu0
        %v1573 = vadd.f32 0.0, %v1572
        %v1574 = vpop.f32.mrb[0].mxu0
        %v1575 = vadd.f32 0.0, %v1574
        %1576 = vmatprep.mubr.f32.mxu0 0.0
        %1577 = vmatmul.mubr.f32.gmra.mrb[0].mxu0 %v1471
        %v1578 = vpop.f32.mrb[0].mxu0
        %v1579 = vadd.f32 0.0, %v1578
        %v1580 = vpop.f32.mrb[0].mxu0
        %v1581 = vadd.f32 0.0, %v1580
        %1582 = vmatprep.mubr.f32.mxu0 0.0
        %1583 = vmatmul.mubr.f32.gmra.mrb[0].mxu0 %v1474
        %v1584 = vpop.f32.mrb[0].mxu0
        %v1585 = vadd.f32 0.0, %v1584
        %v1586 = vpop.f32.mrb[0].mxu0
        %v1587 = vadd.f32 0.0, %v1586
        %1588 = vmatprep.mubr.f32.mxu0 0.0
        %1589 = vmatmul.mubr.f32.gmra.mrb[0].mxu0 %v1477
        %v1590 = vpop.f32.mrb[0].mxu0
        %v1591 = vadd.f32 0.0, %v1590
        %v1592 = vpop.f32.mrb[0].mxu0
        %v1593 = vadd.f32 0.0, %v1592
        %1594 = vmatprep.mubr.f32.mxu0 0.0
        %1595 = vmatmul.mubr.f32.gmra.mrb[0].mxu0 %v1480
        %v1596 = vpop.f32.mrb[0].mxu0
        %v1597 = vadd.f32 0.0, %v1596
        %v1598 = vpop.f32.mrb[0].mxu0
        %v1599 = vadd.f32 0.0, %v1598
        %1600 = vmatprep.mubr.f32.mxu0 0.0
        %1601 = vmatmul.mubr.f32.gmra.mrb[0].mxu0 %v1483
        %v1602 = vpop.f32.mrb[0].mxu0
        %v1603 = vadd.f32 0.0, %v1602
        %v1604 = vpop.f32.mrb[0].mxu0
        %v1605 = vadd.f32 0.0, %v1604
        %1606 = vmatprep.mubr.f32.mxu0 0.0
        %1607 = vmatmul.mubr.f32.gmra.mrb[0].mxu0 %v1486
        %v1608 = vpop.f32.mrb[0].mxu0
        %v1609 = vadd.f32 0.0, %v1608
        %v1610 = vpop.f32.mrb[0].mxu0
        %v1611 = vadd.f32 0.0, %v1610
        %1612 = vdwg.mxu0
        %v1613 = vmax.f32 %v1555, 0.0
        %v1614 = vmax.f32 %v1557, 0.0
        %v1615 = vmax.f32 %v1561, 0.0
        %v1616 = vmax.f32 %v1563, 0.0
        %v1617 = vmax.f32 %v1567, 0.0
        %v1618 = vmax.f32 %v1569, 0.0
        %v1619 = vmax.f32 %v1573, 0.0
        %v1620 = vmax.f32 %v1575, 0.0
        %v1621 = vmax.f32 %v1579, 0.0
        %v1622 = vmax.f32 %v1581, 0.0
        %v1623 = vmax.f32 %v1585, 0.0
        %v1624 = vmax.f32 %v1587, 0.0
        %v1625 = vmax.f32 %v1591, 0.0
        %v1626 = vmax.f32 %v1593, 0.0
        %v1627 = vmax.f32 %v1597, 0.0
        %v1628 = vmax.f32 %v1599, 0.0
        %v1629 = vmax.f32 %v1603, 0.0
        %v1630 = vmax.f32 %v1605, 0.0
        %v1631 = vmax.f32 %v1609, 0.0
        %v1632 = vmax.f32 %v1611, 0.0
        %v1633 = vld [vmem:[%s11] sm:$0xff]
        %v1634 = vld [vmem:[%s11 + $0x8] sm:$0xf]
        %v1635 = vld [vmem:[%s13] sm:$0xff]
        %v1636 = vld [vmem:[%s13 + $0x8] sm:$0xf]
        %1638 = vset.pattern.permute.xlu0 0
        %1639 = vperm.xlu0 %1638, %v1635
        %v1640 = vpop.permute.xlu0 %1639
        %1643 = vset.pattern.permute.xlu0 0
        %1644 = vperm.xlu0 %1643, %v1636
        %v1645 = vpop.permute.xlu0 %1644
        %vm1647 = vcmask 654336
        %v1649 = vsel %vm1647, %v1633, 0
        %v1652 = vsel %vm1647, %v1634, 0
        %1654 = vmatprep.subr.mxu0 %v1614
        %1655 = vmatpush1.msra.mxu0 %v1613
        %1656 = vmatprep.subr.mxu0 %v1616
        %1657 = vmatpush1.msra.mxu0 %v1615
        %1658 = vmatprep.subr.mxu0 %v1618
        %1659 = vmatpush1.msra.mxu0 %v1617
        %1660 = vmatprep.subr.mxu0 %v1620
        %1661 = vmatpush1.msra.mxu0 %v1619
        %1662 = vmatprep.subr.mxu0 %v1622
        %1663 = vmatpush1.msra.mxu0 %v1621
        %1664 = vmatprep.subr.mxu0 %v1624
        %1665 = vmatpush1.msra.mxu0 %v1623
        %1666 = vmatprep.subr.mxu0 %v1626
        %1667 = vmatpush1.msra.mxu0 %v1625
        %1668 = vmatprep.subr.mxu0 %v1628
        %1669 = vmatpush1.msra.mxu0 %v1627
        %1670 = vmatprep.subr.mxu0 %v1630
        %1671 = vmatpush1.msra.mxu0 %v1629
        %1672 = vmatprep.subr.mxu0 %v1632
        %1673 = vmatpush1.msra.mxu0 %v1631
        %1674 = vmatprep.subr.mxu0 0.0
        %1675 = vmatpush1.msra.mxu0 0.0
        %1676 = vmatprep.subr.mxu0 0.0
        %1677 = vmatpush1.msra.mxu0 0.0
        %1678 = vmatprep.subr.mxu0 0.0
        %1679 = vmatpush1.msra.mxu0 0.0
        %1680 = vmatprep.subr.mxu0 0.0
        %1681 = vmatpush1.msra.mxu0 0.0
        %1682 = vmatprep.subr.mxu0 0.0
        %1683 = vmatpush1.msra.mxu0 0.0
        %1684 = vmatprep.subr.mxu0 0.0
        %1685 = vmatpush1.msra.mxu0 0.0
        %1686 = vmatprep.subr.mxu0 0.0
        %1687 = vmatpush1.msra.mxu0 0.0
        %1688 = vmatprep.subr.mxu0 0.0
        %1689 = vmatpush1.msra.mxu0 0.0
        %1690 = vmatprep.subr.mxu0 0.0
        %1691 = vmatpush1.msra.mxu0 0.0
        %1692 = vmatprep.subr.mxu0 0.0
        %1693 = vmatpush1.msra.mxu0 0.0
        %1694 = vmatprep.subr.mxu0 0.0
        %1695 = vmatpush1.msra.mxu0 0.0
        %1696 = vmatprep.subr.mxu0 0.0
        %1697 = vmatpush1.msra.mxu0 0.0
        %1698 = vmatprep.subr.mxu0 0.0
        %1699 = vmatpush1.msra.mxu0 0.0
        %1700 = vmatprep.subr.mxu0 0.0
        %1701 = vmatpush1.msra.mxu0 0.0
        %1702 = vmatprep.subr.mxu0 0.0
        %1703 = vmatpush1.msra.mxu0 0.0
        %1704 = vmatprep.subr.mxu0 0.0
        %1705 = vmatpush1.msra.mxu0 0.0
        %1706 = vmatprep.subr.mxu0 0.0
        %1707 = vmatpush1.msra.mxu0 0.0
        %1708 = vmatprep.subr.mxu0 0.0
        %1709 = vmatpush1.msra.mxu0 0.0
        %1710 = vmatprep.subr.mxu0 0.0
        %1711 = vmatpush1.msra.mxu0 0.0
        %1712 = vmatprep.subr.mxu0 0.0
        %1713 = vmatpush1.msra.mxu0 0.0
        %1714 = vmatprep.subr.mxu0 0.0
        %1715 = vmatpush1.msra.mxu0 0.0
        %1716 = vmatprep.subr.mxu0 0.0
        %1717 = vmatpush1.msra.mxu0 0.0
        %1718 = vmatprep.mubr.f32.mxu0 0.0
        %1719 = vmatmul.mubr.f32.gmra.mrb[0].mxu0 %v1649
        %v1720 = vpop.f32.mrb[0].mxu0
        %v1721 = vadd.f32 %v1640, %v1720
        %v1722 = vpop.f32.mrb[0].mxu0
        %v1723 = vadd.f32 %v1640, %v1722
        %1724 = vmatprep.mubr.f32.mxu0 0.0
        %1725 = vmatmul.mubr.f32.gmra.mrb[0].mxu0 %v1652
        %v1726 = vpop.f32.mrb[0].mxu0
        %v1727 = vadd.f32 %v1645, %v1726
        %v1728 = vpop.f32.mrb[0].mxu0
        %v1729 = vadd.f32 %v1645, %v1728
        %1730 = vdwg.mxu0
        %vm1731 = vcmask 1046528
        %v1732 = vsel %vm1731, %v1721, -inf
        %v1733 = vrot.slane %v1732, 4
        %v1734 = vmax.f32 %v1732, %v1733
        %v1735 = vrot.slane %v1734, 2
        %v1736 = vmax.f32 %v1734, %v1735
        %v1737 = vrot.slane %v1736, 1
        %v1738 = vmax.f32 %v1736, %v1737
        %v1739 = vsel %vm1731, %v1723, -inf
        %v1740 = vrot.slane %v1739, 4
        %v1741 = vmax.f32 %v1739, %v1740
        %v1742 = vrot.slane %v1741, 2
        %v1743 = vmax.f32 %v1741, %v1742
        %v1744 = vrot.slane %v1743, 1
        %v1745 = vmax.f32 %v1743, %v1744
        %v1746 = vsub.f32 %v1721, %v1738
        %v1747 = vsub.f32 %v1723, %v1745
        %v1748 = vmul.f32 %v1746, 1.442695
        %v1749 = vpow.pop %v1748
        %v1750 = vmul.f32 %v1747, 1.442695
        %v1751 = vpow.pop %v1750
        %v1752 = vsel %vm1731, %v1749, 0.0
        %v1753 = vrot.slane %v1752, 4
        %v1754 = vadd.f32 %v1752, %v1753
        %v1755 = vrot.slane %v1754, 2
        %v1756 = vadd.f32 %v1754, %v1755
        %v1757 = vrot.slane %v1756, 1
        %v1758 = vadd.f32 %v1756, %v1757
        %v1759 = vsel %vm1731, %v1751, 0.0
        %v1760 = vrot.slane %v1759, 4
        %v1761 = vadd.f32 %v1759, %v1760
        %v1762 = vrot.slane %v1761, 2
        %v1763 = vadd.f32 %v1761, %v1762
        %v1764 = vrot.slane %v1763, 1
        %v1765 = vadd.f32 %v1763, %v1764
        %v1766 = vrcp.pop %v1758
        %v1767 = vrcp.pop %v1765
        %v1768 = vmul.f32 %v1749, %v1766
        %v1769 = vmul.f32 %v1751, %v1767
        %vm1770 = vcmask 1047559
        %v1771 = vsel %vm1770, %v1721, -inf
        %vm1772 = vcmask 1041408
        %v1773 = vsel %vm1772, %v1727, -inf
        %v1774 = vmax.f32 %v1771, %v1773
        %v1775 = vrot.slane %v1774, 4
        %v1776 = vmax.f32 %v1774, %v1775
        %v1777 = vrot.slane %v1776, 2
        %v1778 = vmax.f32 %v1776, %v1777
        %v1779 = vrot.slane %v1778, 1
        %v1780 = vmax.f32 %v1778, %v1779
        %v1781 = vsel %vm1770, %v1723, -inf
        %v1782 = vsel %vm1772, %v1729, -inf
        %v1783 = vmax.f32 %v1781, %v1782
        %v1784 = vrot.slane %v1783, 4
        %v1785 = vmax.f32 %v1783, %v1784
        %v1786 = vrot.slane %v1785, 2
        %v1787 = vmax.f32 %v1785, %v1786
        %v1788 = vrot.slane %v1787, 1
        %v1789 = vmax.f32 %v1787, %v1788
        %v1790 = vsub.f32 %v1721, %v1780
        %v1791 = vsub.f32 %v1723, %v1789
        %v1792 = vsub.f32 %v1727, %v1780
        %v1793 = vsub.f32 %v1729, %v1789
        %v1794 = vmul.f32 %v1790, 1.442695
        %v1795 = vpow.pop %v1794
        %v1796 = vmul.f32 %v1791, 1.442695
        %v1797 = vpow.pop %v1796
        %v1798 = vmul.f32 %v1792, 1.442695
        %v1799 = vpow.pop %v1798
        %v1800 = vmul.f32 %v1793, 1.442695
        %v1801 = vpow.pop %v1800
        %vm1806 = vcmask 1040384
        %v1807 = vrot.slane %v1795, 7
        %v1808 = vrot.slane %v1799, 7
        %v1809 = vsel %vm1806, %v1807, %v1808
        %v1810 = vrot.slane %v1797, 7
        %v1811 = vrot.slane %v1801, 7
        %v1812 = vsel %vm1806, %v1810, %v1811
        %vm1815 = vcmask 1042432
        %v1816 = vsel %vm1815, %v1809, 0.0
        %v1817 = vrot.slane %v1816, 4
        %v1818 = vadd.f32 %v1816, %v1817
        %v1819 = vrot.slane %v1818, 2
        %v1820 = vadd.f32 %v1818, %v1819
        %v1821 = vrot.slane %v1820, 1
        %v1822 = vadd.f32 %v1820, %v1821
        %v1823 = vsel %vm1815, %v1812, 0.0
        %v1824 = vrot.slane %v1823, 4
        %v1825 = vadd.f32 %v1823, %v1824
        %v1826 = vrot.slane %v1825, 2
        %v1827 = vadd.f32 %v1825, %v1826
        %v1828 = vrot.slane %v1827, 1
        %v1829 = vadd.f32 %v1827, %v1828
        %v1830 = vrcp.pop %v1822
        %v1831 = vrcp.pop %v1829
        %v1832 = vmul.f32 %v1799, %v1830
        %v1833 = vmul.f32 %v1801, %v1831
        %v1836 = vrot.slane %v1832, 1
        %v1837 = vrot.slane %v1833, 1
        %v1840 = vadd.f32 %v1832, %v1836
        %v1841 = vadd.f32 %v1833, %v1837
        %v1842 = vlaneseq
        %v1843 = vshrl.u32 %v1842, 7
        %v1844 = vsub.s32 0, %v1843
        %v1845 = vrot.slane %v1840, %v1844
        %v1846 = vlaneseq
        %v1847 = vshrl.u32 %v1846, 7
        %v1848 = vsub.s32 0, %v1847
        %v1849 = vrot.slane %v1841, %v1848
        %v1850 = vmul.f32 %v1627, %v1845
        %v1851 = vmul.f32 %v1628, %v1849
        %v1852 = vmul.f32 %v1629, %v1845
        %v1853 = vmul.f32 %v1630, %v1849
        %v1854 = vld [vmem:[%s37] sm:$0xff]
        %v1855 = vld [vmem:[%s37 + $0x8] sm:$0xff]
        %v1856 = vld [vmem:[%s37 + $0x10] sm:$0xff]
        %v1857 = vld [vmem:[%s37 + $0x18] sm:$0xff]
        %v1858 = vld [vmem:[%s39] sm:$0xff]
        %v1859 = vld [vmem:[%s39 + $0x8] sm:$0xff]
        %v1860 = vld [vmem:[%s39 + $0x10] sm:$0xff]
        %v1861 = vld [vmem:[%s39 + $0x18] sm:$0xff]
        %v1862 = vld [vmem:[%s41] sm:$0xff]
        %v1863 = vld [vmem:[%s41 + $0x8] sm:$0xff]
        %vm1864 = vcmask 130048
        %v1866 = vsel %vm1864, %v1858, 0
        %v1869 = vsel %vm1864, %v1859, 0
        %v1872 = vsel %vm1864, %v1860, 0
        %v1875 = vsel %vm1864, %v1861, 0
        %1877 = vmatprep.subr.mxu0 %v1851
        %1878 = vmatpush1.msra.mxu0 %v1850
        %1879 = vmatprep.subr.mxu0 %v1853
        %1880 = vmatpush1.msra.mxu0 %v1852
        %1881 = vmatprep.subr.mxu0 0.0
        %1882 = vmatpush1.msra.mxu0 0.0
        %1883 = vmatprep.subr.mxu0 0.0
        %1884 = vmatpush1.msra.mxu0 0.0
        %1885 = vmatprep.subr.mxu0 0.0
        %1886 = vmatpush1.msra.mxu0 0.0
        %1887 = vmatprep.subr.mxu0 0.0
        %1888 = vmatpush1.msra.mxu0 0.0
        %1889 = vmatprep.subr.mxu0 0.0
        %1890 = vmatpush1.msra.mxu0 0.0
        %1891 = vmatprep.subr.mxu0 0.0
        %1892 = vmatpush1.msra.mxu0 0.0
        %1893 = vmatprep.subr.mxu0 0.0
        %1894 = vmatpush1.msra.mxu0 0.0
        %1895 = vmatprep.subr.mxu0 0.0
        %1896 = vmatpush1.msra.mxu0 0.0
        %1897 = vmatprep.subr.mxu0 0.0
        %1898 = vmatpush1.msra.mxu0 0.0
        %1899 = vmatprep.subr.mxu0 0.0
        %1900 = vmatpush1.msra.mxu0 0.0
        %1901 = vmatprep.subr.mxu0 0.0
        %1902 = vmatpush1.msra.mxu0 0.0
        %1903 = vmatprep.subr.mxu0 0.0
        %1904 = vmatpush1.msra.mxu0 0.0
        %1905 = vmatprep.subr.mxu0 0.0
        %1906 = vmatpush1.msra.mxu0 0.0
        %1907 = vmatprep.subr.mxu0 0.0
        %1908 = vmatpush1.msra.mxu0 0.0
        %1909 = vmatprep.subr.mxu0 0.0
        %1910 = vmatpush1.msra.mxu0 0.0
        %1911 = vmatprep.subr.mxu0 0.0
        %1912 = vmatpush1.msra.mxu0 0.0
        %1913 = vmatprep.subr.mxu0 0.0
        %1914 = vmatpush1.msra.mxu0 0.0
        %1915 = vmatprep.subr.mxu0 0.0
        %1916 = vmatpush1.msra.mxu0 0.0
        %1917 = vmatprep.subr.mxu0 0.0
        %1918 = vmatpush1.msra.mxu0 0.0
        %1919 = vmatprep.subr.mxu0 0.0
        %1920 = vmatpush1.msra.mxu0 0.0
        %1921 = vmatprep.subr.mxu0 0.0
        %1922 = vmatpush1.msra.mxu0 0.0
        %1923 = vmatprep.subr.mxu0 0.0
        %1924 = vmatpush1.msra.mxu0 0.0
        %1925 = vmatprep.subr.mxu0 0.0
        %1926 = vmatpush1.msra.mxu0 0.0
        %1927 = vmatprep.subr.mxu0 0.0
        %1928 = vmatpush1.msra.mxu0 0.0
        %1929 = vmatprep.subr.mxu0 0.0
        %1930 = vmatpush1.msra.mxu0 0.0
        %1931 = vmatprep.subr.mxu0 0.0
        %1932 = vmatpush1.msra.mxu0 0.0
        %1933 = vmatprep.subr.mxu0 0.0
        %1934 = vmatpush1.msra.mxu0 0.0
        %1935 = vmatprep.subr.mxu0 0.0
        %1936 = vmatpush1.msra.mxu0 0.0
        %1937 = vmatprep.subr.mxu0 0.0
        %1938 = vmatpush1.msra.mxu0 0.0
        %1939 = vmatprep.subr.mxu0 0.0
        %1940 = vmatpush1.msra.mxu0 0.0
        %1941 = vmatprep.mubr.f32.mxu0 0.0
        %1942 = vmatmul.mubr.f32.gmra.mrb[0].mxu0 %v1866
        %v1943 = vpop.f32.mrb[0].mxu0
        %v1944 = vadd.f32 0.0, %v1943
        %v1945 = vpop.f32.mrb[0].mxu0
        %v1946 = vadd.f32 0.0, %v1945
        %1947 = vmatprep.mubr.f32.mxu0 0.0
        %1948 = vmatmul.mubr.f32.gmra.mrb[0].mxu0 %v1869
        %v1949 = vpop.f32.mrb[0].mxu0
        %v1950 = vadd.f32 0.0, %v1949
        %v1951 = vpop.f32.mrb[0].mxu0
        %v1952 = vadd.f32 0.0, %v1951
        %1953 = vmatprep.mubr.f32.mxu0 0.0
        %1954 = vmatmul.mubr.f32.gmra.mrb[0].mxu0 %v1872
        %v1955 = vpop.f32.mrb[0].mxu0
        %v1956 = vadd.f32 0.0, %v1955
        %v1957 = vpop.f32.mrb[0].mxu0
        %v1958 = vadd.f32 0.0, %v1957
        %1959 = vmatprep.mubr.f32.mxu0 0.0
        %1960 = vmatmul.mubr.f32.gmra.mrb[0].mxu0 %v1875
        %v1961 = vpop.f32.mrb[0].mxu0
        %v1962 = vadd.f32 0.0, %v1961
        %v1963 = vpop.f32.mrb[0].mxu0
        %v1964 = vadd.f32 0.0, %v1963
        %1965 = vdwg.mxu0
        %vm1966 = vcmask 64512
        %v1968 = vsel %vm1966, %v1854, 0
        %v1971 = vsel %vm1966, %v1855, 0
        %v1974 = vsel %vm1966, %v1856, 0
        %v1977 = vsel %vm1966, %v1857, 0
        %1979 = vmatprep.subr.mxu0 %v1632
        %1980 = vmatpush1.msra.mxu0 %v1631
        %1981 = vmatprep.subr.mxu0 0.0
        %1982 = vmatpush1.msra.mxu0 0.0
        %1983 = vmatprep.subr.mxu0 0.0
        %1984 = vmatpush1.msra.mxu0 0.0
        %1985 = vmatprep.subr.mxu0 0.0
        %1986 = vmatpush1.msra.mxu0 0.0
        %1987 = vmatprep.subr.mxu0 0.0
        %1988 = vmatpush1.msra.mxu0 0.0
        %1989 = vmatprep.subr.mxu0 0.0
        %1990 = vmatpush1.msra.mxu0 0.0
        %1991 = vmatprep.subr.mxu0 0.0
        %1992 = vmatpush1.msra.mxu0 0.0
        %1993 = vmatprep.subr.mxu0 0.0
        %1994 = vmatpush1.msra.mxu0 0.0
        %1995 = vmatprep.subr.mxu0 0.0
        %1996 = vmatpush1.msra.mxu0 0.0
        %1997 = vmatprep.subr.mxu0 0.0
        %1998 = vmatpush1.msra.mxu0 0.0
        %1999 = vmatprep.subr.mxu0 0.0
        %2000 = vmatpush1.msra.mxu0 0.0
        %2001 = vmatprep.subr.mxu0 0.0
        %2002 = vmatpush1.msra.mxu0 0.0
        %2003 = vmatprep.subr.mxu0 0.0
        %2004 = vmatpush1.msra.mxu0 0.0
        %2005 = vmatprep.subr.mxu0 0.0
        %2006 = vmatpush1.msra.mxu0 0.0
        %2007 = vmatprep.subr.mxu0 0.0
        %2008 = vmatpush1.msra.mxu0 0.0
        %2009 = vmatprep.subr.mxu0 0.0
        %2010 = vmatpush1.msra.mxu0 0.0
        %2011 = vmatprep.subr.mxu0 0.0
        %2012 = vmatpush1.msra.mxu0 0.0
        %2013 = vmatprep.subr.mxu0 0.0
        %2014 = vmatpush1.msra.mxu0 0.0
        %2015 = vmatprep.subr.mxu0 0.0
        %2016 = vmatpush1.msra.mxu0 0.0
        %2017 = vmatprep.subr.mxu0 0.0
        %2018 = vmatpush1.msra.mxu0 0.0
        %2019 = vmatprep.subr.mxu0 0.0
        %2020 = vmatpush1.msra.mxu0 0.0
        %2021 = vmatprep.subr.mxu0 0.0
        %2022 = vmatpush1.msra.mxu0 0.0
        %2023 = vmatprep.subr.mxu0 0.0
        %2024 = vmatpush1.msra.mxu0 0.0
        %2025 = vmatprep.subr.mxu0 0.0
        %2026 = vmatpush1.msra.mxu0 0.0
        %2027 = vmatprep.subr.mxu0 0.0
        %2028 = vmatpush1.msra.mxu0 0.0
        %2029 = vmatprep.subr.mxu0 0.0
        %2030 = vmatpush1.msra.mxu0 0.0
        %2031 = vmatprep.subr.mxu0 0.0
        %2032 = vmatpush1.msra.mxu0 0.0
        %2033 = vmatprep.subr.mxu0 0.0
        %2034 = vmatpush1.msra.mxu0 0.0
        %2035 = vmatprep.subr.mxu0 0.0
        %2036 = vmatpush1.msra.mxu0 0.0
        %2037 = vmatprep.subr.mxu0 0.0
        %2038 = vmatpush1.msra.mxu0 0.0
        %2039 = vmatprep.subr.mxu0 0.0
        %2040 = vmatpush1.msra.mxu0 0.0
        %2041 = vmatprep.subr.mxu0 0.0
        %2042 = vmatpush1.msra.mxu0 0.0
        %2043 = vmatprep.mubr.f32.mxu0 0.0
        %2044 = vmatmul.mubr.f32.gmra.mrb[0].mxu0 %v1968
        %v2045 = vpop.f32.mrb[0].mxu0
        %v2046 = vadd.f32 %v1944, %v2045
        %v2047 = vpop.f32.mrb[0].mxu0
        %v2048 = vadd.f32 %v1946, %v2047
        %2049 = vmatprep.mubr.f32.mxu0 0.0
        %2050 = vmatmul.mubr.f32.gmra.mrb[0].mxu0 %v1971
        %v2051 = vpop.f32.mrb[0].mxu0
        %v2052 = vadd.f32 %v1950, %v2051
        %v2053 = vpop.f32.mrb[0].mxu0
        %v2054 = vadd.f32 %v1952, %v2053
        %2055 = vmatprep.mubr.f32.mxu0 0.0
        %2056 = vmatmul.mubr.f32.gmra.mrb[0].mxu0 %v1974
        %v2057 = vpop.f32.mrb[0].mxu0
        %v2058 = vadd.f32 %v1956, %v2057
        %v2059 = vpop.f32.mrb[0].mxu0
        %v2060 = vadd.f32 %v1958, %v2059
        %2061 = vmatprep.mubr.f32.mxu0 0.0
        %2062 = vmatmul.mubr.f32.gmra.mrb[0].mxu0 %v1977
        %v2063 = vpop.f32.mrb[0].mxu0
        %v2064 = vadd.f32 %v1962, %v2063
        %v2065 = vpop.f32.mrb[0].mxu0
        %v2066 = vadd.f32 %v1964, %v2065
        %2067 = vdwg.mxu0
        %v2068 = vmax.f32 %v2046, 0.0
        %v2069 = vmax.f32 %v2048, 0.0
        %v2070 = vmax.f32 %v2052, 0.0
        %v2071 = vmax.f32 %v2054, 0.0
        %v2072 = vmax.f32 %v2058, 0.0
        %v2073 = vmax.f32 %v2060, 0.0
        %v2074 = vmax.f32 %v2064, 0.0
        %v2075 = vmax.f32 %v2066, 0.0
        %vm2076 = vcmask 261120
        %v2078 = vsel %vm2076, %v1862, 0
        %v2081 = vsel %vm2076, %v1863, 0
        %2083 = vmatprep.subr.mxu0 %v2069
        %2084 = vmatpush1.msra.mxu0 %v2068
        %2085 = vmatprep.subr.mxu0 %v2071
        %2086 = vmatpush1.msra.mxu0 %v2070
        %2087 = vmatprep.subr.mxu0 %v2073
        %2088 = vmatpush1.msra.mxu0 %v2072
        %2089 = vmatprep.subr.mxu0 %v2075
        %2090 = vmatpush1.msra.mxu0 %v2074
        %2091 = vmatprep.subr.mxu0 0.0
        %2092 = vmatpush1.msra.mxu0 0.0
        %2093 = vmatprep.subr.mxu0 0.0
        %2094 = vmatpush1.msra.mxu0 0.0
        %2095 = vmatprep.subr.mxu0 0.0
        %2096 = vmatpush1.msra.mxu0 0.0
        %2097 = vmatprep.subr.mxu0 0.0
        %2098 = vmatpush1.msra.mxu0 0.0
        %2099 = vmatprep.subr.mxu0 0.0
        %2100 = vmatpush1.msra.mxu0 0.0
        %2101 = vmatprep.subr.mxu0 0.0
        %2102 = vmatpush1.msra.mxu0 0.0
        %2103 = vmatprep.subr.mxu0 0.0
        %2104 = vmatpush1.msra.mxu0 0.0
        %2105 = vmatprep.subr.mxu0 0.0
        %2106 = vmatpush1.msra.mxu0 0.0
        %2107 = vmatprep.subr.mxu0 0.0
        %2108 = vmatpush1.msra.mxu0 0.0
        %2109 = vmatprep.subr.mxu0 0.0
        %2110 = vmatpush1.msra.mxu0 0.0
        %2111 = vmatprep.subr.mxu0 0.0
        %2112 = vmatpush1.msra.mxu0 0.0
        %2113 = vmatprep.subr.mxu0 0.0
        %2114 = vmatpush1.msra.mxu0 0.0
        %2115 = vmatprep.subr.mxu0 0.0
        %2116 = vmatpush1.msra.mxu0 0.0
        %2117 = vmatprep.subr.mxu0 0.0
        %2118 = vmatpush1.msra.mxu0 0.0
        %2119 = vmatprep.subr.mxu0 0.0
        %2120 = vmatpush1.msra.mxu0 0.0
        %2121 = vmatprep.subr.mxu0 0.0
        %2122 = vmatpush1.msra.mxu0 0.0
        %2123 = vmatprep.subr.mxu0 0.0
        %2124 = vmatpush1.msra.mxu0 0.0
        %2125 = vmatprep.subr.mxu0 0.0
        %2126 = vmatpush1.msra.mxu0 0.0
        %2127 = vmatprep.subr.mxu0 0.0
        %2128 = vmatpush1.msra.mxu0 0.0
        %2129 = vmatprep.subr.mxu0 0.0
        %2130 = vmatpush1.msra.mxu0 0.0
        %2131 = vmatprep.subr.mxu0 0.0
        %2132 = vmatpush1.msra.mxu0 0.0
        %2133 = vmatprep.subr.mxu0 0.0
        %2134 = vmatpush1.msra.mxu0 0.0
        %2135 = vmatprep.subr.mxu0 0.0
        %2136 = vmatpush1.msra.mxu0 0.0
        %2137 = vmatprep.subr.mxu0 0.0
        %2138 = vmatpush1.msra.mxu0 0.0
        %2139 = vmatprep.subr.mxu0 0.0
        %2140 = vmatpush1.msra.mxu0 0.0
        %2141 = vmatprep.subr.mxu0 0.0
        %2142 = vmatpush1.msra.mxu0 0.0
        %2143 = vmatprep.subr.mxu0 0.0
        %2144 = vmatpush1.msra.mxu0 0.0
        %2145 = vmatprep.subr.mxu0 0.0
        %2146 = vmatpush1.msra.mxu0 0.0
        %2147 = vmatprep.mubr.f32.mxu0 0.0
        %2148 = vmatmul.mubr.f32.gmra.mrb[0].mxu0 %v2078
        %v2149 = vpop.f32.mrb[0].mxu0
        %v2150 = vadd.f32 0.0, %v2149
        %v2151 = vpop.f32.mrb[0].mxu0
        %v2152 = vadd.f32 0.0, %v2151
        %2153 = vmatprep.mubr.f32.mxu0 0.0
        %2154 = vmatmul.mubr.f32.gmra.mrb[0].mxu0 %v2081
        %v2155 = vpop.f32.mrb[0].mxu0
        %v2156 = vadd.f32 0.0, %v2155
        %v2157 = vpop.f32.mrb[0].mxu0
        %v2158 = vadd.f32 0.0, %v2157
        %2159 = vdwg.mxu0
        %v2160 = vmax.f32 %v2150, 0.0
        %v2161 = vmax.f32 %v2152, 0.0
        %v2162 = vmax.f32 %v2156, 0.0
        %v2163 = vmax.f32 %v2158, 0.0
        %v2164 = vadd.f32 %v2160, %v2162
        %v2165 = vadd.f32 %v2161, %v2163
        %v2166 = vld [vmem:[%s71] sm:$0x7]
        %v2167 = vld [vmem:[%s73] sm:$0x7]
        %2169 = vset.pattern.permute.xlu0 0
        %2170 = vperm.xlu0 %2169, %v2167
        %v2171 = vpop.permute.xlu0 %2170
        %v2174 = vsel %vm1864, %v2166, 0
        %2176 = vmatprep.subr.mxu0 %v2165
        %2177 = vmatpush1.msra.mxu0 %v2164
        %2178 = vmatprep.subr.mxu0 %v1632
        %2179 = vmatpush1.msra.mxu0 %v1631
        %2180 = vmatprep.subr.mxu0 0.0
        %2181 = vmatpush1.msra.mxu0 0.0
        %2182 = vmatprep.subr.mxu0 0.0
        %2183 = vmatpush1.msra.mxu0 0.0
        %2184 = vmatprep.subr.mxu0 0.0
        %2185 = vmatpush1.msra.mxu0 0.0
        %2186 = vmatprep.subr.mxu0 0.0
        %2187 = vmatpush1.msra.mxu0 0.0
        %2188 = vmatprep.subr.mxu0 0.0
        %2189 = vmatpush1.msra.mxu0 0.0
        %2190 = vmatprep.subr.mxu0 0.0
        %2191 = vmatpush1.msra.mxu0 0.0
        %2192 = vmatprep.subr.mxu0 0.0
        %2193 = vmatpush1.msra.mxu0 0.0
        %2194 = vmatprep.subr.mxu0 0.0
        %2195 = vmatpush1.msra.mxu0 0.0
        %2196 = vmatprep.subr.mxu0 0.0
        %2197 = vmatpush1.msra.mxu0 0.0
        %2198 = vmatprep.subr.mxu0 0.0
        %2199 = vmatpush1.msra.mxu0 0.0
        %2200 = vmatprep.subr.mxu0 0.0
        %2201 = vmatpush1.msra.mxu0 0.0
        %2202 = vmatprep.subr.mxu0 0.0
        %2203 = vmatpush1.msra.mxu0 0.0
        %2204 = vmatprep.subr.mxu0 0.0
        %2205 = vmatpush1.msra.mxu0 0.0
        %2206 = vmatprep.subr.mxu0 0.0
        %2207 = vmatpush1.msra.mxu0 0.0
        %2208 = vmatprep.subr.mxu0 0.0
        %2209 = vmatpush1.msra.mxu0 0.0
        %2210 = vmatprep.subr.mxu0 0.0
        %2211 = vmatpush1.msra.mxu0 0.0
        %2212 = vmatprep.subr.mxu0 0.0
        %2213 = vmatpush1.msra.mxu0 0.0
        %2214 = vmatprep.subr.mxu0 0.0
        %2215 = vmatpush1.msra.mxu0 0.0
        %2216 = vmatprep.subr.mxu0 0.0
        %2217 = vmatpush1.msra.mxu0 0.0
        %2218 = vmatprep.subr.mxu0 0.0
        %2219 = vmatpush1.msra.mxu0 0.0
        %2220 = vmatprep.subr.mxu0 0.0
        %2221 = vmatpush1.msra.mxu0 0.0
        %2222 = vmatprep.subr.mxu0 0.0
        %2223 = vmatpush1.msra.mxu0 0.0
        %2224 = vmatprep.subr.mxu0 0.0
        %2225 = vmatpush1.msra.mxu0 0.0
        %2226 = vmatprep.subr.mxu0 0.0
        %2227 = vmatpush1.msra.mxu0 0.0
        %2228 = vmatprep.subr.mxu0 0.0
        %2229 = vmatpush1.msra.mxu0 0.0
        %2230 = vmatprep.subr.mxu0 0.0
        %2231 = vmatpush1.msra.mxu0 0.0
        %2232 = vmatprep.subr.mxu0 0.0
        %2233 = vmatpush1.msra.mxu0 0.0
        %2234 = vmatprep.subr.mxu0 0.0
        %2235 = vmatpush1.msra.mxu0 0.0
        %2236 = vmatprep.subr.mxu0 0.0
        %2237 = vmatpush1.msra.mxu0 0.0
        %2238 = vmatprep.subr.mxu0 0.0
        %2239 = vmatpush1.msra.mxu0 0.0
        %2240 = vmatprep.mubr.f32.mxu0 0.0
        %2241 = vmatmul.mubr.f32.gmra.mrb[0].mxu0 %v2174
        %v2242 = vpop.f32.mrb[0].mxu0
        %v2243 = vadd.f32 %v2171, %v2242
        %v2244 = vpop.f32.mrb[0].mxu0
        %v2245 = vadd.f32 %v2171, %v2244
        %2246 = vdwg.mxu0
        %v2247 = vsub.f32 0.0, %v2243
        %v2248 = vsub.f32 0.0, %v2245
        %v2249 = vmul.f32 %v2247, 1.442695
        %v2250 = vpow.pop %v2249
        %v2251 = vmul.f32 %v2248, 1.442695
        %v2252 = vpow.pop %v2251
        %v2253 = vadd.f32 %v2250, 1.0
        %v2254 = vadd.f32 %v2252, 1.0
        %v2255 = vrcp.pop %v2253
        %v2256 = vrcp.pop %v2254
        %s2257 = sld [smem:[#allocation5]]
        %v2258 = vsub.f32 1.0, %v2255
        %v2259 = vsub.f32 1.0, %v2256
        %v2260 = vlaneseq
        %v2261 = vshrl.u32 %v2260, 7
        %v2262 = vsub.s32 1, %v2261
        %v2263 = vrot.slane %v2258, %v2262
        %v2264 = vlaneseq
        %v2265 = vshrl.u32 %v2264, 7
        %v2266 = vsub.s32 1, %v2265
        %v2267 = vrot.slane %v2259, %v2266
        %v2268 = vmul.f32 %v1631, %v2263
        %v2269 = vmul.f32 %v1632, %v2267
        %v2270 = vlaneseq
        %v2271 = vshrl.u32 %v2270, 7
        %v2272 = vsub.s32 0, %v2271
        %v2273 = vrot.slane %v2255, %v2272
        %v2274 = vlaneseq
        %v2275 = vshrl.u32 %v2274, 7
        %v2276 = vsub.s32 0, %v2275
        %v2277 = vrot.slane %v2256, %v2276
        %v2278 = vmul.f32 %v2164, %v2273
        %v2279 = vmul.f32 %v2165, %v2277
        %v2280 = vstv %s2257
        %v2281 = vmul.f32 %v2278, %v2280
        %v2282 = vmul.f32 %v2279, %v2280
        %v2283 = vadd.f32 %v2268, %v2281
        %v2284 = vadd.f32 %v2269, %v2282
        %v2285 = vlaneseq
        %v2286 = vshrl.u32 %v2285, 7
        %v2287 = vsub.s32 2, %v2286
        %v2288 = vrot.slane %v2258, %v2287
        %v2289 = vlaneseq
        %v2290 = vshrl.u32 %v2289, 7
        %v2291 = vsub.s32 2, %v2290
        %v2292 = vrot.slane %v2259, %v2291
        %v2293 = vmul.f32 %v2288, %v1631
        %v2294 = vmul.f32 %v2292, %v1632
        %v2295 = vtanh.pop %v2283
        %v2296 = vtanh.pop %v2284
        %v2297 = vlaneseq
        %v2298 = vshrl.u32 %v2297, 7
        %v2299 = vsub.s32 2, %v2298
        %v2300 = vrot.slane %v2255, %v2299
        %v2301 = vlaneseq
        %v2302 = vshrl.u32 %v2301, 7
        %v2303 = vsub.s32 2, %v2302
        %v2304 = vrot.slane %v2256, %v2303
        %v2305 = vmul.f32 %v2300, %v2295
        %v2306 = vmul.f32 %v2304, %v2296
        %v2307 = vadd.f32 %v2293, %v2305
        %v2308 = vadd.f32 %v2294, %v2306
        %v2309 = vld [vmem:[%s15] sm:$0xff]
        %v2310 = vld [vmem:[%s15 + $0x8] sm:$0x7]
        %v2311 = vld [vmem:[%s17] sm:$0xff]
        %v2312 = vld [vmem:[%s17 + $0x8] sm:$0x7]
        %2314 = vset.pattern.permute.xlu0 0
        %2315 = vperm.xlu0 %2314, %v2311
        %v2316 = vpop.permute.xlu0 %2315
        %2319 = vset.pattern.permute.xlu0 0
        %2320 = vperm.xlu0 %2319, %v2312
        %v2321 = vpop.permute.xlu0 %2320
        %vm2323 = vcmask 195584
        %v2325 = vsel %vm2323, %v2309, 0
        %v2328 = vsel %vm2323, %v2310, 0
        %2330 = vmatprep.subr.mxu0 %v1628
        %2331 = vmatpush1.msra.mxu0 %v1627
        %2332 = vmatprep.subr.mxu0 %v1630
        %2333 = vmatpush1.msra.mxu0 %v1629
        %2334 = vmatprep.subr.mxu0 %v1632
        %2335 = vmatpush1.msra.mxu0 %v1631
        %2336 = vmatprep.subr.mxu0 0.0
        %2337 = vmatpush1.msra.mxu0 0.0
        %2338 = vmatprep.subr.mxu0 0.0
        %2339 = vmatpush1.msra.mxu0 0.0
        %2340 = vmatprep.subr.mxu0 0.0
        %2341 = vmatpush1.msra.mxu0 0.0
        %2342 = vmatprep.subr.mxu0 0.0
        %2343 = vmatpush1.msra.mxu0 0.0
        %2344 = vmatprep.subr.mxu0 0.0
        %2345 = vmatpush1.msra.mxu0 0.0
        %2346 = vmatprep.subr.mxu0 0.0
        %2347 = vmatpush1.msra.mxu0 0.0
        %2348 = vmatprep.subr.mxu0 0.0
        %2349 = vmatpush1.msra.mxu0 0.0
        %2350 = vmatprep.subr.mxu0 0.0
        %2351 = vmatpush1.msra.mxu0 0.0
        %2352 = vmatprep.subr.mxu0 0.0
        %2353 = vmatpush1.msra.mxu0 0.0
        %2354 = vmatprep.subr.mxu0 0.0
        %2355 = vmatpush1.msra.mxu0 0.0
        %2356 = vmatprep.subr.mxu0 0.0
        %2357 = vmatpush1.msra.mxu0 0.0
        %2358 = vmatprep.subr.mxu0 0.0
        %2359 = vmatpush1.msra.mxu0 0.0
        %2360 = vmatprep.subr.mxu0 0.0
        %2361 = vmatpush1.msra.mxu0 0.0
        %2362 = vmatprep.subr.mxu0 0.0
        %2363 = vmatpush1.msra.mxu0 0.0
        %2364 = vmatprep.subr.mxu0 0.0
        %2365 = vmatpush1.msra.mxu0 0.0
        %2366 = vmatprep.subr.mxu0 0.0
        %2367 = vmatpush1.msra.mxu0 0.0
        %2368 = vmatprep.subr.mxu0 0.0
        %2369 = vmatpush1.msra.mxu0 0.0
        %2370 = vmatprep.subr.mxu0 0.0
        %2371 = vmatpush1.msra.mxu0 0.0
        %2372 = vmatprep.subr.mxu0 0.0
        %2373 = vmatpush1.msra.mxu0 0.0
        %2374 = vmatprep.subr.mxu0 0.0
        %2375 = vmatpush1.msra.mxu0 0.0
        %2376 = vmatprep.subr.mxu0 0.0
        %2377 = vmatpush1.msra.mxu0 0.0
        %2378 = vmatprep.subr.mxu0 0.0
        %2379 = vmatpush1.msra.mxu0 0.0
        %2380 = vmatprep.subr.mxu0 0.0
        %2381 = vmatpush1.msra.mxu0 0.0
        %2382 = vmatprep.subr.mxu0 0.0
        %2383 = vmatpush1.msra.mxu0 0.0
        %2384 = vmatprep.subr.mxu0 0.0
        %2385 = vmatpush1.msra.mxu0 0.0
        %2386 = vmatprep.subr.mxu0 0.0
        %2387 = vmatpush1.msra.mxu0 0.0
        %2388 = vmatprep.subr.mxu0 0.0
        %2389 = vmatpush1.msra.mxu0 0.0
        %2390 = vmatprep.subr.mxu0 0.0
        %2391 = vmatpush1.msra.mxu0 0.0
        %2392 = vmatprep.subr.mxu0 0.0
        %2393 = vmatpush1.msra.mxu0 0.0
        %2394 = vmatprep.mubr.f32.mxu0 0.0
        %2395 = vmatmul.mubr.f32.gmra.mrb[0].mxu0 %v2325
        %v2396 = vpop.f32.mrb[0].mxu0
        %v2397 = vadd.f32 %v2316, %v2396
        %v2398 = vpop.f32.mrb[0].mxu0
        %v2399 = vadd.f32 %v2316, %v2398
        %2400 = vmatprep.mubr.f32.mxu0 0.0
        %2401 = vmatmul.mubr.f32.gmra.mrb[0].mxu0 %v2328
        %v2402 = vpop.f32.mrb[0].mxu0
        %v2403 = vadd.f32 %v2321, %v2402
        %v2404 = vpop.f32.mrb[0].mxu0
        %v2405 = vadd.f32 %v2321, %v2404
        %2406 = vdwg.mxu0
        %vm2407 = vcmask 1044480
        %v2408 = vsel %vm2407, %v2397, -inf
        %v2409 = vrot.slane %v2408, 4
        %v2410 = vmax.f32 %v2408, %v2409
        %v2411 = vrot.slane %v2410, 2
        %v2412 = vmax.f32 %v2410, %v2411
        %v2413 = vrot.slane %v2412, 1
        %v2414 = vmax.f32 %v2412, %v2413
        %v2415 = vsel %vm2407, %v2399, -inf
        %v2416 = vrot.slane %v2415, 4
        %v2417 = vmax.f32 %v2415, %v2416
        %v2418 = vrot.slane %v2417, 2
        %v2419 = vmax.f32 %v2417, %v2418
        %v2420 = vrot.slane %v2419, 1
        %v2421 = vmax.f32 %v2419, %v2420
        %v2422 = vsub.f32 %v2397, %v2414
        %v2423 = vsub.f32 %v2399, %v2421
        %v2424 = vmul.f32 %v2422, 1.442695
        %v2425 = vpow.pop %v2424
        %v2426 = vmul.f32 %v2423, 1.442695
        %v2427 = vpow.pop %v2426
        %v2428 = vsel %vm2407, %v2425, 0.0
        %v2429 = vrot.slane %v2428, 4
        %v2430 = vadd.f32 %v2428, %v2429
        %v2431 = vrot.slane %v2430, 2
        %v2432 = vadd.f32 %v2430, %v2431
        %v2433 = vrot.slane %v2432, 1
        %v2434 = vadd.f32 %v2432, %v2433
        %v2435 = vsel %vm2407, %v2427, 0.0
        %v2436 = vrot.slane %v2435, 4
        %v2437 = vadd.f32 %v2435, %v2436
        %v2438 = vrot.slane %v2437, 2
        %v2439 = vadd.f32 %v2437, %v2438
        %v2440 = vrot.slane %v2439, 1
        %v2441 = vadd.f32 %v2439, %v2440
        %v2442 = vrcp.pop %v2434
        %v2443 = vrcp.pop %v2441
        %v2444 = vmul.f32 %v2425, %v2442
        %v2445 = vmul.f32 %v2427, %v2443
        %vm2446 = vcmask 1047557
        %v2447 = vsel %vm2446, %v2397, -inf
        %v2448 = vrot.slane %v2447, 4
        %v2449 = vmax.f32 %v2447, %v2448
        %v2450 = vrot.slane %v2449, 2
        %v2451 = vmax.f32 %v2449, %v2450
        %v2452 = vrot.slane %v2451, 1
        %v2453 = vmax.f32 %v2451, %v2452
        %v2454 = vsel %vm2446, %v2399, -inf
        %v2455 = vrot.slane %v2454, 4
        %v2456 = vmax.f32 %v2454, %v2455
        %v2457 = vrot.slane %v2456, 2
        %v2458 = vmax.f32 %v2456, %v2457
        %v2459 = vrot.slane %v2458, 1
        %v2460 = vmax.f32 %v2458, %v2459
        %v2461 = vsub.f32 %v2397, %v2453
        %v2462 = vsub.f32 %v2399, %v2460
        %v2463 = vmul.f32 %v2461, 1.442695
        %v2464 = vpow.pop %v2463
        %v2465 = vmul.f32 %v2462, 1.442695
        %v2466 = vpow.pop %v2465
        %v2469 = vrot.slane %v2464, 5
        %v2470 = vrot.slane %v2466, 5
        %v2473 = vsel %vm1815, %v2469, 0.0
        %v2474 = vrot.slane %v2473, 4
        %v2475 = vadd.f32 %v2473, %v2474
        %v2476 = vrot.slane %v2475, 2
        %v2477 = vadd.f32 %v2475, %v2476
        %v2478 = vrot.slane %v2477, 1
        %v2479 = vadd.f32 %v2477, %v2478
        %v2480 = vsel %vm1815, %v2470, 0.0
        %v2481 = vrot.slane %v2480, 4
        %v2482 = vadd.f32 %v2480, %v2481
        %v2483 = vrot.slane %v2482, 2
        %v2484 = vadd.f32 %v2482, %v2483
        %v2485 = vrot.slane %v2484, 1
        %v2486 = vadd.f32 %v2484, %v2485
        %v2487 = vrcp.pop %v2479
        %v2488 = vrcp.pop %v2486
        %v2489 = vmul.f32 %v2464, %v2487
        %v2490 = vmul.f32 %v2466, %v2488
        %v2491 = vsel %vm1815, %v2403, -inf
        %v2492 = vrot.slane %v2491, 4
        %v2493 = vmax.f32 %v2491, %v2492
        %v2494 = vrot.slane %v2493, 2
        %v2495 = vmax.f32 %v2493, %v2494
        %v2496 = vrot.slane %v2495, 1
        %v2497 = vmax.f32 %v2495, %v2496
        %v2498 = vsel %vm1815, %v2405, -inf
        %v2499 = vrot.slane %v2498, 4
        %v2500 = vmax.f32 %v2498, %v2499
        %v2501 = vrot.slane %v2500, 2
        %v2502 = vmax.f32 %v2500, %v2501
        %v2503 = vrot.slane %v2502, 1
        %v2504 = vmax.f32 %v2502, %v2503
        %v2505 = vsub.f32 %v2403, %v2497
        %v2506 = vsub.f32 %v2405, %v2504
        %v2507 = vmul.f32 %v2505, 1.442695
        %v2508 = vpow.pop %v2507
        %v2509 = vmul.f32 %v2506, 1.442695
        %v2510 = vpow.pop %v2509
        %v2511 = vsel %vm1815, %v2508, 0.0
        %v2512 = vrot.slane %v2511, 4
        %v2513 = vadd.f32 %v2511, %v2512
        %v2514 = vrot.slane %v2513, 2
        %v2515 = vadd.f32 %v2513, %v2514
        %v2516 = vrot.slane %v2515, 1
        %v2517 = vadd.f32 %v2515, %v2516
        %v2518 = vsel %vm1815, %v2510, 0.0
        %v2519 = vrot.slane %v2518, 4
        %v2520 = vadd.f32 %v2518, %v2519
        %v2521 = vrot.slane %v2520, 2
        %v2522 = vadd.f32 %v2520, %v2521
        %v2523 = vrot.slane %v2522, 1
        %v2524 = vadd.f32 %v2522, %v2523
        %v2525 = vrcp.pop %v2517
        %v2526 = vrcp.pop %v2524
        %v2527 = vmul.f32 %v2508, %v2525
        %v2528 = vmul.f32 %v2510, %v2526
        %v2529 = vld [vmem:[%s19] sm:$0xff]
        %v2530 = vld [vmem:[%s19 + $0x8] sm:$0xff]
        %v2531 = vld [vmem:[%s19 + $0x10] sm:$0xff]
        %v2532 = vld [vmem:[%s19 + $0x18] sm:$0xff]
        %v2533 = vld [vmem:[%s21] sm:$0xff]
        %v2534 = vld [vmem:[%s21 + $0x8] sm:$0xff]
        %v2535 = vld [vmem:[%s21 + $0x10] sm:$0xff]
        %v2536 = vld [vmem:[%s21 + $0x18] sm:$0xff]
        %v2537 = vld [vmem:[%s23] sm:$0xff]
        %v2538 = vld [vmem:[%s23 + $0x8] sm:$0xff]
        %v2539 = vlaneseq
        %v2540 = vshrl.u32 %v2539, 7
        %v2541 = vsub.s32 1, %v2540
        %v2542 = vrot.slane %v2527, %v2541
        %v2543 = vlaneseq
        %v2544 = vshrl.u32 %v2543, 7
        %v2545 = vsub.s32 1, %v2544
        %v2546 = vrot.slane %v2528, %v2545
        %v2547 = vmul.f32 %v1631, %v2542
        %v2548 = vmul.f32 %v1632, %v2546
        %v2549 = vlaneseq
        %v2550 = vshrl.u32 %v2549, 7
        %v2551 = vsub.s32 2, %v2550
        %v2552 = vrot.slane %v2527, %v2551
        %v2553 = vlaneseq
        %v2554 = vshrl.u32 %v2553, 7
        %v2555 = vsub.s32 2, %v2554
        %v2556 = vrot.slane %v2528, %v2555
        %v2557 = vmul.f32 %v1631, %v2552
        %v2558 = vmul.f32 %v1632, %v2556
        %v2560 = vsel %vm1864, %v2533, 0
        %v2563 = vsel %vm1864, %v2534, 0
        %v2566 = vsel %vm1864, %v2535, 0
        %v2569 = vsel %vm1864, %v2536, 0
        %2571 = vmatprep.subr.mxu0 %v1628
        %2572 = vmatpush1.msra.mxu0 %v1627
        %2573 = vmatprep.subr.mxu0 %v1630
        %2574 = vmatpush1.msra.mxu0 %v1629
        %2575 = vmatprep.subr.mxu0 0.0
        %2576 = vmatpush1.msra.mxu0 0.0
        %2577 = vmatprep.subr.mxu0 0.0
        %2578 = vmatpush1.msra.mxu0 0.0
        %2579 = vmatprep.subr.mxu0 0.0
        %2580 = vmatpush1.msra.mxu0 0.0
        %2581 = vmatprep.subr.mxu0 0.0
        %2582 = vmatpush1.msra.mxu0 0.0
        %2583 = vmatprep.subr.mxu0 0.0
        %2584 = vmatpush1.msra.mxu0 0.0
        %2585 = vmatprep.subr.mxu0 0.0
        %2586 = vmatpush1.msra.mxu0 0.0
        %2587 = vmatprep.subr.mxu0 0.0
        %2588 = vmatpush1.msra.mxu0 0.0
        %2589 = vmatprep.subr.mxu0 0.0
        %2590 = vmatpush1.msra.mxu0 0.0
        %2591 = vmatprep.subr.mxu0 0.0
        %2592 = vmatpush1.msra.mxu0 0.0
        %2593 = vmatprep.subr.mxu0 0.0
        %2594 = vmatpush1.msra.mxu0 0.0
        %2595 = vmatprep.subr.mxu0 0.0
        %2596 = vmatpush1.msra.mxu0 0.0
        %2597 = vmatprep.subr.mxu0 0.0
        %2598 = vmatpush1.msra.mxu0 0.0
        %2599 = vmatprep.subr.mxu0 0.0
        %2600 = vmatpush1.msra.mxu0 0.0
        %2601 = vmatprep.subr.mxu0 0.0
        %2602 = vmatpush1.msra.mxu0 0.0
        %2603 = vmatprep.subr.mxu0 0.0
        %2604 = vmatpush1.msra.mxu0 0.0
        %2605 = vmatprep.subr.mxu0 0.0
        %2606 = vmatpush1.msra.mxu0 0.0
        %2607 = vmatprep.subr.mxu0 0.0
        %2608 = vmatpush1.msra.mxu0 0.0
        %2609 = vmatprep.subr.mxu0 0.0
        %2610 = vmatpush1.msra.mxu0 0.0
        %2611 = vmatprep.subr.mxu0 0.0
        %2612 = vmatpush1.msra.mxu0 0.0
        %2613 = vmatprep.subr.mxu0 0.0
        %2614 = vmatpush1.msra.mxu0 0.0
        %2615 = vmatprep.subr.mxu0 0.0
        %2616 = vmatpush1.msra.mxu0 0.0
        %2617 = vmatprep.subr.mxu0 0.0
        %2618 = vmatpush1.msra.mxu0 0.0
        %2619 = vmatprep.subr.mxu0 0.0
        %2620 = vmatpush1.msra.mxu0 0.0
        %2621 = vmatprep.subr.mxu0 0.0
        %2622 = vmatpush1.msra.mxu0 0.0
        %2623 = vmatprep.subr.mxu0 0.0
        %2624 = vmatpush1.msra.mxu0 0.0
        %2625 = vmatprep.subr.mxu0 0.0
        %2626 = vmatpush1.msra.mxu0 0.0
        %2627 = vmatprep.subr.mxu0 0.0
        %2628 = vmatpush1.msra.mxu0 0.0
        %2629 = vmatprep.subr.mxu0 0.0
        %2630 = vmatpush1.msra.mxu0 0.0
        %2631 = vmatprep.subr.mxu0 0.0
        %2632 = vmatpush1.msra.mxu0 0.0
        %2633 = vmatprep.subr.mxu0 0.0
        %2634 = vmatpush1.msra.mxu0 0.0
        %2635 = vmatprep.mubr.f32.mxu0 0.0
        %2636 = vmatmul.mubr.f32.gmra.mrb[0].mxu0 %v2560
        %v2637 = vpop.f32.mrb[0].mxu0
        %v2638 = vadd.f32 0.0, %v2637
        %v2639 = vpop.f32.mrb[0].mxu0
        %v2640 = vadd.f32 0.0, %v2639
        %2641 = vmatprep.mubr.f32.mxu0 0.0
        %2642 = vmatmul.mubr.f32.gmra.mrb[0].mxu0 %v2563
        %v2643 = vpop.f32.mrb[0].mxu0
        %v2644 = vadd.f32 0.0, %v2643
        %v2645 = vpop.f32.mrb[0].mxu0
        %v2646 = vadd.f32 0.0, %v2645
        %2647 = vmatprep.mubr.f32.mxu0 0.0
        %2648 = vmatmul.mubr.f32.gmra.mrb[0].mxu0 %v2566
        %v2649 = vpop.f32.mrb[0].mxu0
        %v2650 = vadd.f32 0.0, %v2649
        %v2651 = vpop.f32.mrb[0].mxu0
        %v2652 = vadd.f32 0.0, %v2651
        %2653 = vmatprep.mubr.f32.mxu0 0.0
        %2654 = vmatmul.mubr.f32.gmra.mrb[0].mxu0 %v2569
        %v2655 = vpop.f32.mrb[0].mxu0
        %v2656 = vadd.f32 0.0, %v2655
        %v2657 = vpop.f32.mrb[0].mxu0
        %v2658 = vadd.f32 0.0, %v2657
        %2659 = vdwg.mxu0
        %v2661 = vsel %vm1864, %v2529, 0
        %v2664 = vsel %vm1864, %v2530, 0
        %v2667 = vsel %vm1864, %v2531, 0
        %v2670 = vsel %vm1864, %v2532, 0
        %2672 = vmatprep.subr.mxu0 %v2548
        %2673 = vmatpush1.msra.mxu0 %v2547
        %2674 = vmatprep.subr.mxu0 %v2558
        %2675 = vmatpush1.msra.mxu0 %v2557
        %2676 = vmatprep.subr.mxu0 0.0
        %2677 = vmatpush1.msra.mxu0 0.0
        %2678 = vmatprep.subr.mxu0 0.0
        %2679 = vmatpush1.msra.mxu0 0.0
        %2680 = vmatprep.subr.mxu0 0.0
        %2681 = vmatpush1.msra.mxu0 0.0
        %2682 = vmatprep.subr.mxu0 0.0
        %2683 = vmatpush1.msra.mxu0 0.0
        %2684 = vmatprep.subr.mxu0 0.0
        %2685 = vmatpush1.msra.mxu0 0.0
        %2686 = vmatprep.subr.mxu0 0.0
        %2687 = vmatpush1.msra.mxu0 0.0
        %2688 = vmatprep.subr.mxu0 0.0
        %2689 = vmatpush1.msra.mxu0 0.0
        %2690 = vmatprep.subr.mxu0 0.0
        %2691 = vmatpush1.msra.mxu0 0.0
        %2692 = vmatprep.subr.mxu0 0.0
        %2693 = vmatpush1.msra.mxu0 0.0
        %2694 = vmatprep.subr.mxu0 0.0
        %2695 = vmatpush1.msra.mxu0 0.0
        %2696 = vmatprep.subr.mxu0 0.0
        %2697 = vmatpush1.msra.mxu0 0.0
        %2698 = vmatprep.subr.mxu0 0.0
        %2699 = vmatpush1.msra.mxu0 0.0
        %2700 = vmatprep.subr.mxu0 0.0
        %2701 = vmatpush1.msra.mxu0 0.0
        %2702 = vmatprep.subr.mxu0 0.0
        %2703 = vmatpush1.msra.mxu0 0.0
        %2704 = vmatprep.subr.mxu0 0.0
        %2705 = vmatpush1.msra.mxu0 0.0
        %2706 = vmatprep.subr.mxu0 0.0
        %2707 = vmatpush1.msra.mxu0 0.0
        %2708 = vmatprep.subr.mxu0 0.0
        %2709 = vmatpush1.msra.mxu0 0.0
        %2710 = vmatprep.subr.mxu0 0.0
        %2711 = vmatpush1.msra.mxu0 0.0
        %2712 = vmatprep.subr.mxu0 0.0
        %2713 = vmatpush1.msra.mxu0 0.0
        %2714 = vmatprep.subr.mxu0 0.0
        %2715 = vmatpush1.msra.mxu0 0.0
        %2716 = vmatprep.subr.mxu0 0.0
        %2717 = vmatpush1.msra.mxu0 0.0
        %2718 = vmatprep.subr.mxu0 0.0
        %2719 = vmatpush1.msra.mxu0 0.0
        %2720 = vmatprep.subr.mxu0 0.0
        %2721 = vmatpush1.msra.mxu0 0.0
        %2722 = vmatprep.subr.mxu0 0.0
        %2723 = vmatpush1.msra.mxu0 0.0
        %2724 = vmatprep.subr.mxu0 0.0
        %2725 = vmatpush1.msra.mxu0 0.0
        %2726 = vmatprep.subr.mxu0 0.0
        %2727 = vmatpush1.msra.mxu0 0.0
        %2728 = vmatprep.subr.mxu0 0.0
        %2729 = vmatpush1.msra.mxu0 0.0
        %2730 = vmatprep.subr.mxu0 0.0
        %2731 = vmatpush1.msra.mxu0 0.0
        %2732 = vmatprep.subr.mxu0 0.0
        %2733 = vmatpush1.msra.mxu0 0.0
        %2734 = vmatprep.subr.mxu0 0.0
        %2735 = vmatpush1.msra.mxu0 0.0
        %2736 = vmatprep.mubr.f32.mxu0 0.0
        %2737 = vmatmul.mubr.f32.gmra.mrb[0].mxu0 %v2661
        %v2738 = vpop.f32.mrb[0].mxu0
        %v2739 = vadd.f32 %v2638, %v2738
        %v2740 = vpop.f32.mrb[0].mxu0
        %v2741 = vadd.f32 %v2640, %v2740
        %2742 = vmatprep.mubr.f32.mxu0 0.0
        %2743 = vmatmul.mubr.f32.gmra.mrb[0].mxu0 %v2664
        %v2744 = vpop.f32.mrb[0].mxu0
        %v2745 = vadd.f32 %v2644, %v2744
        %v2746 = vpop.f32.mrb[0].mxu0
        %v2747 = vadd.f32 %v2646, %v2746
        %2748 = vmatprep.mubr.f32.mxu0 0.0
        %2749 = vmatmul.mubr.f32.gmra.mrb[0].mxu0 %v2667
        %v2750 = vpop.f32.mrb[0].mxu0
        %v2751 = vadd.f32 %v2650, %v2750
        %v2752 = vpop.f32.mrb[0].mxu0
        %v2753 = vadd.f32 %v2652, %v2752
        %2754 = vmatprep.mubr.f32.mxu0 0.0
        %2755 = vmatmul.mubr.f32.gmra.mrb[0].mxu0 %v2670
        %v2756 = vpop.f32.mrb[0].mxu0
        %v2757 = vadd.f32 %v2656, %v2756
        %v2758 = vpop.f32.mrb[0].mxu0
        %v2759 = vadd.f32 %v2658, %v2758
        %2760 = vdwg.mxu0
        %v2761 = vmax.f32 %v2739, 0.0
        %v2762 = vmax.f32 %v2741, 0.0
        %v2763 = vmax.f32 %v2745, 0.0
        %v2764 = vmax.f32 %v2747, 0.0
        %v2765 = vmax.f32 %v2751, 0.0
        %v2766 = vmax.f32 %v2753, 0.0
        %v2767 = vmax.f32 %v2757, 0.0
        %v2768 = vmax.f32 %v2759, 0.0
        %v2770 = vsel %vm2076, %v2537, 0
        %v2773 = vsel %vm2076, %v2538, 0
        %2775 = vmatprep.subr.mxu0 %v2762
        %2776 = vmatpush1.msra.mxu0 %v2761
        %2777 = vmatprep.subr.mxu0 %v2764
        %2778 = vmatpush1.msra.mxu0 %v2763
        %2779 = vmatprep.subr.mxu0 %v2766
        %2780 = vmatpush1.msra.mxu0 %v2765
        %2781 = vmatprep.subr.mxu0 %v2768
        %2782 = vmatpush1.msra.mxu0 %v2767
        %2783 = vmatprep.subr.mxu0 0.0
        %2784 = vmatpush1.msra.mxu0 0.0
        %2785 = vmatprep.subr.mxu0 0.0
        %2786 = vmatpush1.msra.mxu0 0.0
        %2787 = vmatprep.subr.mxu0 0.0
        %2788 = vmatpush1.msra.mxu0 0.0
        %2789 = vmatprep.subr.mxu0 0.0
        %2790 = vmatpush1.msra.mxu0 0.0
        %2791 = vmatprep.subr.mxu0 0.0
        %2792 = vmatpush1.msra.mxu0 0.0
        %2793 = vmatprep.subr.mxu0 0.0
        %2794 = vmatpush1.msra.mxu0 0.0
        %2795 = vmatprep.subr.mxu0 0.0
        %2796 = vmatpush1.msra.mxu0 0.0
        %2797 = vmatprep.subr.mxu0 0.0
        %2798 = vmatpush1.msra.mxu0 0.0
        %2799 = vmatprep.subr.mxu0 0.0
        %2800 = vmatpush1.msra.mxu0 0.0
        %2801 = vmatprep.subr.mxu0 0.0
        %2802 = vmatpush1.msra.mxu0 0.0
        %2803 = vmatprep.subr.mxu0 0.0
        %2804 = vmatpush1.msra.mxu0 0.0
        %2805 = vmatprep.subr.mxu0 0.0
        %2806 = vmatpush1.msra.mxu0 0.0
        %2807 = vmatprep.subr.mxu0 0.0
        %2808 = vmatpush1.msra.mxu0 0.0
        %2809 = vmatprep.subr.mxu0 0.0
        %2810 = vmatpush1.msra.mxu0 0.0
        %2811 = vmatprep.subr.mxu0 0.0
        %2812 = vmatpush1.msra.mxu0 0.0
        %2813 = vmatprep.subr.mxu0 0.0
        %2814 = vmatpush1.msra.mxu0 0.0
        %2815 = vmatprep.subr.mxu0 0.0
        %2816 = vmatpush1.msra.mxu0 0.0
        %2817 = vmatprep.subr.mxu0 0.0
        %2818 = vmatpush1.msra.mxu0 0.0
        %2819 = vmatprep.subr.mxu0 0.0
        %2820 = vmatpush1.msra.mxu0 0.0
        %2821 = vmatprep.subr.mxu0 0.0
        %2822 = vmatpush1.msra.mxu0 0.0
        %2823 = vmatprep.subr.mxu0 0.0
        %2824 = vmatpush1.msra.mxu0 0.0
        %2825 = vmatprep.subr.mxu0 0.0
        %2826 = vmatpush1.msra.mxu0 0.0
        %2827 = vmatprep.subr.mxu0 0.0
        %2828 = vmatpush1.msra.mxu0 0.0
        %2829 = vmatprep.subr.mxu0 0.0
        %2830 = vmatpush1.msra.mxu0 0.0
        %2831 = vmatprep.subr.mxu0 0.0
        %2832 = vmatpush1.msra.mxu0 0.0
        %2833 = vmatprep.subr.mxu0 0.0
        %2834 = vmatpush1.msra.mxu0 0.0
        %2835 = vmatprep.subr.mxu0 0.0
        %2836 = vmatpush1.msra.mxu0 0.0
        %2837 = vmatprep.subr.mxu0 0.0
        %2838 = vmatpush1.msra.mxu0 0.0
        %2839 = vmatprep.mubr.f32.mxu0 0.0
        %2840 = vmatmul.mubr.f32.gmra.mrb[0].mxu0 %v2770
        %v2841 = vpop.f32.mrb[0].mxu0
        %v2842 = vadd.f32 0.0, %v2841
        %v2843 = vpop.f32.mrb[0].mxu0
        %v2844 = vadd.f32 0.0, %v2843
        %2845 = vmatprep.mubr.f32.mxu0 0.0
        %2846 = vmatmul.mubr.f32.gmra.mrb[0].mxu0 %v2773
        %v2847 = vpop.f32.mrb[0].mxu0
        %v2848 = vadd.f32 0.0, %v2847
        %v2849 = vpop.f32.mrb[0].mxu0
        %v2850 = vadd.f32 0.0, %v2849
        %2851 = vdwg.mxu0
        %v2852 = vmax.f32 %v2842, 0.0
        %v2853 = vmax.f32 %v2844, 0.0
        %v2854 = vmax.f32 %v2848, 0.0
        %v2855 = vmax.f32 %v2850, 0.0
        %v2858 = vrot.slane %v1768, 1
        %v2859 = vrot.slane %v1769, 1
        %vm2862 = vcmask 1043456
        %v2863 = vsel %vm2862, %v2858, 0.0
        %v2864 = vrot.slane %v2863, 4
        %v2865 = vadd.f32 %v2863, %v2864
        %v2866 = vrot.slane %v2865, 2
        %v2867 = vadd.f32 %v2865, %v2866
        %v2868 = vrot.slane %v2867, 1
        %v2869 = vadd.f32 %v2867, %v2868
        %v2870 = vsel %vm2862, %v2859, 0.0
        %v2871 = vrot.slane %v2870, 4
        %v2872 = vadd.f32 %v2870, %v2871
        %v2873 = vrot.slane %v2872, 2
        %v2874 = vadd.f32 %v2872, %v2873
        %v2875 = vrot.slane %v2874, 1
        %v2876 = vadd.f32 %v2874, %v2875
        %v2877 = vrot.slane %v1768, 5
        %v2878 = vrot.slane %v1769, 5
        %v2881 = vsel %vm1772, %v2877, 0.0
        %v2882 = vrot.slane %v2881, 4
        %v2883 = vadd.f32 %v2881, %v2882
        %v2884 = vrot.slane %v2883, 2
        %v2885 = vadd.f32 %v2883, %v2884
        %v2886 = vrot.slane %v2885, 1
        %v2887 = vadd.f32 %v2885, %v2886
        %v2888 = vsel %vm1772, %v2878, 0.0
        %v2889 = vrot.slane %v2888, 4
        %v2890 = vadd.f32 %v2888, %v2889
        %v2891 = vrot.slane %v2890, 2
        %v2892 = vadd.f32 %v2890, %v2891
        %v2893 = vrot.slane %v2892, 1
        %v2894 = vadd.f32 %v2892, %v2893
        %v2895 = vmul.f32 %v1615, %v2869
        %v2896 = vmul.f32 %v1616, %v2876
        %v2897 = vmul.f32 %v1617, %v2869
        %v2898 = vmul.f32 %v1618, %v2876
        %v2899 = vmul.f32 %v1619, %v2869
        %v2900 = vmul.f32 %v1620, %v2876
        %v2901 = vmul.f32 %v1621, %v2869
        %v2902 = vmul.f32 %v1622, %v2876
        %v2903 = vld [vmem:[%s43] sm:$0xff]
        %v2904 = vld [vmem:[%s43 + $0x8] sm:$0xff]
        %v2905 = vld [vmem:[%s43 + $0x10] sm:$0xff]
        %v2906 = vld [vmem:[%s43 + $0x18] sm:$0xff]
        %v2907 = vld [vmem:[%s43 + $0x20] sm:$0xff]
        %v2908 = vld [vmem:[%s43 + $0x28] sm:$0xff]
        %v2909 = vld [vmem:[%s43 + $0x30] sm:$0xff]
        %v2910 = vld [vmem:[%s43 + $0x38] sm:$0xff]
        %v2911 = vld [vmem:[%s45] sm:$0xff]
        %v2912 = vld [vmem:[%s45 + $0x8] sm:$0xff]
        %v2913 = vld [vmem:[%s45 + $0x10] sm:$0xff]
        %v2914 = vld [vmem:[%s45 + $0x18] sm:$0xff]
        %v2915 = vld [vmem:[%s45 + $0x20] sm:$0xff]
        %v2916 = vld [vmem:[%s45 + $0x28] sm:$0xff]
        %v2917 = vld [vmem:[%s45 + $0x30] sm:$0xff]
        %v2918 = vld [vmem:[%s45 + $0x38] sm:$0xff]
        %v2919 = vld [vmem:[%s47] sm:$0xff]
        %v2920 = vld [vmem:[%s47 + $0x8] sm:$0xff]
        %v2921 = vld [vmem:[%s47 + $0x10] sm:$0xff]
        %v2922 = vld [vmem:[%s47 + $0x18] sm:$0xff]
        %v2924 = vsel %vm2076, %v2911, 0
        %v2927 = vsel %vm2076, %v2912, 0
        %v2930 = vsel %vm2076, %v2913, 0
        %v2933 = vsel %vm2076, %v2914, 0
        %v2936 = vsel %vm2076, %v2915, 0
        %v2939 = vsel %vm2076, %v2916, 0
        %v2942 = vsel %vm2076, %v2917, 0
        %v2945 = vsel %vm2076, %v2918, 0
        %2947 = vmatprep.subr.mxu0 %v2896
        %2948 = vmatpush1.msra.mxu0 %v2895
        %2949 = vmatprep.subr.mxu0 %v2898
        %2950 = vmatpush1.msra.mxu0 %v2897
        %2951 = vmatprep.subr.mxu0 %v2900
        %2952 = vmatpush1.msra.mxu0 %v2899
        %2953 = vmatprep.subr.mxu0 %v2902
        %2954 = vmatpush1.msra.mxu0 %v2901
        %2955 = vmatprep.subr.mxu0 0.0
        %2956 = vmatpush1.msra.mxu0 0.0
        %2957 = vmatprep.subr.mxu0 0.0
        %2958 = vmatpush1.msra.mxu0 0.0
        %2959 = vmatprep.subr.mxu0 0.0
        %2960 = vmatpush1.msra.mxu0 0.0
        %2961 = vmatprep.subr.mxu0 0.0
        %2962 = vmatpush1.msra.mxu0 0.0
        %2963 = vmatprep.subr.mxu0 0.0
        %2964 = vmatpush1.msra.mxu0 0.0
        %2965 = vmatprep.subr.mxu0 0.0
        %2966 = vmatpush1.msra.mxu0 0.0
        %2967 = vmatprep.subr.mxu0 0.0
        %2968 = vmatpush1.msra.mxu0 0.0
        %2969 = vmatprep.subr.mxu0 0.0
        %2970 = vmatpush1.msra.mxu0 0.0
        %2971 = vmatprep.subr.mxu0 0.0
        %2972 = vmatpush1.msra.mxu0 0.0
        %2973 = vmatprep.subr.mxu0 0.0
        %2974 = vmatpush1.msra.mxu0 0.0
        %2975 = vmatprep.subr.mxu0 0.0
        %2976 = vmatpush1.msra.mxu0 0.0
        %2977 = vmatprep.subr.mxu0 0.0
        %2978 = vmatpush1.msra.mxu0 0.0
        %2979 = vmatprep.subr.mxu0 0.0
        %2980 = vmatpush1.msra.mxu0 0.0
        %2981 = vmatprep.subr.mxu0 0.0
        %2982 = vmatpush1.msra.mxu0 0.0
        %2983 = vmatprep.subr.mxu0 0.0
        %2984 = vmatpush1.msra.mxu0 0.0
        %2985 = vmatprep.subr.mxu0 0.0
        %2986 = vmatpush1.msra.mxu0 0.0
        %2987 = vmatprep.subr.mxu0 0.0
        %2988 = vmatpush1.msra.mxu0 0.0
        %2989 = vmatprep.subr.mxu0 0.0
        %2990 = vmatpush1.msra.mxu0 0.0
        %2991 = vmatprep.subr.mxu0 0.0
        %2992 = vmatpush1.msra.mxu0 0.0
        %2993 = vmatprep.subr.mxu0 0.0
        %2994 = vmatpush1.msra.mxu0 0.0
        %2995 = vmatprep.subr.mxu0 0.0
        %2996 = vmatpush1.msra.mxu0 0.0
        %2997 = vmatprep.subr.mxu0 0.0
        %2998 = vmatpush1.msra.mxu0 0.0
        %2999 = vmatprep.subr.mxu0 0.0
        %3000 = vmatpush1.msra.mxu0 0.0
        %3001 = vmatprep.subr.mxu0 0.0
        %3002 = vmatpush1.msra.mxu0 0.0
        %3003 = vmatprep.subr.mxu0 0.0
        %3004 = vmatpush1.msra.mxu0 0.0
        %3005 = vmatprep.subr.mxu0 0.0
        %3006 = vmatpush1.msra.mxu0 0.0
        %3007 = vmatprep.subr.mxu0 0.0
        %3008 = vmatpush1.msra.mxu0 0.0
        %3009 = vmatprep.subr.mxu0 0.0
        %3010 = vmatpush1.msra.mxu0 0.0
        %3011 = vmatprep.mubr.f32.mxu0 0.0
        %3012 = vmatmul.mubr.f32.gmra.mrb[0].mxu0 %v2924
        %v3013 = vpop.f32.mrb[0].mxu0
        %v3014 = vadd.f32 0.0, %v3013
        %v3015 = vpop.f32.mrb[0].mxu0
        %v3016 = vadd.f32 0.0, %v3015
        %3017 = vmatprep.mubr.f32.mxu0 0.0
        %3018 = vmatmul.mubr.f32.gmra.mrb[0].mxu0 %v2927
        %v3019 = vpop.f32.mrb[0].mxu0
        %v3020 = vadd.f32 0.0, %v3019
        %v3021 = vpop.f32.mrb[0].mxu0
        %v3022 = vadd.f32 0.0, %v3021
        %3023 = vmatprep.mubr.f32.mxu0 0.0
        %3024 = vmatmul.mubr.f32.gmra.mrb[0].mxu0 %v2930
        %v3025 = vpop.f32.mrb[0].mxu0
        %v3026 = vadd.f32 0.0, %v3025
        %v3027 = vpop.f32.mrb[0].mxu0
        %v3028 = vadd.f32 0.0, %v3027
        %3029 = vmatprep.mubr.f32.mxu0 0.0
        %3030 = vmatmul.mubr.f32.gmra.mrb[0].mxu0 %v2933
        %v3031 = vpop.f32.mrb[0].mxu0
        %v3032 = vadd.f32 0.0, %v3031
        %v3033 = vpop.f32.mrb[0].mxu0
        %v3034 = vadd.f32 0.0, %v3033
        %3035 = vmatprep.mubr.f32.mxu0 0.0
        %3036 = vmatmul.mubr.f32.gmra.mrb[0].mxu0 %v2936
        %v3037 = vpop.f32.mrb[0].mxu0
        %v3038 = vadd.f32 0.0, %v3037
        %v3039 = vpop.f32.mrb[0].mxu0
        %v3040 = vadd.f32 0.0, %v3039
        %3041 = vmatprep.mubr.f32.mxu0 0.0
        %3042 = vmatmul.mubr.f32.gmra.mrb[0].mxu0 %v2939
        %v3043 = vpop.f32.mrb[0].mxu0
        %v3044 = vadd.f32 0.0, %v3043
        %v3045 = vpop.f32.mrb[0].mxu0
        %v3046 = vadd.f32 0.0, %v3045
        %3047 = vmatprep.mubr.f32.mxu0 0.0
        %3048 = vmatmul.mubr.f32.gmra.mrb[0].mxu0 %v2942
        %v3049 = vpop.f32.mrb[0].mxu0
        %v3050 = vadd.f32 0.0, %v3049
        %v3051 = vpop.f32.mrb[0].mxu0
        %v3052 = vadd.f32 0.0, %v3051
        %3053 = vmatprep.mubr.f32.mxu0 0.0
        %3054 = vmatmul.mubr.f32.gmra.mrb[0].mxu0 %v2945
        %v3055 = vpop.f32.mrb[0].mxu0
        %v3056 = vadd.f32 0.0, %v3055
        %v3057 = vpop.f32.mrb[0].mxu0
        %v3058 = vadd.f32 0.0, %v3057
        %3059 = vdwg.mxu0
        %v3061 = vsel %vm1966, %v2903, 0
        %v3064 = vsel %vm1966, %v2904, 0
        %v3067 = vsel %vm1966, %v2905, 0
        %v3070 = vsel %vm1966, %v2906, 0
        %v3073 = vsel %vm1966, %v2907, 0
        %v3076 = vsel %vm1966, %v2908, 0
        %v3079 = vsel %vm1966, %v2909, 0
        %v3082 = vsel %vm1966, %v2910, 0
        %3084 = vmatprep.subr.mxu0 %v1628
        %3085 = vmatpush1.msra.mxu0 %v1627
        %3086 = vmatprep.subr.mxu0 0.0
        %3087 = vmatpush1.msra.mxu0 0.0
        %3088 = vmatprep.subr.mxu0 0.0
        %3089 = vmatpush1.msra.mxu0 0.0
        %3090 = vmatprep.subr.mxu0 0.0
        %3091 = vmatpush1.msra.mxu0 0.0
        %3092 = vmatprep.subr.mxu0 0.0
        %3093 = vmatpush1.msra.mxu0 0.0
        %3094 = vmatprep.subr.mxu0 0.0
        %3095 = vmatpush1.msra.mxu0 0.0
        %3096 = vmatprep.subr.mxu0 0.0
        %3097 = vmatpush1.msra.mxu0 0.0
        %3098 = vmatprep.subr.mxu0 0.0
        %3099 = vmatpush1.msra.mxu0 0.0
        %3100 = vmatprep.subr.mxu0 0.0
        %3101 = vmatpush1.msra.mxu0 0.0
        %3102 = vmatprep.subr.mxu0 0.0
        %3103 = vmatpush1.msra.mxu0 0.0
        %3104 = vmatprep.subr.mxu0 0.0
        %3105 = vmatpush1.msra.mxu0 0.0
        %3106 = vmatprep.subr.mxu0 0.0
        %3107 = vmatpush1.msra.mxu0 0.0
        %3108 = vmatprep.subr.mxu0 0.0
        %3109 = vmatpush1.msra.mxu0 0.0
        %3110 = vmatprep.subr.mxu0 0.0
        %3111 = vmatpush1.msra.mxu0 0.0
        %3112 = vmatprep.subr.mxu0 0.0
        %3113 = vmatpush1.msra.mxu0 0.0
        %3114 = vmatprep.subr.mxu0 0.0
        %3115 = vmatpush1.msra.mxu0 0.0
        %3116 = vmatprep.subr.mxu0 0.0
        %3117 = vmatpush1.msra.mxu0 0.0
        %3118 = vmatprep.subr.mxu0 0.0
        %3119 = vmatpush1.msra.mxu0 0.0
        %3120 = vmatprep.subr.mxu0 0.0
        %3121 = vmatpush1.msra.mxu0 0.0
        %3122 = vmatprep.subr.mxu0 0.0
        %3123 = vmatpush1.msra.mxu0 0.0
        %3124 = vmatprep.subr.mxu0 0.0
        %3125 = vmatpush1.msra.mxu0 0.0
        %3126 = vmatprep.subr.mxu0 0.0
        %3127 = vmatpush1.msra.mxu0 0.0
        %3128 = vmatprep.subr.mxu0 0.0
        %3129 = vmatpush1.msra.mxu0 0.0
        %3130 = vmatprep.subr.mxu0 0.0
        %3131 = vmatpush1.msra.mxu0 0.0
        %3132 = vmatprep.subr.mxu0 0.0
        %3133 = vmatpush1.msra.mxu0 0.0
        %3134 = vmatprep.subr.mxu0 0.0
        %3135 = vmatpush1.msra.mxu0 0.0
        %3136 = vmatprep.subr.mxu0 0.0
        %3137 = vmatpush1.msra.mxu0 0.0
        %3138 = vmatprep.subr.mxu0 0.0
        %3139 = vmatpush1.msra.mxu0 0.0
        %3140 = vmatprep.subr.mxu0 0.0
        %3141 = vmatpush1.msra.mxu0 0.0
        %3142 = vmatprep.subr.mxu0 0.0
        %3143 = vmatpush1.msra.mxu0 0.0
        %3144 = vmatprep.subr.mxu0 0.0
        %3145 = vmatpush1.msra.mxu0 0.0
        %3146 = vmatprep.subr.mxu0 0.0
        %3147 = vmatpush1.msra.mxu0 0.0
        %3148 = vmatprep.mubr.f32.mxu0 0.0
        %3149 = vmatmul.mubr.f32.gmra.mrb[0].mxu0 %v3061
        %v3150 = vpop.f32.mrb[0].mxu0
        %v3151 = vadd.f32 %v3014, %v3150
        %v3152 = vpop.f32.mrb[0].mxu0
        %v3153 = vadd.f32 %v3016, %v3152
        %3154 = vmatprep.mubr.f32.mxu0 0.0
        %3155 = vmatmul.mubr.f32.gmra.mrb[0].mxu0 %v3064
        %v3156 = vpop.f32.mrb[0].mxu0
        %v3157 = vadd.f32 %v3020, %v3156
        %v3158 = vpop.f32.mrb[0].mxu0
        %v3159 = vadd.f32 %v3022, %v3158
        %3160 = vmatprep.mubr.f32.mxu0 0.0
        %3161 = vmatmul.mubr.f32.gmra.mrb[0].mxu0 %v3067
        %v3162 = vpop.f32.mrb[0].mxu0
        %v3163 = vadd.f32 %v3026, %v3162
        %v3164 = vpop.f32.mrb[0].mxu0
        %v3165 = vadd.f32 %v3028, %v3164
        %3166 = vmatprep.mubr.f32.mxu0 0.0
        %3167 = vmatmul.mubr.f32.gmra.mrb[0].mxu0 %v3070
        %v3168 = vpop.f32.mrb[0].mxu0
        %v3169 = vadd.f32 %v3032, %v3168
        %v3170 = vpop.f32.mrb[0].mxu0
        %v3171 = vadd.f32 %v3034, %v3170
        %3172 = vmatprep.mubr.f32.mxu0 0.0
        %3173 = vmatmul.mubr.f32.gmra.mrb[0].mxu0 %v3073
        %v3174 = vpop.f32.mrb[0].mxu0
        %v3175 = vadd.f32 %v3038, %v3174
        %v3176 = vpop.f32.mrb[0].mxu0
        %v3177 = vadd.f32 %v3040, %v3176
        %3178 = vmatprep.mubr.f32.mxu0 0.0
        %3179 = vmatmul.mubr.f32.gmra.mrb[0].mxu0 %v3076
        %v3180 = vpop.f32.mrb[0].mxu0
        %v3181 = vadd.f32 %v3044, %v3180
        %v3182 = vpop.f32.mrb[0].mxu0
        %v3183 = vadd.f32 %v3046, %v3182
        %3184 = vmatprep.mubr.f32.mxu0 0.0
        %3185 = vmatmul.mubr.f32.gmra.mrb[0].mxu0 %v3079
        %v3186 = vpop.f32.mrb[0].mxu0
        %v3187 = vadd.f32 %v3050, %v3186
        %v3188 = vpop.f32.mrb[0].mxu0
        %v3189 = vadd.f32 %v3052, %v3188
        %3190 = vmatprep.mubr.f32.mxu0 0.0
        %3191 = vmatmul.mubr.f32.gmra.mrb[0].mxu0 %v3082
        %v3192 = vpop.f32.mrb[0].mxu0
        %v3193 = vadd.f32 %v3056, %v3192
        %v3194 = vpop.f32.mrb[0].mxu0
        %v3195 = vadd.f32 %v3058, %v3194
        %3196 = vdwg.mxu0
        %v3197 = vmax.f32 %v3151, 0.0
        %v3198 = vmax.f32 %v3153, 0.0
        %v3199 = vmax.f32 %v3157, 0.0
        %v3200 = vmax.f32 %v3159, 0.0
        %v3201 = vmax.f32 %v3163, 0.0
        %v3202 = vmax.f32 %v3165, 0.0
        %v3203 = vmax.f32 %v3169, 0.0
        %v3204 = vmax.f32 %v3171, 0.0
        %v3205 = vmax.f32 %v3175, 0.0
        %v3206 = vmax.f32 %v3177, 0.0
        %v3207 = vmax.f32 %v3181, 0.0
        %v3208 = vmax.f32 %v3183, 0.0
        %v3209 = vmax.f32 %v3187, 0.0
        %v3210 = vmax.f32 %v3189, 0.0
        %v3211 = vmax.f32 %v3193, 0.0
        %v3212 = vmax.f32 %v3195, 0.0
        %vm3213 = vcmask 523264
        %v3215 = vsel %vm3213, %v2919, 0
        %v3218 = vsel %vm3213, %v2920, 0
        %v3221 = vsel %vm3213, %v2921, 0
        %v3224 = vsel %vm3213, %v2922, 0
        %3226 = vmatprep.subr.mxu0 %v3198
        %3227 = vmatpush1.msra.mxu0 %v3197
        %3228 = vmatprep.subr.mxu0 %v3200
        %3229 = vmatpush1.msra.mxu0 %v3199
        %3230 = vmatprep.subr.mxu0 %v3202
        %3231 = vmatpush1.msra.mxu0 %v3201
        %3232 = vmatprep.subr.mxu0 %v3204
        %3233 = vmatpush1.msra.mxu0 %v3203
        %3234 = vmatprep.subr.mxu0 %v3206
        %3235 = vmatpush1.msra.mxu0 %v3205
        %3236 = vmatprep.subr.mxu0 %v3208
        %3237 = vmatpush1.msra.mxu0 %v3207
        %3238 = vmatprep.subr.mxu0 %v3210
        %3239 = vmatpush1.msra.mxu0 %v3209
        %3240 = vmatprep.subr.mxu0 %v3212
        %3241 = vmatpush1.msra.mxu0 %v3211
        %3242 = vmatprep.subr.mxu0 0.0
        %3243 = vmatpush1.msra.mxu0 0.0
        %3244 = vmatprep.subr.mxu0 0.0
        %3245 = vmatpush1.msra.mxu0 0.0
        %3246 = vmatprep.subr.mxu0 0.0
        %3247 = vmatpush1.msra.mxu0 0.0
        %3248 = vmatprep.subr.mxu0 0.0
        %3249 = vmatpush1.msra.mxu0 0.0
        %3250 = vmatprep.subr.mxu0 0.0
        %3251 = vmatpush1.msra.mxu0 0.0
        %3252 = vmatprep.subr.mxu0 0.0
        %3253 = vmatpush1.msra.mxu0 0.0
        %3254 = vmatprep.subr.mxu0 0.0
        %3255 = vmatpush1.msra.mxu0 0.0
        %3256 = vmatprep.subr.mxu0 0.0
        %3257 = vmatpush1.msra.mxu0 0.0
        %3258 = vmatprep.subr.mxu0 0.0
        %3259 = vmatpush1.msra.mxu0 0.0
        %3260 = vmatprep.subr.mxu0 0.0
        %3261 = vmatpush1.msra.mxu0 0.0
        %3262 = vmatprep.subr.mxu0 0.0
        %3263 = vmatpush1.msra.mxu0 0.0
        %3264 = vmatprep.subr.mxu0 0.0
        %3265 = vmatpush1.msra.mxu0 0.0
        %3266 = vmatprep.subr.mxu0 0.0
        %3267 = vmatpush1.msra.mxu0 0.0
        %3268 = vmatprep.subr.mxu0 0.0
        %3269 = vmatpush1.msra.mxu0 0.0
        %3270 = vmatprep.subr.mxu0 0.0
        %3271 = vmatpush1.msra.mxu0 0.0
        %3272 = vmatprep.subr.mxu0 0.0
        %3273 = vmatpush1.msra.mxu0 0.0
        %3274 = vmatprep.subr.mxu0 0.0
        %3275 = vmatpush1.msra.mxu0 0.0
        %3276 = vmatprep.subr.mxu0 0.0
        %3277 = vmatpush1.msra.mxu0 0.0
        %3278 = vmatprep.subr.mxu0 0.0
        %3279 = vmatpush1.msra.mxu0 0.0
        %3280 = vmatprep.subr.mxu0 0.0
        %3281 = vmatpush1.msra.mxu0 0.0
        %3282 = vmatprep.subr.mxu0 0.0
        %3283 = vmatpush1.msra.mxu0 0.0
        %3284 = vmatprep.subr.mxu0 0.0
        %3285 = vmatpush1.msra.mxu0 0.0
        %3286 = vmatprep.subr.mxu0 0.0
        %3287 = vmatpush1.msra.mxu0 0.0
        %3288 = vmatprep.subr.mxu0 0.0
        %3289 = vmatpush1.msra.mxu0 0.0
        %3290 = vmatprep.mubr.f32.mxu0 0.0
        %3291 = vmatmul.mubr.f32.gmra.mrb[0].mxu0 %v3215
        %v3292 = vpop.f32.mrb[0].mxu0
        %v3293 = vadd.f32 0.0, %v3292
        %v3294 = vpop.f32.mrb[0].mxu0
        %v3295 = vadd.f32 0.0, %v3294
        %3296 = vmatprep.mubr.f32.mxu0 0.0
        %3297 = vmatmul.mubr.f32.gmra.mrb[0].mxu0 %v3218
        %v3298 = vpop.f32.mrb[0].mxu0
        %v3299 = vadd.f32 0.0, %v3298
        %v3300 = vpop.f32.mrb[0].mxu0
        %v3301 = vadd.f32 0.0, %v3300
        %3302 = vmatprep.mubr.f32.mxu0 0.0
        %3303 = vmatmul.mubr.f32.gmra.mrb[0].mxu0 %v3221
        %v3304 = vpop.f32.mrb[0].mxu0
        %v3305 = vadd.f32 0.0, %v3304
        %v3306 = vpop.f32.mrb[0].mxu0
        %v3307 = vadd.f32 0.0, %v3306
        %3308 = vmatprep.mubr.f32.mxu0 0.0
        %3309 = vmatmul.mubr.f32.gmra.mrb[0].mxu0 %v3224
        %v3310 = vpop.f32.mrb[0].mxu0
        %v3311 = vadd.f32 0.0, %v3310
        %v3312 = vpop.f32.mrb[0].mxu0
        %v3313 = vadd.f32 0.0, %v3312
        %3314 = vdwg.mxu0
        %v3315 = vmax.f32 %v3293, 0.0
        %v3316 = vmax.f32 %v3295, 0.0
        %v3317 = vmax.f32 %v3299, 0.0
        %v3318 = vmax.f32 %v3301, 0.0
        %v3319 = vmax.f32 %v3305, 0.0
        %v3320 = vmax.f32 %v3307, 0.0
        %v3321 = vmax.f32 %v3311, 0.0
        %v3322 = vmax.f32 %v3313, 0.0
        %v3323 = vadd.f32 %v3315, %v3317
        %v3324 = vadd.f32 %v3316, %v3318
        %v3325 = vadd.f32 %v3323, %v3319
        %v3326 = vadd.f32 %v3324, %v3320
        %v3327 = vadd.f32 %v3325, %v3321
        %v3328 = vadd.f32 %v3326, %v3322
        %v3329 = vmul.f32 %v1623, %v2887
        %v3330 = vmul.f32 %v1624, %v2894
        %v3331 = vmul.f32 %v1625, %v2887
        %v3332 = vmul.f32 %v1626, %v2894
        %v3333 = vld [vmem:[%s49] sm:$0xff]
        %v3334 = vld [vmem:[%s49 + $0x8] sm:$0xff]
        %v3335 = vld [vmem:[%s49 + $0x10] sm:$0xff]
        %v3336 = vld [vmem:[%s49 + $0x18] sm:$0xff]
        %v3337 = vld [vmem:[%s51] sm:$0xff]
        %v3338 = vld [vmem:[%s51 + $0x8] sm:$0xff]
        %v3339 = vld [vmem:[%s51 + $0x10] sm:$0xff]
        %v3340 = vld [vmem:[%s51 + $0x18] sm:$0xff]
        %v3341 = vld [vmem:[%s53] sm:$0xff]
        %v3342 = vld [vmem:[%s53 + $0x8] sm:$0xff]
        %v3344 = vsel %vm1864, %v3337, 0
        %v3347 = vsel %vm1864, %v3338, 0
        %v3350 = vsel %vm1864, %v3339, 0
        %v3353 = vsel %vm1864, %v3340, 0
        %3355 = vmatprep.subr.mxu0 %v3330
        %3356 = vmatpush1.msra.mxu0 %v3329
        %3357 = vmatprep.subr.mxu0 %v3332
        %3358 = vmatpush1.msra.mxu0 %v3331
        %3359 = vmatprep.subr.mxu0 0.0
        %3360 = vmatpush1.msra.mxu0 0.0
        %3361 = vmatprep.subr.mxu0 0.0
        %3362 = vmatpush1.msra.mxu0 0.0
        %3363 = vmatprep.subr.mxu0 0.0
        %3364 = vmatpush1.msra.mxu0 0.0
        %3365 = vmatprep.subr.mxu0 0.0
        %3366 = vmatpush1.msra.mxu0 0.0
        %3367 = vmatprep.subr.mxu0 0.0
        %3368 = vmatpush1.msra.mxu0 0.0
        %3369 = vmatprep.subr.mxu0 0.0
        %3370 = vmatpush1.msra.mxu0 0.0
        %3371 = vmatprep.subr.mxu0 0.0
        %3372 = vmatpush1.msra.mxu0 0.0
        %3373 = vmatprep.subr.mxu0 0.0
        %3374 = vmatpush1.msra.mxu0 0.0
        %3375 = vmatprep.subr.mxu0 0.0
        %3376 = vmatpush1.msra.mxu0 0.0
        %3377 = vmatprep.subr.mxu0 0.0
        %3378 = vmatpush1.msra.mxu0 0.0
        %3379 = vmatprep.subr.mxu0 0.0
        %3380 = vmatpush1.msra.mxu0 0.0
        %3381 = vmatprep.subr.mxu0 0.0
        %3382 = vmatpush1.msra.mxu0 0.0
        %3383 = vmatprep.subr.mxu0 0.0
        %3384 = vmatpush1.msra.mxu0 0.0
        %3385 = vmatprep.subr.mxu0 0.0
        %3386 = vmatpush1.msra.mxu0 0.0
        %3387 = vmatprep.subr.mxu0 0.0
        %3388 = vmatpush1.msra.mxu0 0.0
        %3389 = vmatprep.subr.mxu0 0.0
        %3390 = vmatpush1.msra.mxu0 0.0
        %3391 = vmatprep.subr.mxu0 0.0
        %3392 = vmatpush1.msra.mxu0 0.0
        %3393 = vmatprep.subr.mxu0 0.0
        %3394 = vmatpush1.msra.mxu0 0.0
        %3395 = vmatprep.subr.mxu0 0.0
        %3396 = vmatpush1.msra.mxu0 0.0
        %3397 = vmatprep.subr.mxu0 0.0
        %3398 = vmatpush1.msra.mxu0 0.0
        %3399 = vmatprep.subr.mxu0 0.0
        %3400 = vmatpush1.msra.mxu0 0.0
        %3401 = vmatprep.subr.mxu0 0.0
        %3402 = vmatpush1.msra.mxu0 0.0
        %3403 = vmatprep.subr.mxu0 0.0
        %3404 = vmatpush1.msra.mxu0 0.0
        %3405 = vmatprep.subr.mxu0 0.0
        %3406 = vmatpush1.msra.mxu0 0.0
        %3407 = vmatprep.subr.mxu0 0.0
        %3408 = vmatpush1.msra.mxu0 0.0
        %3409 = vmatprep.subr.mxu0 0.0
        %3410 = vmatpush1.msra.mxu0 0.0
        %3411 = vmatprep.subr.mxu0 0.0
        %3412 = vmatpush1.msra.mxu0 0.0
        %3413 = vmatprep.subr.mxu0 0.0
        %3414 = vmatpush1.msra.mxu0 0.0
        %3415 = vmatprep.subr.mxu0 0.0
        %3416 = vmatpush1.msra.mxu0 0.0
        %3417 = vmatprep.subr.mxu0 0.0
        %3418 = vmatpush1.msra.mxu0 0.0
        %3419 = vmatprep.mubr.f32.mxu0 0.0
        %3420 = vmatmul.mubr.f32.gmra.mrb[0].mxu0 %v3344
        %v3421 = vpop.f32.mrb[0].mxu0
        %v3422 = vadd.f32 0.0, %v3421
        %v3423 = vpop.f32.mrb[0].mxu0
        %v3424 = vadd.f32 0.0, %v3423
        %3425 = vmatprep.mubr.f32.mxu0 0.0
        %3426 = vmatmul.mubr.f32.gmra.mrb[0].mxu0 %v3347
        %v3427 = vpop.f32.mrb[0].mxu0
        %v3428 = vadd.f32 0.0, %v3427
        %v3429 = vpop.f32.mrb[0].mxu0
        %v3430 = vadd.f32 0.0, %v3429
        %3431 = vmatprep.mubr.f32.mxu0 0.0
        %3432 = vmatmul.mubr.f32.gmra.mrb[0].mxu0 %v3350
        %v3433 = vpop.f32.mrb[0].mxu0
        %v3434 = vadd.f32 0.0, %v3433
        %v3435 = vpop.f32.mrb[0].mxu0
        %v3436 = vadd.f32 0.0, %v3435
        %3437 = vmatprep.mubr.f32.mxu0 0.0
        %3438 = vmatmul.mubr.f32.gmra.mrb[0].mxu0 %v3353
        %v3439 = vpop.f32.mrb[0].mxu0
        %v3440 = vadd.f32 0.0, %v3439
        %v3441 = vpop.f32.mrb[0].mxu0
        %v3442 = vadd.f32 0.0, %v3441
        %3443 = vdwg.mxu0
        %v3445 = vsel %vm1966, %v3333, 0
        %v3448 = vsel %vm1966, %v3334, 0
        %v3451 = vsel %vm1966, %v3335, 0
        %v3454 = vsel %vm1966, %v3336, 0
        %3456 = vmatprep.subr.mxu0 %v1630
        %3457 = vmatpush1.msra.mxu0 %v1629
        %3458 = vmatprep.subr.mxu0 0.0
        %3459 = vmatpush1.msra.mxu0 0.0
        %3460 = vmatprep.subr.mxu0 0.0
        %3461 = vmatpush1.msra.mxu0 0.0
        %3462 = vmatprep.subr.mxu0 0.0
        %3463 = vmatpush1.msra.mxu0 0.0
        %3464 = vmatprep.subr.mxu0 0.0
        %3465 = vmatpush1.msra.mxu0 0.0
        %3466 = vmatprep.subr.mxu0 0.0
        %3467 = vmatpush1.msra.mxu0 0.0
        %3468 = vmatprep.subr.mxu0 0.0
        %3469 = vmatpush1.msra.mxu0 0.0
        %3470 = vmatprep.subr.mxu0 0.0
        %3471 = vmatpush1.msra.mxu0 0.0
        %3472 = vmatprep.subr.mxu0 0.0
        %3473 = vmatpush1.msra.mxu0 0.0
        %3474 = vmatprep.subr.mxu0 0.0
        %3475 = vmatpush1.msra.mxu0 0.0
        %3476 = vmatprep.subr.mxu0 0.0
        %3477 = vmatpush1.msra.mxu0 0.0
        %3478 = vmatprep.subr.mxu0 0.0
        %3479 = vmatpush1.msra.mxu0 0.0
        %3480 = vmatprep.subr.mxu0 0.0
        %3481 = vmatpush1.msra.mxu0 0.0
        %3482 = vmatprep.subr.mxu0 0.0
        %3483 = vmatpush1.msra.mxu0 0.0
        %3484 = vmatprep.subr.mxu0 0.0
        %3485 = vmatpush1.msra.mxu0 0.0
        %3486 = vmatprep.subr.mxu0 0.0
        %3487 = vmatpush1.msra.mxu0 0.0
        %3488 = vmatprep.subr.mxu0 0.0
        %3489 = vmatpush1.msra.mxu0 0.0
        %3490 = vmatprep.subr.mxu0 0.0
        %3491 = vmatpush1.msra.mxu0 0.0
        %3492 = vmatprep.subr.mxu0 0.0
        %3493 = vmatpush1.msra.mxu0 0.0
        %3494 = vmatprep.subr.mxu0 0.0
        %3495 = vmatpush1.msra.mxu0 0.0
        %3496 = vmatprep.subr.mxu0 0.0
        %3497 = vmatpush1.msra.mxu0 0.0
        %3498 = vmatprep.subr.mxu0 0.0
        %3499 = vmatpush1.msra.mxu0 0.0
        %3500 = vmatprep.subr.mxu0 0.0
        %3501 = vmatpush1.msra.mxu0 0.0
        %3502 = vmatprep.subr.mxu0 0.0
        %3503 = vmatpush1.msra.mxu0 0.0
        %3504 = vmatprep.subr.mxu0 0.0
        %3505 = vmatpush1.msra.mxu0 0.0
        %3506 = vmatprep.subr.mxu0 0.0
        %3507 = vmatpush1.msra.mxu0 0.0
        %3508 = vmatprep.subr.mxu0 0.0
        %3509 = vmatpush1.msra.mxu0 0.0
        %3510 = vmatprep.subr.mxu0 0.0
        %3511 = vmatpush1.msra.mxu0 0.0
        %3512 = vmatprep.subr.mxu0 0.0
        %3513 = vmatpush1.msra.mxu0 0.0
        %3514 = vmatprep.subr.mxu0 0.0
        %3515 = vmatpush1.msra.mxu0 0.0
        %3516 = vmatprep.subr.mxu0 0.0
        %3517 = vmatpush1.msra.mxu0 0.0
        %3518 = vmatprep.subr.mxu0 0.0
        %3519 = vmatpush1.msra.mxu0 0.0
        %3520 = vmatprep.mubr.f32.mxu0 0.0
        %3521 = vmatmul.mubr.f32.gmra.mrb[0].mxu0 %v3445
        %v3522 = vpop.f32.mrb[0].mxu0
        %v3523 = vadd.f32 %v3422, %v3522
        %v3524 = vpop.f32.mrb[0].mxu0
        %v3525 = vadd.f32 %v3424, %v3524
        %3526 = vmatprep.mubr.f32.mxu0 0.0
        %3527 = vmatmul.mubr.f32.gmra.mrb[0].mxu0 %v3448
        %v3528 = vpop.f32.mrb[0].mxu0
        %v3529 = vadd.f32 %v3428, %v3528
        %v3530 = vpop.f32.mrb[0].mxu0
        %v3531 = vadd.f32 %v3430, %v3530
        %3532 = vmatprep.mubr.f32.mxu0 0.0
        %3533 = vmatmul.mubr.f32.gmra.mrb[0].mxu0 %v3451
        %v3534 = vpop.f32.mrb[0].mxu0
        %v3535 = vadd.f32 %v3434, %v3534
        %v3536 = vpop.f32.mrb[0].mxu0
        %v3537 = vadd.f32 %v3436, %v3536
        %3538 = vmatprep.mubr.f32.mxu0 0.0
        %3539 = vmatmul.mubr.f32.gmra.mrb[0].mxu0 %v3454
        %v3540 = vpop.f32.mrb[0].mxu0
        %v3541 = vadd.f32 %v3440, %v3540
        %v3542 = vpop.f32.mrb[0].mxu0
        %v3543 = vadd.f32 %v3442, %v3542
        %3544 = vdwg.mxu0
        %v3545 = vmax.f32 %v3523, 0.0
        %v3546 = vmax.f32 %v3525, 0.0
        %v3547 = vmax.f32 %v3529, 0.0
        %v3548 = vmax.f32 %v3531, 0.0
        %v3549 = vmax.f32 %v3535, 0.0
        %v3550 = vmax.f32 %v3537, 0.0
        %v3551 = vmax.f32 %v3541, 0.0
        %v3552 = vmax.f32 %v3543, 0.0
        %v3554 = vsel %vm2076, %v3341, 0
        %v3557 = vsel %vm2076, %v3342, 0
        %3559 = vmatprep.subr.mxu0 %v3546
        %3560 = vmatpush1.msra.mxu0 %v3545
        %3561 = vmatprep.subr.mxu0 %v3548
        %3562 = vmatpush1.msra.mxu0 %v3547
        %3563 = vmatprep.subr.mxu0 %v3550
        %3564 = vmatpush1.msra.mxu0 %v3549
        %3565 = vmatprep.subr.mxu0 %v3552
        %3566 = vmatpush1.msra.mxu0 %v3551
        %3567 = vmatprep.subr.mxu0 0.0
        %3568 = vmatpush1.msra.mxu0 0.0
        %3569 = vmatprep.subr.mxu0 0.0
        %3570 = vmatpush1.msra.mxu0 0.0
        %3571 = vmatprep.subr.mxu0 0.0
        %3572 = vmatpush1.msra.mxu0 0.0
        %3573 = vmatprep.subr.mxu0 0.0
        %3574 = vmatpush1.msra.mxu0 0.0
        %3575 = vmatprep.subr.mxu0 0.0
        %3576 = vmatpush1.msra.mxu0 0.0
        %3577 = vmatprep.subr.mxu0 0.0
        %3578 = vmatpush1.msra.mxu0 0.0
        %3579 = vmatprep.subr.mxu0 0.0
        %3580 = vmatpush1.msra.mxu0 0.0
        %3581 = vmatprep.subr.mxu0 0.0
        %3582 = vmatpush1.msra.mxu0 0.0
        %3583 = vmatprep.subr.mxu0 0.0
        %3584 = vmatpush1.msra.mxu0 0.0
        %3585 = vmatprep.subr.mxu0 0.0
        %3586 = vmatpush1.msra.mxu0 0.0
        %3587 = vmatprep.subr.mxu0 0.0
        %3588 = vmatpush1.msra.mxu0 0.0
        %3589 = vmatprep.subr.mxu0 0.0
        %3590 = vmatpush1.msra.mxu0 0.0
        %3591 = vmatprep.subr.mxu0 0.0
        %3592 = vmatpush1.msra.mxu0 0.0
        %3593 = vmatprep.subr.mxu0 0.0
        %3594 = vmatpush1.msra.mxu0 0.0
        %3595 = vmatprep.subr.mxu0 0.0
        %3596 = vmatpush1.msra.mxu0 0.0
        %3597 = vmatprep.subr.mxu0 0.0
        %3598 = vmatpush1.msra.mxu0 0.0
        %3599 = vmatprep.subr.mxu0 0.0
        %3600 = vmatpush1.msra.mxu0 0.0
        %3601 = vmatprep.subr.mxu0 0.0
        %3602 = vmatpush1.msra.mxu0 0.0
        %3603 = vmatprep.subr.mxu0 0.0
        %3604 = vmatpush1.msra.mxu0 0.0
        %3605 = vmatprep.subr.mxu0 0.0
        %3606 = vmatpush1.msra.mxu0 0.0
        %3607 = vmatprep.subr.mxu0 0.0
        %3608 = vmatpush1.msra.mxu0 0.0
        %3609 = vmatprep.subr.mxu0 0.0
        %3610 = vmatpush1.msra.mxu0 0.0
        %3611 = vmatprep.subr.mxu0 0.0
        %3612 = vmatpush1.msra.mxu0 0.0
        %3613 = vmatprep.subr.mxu0 0.0
        %3614 = vmatpush1.msra.mxu0 0.0
        %3615 = vmatprep.subr.mxu0 0.0
        %3616 = vmatpush1.msra.mxu0 0.0
        %3617 = vmatprep.subr.mxu0 0.0
        %3618 = vmatpush1.msra.mxu0 0.0
        %3619 = vmatprep.subr.mxu0 0.0
        %3620 = vmatpush1.msra.mxu0 0.0
        %3621 = vmatprep.subr.mxu0 0.0
        %3622 = vmatpush1.msra.mxu0 0.0
        %3623 = vmatprep.mubr.f32.mxu0 0.0
        %3624 = vmatmul.mubr.f32.gmra.mrb[0].mxu0 %v3554
        %v3625 = vpop.f32.mrb[0].mxu0
        %v3626 = vadd.f32 0.0, %v3625
        %v3627 = vpop.f32.mrb[0].mxu0
        %v3628 = vadd.f32 0.0, %v3627
        %3629 = vmatprep.mubr.f32.mxu0 0.0
        %3630 = vmatmul.mubr.f32.gmra.mrb[0].mxu0 %v3557
        %v3631 = vpop.f32.mrb[0].mxu0
        %v3632 = vadd.f32 0.0, %v3631
        %v3633 = vpop.f32.mrb[0].mxu0
        %v3634 = vadd.f32 0.0, %v3633
        %3635 = vdwg.mxu0
        %v3636 = vmax.f32 %v3626, 0.0
        %v3637 = vmax.f32 %v3628, 0.0
        %v3638 = vmax.f32 %v3632, 0.0
        %v3639 = vmax.f32 %v3634, 0.0
        %v3640 = vadd.f32 %v3636, %v3638
        %v3641 = vadd.f32 %v3637, %v3639
        %v3642 = vld [vmem:[%s75] sm:$0xff]
        %v3643 = vld [vmem:[%s77] sm:$0xff]
        %3645 = vset.pattern.permute.xlu0 0
        %3646 = vperm.xlu0 %3645, %v3643
        %v3647 = vpop.permute.xlu0 %3646
        %vm3649 = vcmask 392192
        %v3651 = vsel %vm3649, %v3642, 0
        %3653 = vmatprep.subr.mxu0 %v2853
        %3654 = vmatpush1.msra.mxu0 %v2852
        %3655 = vmatprep.subr.mxu0 %v2855
        %3656 = vmatpush1.msra.mxu0 %v2854
        %3657 = vmatprep.subr.mxu0 %v3328
        %3658 = vmatpush1.msra.mxu0 %v3327
        %3659 = vmatprep.subr.mxu0 %v3641
        %3660 = vmatpush1.msra.mxu0 %v3640
        %3661 = vmatprep.subr.mxu0 %v1628
        %3662 = vmatpush1.msra.mxu0 %v1627
        %3663 = vmatprep.subr.mxu0 %v1630
        %3664 = vmatpush1.msra.mxu0 %v1629
        %3665 = vmatprep.subr.mxu0 0.0
        %3666 = vmatpush1.msra.mxu0 0.0
        %3667 = vmatprep.subr.mxu0 0.0
        %3668 = vmatpush1.msra.mxu0 0.0
        %3669 = vmatprep.subr.mxu0 0.0
        %3670 = vmatpush1.msra.mxu0 0.0
        %3671 = vmatprep.subr.mxu0 0.0
        %3672 = vmatpush1.msra.mxu0 0.0
        %3673 = vmatprep.subr.mxu0 0.0
        %3674 = vmatpush1.msra.mxu0 0.0
        %3675 = vmatprep.subr.mxu0 0.0
        %3676 = vmatpush1.msra.mxu0 0.0
        %3677 = vmatprep.subr.mxu0 0.0
        %3678 = vmatpush1.msra.mxu0 0.0
        %3679 = vmatprep.subr.mxu0 0.0
        %3680 = vmatpush1.msra.mxu0 0.0
        %3681 = vmatprep.subr.mxu0 0.0
        %3682 = vmatpush1.msra.mxu0 0.0
        %3683 = vmatprep.subr.mxu0 0.0
        %3684 = vmatpush1.msra.mxu0 0.0
        %3685 = vmatprep.subr.mxu0 0.0
        %3686 = vmatpush1.msra.mxu0 0.0
        %3687 = vmatprep.subr.mxu0 0.0
        %3688 = vmatpush1.msra.mxu0 0.0
        %3689 = vmatprep.subr.mxu0 0.0
        %3690 = vmatpush1.msra.mxu0 0.0
        %3691 = vmatprep.subr.mxu0 0.0
        %3692 = vmatpush1.msra.mxu0 0.0
        %3693 = vmatprep.subr.mxu0 0.0
        %3694 = vmatpush1.msra.mxu0 0.0
        %3695 = vmatprep.subr.mxu0 0.0
        %3696 = vmatpush1.msra.mxu0 0.0
        %3697 = vmatprep.subr.mxu0 0.0
        %3698 = vmatpush1.msra.mxu0 0.0
        %3699 = vmatprep.subr.mxu0 0.0
        %3700 = vmatpush1.msra.mxu0 0.0
        %3701 = vmatprep.subr.mxu0 0.0
        %3702 = vmatpush1.msra.mxu0 0.0
        %3703 = vmatprep.subr.mxu0 0.0
        %3704 = vmatpush1.msra.mxu0 0.0
        %3705 = vmatprep.subr.mxu0 0.0
        %3706 = vmatpush1.msra.mxu0 0.0
        %3707 = vmatprep.subr.mxu0 0.0
        %3708 = vmatpush1.msra.mxu0 0.0
        %3709 = vmatprep.subr.mxu0 0.0
        %3710 = vmatpush1.msra.mxu0 0.0
        %3711 = vmatprep.subr.mxu0 0.0
        %3712 = vmatpush1.msra.mxu0 0.0
        %3713 = vmatprep.subr.mxu0 0.0
        %3714 = vmatpush1.msra.mxu0 0.0
        %3715 = vmatprep.subr.mxu0 0.0
        %3716 = vmatpush1.msra.mxu0 0.0
        %3717 = vmatprep.mubr.f32.mxu0 0.0
        %3718 = vmatmul.mubr.f32.gmra.mrb[0].mxu0 %v3651
        %v3719 = vpop.f32.mrb[0].mxu0
        %v3720 = vadd.f32 %v3647, %v3719
        %v3721 = vpop.f32.mrb[0].mxu0
        %v3722 = vadd.f32 %v3647, %v3721
        %3723 = vdwg.mxu0
        %v3724 = vsub.f32 0.0, %v3720
        %v3725 = vsub.f32 0.0, %v3722
        %v3726 = vmul.f32 %v3724, 1.442695
        %v3727 = vpow.pop %v3726
        %v3728 = vmul.f32 %v3725, 1.442695
        %v3729 = vpow.pop %v3728
        %v3730 = vadd.f32 %v3727, 1.0
        %v3731 = vadd.f32 %v3729, 1.0
        %v3732 = vrcp.pop %v3730
        %v3733 = vrcp.pop %v3731
        %s3734 = sld [smem:[#allocation5 + $0x1]]
        %s3735 = sld [smem:[#allocation5 + $0x2]]
        %v3736 = vsub.f32 1.0, %v3732
        %v3737 = vsub.f32 1.0, %v3733
        %v3738 = vlaneseq
        %v3739 = vshrl.u32 %v3738, 7
        %v3740 = vsub.s32 2, %v3739
        %v3741 = vrot.slane %v3736, %v3740
        %v3742 = vlaneseq
        %v3743 = vshrl.u32 %v3742, 7
        %v3744 = vsub.s32 2, %v3743
        %v3745 = vrot.slane %v3737, %v3744
        %v3746 = vmul.f32 %v1627, %v3741
        %v3747 = vmul.f32 %v1628, %v3745
        %v3748 = vlaneseq
        %v3749 = vshrl.u32 %v3748, 7
        %v3750 = vsub.s32 0, %v3749
        %v3751 = vrot.slane %v3732, %v3750
        %v3752 = vlaneseq
        %v3753 = vshrl.u32 %v3752, 7
        %v3754 = vsub.s32 0, %v3753
        %v3755 = vrot.slane %v3733, %v3754
        %v3756 = vmul.f32 %v2852, %v3751
        %v3757 = vmul.f32 %v2853, %v3755
        %v3758 = vstv %s3734
        %v3759 = vmul.f32 %v3756, %v3758
        %v3760 = vmul.f32 %v3757, %v3758
        %v3761 = vadd.f32 %v3746, %v3759
        %v3762 = vadd.f32 %v3747, %v3760
        %v3763 = vlaneseq
        %v3764 = vshrl.u32 %v3763, 7
        %v3765 = vsub.s32 1, %v3764
        %v3766 = vrot.slane %v3732, %v3765
        %v3767 = vlaneseq
        %v3768 = vshrl.u32 %v3767, 7
        %v3769 = vsub.s32 1, %v3768
        %v3770 = vrot.slane %v3733, %v3769
        %v3771 = vmul.f32 %v3327, %v3766
        %v3772 = vmul.f32 %v3328, %v3770
        %v3773 = vstv %s3735
        %v3774 = vmul.f32 %v3771, %v3773
        %v3775 = vmul.f32 %v3772, %v3773
        %v3776 = vadd.f32 %v3761, %v3774
        %v3777 = vadd.f32 %v3762, %v3775
        %v3778 = vlaneseq
        %v3779 = vshrl.u32 %v3778, 7
        %v3780 = vsub.s32 3, %v3779
        %v3781 = vrot.slane %v3736, %v3780
        %v3782 = vlaneseq
        %v3783 = vshrl.u32 %v3782, 7
        %v3784 = vsub.s32 3, %v3783
        %v3785 = vrot.slane %v3737, %v3784
        %v3786 = vmul.f32 %v3781, %v1627
        %v3787 = vmul.f32 %v3785, %v1628
        %v3788 = vtanh.pop %v3776
        %v3789 = vtanh.pop %v3777
        %v3790 = vlaneseq
        %v3791 = vshrl.u32 %v3790, 7
        %v3792 = vsub.s32 3, %v3791
        %v3793 = vrot.slane %v3732, %v3792
        %v3794 = vlaneseq
        %v3795 = vshrl.u32 %v3794, 7
        %v3796 = vsub.s32 3, %v3795
        %v3797 = vrot.slane %v3733, %v3796
        %v3798 = vmul.f32 %v3793, %v3788
        %v3799 = vmul.f32 %v3797, %v3789
        %v3800 = vadd.f32 %v3786, %v3798
        %v3801 = vadd.f32 %v3787, %v3799
        %s3802 = sld [smem:[#allocation5 + $0x3]]
        %s3803 = sld [smem:[#allocation5 + $0x4]]
        %v3804 = vlaneseq
        %v3805 = vshrl.u32 %v3804, 7
        %v3806 = vsub.s32 6, %v3805
        %v3807 = vrot.slane %v3736, %v3806
        %v3808 = vlaneseq
        %v3809 = vshrl.u32 %v3808, 7
        %v3810 = vsub.s32 6, %v3809
        %v3811 = vrot.slane %v3737, %v3810
        %v3812 = vmul.f32 %v1629, %v3807
        %v3813 = vmul.f32 %v1630, %v3811
        %v3814 = vlaneseq
        %v3815 = vshrl.u32 %v3814, 7
        %v3816 = vsub.s32 4, %v3815
        %v3817 = vrot.slane %v3732, %v3816
        %v3818 = vlaneseq
        %v3819 = vshrl.u32 %v3818, 7
        %v3820 = vsub.s32 4, %v3819
        %v3821 = vrot.slane %v3733, %v3820
        %v3822 = vmul.f32 %v2854, %v3817
        %v3823 = vmul.f32 %v2855, %v3821
        %v3824 = vstv %s3802
        %v3825 = vmul.f32 %v3822, %v3824
        %v3826 = vmul.f32 %v3823, %v3824
        %v3827 = vadd.f32 %v3812, %v3825
        %v3828 = vadd.f32 %v3813, %v3826
        %v3829 = vlaneseq
        %v3830 = vshrl.u32 %v3829, 7
        %v3831 = vsub.s32 5, %v3830
        %v3832 = vrot.slane %v3732, %v3831
        %v3833 = vlaneseq
        %v3834 = vshrl.u32 %v3833, 7
        %v3835 = vsub.s32 5, %v3834
        %v3836 = vrot.slane %v3733, %v3835
        %v3837 = vmul.f32 %v3640, %v3832
        %v3838 = vmul.f32 %v3641, %v3836
        %v3839 = vstv %s3803
        %v3840 = vmul.f32 %v3837, %v3839
        %v3841 = vmul.f32 %v3838, %v3839
        %v3842 = vadd.f32 %v3827, %v3840
        %v3843 = vadd.f32 %v3828, %v3841
        %v3844 = vlaneseq
        %v3845 = vshrl.u32 %v3844, 7
        %v3846 = vsub.s32 7, %v3845
        %v3847 = vrot.slane %v3736, %v3846
        %v3848 = vlaneseq
        %v3849 = vshrl.u32 %v3848, 7
        %v3850 = vsub.s32 7, %v3849
        %v3851 = vrot.slane %v3737, %v3850
        %v3852 = vmul.f32 %v3847, %v1629
        %v3853 = vmul.f32 %v3851, %v1630
        %v3854 = vtanh.pop %v3842
        %v3855 = vtanh.pop %v3843
        %v3856 = vlaneseq
        %v3857 = vshrl.u32 %v3856, 7
        %v3858 = vsub.s32 7, %v3857
        %v3859 = vrot.slane %v3732, %v3858
        %v3860 = vlaneseq
        %v3861 = vshrl.u32 %v3860, 7
        %v3862 = vsub.s32 7, %v3861
        %v3863 = vrot.slane %v3733, %v3862
        %v3864 = vmul.f32 %v3859, %v3854
        %v3865 = vmul.f32 %v3863, %v3855
        %v3866 = vadd.f32 %v3852, %v3864
        %v3867 = vadd.f32 %v3853, %v3865
        %v3868 = vld [vmem:[%s25] sm:$0xff]
        %v3869 = vld [vmem:[%s25 + $0x8] sm:$0xff]
        %v3870 = vld [vmem:[%s25 + $0x10] sm:$0xff]
        %v3871 = vld [vmem:[%s25 + $0x18] sm:$0xff]
        %v3872 = vld [vmem:[%s25 + $0x20] sm:$0xff]
        %v3873 = vld [vmem:[%s25 + $0x28] sm:$0xff]
        %v3874 = vld [vmem:[%s25 + $0x30] sm:$0xff]
        %v3875 = vld [vmem:[%s25 + $0x38] sm:$0xff]
        %v3876 = vld [vmem:[%s27] sm:$0xff]
        %v3877 = vld [vmem:[%s27 + $0x8] sm:$0xff]
        %v3878 = vld [vmem:[%s27 + $0x10] sm:$0xff]
        %v3879 = vld [vmem:[%s27 + $0x18] sm:$0xff]
        %v3880 = vld [vmem:[%s27 + $0x20] sm:$0xff]
        %v3881 = vld [vmem:[%s27 + $0x28] sm:$0xff]
        %v3882 = vld [vmem:[%s27 + $0x30] sm:$0xff]
        %v3883 = vld [vmem:[%s27 + $0x38] sm:$0xff]
        %v3884 = vld [vmem:[%s29] sm:$0xff]
        %v3885 = vld [vmem:[%s29 + $0x8] sm:$0xff]
        %v3886 = vld [vmem:[%s29 + $0x10] sm:$0xff]
        %v3887 = vld [vmem:[%s29 + $0x18] sm:$0xff]
        %v3888 = vlaneseq
        %v3889 = vshrl.u32 %v3888, 7
        %v3890 = vsub.s32 1, %v3889
        %v3891 = vrot.slane %v2444, %v3890
        %v3892 = vlaneseq
        %v3893 = vshrl.u32 %v3892, 7
        %v3894 = vsub.s32 1, %v3893
        %v3895 = vrot.slane %v2445, %v3894
        %v3896 = vmul.f32 %v1627, %v3891
        %v3897 = vmul.f32 %v1628, %v3895
        %v3898 = vlaneseq
        %v3899 = vshrl.u32 %v3898, 7
        %v3900 = vsub.s32 2, %v3899
        %v3901 = vrot.slane %v2444, %v3900
        %v3902 = vlaneseq
        %v3903 = vshrl.u32 %v3902, 7
        %v3904 = vsub.s32 2, %v3903
        %v3905 = vrot.slane %v2445, %v3904
        %v3906 = vmul.f32 %v1627, %v3901
        %v3907 = vmul.f32 %v1628, %v3905
        %v3908 = vlaneseq
        %v3909 = vshrl.u32 %v3908, 7
        %v3910 = vsub.s32 3, %v3909
        %v3911 = vrot.slane %v2444, %v3910
        %v3912 = vlaneseq
        %v3913 = vshrl.u32 %v3912, 7
        %v3914 = vsub.s32 3, %v3913
        %v3915 = vrot.slane %v2445, %v3914
        %v3916 = vmul.f32 %v1627, %v3911
        %v3917 = vmul.f32 %v1628, %v3915
        %v3918 = vlaneseq
        %v3919 = vshrl.u32 %v3918, 7
        %v3920 = vsub.s32 4, %v3919
        %v3921 = vrot.slane %v2444, %v3920
        %v3922 = vlaneseq
        %v3923 = vshrl.u32 %v3922, 7
        %v3924 = vsub.s32 4, %v3923
        %v3925 = vrot.slane %v2445, %v3924
        %v3926 = vmul.f32 %v1627, %v3921
        %v3927 = vmul.f32 %v1628, %v3925
        %v3929 = vsel %vm2076, %v3876, 0
        %v3932 = vsel %vm2076, %v3877, 0
        %v3935 = vsel %vm2076, %v3878, 0
        %v3938 = vsel %vm2076, %v3879, 0
        %v3941 = vsel %vm2076, %v3880, 0
        %v3944 = vsel %vm2076, %v3881, 0
        %v3947 = vsel %vm2076, %v3882, 0
        %v3950 = vsel %vm2076, %v3883, 0
        %3952 = vmatprep.subr.mxu0 %v1616
        %3953 = vmatpush1.msra.mxu0 %v1615
        %3954 = vmatprep.subr.mxu0 %v1618
        %3955 = vmatpush1.msra.mxu0 %v1617
        %3956 = vmatprep.subr.mxu0 %v1620
        %3957 = vmatpush1.msra.mxu0 %v1619
        %3958 = vmatprep.subr.mxu0 %v1622
        %3959 = vmatpush1.msra.mxu0 %v1621
        %3960 = vmatprep.subr.mxu0 0.0
        %3961 = vmatpush1.msra.mxu0 0.0
        %3962 = vmatprep.subr.mxu0 0.0
        %3963 = vmatpush1.msra.mxu0 0.0
        %3964 = vmatprep.subr.mxu0 0.0
        %3965 = vmatpush1.msra.mxu0 0.0
        %3966 = vmatprep.subr.mxu0 0.0
        %3967 = vmatpush1.msra.mxu0 0.0
        %3968 = vmatprep.subr.mxu0 0.0
        %3969 = vmatpush1.msra.mxu0 0.0
        %3970 = vmatprep.subr.mxu0 0.0
        %3971 = vmatpush1.msra.mxu0 0.0
        %3972 = vmatprep.subr.mxu0 0.0
        %3973 = vmatpush1.msra.mxu0 0.0
        %3974 = vmatprep.subr.mxu0 0.0
        %3975 = vmatpush1.msra.mxu0 0.0
        %3976 = vmatprep.subr.mxu0 0.0
        %3977 = vmatpush1.msra.mxu0 0.0
        %3978 = vmatprep.subr.mxu0 0.0
        %3979 = vmatpush1.msra.mxu0 0.0
        %3980 = vmatprep.subr.mxu0 0.0
        %3981 = vmatpush1.msra.mxu0 0.0
        %3982 = vmatprep.subr.mxu0 0.0
        %3983 = vmatpush1.msra.mxu0 0.0
        %3984 = vmatprep.subr.mxu0 0.0
        %3985 = vmatpush1.msra.mxu0 0.0
        %3986 = vmatprep.subr.mxu0 0.0
        %3987 = vmatpush1.msra.mxu0 0.0
        %3988 = vmatprep.subr.mxu0 0.0
        %3989 = vmatpush1.msra.mxu0 0.0
        %3990 = vmatprep.subr.mxu0 0.0
        %3991 = vmatpush1.msra.mxu0 0.0
        %3992 = vmatprep.subr.mxu0 0.0
        %3993 = vmatpush1.msra.mxu0 0.0
        %3994 = vmatprep.subr.mxu0 0.0
        %3995 = vmatpush1.msra.mxu0 0.0
        %3996 = vmatprep.subr.mxu0 0.0
        %3997 = vmatpush1.msra.mxu0 0.0
        %3998 = vmatprep.subr.mxu0 0.0
        %3999 = vmatpush1.msra.mxu0 0.0
        %4000 = vmatprep.subr.mxu0 0.0
        %4001 = vmatpush1.msra.mxu0 0.0
        %4002 = vmatprep.subr.mxu0 0.0
        %4003 = vmatpush1.msra.mxu0 0.0
        %4004 = vmatprep.subr.mxu0 0.0
        %4005 = vmatpush1.msra.mxu0 0.0
        %4006 = vmatprep.subr.mxu0 0.0
        %4007 = vmatpush1.msra.mxu0 0.0
        %4008 = vmatprep.subr.mxu0 0.0
        %4009 = vmatpush1.msra.mxu0 0.0
        %4010 = vmatprep.subr.mxu0 0.0
        %4011 = vmatpush1.msra.mxu0 0.0
        %4012 = vmatprep.subr.mxu0 0.0
        %4013 = vmatpush1.msra.mxu0 0.0
        %4014 = vmatprep.subr.mxu0 0.0
        %4015 = vmatpush1.msra.mxu0 0.0
        %4016 = vmatprep.mubr.f32.mxu0 0.0
        %4017 = vmatmul.mubr.f32.gmra.mrb[0].mxu0 %v3929
        %v4018 = vpop.f32.mrb[0].mxu0
        %v4019 = vadd.f32 0.0, %v4018
        %v4020 = vpop.f32.mrb[0].mxu0
        %v4021 = vadd.f32 0.0, %v4020
        %4022 = vmatprep.mubr.f32.mxu0 0.0
        %4023 = vmatmul.mubr.f32.gmra.mrb[0].mxu0 %v3932
        %v4024 = vpop.f32.mrb[0].mxu0
        %v4025 = vadd.f32 0.0, %v4024
        %v4026 = vpop.f32.mrb[0].mxu0
        %v4027 = vadd.f32 0.0, %v4026
        %4028 = vmatprep.mubr.f32.mxu0 0.0
        %4029 = vmatmul.mubr.f32.gmra.mrb[0].mxu0 %v3935
        %v4030 = vpop.f32.mrb[0].mxu0
        %v4031 = vadd.f32 0.0, %v4030
        %v4032 = vpop.f32.mrb[0].mxu0
        %v4033 = vadd.f32 0.0, %v4032
        %4034 = vmatprep.mubr.f32.mxu0 0.0
        %4035 = vmatmul.mubr.f32.gmra.mrb[0].mxu0 %v3938
        %v4036 = vpop.f32.mrb[0].mxu0
        %v4037 = vadd.f32 0.0, %v4036
        %v4038 = vpop.f32.mrb[0].mxu0
        %v4039 = vadd.f32 0.0, %v4038
        %4040 = vmatprep.mubr.f32.mxu0 0.0
        %4041 = vmatmul.mubr.f32.gmra.mrb[0].mxu0 %v3941
        %v4042 = vpop.f32.mrb[0].mxu0
        %v4043 = vadd.f32 0.0, %v4042
        %v4044 = vpop.f32.mrb[0].mxu0
        %v4045 = vadd.f32 0.0, %v4044
        %4046 = vmatprep.mubr.f32.mxu0 0.0
        %4047 = vmatmul.mubr.f32.gmra.mrb[0].mxu0 %v3944
        %v4048 = vpop.f32.mrb[0].mxu0
        %v4049 = vadd.f32 0.0, %v4048
        %v4050 = vpop.f32.mrb[0].mxu0
        %v4051 = vadd.f32 0.0, %v4050
        %4052 = vmatprep.mubr.f32.mxu0 0.0
        %4053 = vmatmul.mubr.f32.gmra.mrb[0].mxu0 %v3947
        %v4054 = vpop.f32.mrb[0].mxu0
        %v4055 = vadd.f32 0.0, %v4054
        %v4056 = vpop.f32.mrb[0].mxu0
        %v4057 = vadd.f32 0.0, %v4056
        %4058 = vmatprep.mubr.f32.mxu0 0.0
        %4059 = vmatmul.mubr.f32.gmra.mrb[0].mxu0 %v3950
        %v4060 = vpop.f32.mrb[0].mxu0
        %v4061 = vadd.f32 0.0, %v4060
        %v4062 = vpop.f32.mrb[0].mxu0
        %v4063 = vadd.f32 0.0, %v4062
        %4064 = vdwg.mxu0
        %v4066 = vsel %vm2076, %v3868, 0
        %v4069 = vsel %vm2076, %v3869, 0
        %v4072 = vsel %vm2076, %v3870, 0
        %v4075 = vsel %vm2076, %v3871, 0
        %v4078 = vsel %vm2076, %v3872, 0
        %v4081 = vsel %vm2076, %v3873, 0
        %v4084 = vsel %vm2076, %v3874, 0
        %v4087 = vsel %vm2076, %v3875, 0
        %4089 = vmatprep.subr.mxu0 %v3897
        %4090 = vmatpush1.msra.mxu0 %v3896
        %4091 = vmatprep.subr.mxu0 %v3907
        %4092 = vmatpush1.msra.mxu0 %v3906
        %4093 = vmatprep.subr.mxu0 %v3917
        %4094 = vmatpush1.msra.mxu0 %v3916
        %4095 = vmatprep.subr.mxu0 %v3927
        %4096 = vmatpush1.msra.mxu0 %v3926
        %4097 = vmatprep.subr.mxu0 0.0
        %4098 = vmatpush1.msra.mxu0 0.0
        %4099 = vmatprep.subr.mxu0 0.0
        %4100 = vmatpush1.msra.mxu0 0.0
        %4101 = vmatprep.subr.mxu0 0.0
        %4102 = vmatpush1.msra.mxu0 0.0
        %4103 = vmatprep.subr.mxu0 0.0
        %4104 = vmatpush1.msra.mxu0 0.0
        %4105 = vmatprep.subr.mxu0 0.0
        %4106 = vmatpush1.msra.mxu0 0.0
        %4107 = vmatprep.subr.mxu0 0.0
        %4108 = vmatpush1.msra.mxu0 0.0
        %4109 = vmatprep.subr.mxu0 0.0
        %4110 = vmatpush1.msra.mxu0 0.0
        %4111 = vmatprep.subr.mxu0 0.0
        %4112 = vmatpush1.msra.mxu0 0.0
        %4113 = vmatprep.subr.mxu0 0.0
        %4114 = vmatpush1.msra.mxu0 0.0
        %4115 = vmatprep.subr.mxu0 0.0
        %4116 = vmatpush1.msra.mxu0 0.0
        %4117 = vmatprep.subr.mxu0 0.0
        %4118 = vmatpush1.msra.mxu0 0.0
        %4119 = vmatprep.subr.mxu0 0.0
        %4120 = vmatpush1.msra.mxu0 0.0
        %4121 = vmatprep.subr.mxu0 0.0
        %4122 = vmatpush1.msra.mxu0 0.0
        %4123 = vmatprep.subr.mxu0 0.0
        %4124 = vmatpush1.msra.mxu0 0.0
        %4125 = vmatprep.subr.mxu0 0.0
        %4126 = vmatpush1.msra.mxu0 0.0
        %4127 = vmatprep.subr.mxu0 0.0
        %4128 = vmatpush1.msra.mxu0 0.0
        %4129 = vmatprep.subr.mxu0 0.0
        %4130 = vmatpush1.msra.mxu0 0.0
        %4131 = vmatprep.subr.mxu0 0.0
        %4132 = vmatpush1.msra.mxu0 0.0
        %4133 = vmatprep.subr.mxu0 0.0
        %4134 = vmatpush1.msra.mxu0 0.0
        %4135 = vmatprep.subr.mxu0 0.0
        %4136 = vmatpush1.msra.mxu0 0.0
        %4137 = vmatprep.subr.mxu0 0.0
        %4138 = vmatpush1.msra.mxu0 0.0
        %4139 = vmatprep.subr.mxu0 0.0
        %4140 = vmatpush1.msra.mxu0 0.0
        %4141 = vmatprep.subr.mxu0 0.0
        %4142 = vmatpush1.msra.mxu0 0.0
        %4143 = vmatprep.subr.mxu0 0.0
        %4144 = vmatpush1.msra.mxu0 0.0
        %4145 = vmatprep.subr.mxu0 0.0
        %4146 = vmatpush1.msra.mxu0 0.0
        %4147 = vmatprep.subr.mxu0 0.0
        %4148 = vmatpush1.msra.mxu0 0.0
        %4149 = vmatprep.subr.mxu0 0.0
        %4150 = vmatpush1.msra.mxu0 0.0
        %4151 = vmatprep.subr.mxu0 0.0
        %4152 = vmatpush1.msra.mxu0 0.0
        %4153 = vmatprep.mubr.f32.mxu0 0.0
        %4154 = vmatmul.mubr.f32.gmra.mrb[0].mxu0 %v4066
        %v4155 = vpop.f32.mrb[0].mxu0
        %v4156 = vadd.f32 %v4019, %v4155
        %v4157 = vpop.f32.mrb[0].mxu0
        %v4158 = vadd.f32 %v4021, %v4157
        %4159 = vmatprep.mubr.f32.mxu0 0.0
        %4160 = vmatmul.mubr.f32.gmra.mrb[0].mxu0 %v4069
        %v4161 = vpop.f32.mrb[0].mxu0
        %v4162 = vadd.f32 %v4025, %v4161
        %v4163 = vpop.f32.mrb[0].mxu0
        %v4164 = vadd.f32 %v4027, %v4163
        %4165 = vmatprep.mubr.f32.mxu0 0.0
        %4166 = vmatmul.mubr.f32.gmra.mrb[0].mxu0 %v4072
        %v4167 = vpop.f32.mrb[0].mxu0
        %v4168 = vadd.f32 %v4031, %v4167
        %v4169 = vpop.f32.mrb[0].mxu0
        %v4170 = vadd.f32 %v4033, %v4169
        %4171 = vmatprep.mubr.f32.mxu0 0.0
        %4172 = vmatmul.mubr.f32.gmra.mrb[0].mxu0 %v4075
        %v4173 = vpop.f32.mrb[0].mxu0
        %v4174 = vadd.f32 %v4037, %v4173
        %v4175 = vpop.f32.mrb[0].mxu0
        %v4176 = vadd.f32 %v4039, %v4175
        %4177 = vmatprep.mubr.f32.mxu0 0.0
        %4178 = vmatmul.mubr.f32.gmra.mrb[0].mxu0 %v4078
        %v4179 = vpop.f32.mrb[0].mxu0
        %v4180 = vadd.f32 %v4043, %v4179
        %v4181 = vpop.f32.mrb[0].mxu0
        %v4182 = vadd.f32 %v4045, %v4181
        %4183 = vmatprep.mubr.f32.mxu0 0.0
        %4184 = vmatmul.mubr.f32.gmra.mrb[0].mxu0 %v4081
        %v4185 = vpop.f32.mrb[0].mxu0
        %v4186 = vadd.f32 %v4049, %v4185
        %v4187 = vpop.f32.mrb[0].mxu0
        %v4188 = vadd.f32 %v4051, %v4187
        %4189 = vmatprep.mubr.f32.mxu0 0.0
        %4190 = vmatmul.mubr.f32.gmra.mrb[0].mxu0 %v4084
        %v4191 = vpop.f32.mrb[0].mxu0
        %v4192 = vadd.f32 %v4055, %v4191
        %v4193 = vpop.f32.mrb[0].mxu0
        %v4194 = vadd.f32 %v4057, %v4193
        %4195 = vmatprep.mubr.f32.mxu0 0.0
        %4196 = vmatmul.mubr.f32.gmra.mrb[0].mxu0 %v4087
        %v4197 = vpop.f32.mrb[0].mxu0
        %v4198 = vadd.f32 %v4061, %v4197
        %v4199 = vpop.f32.mrb[0].mxu0
        %v4200 = vadd.f32 %v4063, %v4199
        %4201 = vdwg.mxu0
        %v4202 = vmax.f32 %v4156, 0.0
        %v4203 = vmax.f32 %v4158, 0.0
        %v4204 = vmax.f32 %v4162, 0.0
        %v4205 = vmax.f32 %v4164, 0.0
        %v4206 = vmax.f32 %v4168, 0.0
        %v4207 = vmax.f32 %v4170, 0.0
        %v4208 = vmax.f32 %v4174, 0.0
        %v4209 = vmax.f32 %v4176, 0.0
        %v4210 = vmax.f32 %v4180, 0.0
        %v4211 = vmax.f32 %v4182, 0.0
        %v4212 = vmax.f32 %v4186, 0.0
        %v4213 = vmax.f32 %v4188, 0.0
        %v4214 = vmax.f32 %v4192, 0.0
        %v4215 = vmax.f32 %v4194, 0.0
        %v4216 = vmax.f32 %v4198, 0.0
        %v4217 = vmax.f32 %v4200, 0.0
        %v4219 = vsel %vm3213, %v3884, 0
        %v4222 = vsel %vm3213, %v3885, 0
        %v4225 = vsel %vm3213, %v3886, 0
        %v4228 = vsel %vm3213, %v3887, 0
        %4230 = vmatprep.subr.mxu0 %v4203
        %4231 = vmatpush1.msra.mxu0 %v4202
        %4232 = vmatprep.subr.mxu0 %v4205
        %4233 = vmatpush1.msra.mxu0 %v4204
        %4234 = vmatprep.subr.mxu0 %v4207
        %4235 = vmatpush1.msra.mxu0 %v4206
        %4236 = vmatprep.subr.mxu0 %v4209
        %4237 = vmatpush1.msra.mxu0 %v4208
        %4238 = vmatprep.subr.mxu0 %v4211
        %4239 = vmatpush1.msra.mxu0 %v4210
        %4240 = vmatprep.subr.mxu0 %v4213
        %4241 = vmatpush1.msra.mxu0 %v4212
        %4242 = vmatprep.subr.mxu0 %v4215
        %4243 = vmatpush1.msra.mxu0 %v4214
        %4244 = vmatprep.subr.mxu0 %v4217
        %4245 = vmatpush1.msra.mxu0 %v4216
        %4246 = vmatprep.subr.mxu0 0.0
        %4247 = vmatpush1.msra.mxu0 0.0
        %4248 = vmatprep.subr.mxu0 0.0
        %4249 = vmatpush1.msra.mxu0 0.0
        %4250 = vmatprep.subr.mxu0 0.0
        %4251 = vmatpush1.msra.mxu0 0.0
        %4252 = vmatprep.subr.mxu0 0.0
        %4253 = vmatpush1.msra.mxu0 0.0
        %4254 = vmatprep.subr.mxu0 0.0
        %4255 = vmatpush1.msra.mxu0 0.0
        %4256 = vmatprep.subr.mxu0 0.0
        %4257 = vmatpush1.msra.mxu0 0.0
        %4258 = vmatprep.subr.mxu0 0.0
        %4259 = vmatpush1.msra.mxu0 0.0
        %4260 = vmatprep.subr.mxu0 0.0
        %4261 = vmatpush1.msra.mxu0 0.0
        %4262 = vmatprep.subr.mxu0 0.0
        %4263 = vmatpush1.msra.mxu0 0.0
        %4264 = vmatprep.subr.mxu0 0.0
        %4265 = vmatpush1.msra.mxu0 0.0
        %4266 = vmatprep.subr.mxu0 0.0
        %4267 = vmatpush1.msra.mxu0 0.0
        %4268 = vmatprep.subr.mxu0 0.0
        %4269 = vmatpush1.msra.mxu0 0.0
        %4270 = vmatprep.subr.mxu0 0.0
        %4271 = vmatpush1.msra.mxu0 0.0
        %4272 = vmatprep.subr.mxu0 0.0
        %4273 = vmatpush1.msra.mxu0 0.0
        %4274 = vmatprep.subr.mxu0 0.0
        %4275 = vmatpush1.msra.mxu0 0.0
        %4276 = vmatprep.subr.mxu0 0.0
        %4277 = vmatpush1.msra.mxu0 0.0
        %4278 = vmatprep.subr.mxu0 0.0
        %4279 = vmatpush1.msra.mxu0 0.0
        %4280 = vmatprep.subr.mxu0 0.0
        %4281 = vmatpush1.msra.mxu0 0.0
        %4282 = vmatprep.subr.mxu0 0.0
        %4283 = vmatpush1.msra.mxu0 0.0
        %4284 = vmatprep.subr.mxu0 0.0
        %4285 = vmatpush1.msra.mxu0 0.0
        %4286 = vmatprep.subr.mxu0 0.0
        %4287 = vmatpush1.msra.mxu0 0.0
        %4288 = vmatprep.subr.mxu0 0.0
        %4289 = vmatpush1.msra.mxu0 0.0
        %4290 = vmatprep.subr.mxu0 0.0
        %4291 = vmatpush1.msra.mxu0 0.0
        %4292 = vmatprep.subr.mxu0 0.0
        %4293 = vmatpush1.msra.mxu0 0.0
        %4294 = vmatprep.mubr.f32.mxu0 0.0
        %4295 = vmatmul.mubr.f32.gmra.mrb[0].mxu0 %v4219
        %v4296 = vpop.f32.mrb[0].mxu0
        %v4297 = vadd.f32 0.0, %v4296
        %v4298 = vpop.f32.mrb[0].mxu0
        %v4299 = vadd.f32 0.0, %v4298
        %4300 = vmatprep.mubr.f32.mxu0 0.0
        %4301 = vmatmul.mubr.f32.gmra.mrb[0].mxu0 %v4222
        %v4302 = vpop.f32.mrb[0].mxu0
        %v4303 = vadd.f32 0.0, %v4302
        %v4304 = vpop.f32.mrb[0].mxu0
        %v4305 = vadd.f32 0.0, %v4304
        %4306 = vmatprep.mubr.f32.mxu0 0.0
        %4307 = vmatmul.mubr.f32.gmra.mrb[0].mxu0 %v4225
        %v4308 = vpop.f32.mrb[0].mxu0
        %v4309 = vadd.f32 0.0, %v4308
        %v4310 = vpop.f32.mrb[0].mxu0
        %v4311 = vadd.f32 0.0, %v4310
        %4312 = vmatprep.mubr.f32.mxu0 0.0
        %4313 = vmatmul.mubr.f32.gmra.mrb[0].mxu0 %v4228
        %v4314 = vpop.f32.mrb[0].mxu0
        %v4315 = vadd.f32 0.0, %v4314
        %v4316 = vpop.f32.mrb[0].mxu0
        %v4317 = vadd.f32 0.0, %v4316
        %4318 = vdwg.mxu0
        %v4319 = vmax.f32 %v4297, 0.0
        %v4320 = vmax.f32 %v4299, 0.0
        %v4321 = vmax.f32 %v4303, 0.0
        %v4322 = vmax.f32 %v4305, 0.0
        %v4323 = vmax.f32 %v4309, 0.0
        %v4324 = vmax.f32 %v4311, 0.0
        %v4325 = vmax.f32 %v4315, 0.0
        %v4326 = vmax.f32 %v4317, 0.0
        %v4327 = vld [vmem:[%s31] sm:$0xff]
        %v4328 = vld [vmem:[%s31 + $0x8] sm:$0xff]
        %v4329 = vld [vmem:[%s31 + $0x10] sm:$0xff]
        %v4330 = vld [vmem:[%s31 + $0x18] sm:$0xff]
        %v4331 = vld [vmem:[%s33] sm:$0xff]
        %v4332 = vld [vmem:[%s33 + $0x8] sm:$0xff]
        %v4333 = vld [vmem:[%s33 + $0x10] sm:$0xff]
        %v4334 = vld [vmem:[%s33 + $0x18] sm:$0xff]
        %v4335 = vld [vmem:[%s35] sm:$0xff]
        %v4336 = vld [vmem:[%s35 + $0x8] sm:$0xff]
        %v4337 = vlaneseq
        %v4338 = vshrl.u32 %v4337, 7
        %v4339 = vsub.s32 6, %v4338
        %v4340 = vrot.slane %v2489, %v4339
        %v4341 = vlaneseq
        %v4342 = vshrl.u32 %v4341, 7
        %v4343 = vsub.s32 6, %v4342
        %v4344 = vrot.slane %v2490, %v4343
        %v4345 = vmul.f32 %v1629, %v4340
        %v4346 = vmul.f32 %v1630, %v4344
        %v4347 = vlaneseq
        %v4348 = vshrl.u32 %v4347, 7
        %v4349 = vsub.s32 7, %v4348
        %v4350 = vrot.slane %v2489, %v4349
        %v4351 = vlaneseq
        %v4352 = vshrl.u32 %v4351, 7
        %v4353 = vsub.s32 7, %v4352
        %v4354 = vrot.slane %v2490, %v4353
        %v4355 = vmul.f32 %v1629, %v4350
        %v4356 = vmul.f32 %v1630, %v4354
        %v4358 = vsel %vm1864, %v4331, 0
        %v4361 = vsel %vm1864, %v4332, 0
        %v4364 = vsel %vm1864, %v4333, 0
        %v4367 = vsel %vm1864, %v4334, 0
        %4369 = vmatprep.subr.mxu0 %v1624
        %4370 = vmatpush1.msra.mxu0 %v1623
        %4371 = vmatprep.subr.mxu0 %v1626
        %4372 = vmatpush1.msra.mxu0 %v1625
        %4373 = vmatprep.subr.mxu0 0.0
        %4374 = vmatpush1.msra.mxu0 0.0
        %4375 = vmatprep.subr.mxu0 0.0
        %4376 = vmatpush1.msra.mxu0 0.0
        %4377 = vmatprep.subr.mxu0 0.0
        %4378 = vmatpush1.msra.mxu0 0.0
        %4379 = vmatprep.subr.mxu0 0.0
        %4380 = vmatpush1.msra.mxu0 0.0
        %4381 = vmatprep.subr.mxu0 0.0
        %4382 = vmatpush1.msra.mxu0 0.0
        %4383 = vmatprep.subr.mxu0 0.0
        %4384 = vmatpush1.msra.mxu0 0.0
        %4385 = vmatprep.subr.mxu0 0.0
        %4386 = vmatpush1.msra.mxu0 0.0
        %4387 = vmatprep.subr.mxu0 0.0
        %4388 = vmatpush1.msra.mxu0 0.0
        %4389 = vmatprep.subr.mxu0 0.0
        %4390 = vmatpush1.msra.mxu0 0.0
        %4391 = vmatprep.subr.mxu0 0.0
        %4392 = vmatpush1.msra.mxu0 0.0
        %4393 = vmatprep.subr.mxu0 0.0
        %4394 = vmatpush1.msra.mxu0 0.0
        %4395 = vmatprep.subr.mxu0 0.0
        %4396 = vmatpush1.msra.mxu0 0.0
        %4397 = vmatprep.subr.mxu0 0.0
        %4398 = vmatpush1.msra.mxu0 0.0
        %4399 = vmatprep.subr.mxu0 0.0
        %4400 = vmatpush1.msra.mxu0 0.0
        %4401 = vmatprep.subr.mxu0 0.0
        %4402 = vmatpush1.msra.mxu0 0.0
        %4403 = vmatprep.subr.mxu0 0.0
        %4404 = vmatpush1.msra.mxu0 0.0
        %4405 = vmatprep.subr.mxu0 0.0
        %4406 = vmatpush1.msra.mxu0 0.0
        %4407 = vmatprep.subr.mxu0 0.0
        %4408 = vmatpush1.msra.mxu0 0.0
        %4409 = vmatprep.subr.mxu0 0.0
        %4410 = vmatpush1.msra.mxu0 0.0
        %4411 = vmatprep.subr.mxu0 0.0
        %4412 = vmatpush1.msra.mxu0 0.0
        %4413 = vmatprep.subr.mxu0 0.0
        %4414 = vmatpush1.msra.mxu0 0.0
        %4415 = vmatprep.subr.mxu0 0.0
        %4416 = vmatpush1.msra.mxu0 0.0
        %4417 = vmatprep.subr.mxu0 0.0
        %4418 = vmatpush1.msra.mxu0 0.0
        %4419 = vmatprep.subr.mxu0 0.0
        %4420 = vmatpush1.msra.mxu0 0.0
        %4421 = vmatprep.subr.mxu0 0.0
        %4422 = vmatpush1.msra.mxu0 0.0
        %4423 = vmatprep.subr.mxu0 0.0
        %4424 = vmatpush1.msra.mxu0 0.0
        %4425 = vmatprep.subr.mxu0 0.0
        %4426 = vmatpush1.msra.mxu0 0.0
        %4427 = vmatprep.subr.mxu0 0.0
        %4428 = vmatpush1.msra.mxu0 0.0
        %4429 = vmatprep.subr.mxu0 0.0
        %4430 = vmatpush1.msra.mxu0 0.0
        %4431 = vmatprep.subr.mxu0 0.0
        %4432 = vmatpush1.msra.mxu0 0.0
        %4433 = vmatprep.mubr.f32.mxu0 0.0
        %4434 = vmatmul.mubr.f32.gmra.mrb[0].mxu0 %v4358
        %v4435 = vpop.f32.mrb[0].mxu0
        %v4436 = vadd.f32 0.0, %v4435
        %v4437 = vpop.f32.mrb[0].mxu0
        %v4438 = vadd.f32 0.0, %v4437
        %4439 = vmatprep.mubr.f32.mxu0 0.0
        %4440 = vmatmul.mubr.f32.gmra.mrb[0].mxu0 %v4361
        %v4441 = vpop.f32.mrb[0].mxu0
        %v4442 = vadd.f32 0.0, %v4441
        %v4443 = vpop.f32.mrb[0].mxu0
        %v4444 = vadd.f32 0.0, %v4443
        %4445 = vmatprep.mubr.f32.mxu0 0.0
        %4446 = vmatmul.mubr.f32.gmra.mrb[0].mxu0 %v4364
        %v4447 = vpop.f32.mrb[0].mxu0
        %v4448 = vadd.f32 0.0, %v4447
        %v4449 = vpop.f32.mrb[0].mxu0
        %v4450 = vadd.f32 0.0, %v4449
        %4451 = vmatprep.mubr.f32.mxu0 0.0
        %4452 = vmatmul.mubr.f32.gmra.mrb[0].mxu0 %v4367
        %v4453 = vpop.f32.mrb[0].mxu0
        %v4454 = vadd.f32 0.0, %v4453
        %v4455 = vpop.f32.mrb[0].mxu0
        %v4456 = vadd.f32 0.0, %v4455
        %4457 = vdwg.mxu0
        %v4459 = vsel %vm1864, %v4327, 0
        %v4462 = vsel %vm1864, %v4328, 0
        %v4465 = vsel %vm1864, %v4329, 0
        %v4468 = vsel %vm1864, %v4330, 0
        %4470 = vmatprep.subr.mxu0 %v4346
        %4471 = vmatpush1.msra.mxu0 %v4345
        %4472 = vmatprep.subr.mxu0 %v4356
        %4473 = vmatpush1.msra.mxu0 %v4355
        %4474 = vmatprep.subr.mxu0 0.0
        %4475 = vmatpush1.msra.mxu0 0.0
        %4476 = vmatprep.subr.mxu0 0.0
        %4477 = vmatpush1.msra.mxu0 0.0
        %4478 = vmatprep.subr.mxu0 0.0
        %4479 = vmatpush1.msra.mxu0 0.0
        %4480 = vmatprep.subr.mxu0 0.0
        %4481 = vmatpush1.msra.mxu0 0.0
        %4482 = vmatprep.subr.mxu0 0.0
        %4483 = vmatpush1.msra.mxu0 0.0
        %4484 = vmatprep.subr.mxu0 0.0
        %4485 = vmatpush1.msra.mxu0 0.0
        %4486 = vmatprep.subr.mxu0 0.0
        %4487 = vmatpush1.msra.mxu0 0.0
        %4488 = vmatprep.subr.mxu0 0.0
        %4489 = vmatpush1.msra.mxu0 0.0
        %4490 = vmatprep.subr.mxu0 0.0
        %4491 = vmatpush1.msra.mxu0 0.0
        %4492 = vmatprep.subr.mxu0 0.0
        %4493 = vmatpush1.msra.mxu0 0.0
        %4494 = vmatprep.subr.mxu0 0.0
        %4495 = vmatpush1.msra.mxu0 0.0
        %4496 = vmatprep.subr.mxu0 0.0
        %4497 = vmatpush1.msra.mxu0 0.0
        %4498 = vmatprep.subr.mxu0 0.0
        %4499 = vmatpush1.msra.mxu0 0.0
        %4500 = vmatprep.subr.mxu0 0.0
        %4501 = vmatpush1.msra.mxu0 0.0
        %4502 = vmatprep.subr.mxu0 0.0
        %4503 = vmatpush1.msra.mxu0 0.0
        %4504 = vmatprep.subr.mxu0 0.0
        %4505 = vmatpush1.msra.mxu0 0.0
        %4506 = vmatprep.subr.mxu0 0.0
        %4507 = vmatpush1.msra.mxu0 0.0
        %4508 = vmatprep.subr.mxu0 0.0
        %4509 = vmatpush1.msra.mxu0 0.0
        %4510 = vmatprep.subr.mxu0 0.0
        %4511 = vmatpush1.msra.mxu0 0.0
        %4512 = vmatprep.subr.mxu0 0.0
        %4513 = vmatpush1.msra.mxu0 0.0
        %4514 = vmatprep.subr.mxu0 0.0
        %4515 = vmatpush1.msra.mxu0 0.0
        %4516 = vmatprep.subr.mxu0 0.0
        %4517 = vmatpush1.msra.mxu0 0.0
        %4518 = vmatprep.subr.mxu0 0.0
        %4519 = vmatpush1.msra.mxu0 0.0
        %4520 = vmatprep.subr.mxu0 0.0
        %4521 = vmatpush1.msra.mxu0 0.0
        %4522 = vmatprep.subr.mxu0 0.0
        %4523 = vmatpush1.msra.mxu0 0.0
        %4524 = vmatprep.subr.mxu0 0.0
        %4525 = vmatpush1.msra.mxu0 0.0
        %4526 = vmatprep.subr.mxu0 0.0
        %4527 = vmatpush1.msra.mxu0 0.0
        %4528 = vmatprep.subr.mxu0 0.0
        %4529 = vmatpush1.msra.mxu0 0.0
        %4530 = vmatprep.subr.mxu0 0.0
        %4531 = vmatpush1.msra.mxu0 0.0
        %4532 = vmatprep.subr.mxu0 0.0
        %4533 = vmatpush1.msra.mxu0 0.0
        %4534 = vmatprep.mubr.f32.mxu0 0.0
        %4535 = vmatmul.mubr.f32.gmra.mrb[0].mxu0 %v4459
        %v4536 = vpop.f32.mrb[0].mxu0
        %v4537 = vadd.f32 %v4436, %v4536
        %v4538 = vpop.f32.mrb[0].mxu0
        %v4539 = vadd.f32 %v4438, %v4538
        %4540 = vmatprep.mubr.f32.mxu0 0.0
        %4541 = vmatmul.mubr.f32.gmra.mrb[0].mxu0 %v4462
        %v4542 = vpop.f32.mrb[0].mxu0
        %v4543 = vadd.f32 %v4442, %v4542
        %v4544 = vpop.f32.mrb[0].mxu0
        %v4545 = vadd.f32 %v4444, %v4544
        %4546 = vmatprep.mubr.f32.mxu0 0.0
        %4547 = vmatmul.mubr.f32.gmra.mrb[0].mxu0 %v4465
        %v4548 = vpop.f32.mrb[0].mxu0
        %v4549 = vadd.f32 %v4448, %v4548
        %v4550 = vpop.f32.mrb[0].mxu0
        %v4551 = vadd.f32 %v4450, %v4550
        %4552 = vmatprep.mubr.f32.mxu0 0.0
        %4553 = vmatmul.mubr.f32.gmra.mrb[0].mxu0 %v4468
        %v4554 = vpop.f32.mrb[0].mxu0
        %v4555 = vadd.f32 %v4454, %v4554
        %v4556 = vpop.f32.mrb[0].mxu0
        %v4557 = vadd.f32 %v4456, %v4556
        %4558 = vdwg.mxu0
        %v4559 = vmax.f32 %v4537, 0.0
        %v4560 = vmax.f32 %v4539, 0.0
        %v4561 = vmax.f32 %v4543, 0.0
        %v4562 = vmax.f32 %v4545, 0.0
        %v4563 = vmax.f32 %v4549, 0.0
        %v4564 = vmax.f32 %v4551, 0.0
        %v4565 = vmax.f32 %v4555, 0.0
        %v4566 = vmax.f32 %v4557, 0.0
        %v4568 = vsel %vm2076, %v4335, 0
        %v4571 = vsel %vm2076, %v4336, 0
        %4573 = vmatprep.subr.mxu0 %v4560
        %4574 = vmatpush1.msra.mxu0 %v4559
        %4575 = vmatprep.subr.mxu0 %v4562
        %4576 = vmatpush1.msra.mxu0 %v4561
        %4577 = vmatprep.subr.mxu0 %v4564
        %4578 = vmatpush1.msra.mxu0 %v4563
        %4579 = vmatprep.subr.mxu0 %v4566
        %4580 = vmatpush1.msra.mxu0 %v4565
        %4581 = vmatprep.subr.mxu0 0.0
        %4582 = vmatpush1.msra.mxu0 0.0
        %4583 = vmatprep.subr.mxu0 0.0
        %4584 = vmatpush1.msra.mxu0 0.0
        %4585 = vmatprep.subr.mxu0 0.0
        %4586 = vmatpush1.msra.mxu0 0.0
        %4587 = vmatprep.subr.mxu0 0.0
        %4588 = vmatpush1.msra.mxu0 0.0
        %4589 = vmatprep.subr.mxu0 0.0
        %4590 = vmatpush1.msra.mxu0 0.0
        %4591 = vmatprep.subr.mxu0 0.0
        %4592 = vmatpush1.msra.mxu0 0.0
        %4593 = vmatprep.subr.mxu0 0.0
        %4594 = vmatpush1.msra.mxu0 0.0
        %4595 = vmatprep.subr.mxu0 0.0
        %4596 = vmatpush1.msra.mxu0 0.0
        %4597 = vmatprep.subr.mxu0 0.0
        %4598 = vmatpush1.msra.mxu0 0.0
        %4599 = vmatprep.subr.mxu0 0.0
        %4600 = vmatpush1.msra.mxu0 0.0
        %4601 = vmatprep.subr.mxu0 0.0
        %4602 = vmatpush1.msra.mxu0 0.0
        %4603 = vmatprep.subr.mxu0 0.0
        %4604 = vmatpush1.msra.mxu0 0.0
        %4605 = vmatprep.subr.mxu0 0.0
        %4606 = vmatpush1.msra.mxu0 0.0
        %4607 = vmatprep.subr.mxu0 0.0
        %4608 = vmatpush1.msra.mxu0 0.0
        %4609 = vmatprep.subr.mxu0 0.0
        %4610 = vmatpush1.msra.mxu0 0.0
        %4611 = vmatprep.subr.mxu0 0.0
        %4612 = vmatpush1.msra.mxu0 0.0
        %4613 = vmatprep.subr.mxu0 0.0
        %4614 = vmatpush1.msra.mxu0 0.0
        %4615 = vmatprep.subr.mxu0 0.0
        %4616 = vmatpush1.msra.mxu0 0.0
        %4617 = vmatprep.subr.mxu0 0.0
        %4618 = vmatpush1.msra.mxu0 0.0
        %4619 = vmatprep.subr.mxu0 0.0
        %4620 = vmatpush1.msra.mxu0 0.0
        %4621 = vmatprep.subr.mxu0 0.0
        %4622 = vmatpush1.msra.mxu0 0.0
        %4623 = vmatprep.subr.mxu0 0.0
        %4624 = vmatpush1.msra.mxu0 0.0
        %4625 = vmatprep.subr.mxu0 0.0
        %4626 = vmatpush1.msra.mxu0 0.0
        %4627 = vmatprep.subr.mxu0 0.0
        %4628 = vmatpush1.msra.mxu0 0.0
        %4629 = vmatprep.subr.mxu0 0.0
        %4630 = vmatpush1.msra.mxu0 0.0
        %4631 = vmatprep.subr.mxu0 0.0
        %4632 = vmatpush1.msra.mxu0 0.0
        %4633 = vmatprep.subr.mxu0 0.0
        %4634 = vmatpush1.msra.mxu0 0.0
        %4635 = vmatprep.subr.mxu0 0.0
        %4636 = vmatpush1.msra.mxu0 0.0
        %4637 = vmatprep.mubr.f32.mxu0 0.0
        %4638 = vmatmul.mubr.f32.gmra.mrb[0].mxu0 %v4568
        %v4639 = vpop.f32.mrb[0].mxu0
        %v4640 = vadd.f32 0.0, %v4639
        %v4641 = vpop.f32.mrb[0].mxu0
        %v4642 = vadd.f32 0.0, %v4641
        %4643 = vmatprep.mubr.f32.mxu0 0.0
        %4644 = vmatmul.mubr.f32.gmra.mrb[0].mxu0 %v4571
        %v4645 = vpop.f32.mrb[0].mxu0
        %v4646 = vadd.f32 0.0, %v4645
        %v4647 = vpop.f32.mrb[0].mxu0
        %v4648 = vadd.f32 0.0, %v4647
        %4649 = vdwg.mxu0
        %v4650 = vmax.f32 %v4640, 0.0
        %v4651 = vmax.f32 %v4642, 0.0
        %v4652 = vmax.f32 %v4646, 0.0
        %v4653 = vmax.f32 %v4648, 0.0
        %v4654 = vld [vmem:[%s55] sm:$0xff]
        %v4655 = vld [vmem:[%s55 + $0x8] sm:$0xff]
        %v4656 = vld [vmem:[%s55 + $0x10] sm:$0xff]
        %v4657 = vld [vmem:[%s55 + $0x18] sm:$0xff]
        %v4658 = vld [vmem:[%s55 + $0x20] sm:$0xff]
        %v4659 = vld [vmem:[%s55 + $0x28] sm:$0xff]
        %v4660 = vld [vmem:[%s55 + $0x30] sm:$0xff]
        %v4661 = vld [vmem:[%s55 + $0x38] sm:$0xff]
        %vm4662 = vcmask 719872
        %v4664 = vsel %vm4662, %v4654, 0
        %v4667 = vsel %vm4662, %v4655, 0
        %v4670 = vsel %vm4662, %v4656, 0
        %v4673 = vsel %vm4662, %v4657, 0
        %v4676 = vsel %vm4662, %v4658, 0
        %v4679 = vsel %vm4662, %v4659, 0
        %v4682 = vsel %vm4662, %v4660, 0
        %v4685 = vsel %vm4662, %v4661, 0
        %4687 = vmatprep.subr.mxu0 %v1616
        %4688 = vmatpush1.msra.mxu0 %v1615
        %4689 = vmatprep.subr.mxu0 %v1618
        %4690 = vmatpush1.msra.mxu0 %v1617
        %4691 = vmatprep.subr.mxu0 %v1620
        %4692 = vmatpush1.msra.mxu0 %v1619
        %4693 = vmatprep.subr.mxu0 %v1622
        %4694 = vmatpush1.msra.mxu0 %v1621
        %4695 = vmatprep.subr.mxu0 %v1624
        %4696 = vmatpush1.msra.mxu0 %v1623
        %4697 = vmatprep.subr.mxu0 %v1626
        %4698 = vmatpush1.msra.mxu0 %v1625
        %4699 = vmatprep.subr.mxu0 %v1422
        %4700 = vmatpush1.msra.mxu0 %v1421
        %4701 = vmatprep.subr.mxu0 %v1424
        %4702 = vmatpush1.msra.mxu0 %v1423
        %4703 = vmatprep.subr.mxu0 %v1426
        %4704 = vmatpush1.msra.mxu0 %v1425
        %4705 = vmatprep.subr.mxu0 %v1428
        %4706 = vmatpush1.msra.mxu0 %v1427
        %4707 = vmatprep.subr.mxu0 %v1446
        %4708 = vmatpush1.msra.mxu0 %v1445
        %4709 = vmatprep.subr.mxu0 0.0
        %4710 = vmatpush1.msra.mxu0 0.0
        %4711 = vmatprep.subr.mxu0 0.0
        %4712 = vmatpush1.msra.mxu0 0.0
        %4713 = vmatprep.subr.mxu0 0.0
        %4714 = vmatpush1.msra.mxu0 0.0
        %4715 = vmatprep.subr.mxu0 0.0
        %4716 = vmatpush1.msra.mxu0 0.0
        %4717 = vmatprep.subr.mxu0 0.0
        %4718 = vmatpush1.msra.mxu0 0.0
        %4719 = vmatprep.subr.mxu0 0.0
        %4720 = vmatpush1.msra.mxu0 0.0
        %4721 = vmatprep.subr.mxu0 0.0
        %4722 = vmatpush1.msra.mxu0 0.0
        %4723 = vmatprep.subr.mxu0 0.0
        %4724 = vmatpush1.msra.mxu0 0.0
        %4725 = vmatprep.subr.mxu0 0.0
        %4726 = vmatpush1.msra.mxu0 0.0
        %4727 = vmatprep.subr.mxu0 0.0
        %4728 = vmatpush1.msra.mxu0 0.0
        %4729 = vmatprep.subr.mxu0 0.0
        %4730 = vmatpush1.msra.mxu0 0.0
        %4731 = vmatprep.subr.mxu0 0.0
        %4732 = vmatpush1.msra.mxu0 0.0
        %4733 = vmatprep.subr.mxu0 0.0
        %4734 = vmatpush1.msra.mxu0 0.0
        %4735 = vmatprep.subr.mxu0 0.0
        %4736 = vmatpush1.msra.mxu0 0.0
        %4737 = vmatprep.subr.mxu0 0.0
        %4738 = vmatpush1.msra.mxu0 0.0
        %4739 = vmatprep.subr.mxu0 0.0
        %4740 = vmatpush1.msra.mxu0 0.0
        %4741 = vmatprep.subr.mxu0 0.0
        %4742 = vmatpush1.msra.mxu0 0.0
        %4743 = vmatprep.subr.mxu0 0.0
        %4744 = vmatpush1.msra.mxu0 0.0
        %4745 = vmatprep.subr.mxu0 0.0
        %4746 = vmatpush1.msra.mxu0 0.0
        %4747 = vmatprep.subr.mxu0 0.0
        %4748 = vmatpush1.msra.mxu0 0.0
        %4749 = vmatprep.subr.mxu0 0.0
        %4750 = vmatpush1.msra.mxu0 0.0
        %4751 = vmatprep.mubr.f32.mxu0 0.0
        %4752 = vmatmul.mubr.f32.gmra.mrb[0].mxu0 %v4664
        %v4753 = vpop.f32.mrb[0].mxu0
        %v4754 = vadd.f32 0.0, %v4753
        %v4755 = vpop.f32.mrb[0].mxu0
        %v4756 = vadd.f32 0.0, %v4755
        %4757 = vmatprep.mubr.f32.mxu0 0.0
        %4758 = vmatmul.mubr.f32.gmra.mrb[0].mxu0 %v4667
        %v4759 = vpop.f32.mrb[0].mxu0
        %v4760 = vadd.f32 0.0, %v4759
        %v4761 = vpop.f32.mrb[0].mxu0
        %v4762 = vadd.f32 0.0, %v4761
        %4763 = vmatprep.mubr.f32.mxu0 0.0
        %4764 = vmatmul.mubr.f32.gmra.mrb[0].mxu0 %v4670
        %v4765 = vpop.f32.mrb[0].mxu0
        %v4766 = vadd.f32 0.0, %v4765
        %v4767 = vpop.f32.mrb[0].mxu0
        %v4768 = vadd.f32 0.0, %v4767
        %4769 = vmatprep.mubr.f32.mxu0 0.0
        %4770 = vmatmul.mubr.f32.gmra.mrb[0].mxu0 %v4673
        %v4771 = vpop.f32.mrb[0].mxu0
        %v4772 = vadd.f32 0.0, %v4771
        %v4773 = vpop.f32.mrb[0].mxu0
        %v4774 = vadd.f32 0.0, %v4773
        %4775 = vmatprep.mubr.f32.mxu0 0.0
        %4776 = vmatmul.mubr.f32.gmra.mrb[0].mxu0 %v4676
        %v4777 = vpop.f32.mrb[0].mxu0
        %v4778 = vadd.f32 0.0, %v4777
        %v4779 = vpop.f32.mrb[0].mxu0
        %v4780 = vadd.f32 0.0, %v4779
        %4781 = vmatprep.mubr.f32.mxu0 0.0
        %4782 = vmatmul.mubr.f32.gmra.mrb[0].mxu0 %v4679
        %v4783 = vpop.f32.mrb[0].mxu0
        %v4784 = vadd.f32 0.0, %v4783
        %v4785 = vpop.f32.mrb[0].mxu0
        %v4786 = vadd.f32 0.0, %v4785
        %4787 = vmatprep.mubr.f32.mxu0 0.0
        %4788 = vmatmul.mubr.f32.gmra.mrb[0].mxu0 %v4682
        %v4789 = vpop.f32.mrb[0].mxu0
        %v4790 = vadd.f32 0.0, %v4789
        %v4791 = vpop.f32.mrb[0].mxu0
        %v4792 = vadd.f32 0.0, %v4791
        %4793 = vmatprep.mubr.f32.mxu0 0.0
        %4794 = vmatmul.mubr.f32.gmra.mrb[0].mxu0 %v4685
        %v4795 = vpop.f32.mrb[0].mxu0
        %v4796 = vadd.f32 0.0, %v4795
        %v4797 = vpop.f32.mrb[0].mxu0
        %v4798 = vadd.f32 0.0, %v4797
        %4799 = vdwg.mxu0
        %v4800 = vmax.f32 %v4754, 0.0
        %v4801 = vmax.f32 %v4756, 0.0
        %v4802 = vmax.f32 %v4760, 0.0
        %v4803 = vmax.f32 %v4762, 0.0
        %v4804 = vmax.f32 %v4766, 0.0
        %v4805 = vmax.f32 %v4768, 0.0
        %v4806 = vmax.f32 %v4772, 0.0
        %v4807 = vmax.f32 %v4774, 0.0
        %v4808 = vmax.f32 %v4778, 0.0
        %v4809 = vmax.f32 %v4780, 0.0
        %v4810 = vmax.f32 %v4784, 0.0
        %v4811 = vmax.f32 %v4786, 0.0
        %v4812 = vmax.f32 %v4790, 0.0
        %v4813 = vmax.f32 %v4792, 0.0
        %v4814 = vmax.f32 %v4796, 0.0
        %v4815 = vmax.f32 %v4798, 0.0
        %4816 = vxpose.xlu0.b32.start [1/16] %v4800, 128
        %4817 = vxpose.xlu0.b32.cont [2/16] %v4802, 128
        %4818 = vxpose.xlu0.b32.cont [3/16] %v4804, 128
        %4819 = vxpose.xlu0.b32.cont [4/16] %v4806, 128
        %4820 = vxpose.xlu0.b32.cont [5/16] 0.0, 128
        %4821 = vxpose.xlu0.b32.cont [6/16] 0.0, 128
        %4822 = vxpose.xlu0.b32.cont [7/16] 0.0, 128
        %4823 = vxpose.xlu0.b32.cont [8/16] 0.0, 128
        %4824 = vxpose.xlu0.b32.cont [9/16] 0.0, 128
        %4825 = vxpose.xlu0.b32.cont [10/16] 0.0, 128
        %4826 = vxpose.xlu0.b32.cont [11/16] 0.0, 128
        %4827 = vxpose.xlu0.b32.cont [12/16] 0.0, 128
        %4828 = vxpose.xlu0.b32.cont [13/16] 0.0, 128
        %4829 = vxpose.xlu0.b32.cont [14/16] 0.0, 128
        %4830 = vxpose.xlu0.b32.cont [15/16] 0.0, 128
        %4831 = vxpose.xlu0.b32.end [16/16] 0.0, 128
        %v4832 = vpop.trf.xlu0
        %v4833 = vpop.trf.xlu0
        %v4834 = vpop.trf.xlu0
        %v4835 = vpop.trf.xlu0
        %v4836 = vpop.trf.xlu0
        %v4837 = vpop.trf.xlu0
        %v4838 = vpop.trf.xlu0
        %v4839 = vpop.trf.xlu0
        %v4840 = vpop.trf.xlu0
        %v4841 = vpop.trf.xlu0
        %v4842 = vpop.trf.xlu0
        %v4843 = vpop.trf.xlu0
        %v4844 = vpop.trf.xlu0
        %v4845 = vpop.trf.xlu0
        %v4846 = vpop.trf.xlu0
        %v4847 = vpop.trf.xlu0
        %4848 = vxpose.xlu0.b32.start [1/16] %v4801, 128
        %4849 = vxpose.xlu0.b32.cont [2/16] %v4803, 128
        %4850 = vxpose.xlu0.b32.cont [3/16] %v4805, 128
        %4851 = vxpose.xlu0.b32.cont [4/16] %v4807, 128
        %4852 = vxpose.xlu0.b32.cont [5/16] 0.0, 128
        %4853 = vxpose.xlu0.b32.cont [6/16] 0.0, 128
        %4854 = vxpose.xlu0.b32.cont [7/16] 0.0, 128
        %4855 = vxpose.xlu0.b32.cont [8/16] 0.0, 128
        %4856 = vxpose.xlu0.b32.cont [9/16] 0.0, 128
        %4857 = vxpose.xlu0.b32.cont [10/16] 0.0, 128
        %4858 = vxpose.xlu0.b32.cont [11/16] 0.0, 128
        %4859 = vxpose.xlu0.b32.cont [12/16] 0.0, 128
        %4860 = vxpose.xlu0.b32.cont [13/16] 0.0, 128
        %4861 = vxpose.xlu0.b32.cont [14/16] 0.0, 128
        %4862 = vxpose.xlu0.b32.cont [15/16] 0.0, 128
        %4863 = vxpose.xlu0.b32.end [16/16] 0.0, 128
        %v4864 = vpop.trf.xlu0
        %v4865 = vpop.trf.xlu0
        %v4866 = vpop.trf.xlu0
        %v4867 = vpop.trf.xlu0
        %v4868 = vpop.trf.xlu0
        %v4869 = vpop.trf.xlu0
        %v4870 = vpop.trf.xlu0
        %v4871 = vpop.trf.xlu0
        %v4872 = vpop.trf.xlu0
        %v4873 = vpop.trf.xlu0
        %v4874 = vpop.trf.xlu0
        %v4875 = vpop.trf.xlu0
        %v4876 = vpop.trf.xlu0
        %v4877 = vpop.trf.xlu0
        %v4878 = vpop.trf.xlu0
        %v4879 = vpop.trf.xlu0
        %v4881 = vsel %vm2076, %v4832, 0
        %v4884 = vsel %vm2076, %v4833, 0
        %v4887 = vsel %vm2076, %v4834, 0
        %v4890 = vsel %vm2076, %v4835, 0
        %v4893 = vsel %vm2076, %v4836, 0
        %v4896 = vsel %vm2076, %v4837, 0
        %v4899 = vsel %vm2076, %v4838, 0
        %v4902 = vsel %vm2076, %v4839, 0
        %v4905 = vsel %vm2076, %v4840, 0
        %v4908 = vsel %vm2076, %v4841, 0
        %v4911 = vsel %vm2076, %v4842, 0
        %v4914 = vsel %vm2076, %v4843, 0
        %v4917 = vsel %vm2076, %v4844, 0
        %v4920 = vsel %vm2076, %v4845, 0
        %v4923 = vsel %vm2076, %v4846, 0
        %v4926 = vsel %vm2076, %v4847, 0
        %v4929 = vsel %vm2076, %v4864, 0
        %v4932 = vsel %vm2076, %v4865, 0
        %v4935 = vsel %vm2076, %v4866, 0
        %v4938 = vsel %vm2076, %v4867, 0
        %v4941 = vsel %vm2076, %v4868, 0
        %v4944 = vsel %vm2076, %v4869, 0
        %v4947 = vsel %vm2076, %v4870, 0
        %v4950 = vsel %vm2076, %v4871, 0
        %v4953 = vsel %vm2076, %v4872, 0
        %v4956 = vsel %vm2076, %v4873, 0
        %v4959 = vsel %vm2076, %v4874, 0
        %v4962 = vsel %vm2076, %v4875, 0
        %v4965 = vsel %vm2076, %v4876, 0
        %v4968 = vsel %vm2076, %v4877, 0
        %v4971 = vsel %vm2076, %v4878, 0
        %v4974 = vsel %vm2076, %v4879, 0
        %4976 = vmatprep.subr.mxu0 %v4809
        %4977 = vmatpush1.msra.mxu0 %v4808
        %4978 = vmatprep.subr.mxu0 %v4811
        %4979 = vmatpush1.msra.mxu0 %v4810
        %4980 = vmatprep.subr.mxu0 %v4813
        %4981 = vmatpush1.msra.mxu0 %v4812
        %4982 = vmatprep.subr.mxu0 %v4815
        %4983 = vmatpush1.msra.mxu0 %v4814
        %4984 = vmatprep.subr.mxu0 0.0
        %4985 = vmatpush1.msra.mxu0 0.0
        %4986 = vmatprep.subr.mxu0 0.0
        %4987 = vmatpush1.msra.mxu0 0.0
        %4988 = vmatprep.subr.mxu0 0.0
        %4989 = vmatpush1.msra.mxu0 0.0
        %4990 = vmatprep.subr.mxu0 0.0
        %4991 = vmatpush1.msra.mxu0 0.0
        %4992 = vmatprep.subr.mxu0 0.0
        %4993 = vmatpush1.msra.mxu0 0.0
        %4994 = vmatprep.subr.mxu0 0.0
        %4995 = vmatpush1.msra.mxu0 0.0
        %4996 = vmatprep.subr.mxu0 0.0
        %4997 = vmatpush1.msra.mxu0 0.0
        %4998 = vmatprep.subr.mxu0 0.0
        %4999 = vmatpush1.msra.mxu0 0.0
        %5000 = vmatprep.subr.mxu0 0.0
        %5001 = vmatpush1.msra.mxu0 0.0
        %5002 = vmatprep.subr.mxu0 0.0
        %5003 = vmatpush1.msra.mxu0 0.0
        %5004 = vmatprep.subr.mxu0 0.0
        %5005 = vmatpush1.msra.mxu0 0.0
        %5006 = vmatprep.subr.mxu0 0.0
        %5007 = vmatpush1.msra.mxu0 0.0
        %5008 = vmatprep.subr.mxu0 0.0
        %5009 = vmatpush1.msra.mxu0 0.0
        %5010 = vmatprep.subr.mxu0 0.0
        %5011 = vmatpush1.msra.mxu0 0.0
        %5012 = vmatprep.subr.mxu0 0.0
        %5013 = vmatpush1.msra.mxu0 0.0
        %5014 = vmatprep.subr.mxu0 0.0
        %5015 = vmatpush1.msra.mxu0 0.0
        %5016 = vmatprep.subr.mxu0 0.0
        %5017 = vmatpush1.msra.mxu0 0.0
        %5018 = vmatprep.subr.mxu0 0.0
        %5019 = vmatpush1.msra.mxu0 0.0
        %5020 = vmatprep.subr.mxu0 0.0
        %5021 = vmatpush1.msra.mxu0 0.0
        %5022 = vmatprep.subr.mxu0 0.0
        %5023 = vmatpush1.msra.mxu0 0.0
        %5024 = vmatprep.subr.mxu0 0.0
        %5025 = vmatpush1.msra.mxu0 0.0
        %5026 = vmatprep.subr.mxu0 0.0
        %5027 = vmatpush1.msra.mxu0 0.0
        %5028 = vmatprep.subr.mxu0 0.0
        %5029 = vmatpush1.msra.mxu0 0.0
        %5030 = vmatprep.subr.mxu0 0.0
        %5031 = vmatpush1.msra.mxu0 0.0
        %5032 = vmatprep.subr.mxu0 0.0
        %5033 = vmatpush1.msra.mxu0 0.0
        %5034 = vmatprep.subr.mxu0 0.0
        %5035 = vmatpush1.msra.mxu0 0.0
        %5036 = vmatprep.subr.mxu0 0.0
        %5037 = vmatpush1.msra.mxu0 0.0
        %5038 = vmatprep.subr.mxu0 0.0
        %5039 = vmatpush1.msra.mxu0 0.0
        %5040 = vmatprep.mubr.f32.mxu0 0.0
        %5041 = vmatmul.mubr.f32.gmra.mrb[0].mxu0 %v4881
        %v5042 = vpop.f32.mrb[0].mxu0
        %v5043 = vadd.f32 0.0, %v5042
        %v5044 = vpop.f32.mrb[0].mxu0
        %v5045 = vadd.f32 0.0, %v5044
        %5046 = vmatprep.mubr.f32.mxu0 0.0
        %5047 = vmatmul.mubr.f32.gmra.mrb[0].mxu0 %v4884
        %v5048 = vpop.f32.mrb[0].mxu0
        %v5049 = vadd.f32 0.0, %v5048
        %v5050 = vpop.f32.mrb[0].mxu0
        %v5051 = vadd.f32 0.0, %v5050
        %5052 = vmatprep.mubr.f32.mxu0 0.0
        %5053 = vmatmul.mubr.f32.gmra.mrb[0].mxu0 %v4887
        %v5054 = vpop.f32.mrb[0].mxu0
        %v5055 = vadd.f32 0.0, %v5054
        %v5056 = vpop.f32.mrb[0].mxu0
        %v5057 = vadd.f32 0.0, %v5056
        %5058 = vmatprep.mubr.f32.mxu0 0.0
        %5059 = vmatmul.mubr.f32.gmra.mrb[0].mxu0 %v4890
        %v5060 = vpop.f32.mrb[0].mxu0
        %v5061 = vadd.f32 0.0, %v5060
        %v5062 = vpop.f32.mrb[0].mxu0
        %v5063 = vadd.f32 0.0, %v5062
        %5064 = vmatprep.mubr.f32.mxu0 0.0
        %5065 = vmatmul.mubr.f32.gmra.mrb[0].mxu0 %v4893
        %v5066 = vpop.f32.mrb[0].mxu0
        %v5067 = vadd.f32 0.0, %v5066
        %v5068 = vpop.f32.mrb[0].mxu0
        %v5069 = vadd.f32 0.0, %v5068
        %5070 = vmatprep.mubr.f32.mxu0 0.0
        %5071 = vmatmul.mubr.f32.gmra.mrb[0].mxu0 %v4896
        %v5072 = vpop.f32.mrb[0].mxu0
        %v5073 = vadd.f32 0.0, %v5072
        %v5074 = vpop.f32.mrb[0].mxu0
        %v5075 = vadd.f32 0.0, %v5074
        %5076 = vmatprep.mubr.f32.mxu0 0.0
        %5077 = vmatmul.mubr.f32.gmra.mrb[0].mxu0 %v4899
        %v5078 = vpop.f32.mrb[0].mxu0
        %v5079 = vadd.f32 0.0, %v5078
        %v5080 = vpop.f32.mrb[0].mxu0
        %v5081 = vadd.f32 0.0, %v5080
        %5082 = vmatprep.mubr.f32.mxu0 0.0
        %5083 = vmatmul.mubr.f32.gmra.mrb[0].mxu0 %v4902
        %v5084 = vpop.f32.mrb[0].mxu0
        %v5085 = vadd.f32 0.0, %v5084
        %v5086 = vpop.f32.mrb[0].mxu0
        %v5087 = vadd.f32 0.0, %v5086
        %5088 = vmatprep.mubr.f32.mxu0 0.0
        %5089 = vmatmul.mubr.f32.gmra.mrb[0].mxu0 %v4905
        %v5090 = vpop.f32.mrb[0].mxu0
        %v5091 = vadd.f32 0.0, %v5090
        %v5092 = vpop.f32.mrb[0].mxu0
        %v5093 = vadd.f32 0.0, %v5092
        %5094 = vmatprep.mubr.f32.mxu0 0.0
        %5095 = vmatmul.mubr.f32.gmra.mrb[0].mxu0 %v4908
        %v5096 = vpop.f32.mrb[0].mxu0
        %v5097 = vadd.f32 0.0, %v5096
        %v5098 = vpop.f32.mrb[0].mxu0
        %v5099 = vadd.f32 0.0, %v5098
        %5100 = vmatprep.mubr.f32.mxu0 0.0
        %5101 = vmatmul.mubr.f32.gmra.mrb[0].mxu0 %v4911
        %v5102 = vpop.f32.mrb[0].mxu0
        %v5103 = vadd.f32 0.0, %v5102
        %v5104 = vpop.f32.mrb[0].mxu0
        %v5105 = vadd.f32 0.0, %v5104
        %5106 = vmatprep.mubr.f32.mxu0 0.0
        %5107 = vmatmul.mubr.f32.gmra.mrb[0].mxu0 %v4914
        %v5108 = vpop.f32.mrb[0].mxu0
        %v5109 = vadd.f32 0.0, %v5108
        %v5110 = vpop.f32.mrb[0].mxu0
        %v5111 = vadd.f32 0.0, %v5110
        %5112 = vmatprep.mubr.f32.mxu0 0.0
        %5113 = vmatmul.mubr.f32.gmra.mrb[0].mxu0 %v4917
        %v5114 = vpop.f32.mrb[0].mxu0
        %v5115 = vadd.f32 0.0, %v5114
        %v5116 = vpop.f32.mrb[0].mxu0
        %v5117 = vadd.f32 0.0, %v5116
        %5118 = vmatprep.mubr.f32.mxu0 0.0
        %5119 = vmatmul.mubr.f32.gmra.mrb[0].mxu0 %v4920
        %v5120 = vpop.f32.mrb[0].mxu0
        %v5121 = vadd.f32 0.0, %v5120
        %v5122 = vpop.f32.mrb[0].mxu0
        %v5123 = vadd.f32 0.0, %v5122
        %5124 = vmatprep.mubr.f32.mxu0 0.0
        %5125 = vmatmul.mubr.f32.gmra.mrb[0].mxu0 %v4923
        %v5126 = vpop.f32.mrb[0].mxu0
        %v5127 = vadd.f32 0.0, %v5126
        %v5128 = vpop.f32.mrb[0].mxu0
        %v5129 = vadd.f32 0.0, %v5128
        %5130 = vmatprep.mubr.f32.mxu0 0.0
        %5131 = vmatmul.mubr.f32.gmra.mrb[0].mxu0 %v4926
        %v5132 = vpop.f32.mrb[0].mxu0
        %v5133 = vadd.f32 0.0, %v5132
        %v5134 = vpop.f32.mrb[0].mxu0
        %v5135 = vadd.f32 0.0, %v5134
        %5136 = vmatprep.mubr.f32.mxu0 0.0
        %5137 = vmatmul.mubr.f32.gmra.mrb[0].mxu0 %v4929
        %v5138 = vpop.f32.mrb[0].mxu0
        %v5139 = vadd.f32 0.0, %v5138
        %v5140 = vpop.f32.mrb[0].mxu0
        %v5141 = vadd.f32 0.0, %v5140
        %5142 = vmatprep.mubr.f32.mxu0 0.0
        %5143 = vmatmul.mubr.f32.gmra.mrb[0].mxu0 %v4932
        %v5144 = vpop.f32.mrb[0].mxu0
        %v5145 = vadd.f32 0.0, %v5144
        %v5146 = vpop.f32.mrb[0].mxu0
        %v5147 = vadd.f32 0.0, %v5146
        %5148 = vmatprep.mubr.f32.mxu0 0.0
        %5149 = vmatmul.mubr.f32.gmra.mrb[0].mxu0 %v4935
        %v5150 = vpop.f32.mrb[0].mxu0
        %v5151 = vadd.f32 0.0, %v5150
        %v5152 = vpop.f32.mrb[0].mxu0
        %v5153 = vadd.f32 0.0, %v5152
        %5154 = vmatprep.mubr.f32.mxu0 0.0
        %5155 = vmatmul.mubr.f32.gmra.mrb[0].mxu0 %v4938
        %v5156 = vpop.f32.mrb[0].mxu0
        %v5157 = vadd.f32 0.0, %v5156
        %v5158 = vpop.f32.mrb[0].mxu0
        %v5159 = vadd.f32 0.0, %v5158
        %5160 = vmatprep.mubr.f32.mxu0 0.0
        %5161 = vmatmul.mubr.f32.gmra.mrb[0].mxu0 %v4941
        %v5162 = vpop.f32.mrb[0].mxu0
        %v5163 = vadd.f32 0.0, %v5162
        %v5164 = vpop.f32.mrb[0].mxu0
        %v5165 = vadd.f32 0.0, %v5164
        %5166 = vmatprep.mubr.f32.mxu0 0.0
        %5167 = vmatmul.mubr.f32.gmra.mrb[0].mxu0 %v4944
        %v5168 = vpop.f32.mrb[0].mxu0
        %v5169 = vadd.f32 0.0, %v5168
        %v5170 = vpop.f32.mrb[0].mxu0
        %v5171 = vadd.f32 0.0, %v5170
        %5172 = vmatprep.mubr.f32.mxu0 0.0
        %5173 = vmatmul.mubr.f32.gmra.mrb[0].mxu0 %v4947
        %v5174 = vpop.f32.mrb[0].mxu0
        %v5175 = vadd.f32 0.0, %v5174
        %v5176 = vpop.f32.mrb[0].mxu0
        %v5177 = vadd.f32 0.0, %v5176
        %5178 = vmatprep.mubr.f32.mxu0 0.0
        %5179 = vmatmul.mubr.f32.gmra.mrb[0].mxu0 %v4950
        %v5180 = vpop.f32.mrb[0].mxu0
        %v5181 = vadd.f32 0.0, %v5180
        %v5182 = vpop.f32.mrb[0].mxu0
        %v5183 = vadd.f32 0.0, %v5182
        %5184 = vmatprep.mubr.f32.mxu0 0.0
        %5185 = vmatmul.mubr.f32.gmra.mrb[0].mxu0 %v4953
        %v5186 = vpop.f32.mrb[0].mxu0
        %v5187 = vadd.f32 0.0, %v5186
        %v5188 = vpop.f32.mrb[0].mxu0
        %v5189 = vadd.f32 0.0, %v5188
        %5190 = vmatprep.mubr.f32.mxu0 0.0
        %5191 = vmatmul.mubr.f32.gmra.mrb[0].mxu0 %v4956
        %v5192 = vpop.f32.mrb[0].mxu0
        %v5193 = vadd.f32 0.0, %v5192
        %v5194 = vpop.f32.mrb[0].mxu0
        %v5195 = vadd.f32 0.0, %v5194
        %5196 = vmatprep.mubr.f32.mxu0 0.0
        %5197 = vmatmul.mubr.f32.gmra.mrb[0].mxu0 %v4959
        %v5198 = vpop.f32.mrb[0].mxu0
        %v5199 = vadd.f32 0.0, %v5198
        %v5200 = vpop.f32.mrb[0].mxu0
        %v5201 = vadd.f32 0.0, %v5200
        %5202 = vmatprep.mubr.f32.mxu0 0.0
        %5203 = vmatmul.mubr.f32.gmra.mrb[0].mxu0 %v4962
        %v5204 = vpop.f32.mrb[0].mxu0
        %v5205 = vadd.f32 0.0, %v5204
        %v5206 = vpop.f32.mrb[0].mxu0
        %v5207 = vadd.f32 0.0, %v5206
        %5208 = vmatprep.mubr.f32.mxu0 0.0
        %5209 = vmatmul.mubr.f32.gmra.mrb[0].mxu0 %v4965
        %v5210 = vpop.f32.mrb[0].mxu0
        %v5211 = vadd.f32 0.0, %v5210
        %v5212 = vpop.f32.mrb[0].mxu0
        %v5213 = vadd.f32 0.0, %v5212
        %5214 = vmatprep.mubr.f32.mxu0 0.0
        %5215 = vmatmul.mubr.f32.gmra.mrb[0].mxu0 %v4968
        %v5216 = vpop.f32.mrb[0].mxu0
        %v5217 = vadd.f32 0.0, %v5216
        %v5218 = vpop.f32.mrb[0].mxu0
        %v5219 = vadd.f32 0.0, %v5218
        %5220 = vmatprep.mubr.f32.mxu0 0.0
        %5221 = vmatmul.mubr.f32.gmra.mrb[0].mxu0 %v4971
        %v5222 = vpop.f32.mrb[0].mxu0
        %v5223 = vadd.f32 0.0, %v5222
        %v5224 = vpop.f32.mrb[0].mxu0
        %v5225 = vadd.f32 0.0, %v5224
        %5226 = vmatprep.mubr.f32.mxu0 0.0
        %5227 = vmatmul.mubr.f32.gmra.mrb[0].mxu0 %v4974
        %v5228 = vpop.f32.mrb[0].mxu0
        %v5229 = vadd.f32 0.0, %v5228
        %v5230 = vpop.f32.mrb[0].mxu0
        %v5231 = vadd.f32 0.0, %v5230
        %5232 = vdwg.mxu0
        %v5233 = vmax.f32 %v5043, %v5055
        %v5234 = vmax.f32 %v5049, %v5061
        %v5235 = vmax.f32 %v5233, %v5067
        %v5236 = vmax.f32 %v5234, %v5073
        %v5237 = vmax.f32 %v5235, %v5079
        %v5238 = vmax.f32 %v5236, %v5085
        %v5239 = vmax.f32 %v5237, %v5091
        %v5240 = vmax.f32 %v5238, %v5097
        %v5241 = vmax.f32 %v5239, %v5103
        %v5242 = vmax.f32 %v5240, %v5109
        %v5243 = vmax.f32 %v5241, %v5115
        %v5244 = vmax.f32 %v5242, %v5121
        %v5245 = vmax.f32 %v5243, %v5127
        %v5246 = vmax.f32 %v5244, %v5133
        %v5247 = vmax.f32 %v5245, %v5139
        %v5248 = vmax.f32 %v5246, %v5145
        %v5249 = vmax.f32 %v5247, %v5151
        %v5250 = vmax.f32 %v5248, %v5157
        %v5251 = vmax.f32 %v5249, %v5163
        %v5252 = vmax.f32 %v5250, %v5169
        %v5253 = vmax.f32 %v5251, %v5175
        %v5254 = vmax.f32 %v5252, %v5181
        %v5255 = vmax.f32 %v5253, %v5187
        %v5256 = vmax.f32 %v5254, %v5193
        %v5257 = vmax.f32 %v5255, %v5199
        %v5258 = vmax.f32 %v5256, %v5205
        %v5259 = vmax.f32 %v5257, %v5211
        %v5260 = vmax.f32 %v5258, %v5217
        %v5261 = vmax.f32 %v5259, %v5223
        %v5262 = vmax.f32 %v5260, %v5229
        %v5263 = vmax.f32 %v5261, %v5262
        %v5264 = vrot.slane %v5263, 4
        %v5265 = vmax.f32 %v5263, %v5264
        %v5266 = vrot.slane %v5265, 2
        %v5267 = vmax.f32 %v5265, %v5266
        %v5268 = vrot.slane %v5267, 1
        %v5269 = vmax.f32 %v5267, %v5268
        %v5270 = vmax.f32 %v5045, %v5057
        %v5271 = vmax.f32 %v5051, %v5063
        %v5272 = vmax.f32 %v5270, %v5069
        %v5273 = vmax.f32 %v5271, %v5075
        %v5274 = vmax.f32 %v5272, %v5081
        %v5275 = vmax.f32 %v5273, %v5087
        %v5276 = vmax.f32 %v5274, %v5093
        %v5277 = vmax.f32 %v5275, %v5099
        %v5278 = vmax.f32 %v5276, %v5105
        %v5279 = vmax.f32 %v5277, %v5111
        %v5280 = vmax.f32 %v5278, %v5117
        %v5281 = vmax.f32 %v5279, %v5123
        %v5282 = vmax.f32 %v5280, %v5129
        %v5283 = vmax.f32 %v5281, %v5135
        %v5284 = vmax.f32 %v5282, %v5141
        %v5285 = vmax.f32 %v5283, %v5147
        %v5286 = vmax.f32 %v5284, %v5153
        %v5287 = vmax.f32 %v5285, %v5159
        %v5288 = vmax.f32 %v5286, %v5165
        %v5289 = vmax.f32 %v5287, %v5171
        %v5290 = vmax.f32 %v5288, %v5177
        %v5291 = vmax.f32 %v5289, %v5183
        %v5292 = vmax.f32 %v5290, %v5189
        %v5293 = vmax.f32 %v5291, %v5195
        %v5294 = vmax.f32 %v5292, %v5201
        %v5295 = vmax.f32 %v5293, %v5207
        %v5296 = vmax.f32 %v5294, %v5213
        %v5297 = vmax.f32 %v5295, %v5219
        %v5298 = vmax.f32 %v5296, %v5225
        %v5299 = vmax.f32 %v5297, %v5231
        %v5300 = vmax.f32 %v5298, %v5299
        %v5301 = vrot.slane %v5300, 4
        %v5302 = vmax.f32 %v5300, %v5301
        %v5303 = vrot.slane %v5302, 2
        %v5304 = vmax.f32 %v5302, %v5303
        %v5305 = vrot.slane %v5304, 1
        %v5306 = vmax.f32 %v5304, %v5305
        %v5307 = vsub.f32 %v5043, %v5269
        %v5308 = vsub.f32 %v5045, %v5306
        %v5309 = vsub.f32 %v5049, %v5269
        %v5310 = vsub.f32 %v5051, %v5306
        %v5311 = vsub.f32 %v5055, %v5269
        %v5312 = vsub.f32 %v5057, %v5306
        %v5313 = vsub.f32 %v5061, %v5269
        %v5314 = vsub.f32 %v5063, %v5306
        %v5315 = vsub.f32 %v5067, %v5269
        %v5316 = vsub.f32 %v5069, %v5306
        %v5317 = vsub.f32 %v5073, %v5269
        %v5318 = vsub.f32 %v5075, %v5306
        %v5319 = vsub.f32 %v5079, %v5269
        %v5320 = vsub.f32 %v5081, %v5306
        %v5321 = vsub.f32 %v5085, %v5269
        %v5322 = vsub.f32 %v5087, %v5306
        %v5323 = vsub.f32 %v5091, %v5269
        %v5324 = vsub.f32 %v5093, %v5306
        %v5325 = vsub.f32 %v5097, %v5269
        %v5326 = vsub.f32 %v5099, %v5306
        %v5327 = vsub.f32 %v5103, %v5269
        %v5328 = vsub.f32 %v5105, %v5306
        %v5329 = vsub.f32 %v5109, %v5269
        %v5330 = vsub.f32 %v5111, %v5306
        %v5331 = vsub.f32 %v5115, %v5269
        %v5332 = vsub.f32 %v5117, %v5306
        %v5333 = vsub.f32 %v5121, %v5269
        %v5334 = vsub.f32 %v5123, %v5306
        %v5335 = vsub.f32 %v5127, %v5269
        %v5336 = vsub.f32 %v5129, %v5306
        %v5337 = vsub.f32 %v5133, %v5269
        %v5338 = vsub.f32 %v5135, %v5306
        %v5339 = vsub.f32 %v5139, %v5269
        %v5340 = vsub.f32 %v5141, %v5306
        %v5341 = vsub.f32 %v5145, %v5269
        %v5342 = vsub.f32 %v5147, %v5306
        %v5343 = vsub.f32 %v5151, %v5269
        %v5344 = vsub.f32 %v5153, %v5306
        %v5345 = vsub.f32 %v5157, %v5269
        %v5346 = vsub.f32 %v5159, %v5306
        %v5347 = vsub.f32 %v5163, %v5269
        %v5348 = vsub.f32 %v5165, %v5306
        %v5349 = vsub.f32 %v5169, %v5269
        %v5350 = vsub.f32 %v5171, %v5306
        %v5351 = vsub.f32 %v5175, %v5269
        %v5352 = vsub.f32 %v5177, %v5306
        %v5353 = vsub.f32 %v5181, %v5269
        %v5354 = vsub.f32 %v5183, %v5306
        %v5355 = vsub.f32 %v5187, %v5269
        %v5356 = vsub.f32 %v5189, %v5306
        %v5357 = vsub.f32 %v5193, %v5269
        %v5358 = vsub.f32 %v5195, %v5306
        %v5359 = vsub.f32 %v5199, %v5269
        %v5360 = vsub.f32 %v5201, %v5306
        %v5361 = vsub.f32 %v5205, %v5269
        %v5362 = vsub.f32 %v5207, %v5306
        %v5363 = vsub.f32 %v5211, %v5269
        %v5364 = vsub.f32 %v5213, %v5306
        %v5365 = vsub.f32 %v5217, %v5269
        %v5366 = vsub.f32 %v5219, %v5306
        %v5367 = vsub.f32 %v5223, %v5269
        %v5368 = vsub.f32 %v5225, %v5306
        %v5369 = vsub.f32 %v5229, %v5269
        %v5370 = vsub.f32 %v5231, %v5306
        %v5371 = vmul.f32 %v5307, 1.442695
        %v5372 = vpow.pop %v5371
        %v5373 = vmul.f32 %v5308, 1.442695
        %v5374 = vpow.pop %v5373
        %v5375 = vmul.f32 %v5309, 1.442695
        %v5376 = vpow.pop %v5375
        %v5377 = vmul.f32 %v5310, 1.442695
        %v5378 = vpow.pop %v5377
        %v5379 = vmul.f32 %v5311, 1.442695
        %v5380 = vpow.pop %v5379
        %v5381 = vmul.f32 %v5312, 1.442695
        %v5382 = vpow.pop %v5381
        %v5383 = vmul.f32 %v5313, 1.442695
        %v5384 = vpow.pop %v5383
        %v5385 = vmul.f32 %v5314, 1.442695
        %v5386 = vpow.pop %v5385
        %v5387 = vmul.f32 %v5315, 1.442695
        %v5388 = vpow.pop %v5387
        %v5389 = vmul.f32 %v5316, 1.442695
        %v5390 = vpow.pop %v5389
        %v5391 = vmul.f32 %v5317, 1.442695
        %v5392 = vpow.pop %v5391
        %v5393 = vmul.f32 %v5318, 1.442695
        %v5394 = vpow.pop %v5393
        %v5395 = vmul.f32 %v5319, 1.442695
        %v5396 = vpow.pop %v5395
        %v5397 = vmul.f32 %v5320, 1.442695
        %v5398 = vpow.pop %v5397
        %v5399 = vmul.f32 %v5321, 1.442695
        %v5400 = vpow.pop %v5399
        %v5401 = vmul.f32 %v5322, 1.442695
        %v5402 = vpow.pop %v5401
        %v5403 = vmul.f32 %v5323, 1.442695
        %v5404 = vpow.pop %v5403
        %v5405 = vmul.f32 %v5324, 1.442695
        %v5406 = vpow.pop %v5405
        %v5407 = vmul.f32 %v5325, 1.442695
        %v5408 = vpow.pop %v5407
        %v5409 = vmul.f32 %v5326, 1.442695
        %v5410 = vpow.pop %v5409
        %v5411 = vmul.f32 %v5327, 1.442695
        %v5412 = vpow.pop %v5411
        %v5413 = vmul.f32 %v5328, 1.442695
        %v5414 = vpow.pop %v5413
        %v5415 = vmul.f32 %v5329, 1.442695
        %v5416 = vpow.pop %v5415
        %v5417 = vmul.f32 %v5330, 1.442695
        %v5418 = vpow.pop %v5417
        %v5419 = vmul.f32 %v5331, 1.442695
        %v5420 = vpow.pop %v5419
        %v5421 = vmul.f32 %v5332, 1.442695
        %v5422 = vpow.pop %v5421
        %v5423 = vmul.f32 %v5333, 1.442695
        %v5424 = vpow.pop %v5423
        %v5425 = vmul.f32 %v5334, 1.442695
        %v5426 = vpow.pop %v5425
        %v5427 = vmul.f32 %v5335, 1.442695
        %v5428 = vpow.pop %v5427
        %v5429 = vmul.f32 %v5336, 1.442695
        %v5430 = vpow.pop %v5429
        %v5431 = vmul.f32 %v5337, 1.442695
        %v5432 = vpow.pop %v5431
        %v5433 = vmul.f32 %v5338, 1.442695
        %v5434 = vpow.pop %v5433
        %v5435 = vmul.f32 %v5339, 1.442695
        %v5436 = vpow.pop %v5435
        %v5437 = vmul.f32 %v5340, 1.442695
        %v5438 = vpow.pop %v5437
        %v5439 = vmul.f32 %v5341, 1.442695
        %v5440 = vpow.pop %v5439
        %v5441 = vmul.f32 %v5342, 1.442695
        %v5442 = vpow.pop %v5441
        %v5443 = vmul.f32 %v5343, 1.442695
        %v5444 = vpow.pop %v5443
        %v5445 = vmul.f32 %v5344, 1.442695
        %v5446 = vpow.pop %v5445
        %v5447 = vmul.f32 %v5345, 1.442695
        %v5448 = vpow.pop %v5447
        %v5449 = vmul.f32 %v5346, 1.442695
        %v5450 = vpow.pop %v5449
        %v5451 = vmul.f32 %v5347, 1.442695
        %v5452 = vpow.pop %v5451
        %v5453 = vmul.f32 %v5348, 1.442695
        %v5454 = vpow.pop %v5453
        %v5455 = vmul.f32 %v5349, 1.442695
        %v5456 = vpow.pop %v5455
        %v5457 = vmul.f32 %v5350, 1.442695
        %v5458 = vpow.pop %v5457
        %v5459 = vmul.f32 %v5351, 1.442695
        %v5460 = vpow.pop %v5459
        %v5461 = vmul.f32 %v5352, 1.442695
        %v5462 = vpow.pop %v5461
        %v5463 = vmul.f32 %v5353, 1.442695
        %v5464 = vpow.pop %v5463
        %v5465 = vmul.f32 %v5354, 1.442695
        %v5466 = vpow.pop %v5465
        %v5467 = vmul.f32 %v5355, 1.442695
        %v5468 = vpow.pop %v5467
        %v5469 = vmul.f32 %v5356, 1.442695
        %v5470 = vpow.pop %v5469
        %v5471 = vmul.f32 %v5357, 1.442695
        %v5472 = vpow.pop %v5471
        %v5473 = vmul.f32 %v5358, 1.442695
        %v5474 = vpow.pop %v5473
        %v5475 = vmul.f32 %v5359, 1.442695
        %v5476 = vpow.pop %v5475
        %v5477 = vmul.f32 %v5360, 1.442695
        %v5478 = vpow.pop %v5477
        %v5479 = vmul.f32 %v5361, 1.442695
        %v5480 = vpow.pop %v5479
        %v5481 = vmul.f32 %v5362, 1.442695
        %v5482 = vpow.pop %v5481
        %v5483 = vmul.f32 %v5363, 1.442695
        %v5484 = vpow.pop %v5483
        %v5485 = vmul.f32 %v5364, 1.442695
        %v5486 = vpow.pop %v5485
        %v5487 = vmul.f32 %v5365, 1.442695
        %v5488 = vpow.pop %v5487
        %v5489 = vmul.f32 %v5366, 1.442695
        %v5490 = vpow.pop %v5489
        %v5491 = vmul.f32 %v5367, 1.442695
        %v5492 = vpow.pop %v5491
        %v5493 = vmul.f32 %v5368, 1.442695
        %v5494 = vpow.pop %v5493
        %v5495 = vmul.f32 %v5369, 1.442695
        %v5496 = vpow.pop %v5495
        %v5497 = vmul.f32 %v5370, 1.442695
        %v5498 = vpow.pop %v5497
        %v5499 = vadd.f32 %v5372, %v5376
        %v5500 = vadd.f32 %v5499, %v5380
        %v5501 = vadd.f32 %v5500, %v5384
        %v5502 = vadd.f32 %v5501, %v5388
        %v5503 = vadd.f32 %v5502, %v5392
        %v5504 = vadd.f32 %v5503, %v5396
        %v5505 = vadd.f32 %v5504, %v5400
        %v5506 = vadd.f32 %v5505, %v5404
        %v5507 = vadd.f32 %v5506, %v5408
        %v5508 = vadd.f32 %v5507, %v5412
        %v5509 = vadd.f32 %v5508, %v5416
        %v5510 = vadd.f32 %v5509, %v5420
        %v5511 = vadd.f32 %v5510, %v5424
        %v5512 = vadd.f32 %v5511, %v5428
        %v5513 = vadd.f32 %v5512, %v5432
        %v5514 = vadd.f32 %v5513, %v5436
        %v5515 = vadd.f32 %v5514, %v5440
        %v5516 = vadd.f32 %v5515, %v5444
        %v5517 = vadd.f32 %v5516, %v5448
        %v5518 = vadd.f32 %v5517, %v5452
        %v5519 = vadd.f32 %v5518, %v5456
        %v5520 = vadd.f32 %v5519, %v5460
        %v5521 = vadd.f32 %v5520, %v5464
        %v5522 = vadd.f32 %v5521, %v5468
        %v5523 = vadd.f32 %v5522, %v5472
        %v5524 = vadd.f32 %v5523, %v5476
        %v5525 = vadd.f32 %v5524, %v5480
        %v5526 = vadd.f32 %v5525, %v5484
        %v5527 = vadd.f32 %v5526, %v5488
        %v5528 = vadd.f32 %v5527, %v5492
        %v5529 = vadd.f32 %v5528, %v5496
        %v5530 = vrot.slane %v5529, 4
        %v5531 = vadd.f32 %v5529, %v5530
        %v5532 = vrot.slane %v5531, 2
        %v5533 = vadd.f32 %v5531, %v5532
        %v5534 = vrot.slane %v5533, 1
        %v5535 = vadd.f32 %v5533, %v5534
        %v5536 = vadd.f32 %v5374, %v5378
        %v5537 = vadd.f32 %v5536, %v5382
        %v5538 = vadd.f32 %v5537, %v5386
        %v5539 = vadd.f32 %v5538, %v5390
        %v5540 = vadd.f32 %v5539, %v5394
        %v5541 = vadd.f32 %v5540, %v5398
        %v5542 = vadd.f32 %v5541, %v5402
        %v5543 = vadd.f32 %v5542, %v5406
        %v5544 = vadd.f32 %v5543, %v5410
        %v5545 = vadd.f32 %v5544, %v5414
        %v5546 = vadd.f32 %v5545, %v5418
        %v5547 = vadd.f32 %v5546, %v5422
        %v5548 = vadd.f32 %v5547, %v5426
        %v5549 = vadd.f32 %v5548, %v5430
        %v5550 = vadd.f32 %v5549, %v5434
        %v5551 = vadd.f32 %v5550, %v5438
        %v5552 = vadd.f32 %v5551, %v5442
        %v5553 = vadd.f32 %v5552, %v5446
        %v5554 = vadd.f32 %v5553, %v5450
        %v5555 = vadd.f32 %v5554, %v5454
        %v5556 = vadd.f32 %v5555, %v5458
        %v5557 = vadd.f32 %v5556, %v5462
        %v5558 = vadd.f32 %v5557, %v5466
        %v5559 = vadd.f32 %v5558, %v5470
        %v5560 = vadd.f32 %v5559, %v5474
        %v5561 = vadd.f32 %v5560, %v5478
        %v5562 = vadd.f32 %v5561, %v5482
        %v5563 = vadd.f32 %v5562, %v5486
        %v5564 = vadd.f32 %v5563, %v5490
        %v5565 = vadd.f32 %v5564, %v5494
        %v5566 = vadd.f32 %v5565, %v5498
        %v5567 = vrot.slane %v5566, 4
        %v5568 = vadd.f32 %v5566, %v5567
        %v5569 = vrot.slane %v5568, 2
        %v5570 = vadd.f32 %v5568, %v5569
        %v5571 = vrot.slane %v5570, 1
        %v5572 = vadd.f32 %v5570, %v5571
        %5573 = vmatprep.subr.mxu0 %v5374
        %5574 = vmatpush1.msra.mxu0 %v5372
        %5575 = vmatprep.subr.mxu0 %v5378
        %5576 = vmatpush1.msra.mxu0 %v5376
        %5577 = vmatprep.subr.mxu0 %v5382
        %5578 = vmatpush1.msra.mxu0 %v5380
        %5579 = vmatprep.subr.mxu0 %v5386
        %5580 = vmatpush1.msra.mxu0 %v5384
        %5581 = vmatprep.subr.mxu0 %v5390
        %5582 = vmatpush1.msra.mxu0 %v5388
        %5583 = vmatprep.subr.mxu0 %v5394
        %5584 = vmatpush1.msra.mxu0 %v5392
        %5585 = vmatprep.subr.mxu0 %v5398
        %5586 = vmatpush1.msra.mxu0 %v5396
        %5587 = vmatprep.subr.mxu0 %v5402
        %5588 = vmatpush1.msra.mxu0 %v5400
        %5589 = vmatprep.subr.mxu0 %v5406
        %5590 = vmatpush1.msra.mxu0 %v5404
        %5591 = vmatprep.subr.mxu0 %v5410
        %5592 = vmatpush1.msra.mxu0 %v5408
        %5593 = vmatprep.subr.mxu0 %v5414
        %5594 = vmatpush1.msra.mxu0 %v5412
        %5595 = vmatprep.subr.mxu0 %v5418
        %5596 = vmatpush1.msra.mxu0 %v5416
        %5597 = vmatprep.subr.mxu0 %v5422
        %5598 = vmatpush1.msra.mxu0 %v5420
        %5599 = vmatprep.subr.mxu0 %v5426
        %5600 = vmatpush1.msra.mxu0 %v5424
        %5601 = vmatprep.subr.mxu0 %v5430
        %5602 = vmatpush1.msra.mxu0 %v5428
        %5603 = vmatprep.subr.mxu0 %v5434
        %5604 = vmatpush1.msra.mxu0 %v5432
        %5605 = vmatprep.subr.mxu0 %v5438
        %5606 = vmatpush1.msra.mxu0 %v5436
        %5607 = vmatprep.subr.mxu0 %v5442
        %5608 = vmatpush1.msra.mxu0 %v5440
        %5609 = vmatprep.subr.mxu0 %v5446
        %5610 = vmatpush1.msra.mxu0 %v5444
        %5611 = vmatprep.subr.mxu0 %v5450
        %5612 = vmatpush1.msra.mxu0 %v5448
        %5613 = vmatprep.subr.mxu0 %v5454
        %5614 = vmatpush1.msra.mxu0 %v5452
        %5615 = vmatprep.subr.mxu0 %v5458
        %5616 = vmatpush1.msra.mxu0 %v5456
        %5617 = vmatprep.subr.mxu0 %v5462
        %5618 = vmatpush1.msra.mxu0 %v5460
        %5619 = vmatprep.subr.mxu0 %v5466
        %5620 = vmatpush1.msra.mxu0 %v5464
        %5621 = vmatprep.subr.mxu0 %v5470
        %5622 = vmatpush1.msra.mxu0 %v5468
        %5623 = vmatprep.subr.mxu0 %v5474
        %5624 = vmatpush1.msra.mxu0 %v5472
        %5625 = vmatprep.subr.mxu0 %v5478
        %5626 = vmatpush1.msra.mxu0 %v5476
        %5627 = vmatprep.subr.mxu0 %v5482
        %5628 = vmatpush1.msra.mxu0 %v5480
        %5629 = vmatprep.subr.mxu0 %v5486
        %5630 = vmatpush1.msra.mxu0 %v5484
        %5631 = vmatprep.subr.mxu0 %v5490
        %5632 = vmatpush1.msra.mxu0 %v5488
        %5633 = vmatprep.subr.mxu0 %v5494
        %5634 = vmatpush1.msra.mxu0 %v5492
        %5635 = vmatprep.subr.mxu0 %v5498
        %5636 = vmatpush1.msra.mxu0 %v5496
        %5637 = vmatprep.mubr.f32.mxu0 %v1422
        %5638 = vmatmul.mubr.f32.gmra.mrb[0].mxu0 %v1421
        %v5639 = vpop.f32.mrb[0].mxu0
        %v5640 = vadd.f32 0.0, %v5639
        %v5641 = vpop.f32.mrb[0].mxu0
        %v5642 = vadd.f32 0.0, %v5641
        %5643 = vmatprep.mubr.f32.mxu0 %v1424
        %5644 = vmatmul.mubr.f32.gmra.mrb[0].mxu0 %v1423
        %v5645 = vpop.f32.mrb[0].mxu0
        %v5646 = vadd.f32 0.0, %v5645
        %v5647 = vpop.f32.mrb[0].mxu0
        %v5648 = vadd.f32 0.0, %v5647
        %5649 = vmatprep.mubr.f32.mxu0 %v1426
        %5650 = vmatmul.mubr.f32.gmra.mrb[0].mxu0 %v1425
        %v5651 = vpop.f32.mrb[0].mxu0
        %v5652 = vadd.f32 0.0, %v5651
        %v5653 = vpop.f32.mrb[0].mxu0
        %v5654 = vadd.f32 0.0, %v5653
        %5655 = vmatprep.mubr.f32.mxu0 %v1428
        %5656 = vmatmul.mubr.f32.gmra.mrb[0].mxu0 %v1427
        %v5657 = vpop.f32.mrb[0].mxu0
        %v5658 = vadd.f32 0.0, %v5657
        %v5659 = vpop.f32.mrb[0].mxu0
        %v5660 = vadd.f32 0.0, %v5659
        %5661 = vdwg.mxu0
        %v5662 = vrcp.pop %v5535
        %v5663 = vrcp.pop %v5572
        %v5664 = vmul.f32 %v5640, %v5662
        %v5665 = vmul.f32 %v5642, %v5663
        %v5666 = vmul.f32 %v5646, %v5662
        %v5667 = vmul.f32 %v5648, %v5663
        %v5668 = vmul.f32 %v5652, %v5662
        %v5669 = vmul.f32 %v5654, %v5663
        %v5670 = vmul.f32 %v5658, %v5662
        %v5671 = vmul.f32 %v5660, %v5663
        %v5672 = vld [vmem:[%s57] sm:$0xff]
        %v5674 = vsel %vm2076, %v5672, 0
        %5676 = vmatprep.subr.mxu0 %v5665
        %5677 = vmatpush1.msra.mxu0 %v5664
        %5678 = vmatprep.subr.mxu0 %v5667
        %5679 = vmatpush1.msra.mxu0 %v5666
        %5680 = vmatprep.subr.mxu0 %v5669
        %5681 = vmatpush1.msra.mxu0 %v5668
        %5682 = vmatprep.subr.mxu0 %v5671
        %5683 = vmatpush1.msra.mxu0 %v5670
        %5684 = vmatprep.subr.mxu0 0.0
        %5685 = vmatpush1.msra.mxu0 0.0
        %5686 = vmatprep.subr.mxu0 0.0
        %5687 = vmatpush1.msra.mxu0 0.0
        %5688 = vmatprep.subr.mxu0 0.0
        %5689 = vmatpush1.msra.mxu0 0.0
        %5690 = vmatprep.subr.mxu0 0.0
        %5691 = vmatpush1.msra.mxu0 0.0
        %5692 = vmatprep.subr.mxu0 0.0
        %5693 = vmatpush1.msra.mxu0 0.0
        %5694 = vmatprep.subr.mxu0 0.0
        %5695 = vmatpush1.msra.mxu0 0.0
        %5696 = vmatprep.subr.mxu0 0.0
        %5697 = vmatpush1.msra.mxu0 0.0
        %5698 = vmatprep.subr.mxu0 0.0
        %5699 = vmatpush1.msra.mxu0 0.0
        %5700 = vmatprep.subr.mxu0 0.0
        %5701 = vmatpush1.msra.mxu0 0.0
        %5702 = vmatprep.subr.mxu0 0.0
        %5703 = vmatpush1.msra.mxu0 0.0
        %5704 = vmatprep.subr.mxu0 0.0
        %5705 = vmatpush1.msra.mxu0 0.0
        %5706 = vmatprep.subr.mxu0 0.0
        %5707 = vmatpush1.msra.mxu0 0.0
        %5708 = vmatprep.subr.mxu0 0.0
        %5709 = vmatpush1.msra.mxu0 0.0
        %5710 = vmatprep.subr.mxu0 0.0
        %5711 = vmatpush1.msra.mxu0 0.0
        %5712 = vmatprep.subr.mxu0 0.0
        %5713 = vmatpush1.msra.mxu0 0.0
        %5714 = vmatprep.subr.mxu0 0.0
        %5715 = vmatpush1.msra.mxu0 0.0
        %5716 = vmatprep.subr.mxu0 0.0
        %5717 = vmatpush1.msra.mxu0 0.0
        %5718 = vmatprep.subr.mxu0 0.0
        %5719 = vmatpush1.msra.mxu0 0.0
        %5720 = vmatprep.subr.mxu0 0.0
        %5721 = vmatpush1.msra.mxu0 0.0
        %5722 = vmatprep.subr.mxu0 0.0
        %5723 = vmatpush1.msra.mxu0 0.0
        %5724 = vmatprep.subr.mxu0 0.0
        %5725 = vmatpush1.msra.mxu0 0.0
        %5726 = vmatprep.subr.mxu0 0.0
        %5727 = vmatpush1.msra.mxu0 0.0
        %5728 = vmatprep.subr.mxu0 0.0
        %5729 = vmatpush1.msra.mxu0 0.0
        %5730 = vmatprep.subr.mxu0 0.0
        %5731 = vmatpush1.msra.mxu0 0.0
        %5732 = vmatprep.subr.mxu0 0.0
        %5733 = vmatpush1.msra.mxu0 0.0
        %5734 = vmatprep.subr.mxu0 0.0
        %5735 = vmatpush1.msra.mxu0 0.0
        %5736 = vmatprep.subr.mxu0 0.0
        %5737 = vmatpush1.msra.mxu0 0.0
        %5738 = vmatprep.subr.mxu0 0.0
        %5739 = vmatpush1.msra.mxu0 0.0
        %5740 = vmatprep.mubr.f32.mxu0 0.0
        %5741 = vmatmul.mubr.f32.gmra.mrb[0].mxu0 %v5674
        %v5742 = vpop.f32.mrb[0].mxu0
        %v5743 = vadd.f32 0.0, %v5742
        %v5744 = vpop.f32.mrb[0].mxu0
        %v5745 = vadd.f32 0.0, %v5744
        %5746 = vdwg.mxu0
        %v5747 = vmax.f32 %v5743, 0.0
        %v5748 = vmax.f32 %v5745, 0.0
        %v5749 = vld [vmem:[%s59] sm:$0xff]
        %v5750 = vld [vmem:[%s59 + $0x8] sm:$0xff]
        %v5751 = vld [vmem:[%s59 + $0x10] sm:$0x3f]
        %v5752 = vld [vmem:[%s61] sm:$0xff]
        %v5753 = vld [vmem:[%s61 + $0x8] sm:$0xff]
        %v5754 = vld [vmem:[%s61 + $0x10] sm:$0x3f]
        %5756 = vset.pattern.permute.xlu0 0
        %5757 = vperm.xlu0 %5756, %v5752
        %v5758 = vpop.permute.xlu0 %5757
        %5761 = vset.pattern.permute.xlu0 0
        %5762 = vperm.xlu0 %5761, %v5753
        %v5763 = vpop.permute.xlu0 %5762
        %5766 = vset.pattern.permute.xlu0 0
        %5767 = vperm.xlu0 %5766, %v5754
        %v5768 = vpop.permute.xlu0 %5767
        %v5771 = vsel %vm1966, %v5749, 0
        %v5774 = vsel %vm1966, %v5750, 0
        %v5777 = vsel %vm1966, %v5751, 0
        %5779 = vmatprep.subr.mxu0 %v5748
        %5780 = vmatpush1.msra.mxu0 %v5747
        %5781 = vmatprep.subr.mxu0 0.0
        %5782 = vmatpush1.msra.mxu0 0.0
        %5783 = vmatprep.subr.mxu0 0.0
        %5784 = vmatpush1.msra.mxu0 0.0
        %5785 = vmatprep.subr.mxu0 0.0
        %5786 = vmatpush1.msra.mxu0 0.0
        %5787 = vmatprep.subr.mxu0 0.0
        %5788 = vmatpush1.msra.mxu0 0.0
        %5789 = vmatprep.subr.mxu0 0.0
        %5790 = vmatpush1.msra.mxu0 0.0
        %5791 = vmatprep.subr.mxu0 0.0
        %5792 = vmatpush1.msra.mxu0 0.0
        %5793 = vmatprep.subr.mxu0 0.0
        %5794 = vmatpush1.msra.mxu0 0.0
        %5795 = vmatprep.subr.mxu0 0.0
        %5796 = vmatpush1.msra.mxu0 0.0
        %5797 = vmatprep.subr.mxu0 0.0
        %5798 = vmatpush1.msra.mxu0 0.0
        %5799 = vmatprep.subr.mxu0 0.0
        %5800 = vmatpush1.msra.mxu0 0.0
        %5801 = vmatprep.subr.mxu0 0.0
        %5802 = vmatpush1.msra.mxu0 0.0
        %5803 = vmatprep.subr.mxu0 0.0
        %5804 = vmatpush1.msra.mxu0 0.0
        %5805 = vmatprep.subr.mxu0 0.0
        %5806 = vmatpush1.msra.mxu0 0.0
        %5807 = vmatprep.subr.mxu0 0.0
        %5808 = vmatpush1.msra.mxu0 0.0
        %5809 = vmatprep.subr.mxu0 0.0
        %5810 = vmatpush1.msra.mxu0 0.0
        %5811 = vmatprep.subr.mxu0 0.0
        %5812 = vmatpush1.msra.mxu0 0.0
        %5813 = vmatprep.subr.mxu0 0.0
        %5814 = vmatpush1.msra.mxu0 0.0
        %5815 = vmatprep.subr.mxu0 0.0
        %5816 = vmatpush1.msra.mxu0 0.0
        %5817 = vmatprep.subr.mxu0 0.0
        %5818 = vmatpush1.msra.mxu0 0.0
        %5819 = vmatprep.subr.mxu0 0.0
        %5820 = vmatpush1.msra.mxu0 0.0
        %5821 = vmatprep.subr.mxu0 0.0
        %5822 = vmatpush1.msra.mxu0 0.0
        %5823 = vmatprep.subr.mxu0 0.0
        %5824 = vmatpush1.msra.mxu0 0.0
        %5825 = vmatprep.subr.mxu0 0.0
        %5826 = vmatpush1.msra.mxu0 0.0
        %5827 = vmatprep.subr.mxu0 0.0
        %5828 = vmatpush1.msra.mxu0 0.0
        %5829 = vmatprep.subr.mxu0 0.0
        %5830 = vmatpush1.msra.mxu0 0.0
        %5831 = vmatprep.subr.mxu0 0.0
        %5832 = vmatpush1.msra.mxu0 0.0
        %5833 = vmatprep.subr.mxu0 0.0
        %5834 = vmatpush1.msra.mxu0 0.0
        %5835 = vmatprep.subr.mxu0 0.0
        %5836 = vmatpush1.msra.mxu0 0.0
        %5837 = vmatprep.subr.mxu0 0.0
        %5838 = vmatpush1.msra.mxu0 0.0
        %5839 = vmatprep.subr.mxu0 0.0
        %5840 = vmatpush1.msra.mxu0 0.0
        %5841 = vmatprep.subr.mxu0 0.0
        %5842 = vmatpush1.msra.mxu0 0.0
        %5843 = vmatprep.mubr.f32.mxu0 0.0
        %5844 = vmatmul.mubr.f32.gmra.mrb[0].mxu0 %v5771
        %v5845 = vpop.f32.mrb[0].mxu0
        %v5846 = vadd.f32 %v5758, %v5845
        %v5847 = vpop.f32.mrb[0].mxu0
        %v5848 = vadd.f32 %v5758, %v5847
        %5849 = vmatprep.mubr.f32.mxu0 0.0
        %5850 = vmatmul.mubr.f32.gmra.mrb[0].mxu0 %v5774
        %v5851 = vpop.f32.mrb[0].mxu0
        %v5852 = vadd.f32 %v5763, %v5851
        %v5853 = vpop.f32.mrb[0].mxu0
        %v5854 = vadd.f32 %v5763, %v5853
        %5855 = vmatprep.mubr.f32.mxu0 0.0
        %5856 = vmatmul.mubr.f32.gmra.mrb[0].mxu0 %v5777
        %v5857 = vpop.f32.mrb[0].mxu0
        %v5858 = vadd.f32 %v5768, %v5857
        %v5859 = vpop.f32.mrb[0].mxu0
        %v5860 = vadd.f32 %v5768, %v5859
        %5861 = vdwg.mxu0
        %v5862 = vsel %vm1815, %v5846, -inf
        %v5863 = vrot.slane %v5862, 4
        %v5864 = vmax.f32 %v5862, %v5863
        %v5865 = vrot.slane %v5864, 2
        %v5866 = vmax.f32 %v5864, %v5865
        %v5867 = vrot.slane %v5866, 1
        %v5868 = vmax.f32 %v5866, %v5867
        %v5869 = vsel %vm1815, %v5848, -inf
        %v5870 = vrot.slane %v5869, 4
        %v5871 = vmax.f32 %v5869, %v5870
        %v5872 = vrot.slane %v5871, 2
        %v5873 = vmax.f32 %v5871, %v5872
        %v5874 = vrot.slane %v5873, 1
        %v5875 = vmax.f32 %v5873, %v5874
        %v5876 = vsub.f32 %v5846, %v5868
        %v5877 = vsub.f32 %v5848, %v5875
        %v5878 = vmul.f32 %v5876, 1.442695
        %v5879 = vpow.pop %v5878
        %v5880 = vmul.f32 %v5877, 1.442695
        %v5881 = vpow.pop %v5880
        %v5882 = vsel %vm1815, %v5879, 0.0
        %v5883 = vrot.slane %v5882, 4
        %v5884 = vadd.f32 %v5882, %v5883
        %v5885 = vrot.slane %v5884, 2
        %v5886 = vadd.f32 %v5884, %v5885
        %v5887 = vrot.slane %v5886, 1
        %v5888 = vadd.f32 %v5886, %v5887
        %v5889 = vsel %vm1815, %v5881, 0.0
        %v5890 = vrot.slane %v5889, 4
        %v5891 = vadd.f32 %v5889, %v5890
        %v5892 = vrot.slane %v5891, 2
        %v5893 = vadd.f32 %v5891, %v5892
        %v5894 = vrot.slane %v5893, 1
        %v5895 = vadd.f32 %v5893, %v5894
        %v5896 = vrcp.pop %v5888
        %v5897 = vrcp.pop %v5895
        %v5898 = vmul.f32 %v5879, %v5896
        %v5899 = vmul.f32 %v5881, %v5897
        %vm5900 = vcmask 1046531
        %v5901 = vsel %vm5900, %v5846, -inf
        %v5902 = vrot.slane %v5901, 4
        %v5903 = vmax.f32 %v5901, %v5902
        %v5904 = vrot.slane %v5903, 2
        %v5905 = vmax.f32 %v5903, %v5904
        %v5906 = vrot.slane %v5905, 1
        %v5907 = vmax.f32 %v5905, %v5906
        %v5908 = vsel %vm5900, %v5848, -inf
        %v5909 = vrot.slane %v5908, 4
        %v5910 = vmax.f32 %v5908, %v5909
        %v5911 = vrot.slane %v5910, 2
        %v5912 = vmax.f32 %v5910, %v5911
        %v5913 = vrot.slane %v5912, 1
        %v5914 = vmax.f32 %v5912, %v5913
        %v5915 = vsub.f32 %v5846, %v5907
        %v5916 = vsub.f32 %v5848, %v5914
        %v5917 = vmul.f32 %v5915, 1.442695
        %v5918 = vpow.pop %v5917
        %v5919 = vmul.f32 %v5916, 1.442695
        %v5920 = vpow.pop %v5919
        %v5923 = vrot.slane %v5918, 3
        %v5924 = vrot.slane %v5920, 3
        %v5927 = vsel %vm2862, %v5923, 0.0
        %v5928 = vrot.slane %v5927, 4
        %v5929 = vadd.f32 %v5927, %v5928
        %v5930 = vrot.slane %v5929, 2
        %v5931 = vadd.f32 %v5929, %v5930
        %v5932 = vrot.slane %v5931, 1
        %v5933 = vadd.f32 %v5931, %v5932
        %v5934 = vsel %vm2862, %v5924, 0.0
        %v5935 = vrot.slane %v5934, 4
        %v5936 = vadd.f32 %v5934, %v5935
        %v5937 = vrot.slane %v5936, 2
        %v5938 = vadd.f32 %v5936, %v5937
        %v5939 = vrot.slane %v5938, 1
        %v5940 = vadd.f32 %v5938, %v5939
        %v5941 = vrcp.pop %v5933
        %v5942 = vrcp.pop %v5940
        %v5943 = vmul.f32 %v5918, %v5941
        %v5944 = vmul.f32 %v5920, %v5942
        %v5945 = vsel %vm1770, %v5846, -inf
        %v5946 = vsel %vm1815, %v5852, -inf
        %v5947 = vmax.f32 %v5945, %v5946
        %v5948 = vrot.slane %v5947, 4
        %v5949 = vmax.f32 %v5947, %v5948
        %v5950 = vrot.slane %v5949, 2
        %v5951 = vmax.f32 %v5949, %v5950
        %v5952 = vrot.slane %v5951, 1
        %v5953 = vmax.f32 %v5951, %v5952
        %v5954 = vsel %vm1770, %v5848, -inf
        %v5955 = vsel %vm1815, %v5854, -inf
        %v5956 = vmax.f32 %v5954, %v5955
        %v5957 = vrot.slane %v5956, 4
        %v5958 = vmax.f32 %v5956, %v5957
        %v5959 = vrot.slane %v5958, 2
        %v5960 = vmax.f32 %v5958, %v5959
        %v5961 = vrot.slane %v5960, 1
        %v5962 = vmax.f32 %v5960, %v5961
        %v5963 = vsub.f32 %v5846, %v5953
        %v5964 = vsub.f32 %v5848, %v5962
        %v5965 = vsub.f32 %v5852, %v5953
        %v5966 = vsub.f32 %v5854, %v5962
        %v5967 = vmul.f32 %v5963, 1.442695
        %v5968 = vpow.pop %v5967
        %v5969 = vmul.f32 %v5964, 1.442695
        %v5970 = vpow.pop %v5969
        %v5971 = vmul.f32 %v5965, 1.442695
        %v5972 = vpow.pop %v5971
        %v5973 = vmul.f32 %v5966, 1.442695
        %v5974 = vpow.pop %v5973
        %v5979 = vrot.slane %v5968, 7
        %v5980 = vrot.slane %v5972, 7
        %v5981 = vsel %vm1806, %v5979, %v5980
        %v5982 = vrot.slane %v5970, 7
        %v5983 = vrot.slane %v5974, 7
        %v5984 = vsel %vm1806, %v5982, %v5983
        %v5987 = vsel %vm2862, %v5981, 0.0
        %v5988 = vrot.slane %v5987, 4
        %v5989 = vadd.f32 %v5987, %v5988
        %v5990 = vrot.slane %v5989, 2
        %v5991 = vadd.f32 %v5989, %v5990
        %v5992 = vrot.slane %v5991, 1
        %v5993 = vadd.f32 %v5991, %v5992
        %v5994 = vsel %vm2862, %v5984, 0.0
        %v5995 = vrot.slane %v5994, 4
        %v5996 = vadd.f32 %v5994, %v5995
        %v5997 = vrot.slane %v5996, 2
        %v5998 = vadd.f32 %v5996, %v5997
        %v5999 = vrot.slane %v5998, 1
        %v6000 = vadd.f32 %v5998, %v5999
        %v6001 = vrcp.pop %v5993
        %v6002 = vrcp.pop %v6000
        %v6003 = vmul.f32 %v5972, %v6001
        %v6004 = vmul.f32 %v5974, %v6002
        %v6005 = vsel %vm5900, %v5852, -inf
        %v6006 = vrot.slane %v6005, 4
        %v6007 = vmax.f32 %v6005, %v6006
        %v6008 = vrot.slane %v6007, 2
        %v6009 = vmax.f32 %v6007, %v6008
        %v6010 = vrot.slane %v6009, 1
        %v6011 = vmax.f32 %v6009, %v6010
        %v6012 = vsel %vm5900, %v5854, -inf
        %v6013 = vrot.slane %v6012, 4
        %v6014 = vmax.f32 %v6012, %v6013
        %v6015 = vrot.slane %v6014, 2
        %v6016 = vmax.f32 %v6014, %v6015
        %v6017 = vrot.slane %v6016, 1
        %v6018 = vmax.f32 %v6016, %v6017
        %v6019 = vsub.f32 %v5852, %v6011
        %v6020 = vsub.f32 %v5854, %v6018
        %v6021 = vmul.f32 %v6019, 1.442695
        %v6022 = vpow.pop %v6021
        %v6023 = vmul.f32 %v6020, 1.442695
        %v6024 = vpow.pop %v6023
        %v6027 = vrot.slane %v6022, 3
        %v6028 = vrot.slane %v6024, 3
        %v6031 = vsel %vm2862, %v6027, 0.0
        %v6032 = vrot.slane %v6031, 4
        %v6033 = vadd.f32 %v6031, %v6032
        %v6034 = vrot.slane %v6033, 2
        %v6035 = vadd.f32 %v6033, %v6034
        %v6036 = vrot.slane %v6035, 1
        %v6037 = vadd.f32 %v6035, %v6036
        %v6038 = vsel %vm2862, %v6028, 0.0
        %v6039 = vrot.slane %v6038, 4
        %v6040 = vadd.f32 %v6038, %v6039
        %v6041 = vrot.slane %v6040, 2
        %v6042 = vadd.f32 %v6040, %v6041
        %v6043 = vrot.slane %v6042, 1
        %v6044 = vadd.f32 %v6042, %v6043
        %v6045 = vrcp.pop %v6037
        %v6046 = vrcp.pop %v6044
        %v6047 = vmul.f32 %v6022, %v6045
        %v6048 = vmul.f32 %v6024, %v6046
        %v6049 = vsel %vm1770, %v5852, -inf
        %v6050 = vsel %vm1815, %v5858, -inf
        %v6051 = vmax.f32 %v6049, %v6050
        %v6052 = vrot.slane %v6051, 4
        %v6053 = vmax.f32 %v6051, %v6052
        %v6054 = vrot.slane %v6053, 2
        %v6055 = vmax.f32 %v6053, %v6054
        %v6056 = vrot.slane %v6055, 1
        %v6057 = vmax.f32 %v6055, %v6056
        %v6058 = vsel %vm1770, %v5854, -inf
        %v6059 = vsel %vm1815, %v5860, -inf
        %v6060 = vmax.f32 %v6058, %v6059
        %v6061 = vrot.slane %v6060, 4
        %v6062 = vmax.f32 %v6060, %v6061
        %v6063 = vrot.slane %v6062, 2
        %v6064 = vmax.f32 %v6062, %v6063
        %v6065 = vrot.slane %v6064, 1
        %v6066 = vmax.f32 %v6064, %v6065
        %v6067 = vsub.f32 %v5852, %v6057
        %v6068 = vsub.f32 %v5854, %v6066
        %v6069 = vsub.f32 %v5858, %v6057
        %v6070 = vsub.f32 %v5860, %v6066
        %v6071 = vmul.f32 %v6067, 1.442695
        %v6072 = vpow.pop %v6071
        %v6073 = vmul.f32 %v6068, 1.442695
        %v6074 = vpow.pop %v6073
        %v6075 = vmul.f32 %v6069, 1.442695
        %v6076 = vpow.pop %v6075
        %v6077 = vmul.f32 %v6070, 1.442695
        %v6078 = vpow.pop %v6077
        %v6083 = vrot.slane %v6072, 7
        %v6084 = vrot.slane %v6076, 7
        %v6085 = vsel %vm1806, %v6083, %v6084
        %v6086 = vrot.slane %v6074, 7
        %v6087 = vrot.slane %v6078, 7
        %v6088 = vsel %vm1806, %v6086, %v6087
        %v6091 = vsel %vm2862, %v6085, 0.0
        %v6092 = vrot.slane %v6091, 4
        %v6093 = vadd.f32 %v6091, %v6092
        %v6094 = vrot.slane %v6093, 2
        %v6095 = vadd.f32 %v6093, %v6094
        %v6096 = vrot.slane %v6095, 1
        %v6097 = vadd.f32 %v6095, %v6096
        %v6098 = vsel %vm2862, %v6088, 0.0
        %v6099 = vrot.slane %v6098, 4
        %v6100 = vadd.f32 %v6098, %v6099
        %v6101 = vrot.slane %v6100, 2
        %v6102 = vadd.f32 %v6100, %v6101
        %v6103 = vrot.slane %v6102, 1
        %v6104 = vadd.f32 %v6102, %v6103
        %v6105 = vrcp.pop %v6097
        %v6106 = vrcp.pop %v6104
        %v6107 = vmul.f32 %v6076, %v6105
        %v6108 = vmul.f32 %v6078, %v6106
        %vm6109 = vcmask 1045507
        %v6110 = vsel %vm6109, %v5858, -inf
        %v6111 = vrot.slane %v6110, 4
        %v6112 = vmax.f32 %v6110, %v6111
        %v6113 = vrot.slane %v6112, 2
        %v6114 = vmax.f32 %v6112, %v6113
        %v6115 = vrot.slane %v6114, 1
        %v6116 = vmax.f32 %v6114, %v6115
        %v6117 = vsel %vm6109, %v5860, -inf
        %v6118 = vrot.slane %v6117, 4
        %v6119 = vmax.f32 %v6117, %v6118
        %v6120 = vrot.slane %v6119, 2
        %v6121 = vmax.f32 %v6119, %v6120
        %v6122 = vrot.slane %v6121, 1
        %v6123 = vmax.f32 %v6121, %v6122
        %v6124 = vsub.f32 %v5858, %v6116
        %v6125 = vsub.f32 %v5860, %v6123
        %v6126 = vmul.f32 %v6124, 1.442695
        %v6127 = vpow.pop %v6126
        %v6128 = vmul.f32 %v6125, 1.442695
        %v6129 = vpow.pop %v6128
        %v6132 = vrot.slane %v6127, 3
        %v6133 = vrot.slane %v6129, 3
        %v6136 = vsel %vm1815, %v6132, 0.0
        %v6137 = vrot.slane %v6136, 4
        %v6138 = vadd.f32 %v6136, %v6137
        %v6139 = vrot.slane %v6138, 2
        %v6140 = vadd.f32 %v6138, %v6139
        %v6141 = vrot.slane %v6140, 1
        %v6142 = vadd.f32 %v6140, %v6141
        %v6143 = vsel %vm1815, %v6133, 0.0
        %v6144 = vrot.slane %v6143, 4
        %v6145 = vadd.f32 %v6143, %v6144
        %v6146 = vrot.slane %v6145, 2
        %v6147 = vadd.f32 %v6145, %v6146
        %v6148 = vrot.slane %v6147, 1
        %v6149 = vadd.f32 %v6147, %v6148
        %v6150 = vrcp.pop %v6142
        %v6151 = vrcp.pop %v6149
        %v6152 = vmul.f32 %v6127, %v6150
        %v6153 = vmul.f32 %v6129, %v6151
        %v6154 = vlaneseq
        %v6155 = vshrl.u32 %v6154, 7
        %v6156 = vsub.s32 2, %v6155
        %v6157 = vrot.slane %v5898, %v6156
        %v6158 = vlaneseq
        %v6159 = vshrl.u32 %v6158, 7
        %v6160 = vsub.s32 2, %v6159
        %v6161 = vrot.slane %v5899, %v6160
        %v6162 = vmul.f32 %v5747, %v6157
        %v6163 = vmul.f32 %v5748, %v6161
        %v6164 = vlaneseq
        %v6165 = vshrl.u32 %v6164, 7
        %v6166 = vsub.s32 5, %v6165
        %v6167 = vrot.slane %v5943, %v6166
        %v6168 = vlaneseq
        %v6169 = vshrl.u32 %v6168, 7
        %v6170 = vsub.s32 5, %v6169
        %v6171 = vrot.slane %v5944, %v6170
        %v6172 = vmul.f32 %v5747, %v6167
        %v6173 = vmul.f32 %v5748, %v6171
        %v6174 = vlaneseq
        %v6175 = vshrl.u32 %v6174, 7
        %v6176 = vsub.s32 6, %v6175
        %v6177 = vrot.slane %v5943, %v6176
        %v6178 = vlaneseq
        %v6179 = vshrl.u32 %v6178, 7
        %v6180 = vsub.s32 6, %v6179
        %v6181 = vrot.slane %v5944, %v6180
        %v6182 = vmul.f32 %v5747, %v6177
        %v6183 = vmul.f32 %v5748, %v6181
        %v6184 = vlaneseq
        %v6185 = vshrl.u32 %v6184, 7
        %v6186 = vsub.s32 1, %v6185
        %v6187 = vrot.slane %v6003, %v6186
        %v6188 = vlaneseq
        %v6189 = vshrl.u32 %v6188, 7
        %v6190 = vsub.s32 1, %v6189
        %v6191 = vrot.slane %v6004, %v6190
        %v6192 = vmul.f32 %v5747, %v6187
        %v6193 = vmul.f32 %v5748, %v6191
        %v6194 = vlaneseq
        %v6195 = vshrl.u32 %v6194, 7
        %v6196 = vsub.s32 2, %v6195
        %v6197 = vrot.slane %v6003, %v6196
        %v6198 = vlaneseq
        %v6199 = vshrl.u32 %v6198, 7
        %v6200 = vsub.s32 2, %v6199
        %v6201 = vrot.slane %v6004, %v6200
        %v6202 = vmul.f32 %v5747, %v6197
        %v6203 = vmul.f32 %v5748, %v6201
        %v6204 = vlaneseq
        %v6205 = vshrl.u32 %v6204, 7
        %v6206 = vsub.s32 5, %v6205
        %v6207 = vrot.slane %v6047, %v6206
        %v6208 = vlaneseq
        %v6209 = vshrl.u32 %v6208, 7
        %v6210 = vsub.s32 5, %v6209
        %v6211 = vrot.slane %v6048, %v6210
        %v6212 = vmul.f32 %v5747, %v6207
        %v6213 = vmul.f32 %v5748, %v6211
        %v6214 = vlaneseq
        %v6215 = vshrl.u32 %v6214, 7
        %v6216 = vsub.s32 6, %v6215
        %v6217 = vrot.slane %v6047, %v6216
        %v6218 = vlaneseq
        %v6219 = vshrl.u32 %v6218, 7
        %v6220 = vsub.s32 6, %v6219
        %v6221 = vrot.slane %v6048, %v6220
        %v6222 = vmul.f32 %v5747, %v6217
        %v6223 = vmul.f32 %v5748, %v6221
        %v6224 = vlaneseq
        %v6225 = vshrl.u32 %v6224, 7
        %v6226 = vsub.s32 1, %v6225
        %v6227 = vrot.slane %v6107, %v6226
        %v6228 = vlaneseq
        %v6229 = vshrl.u32 %v6228, 7
        %v6230 = vsub.s32 1, %v6229
        %v6231 = vrot.slane %v6108, %v6230
        %v6232 = vmul.f32 %v5747, %v6227
        %v6233 = vmul.f32 %v5748, %v6231
        %v6234 = vlaneseq
        %v6235 = vshrl.u32 %v6234, 7
        %v6236 = vsub.s32 2, %v6235
        %v6237 = vrot.slane %v6107, %v6236
        %v6238 = vlaneseq
        %v6239 = vshrl.u32 %v6238, 7
        %v6240 = vsub.s32 2, %v6239
        %v6241 = vrot.slane %v6108, %v6240
        %v6242 = vmul.f32 %v5747, %v6237
        %v6243 = vmul.f32 %v5748, %v6241
        %v6244 = vlaneseq
        %v6245 = vshrl.u32 %v6244, 7
        %v6246 = vsub.s32 5, %v6245
        %v6247 = vrot.slane %v6152, %v6246
        %v6248 = vlaneseq
        %v6249 = vshrl.u32 %v6248, 7
        %v6250 = vsub.s32 5, %v6249
        %v6251 = vrot.slane %v6153, %v6250
        %v6252 = vmul.f32 %v5747, %v6247
        %v6253 = vmul.f32 %v5748, %v6251
        %v6254 = vld [vmem:[%s63] sm:$0xff]
        %v6255 = vld [vmem:[%s63 + $0x8] sm:$0xff]
        %v6256 = vld [vmem:[%s63 + $0x10] sm:$0xff]
        %v6257 = vld [vmem:[%s63 + $0x18] sm:$0xff]
        %v6258 = vld [vmem:[%s63 + $0x20] sm:$0xff]
        %v6259 = vld [vmem:[%s63 + $0x28] sm:$0xff]
        %v6260 = vld [vmem:[%s63 + $0x30] sm:$0xff]
        %v6261 = vld [vmem:[%s63 + $0x38] sm:$0xff]
        %v6262 = vld [vmem:[%s63 + $0x40] sm:$0xff]
        %v6263 = vld [vmem:[%s63 + $0x48] sm:$0xff]
        %v6264 = vld [vmem:[%s63 + $0x50] sm:$0xff]
        %v6265 = vld [vmem:[%s63 + $0x58] sm:$0xff]
        %v6266 = vld [vmem:[%s63 + $0x60] sm:$0xff]
        %v6267 = vld [vmem:[%s63 + $0x68] sm:$0xff]
        %v6268 = vld [vmem:[%s63 + $0x70] sm:$0xff]
        %v6269 = vld [vmem:[%s63 + $0x78] sm:$0xff]
        %v6270 = vld [vmem:[%s63 + $0x80] sm:$0xff]
        %v6271 = vld [vmem:[%s63 + $0x88] sm:$0xff]
        %v6272 = vld [vmem:[%s63 + $0x90] sm:$0xff]
        %v6273 = vld [vmem:[%s63 + $0x98] sm:$0xff]
        %v6274 = vld [vmem:[%s65] sm:$0xff]
        %v6275 = vld [vmem:[%s65 + $0x8] sm:$0xff]
        %v6276 = vld [vmem:[%s65 + $0x10] sm:$0xff]
        %v6277 = vld [vmem:[%s65 + $0x18] sm:$0xff]
        %v6278 = vld [vmem:[%s65 + $0x20] sm:$0xff]
        %v6279 = vld [vmem:[%s65 + $0x28] sm:$0xff]
        %v6280 = vld [vmem:[%s65 + $0x30] sm:$0xff]
        %v6281 = vld [vmem:[%s65 + $0x38] sm:$0xff]
        %v6282 = vld [vmem:[%s65 + $0x40] sm:$0xff]
        %v6283 = vld [vmem:[%s65 + $0x48] sm:$0xff]
        %v6284 = vld [vmem:[%s65 + $0x50] sm:$0xff]
        %v6285 = vld [vmem:[%s65 + $0x58] sm:$0xff]
        %v6286 = vld [vmem:[%s65 + $0x60] sm:$0xff]
        %v6287 = vld [vmem:[%s65 + $0x68] sm:$0xff]
        %v6288 = vld [vmem:[%s65 + $0x70] sm:$0xff]
        %v6289 = vld [vmem:[%s65 + $0x78] sm:$0xff]
        %v6290 = vld [vmem:[%s65 + $0x80] sm:$0xff]
        %v6291 = vld [vmem:[%s65 + $0x88] sm:$0xff]
        %v6292 = vld [vmem:[%s65 + $0x90] sm:$0xff]
        %v6293 = vld [vmem:[%s65 + $0x98] sm:$0xff]
        %v6295 = vsel %vm3649, %v6274, 0
        %v6298 = vsel %vm3649, %v6275, 0
        %v6301 = vsel %vm3649, %v6276, 0
        %v6304 = vsel %vm3649, %v6277, 0
        %v6307 = vsel %vm3649, %v6278, 0
        %v6310 = vsel %vm3649, %v6279, 0
        %v6313 = vsel %vm3649, %v6280, 0
        %v6316 = vsel %vm3649, %v6281, 0
        %v6319 = vsel %vm3649, %v6282, 0
        %v6322 = vsel %vm3649, %v6283, 0
        %v6325 = vsel %vm3649, %v6284, 0
        %v6328 = vsel %vm3649, %v6285, 0
        %v6331 = vsel %vm3649, %v6286, 0
        %v6334 = vsel %vm3649, %v6287, 0
        %v6337 = vsel %vm3649, %v6288, 0
        %v6340 = vsel %vm3649, %v6289, 0
        %v6343 = vsel %vm3649, %v6290, 0
        %v6346 = vsel %vm3649, %v6291, 0
        %v6349 = vsel %vm3649, %v6292, 0
        %v6352 = vsel %vm3649, %v6293, 0
        %6354 = vmatprep.subr.mxu0 %v1616
        %6355 = vmatpush1.msra.mxu0 %v1615
        %6356 = vmatprep.subr.mxu0 %v1618
        %6357 = vmatpush1.msra.mxu0 %v1617
        %6358 = vmatprep.subr.mxu0 %v1620
        %6359 = vmatpush1.msra.mxu0 %v1619
        %6360 = vmatprep.subr.mxu0 %v1622
        %6361 = vmatpush1.msra.mxu0 %v1621
        %6362 = vmatprep.subr.mxu0 %v1624
        %6363 = vmatpush1.msra.mxu0 %v1623
        %6364 = vmatprep.subr.mxu0 %v1626
        %6365 = vmatpush1.msra.mxu0 %v1625
        %6366 = vmatprep.subr.mxu0 0.0
        %6367 = vmatpush1.msra.mxu0 0.0
        %6368 = vmatprep.subr.mxu0 0.0
        %6369 = vmatpush1.msra.mxu0 0.0
        %6370 = vmatprep.subr.mxu0 0.0
        %6371 = vmatpush1.msra.mxu0 0.0
        %6372 = vmatprep.subr.mxu0 0.0
        %6373 = vmatpush1.msra.mxu0 0.0
        %6374 = vmatprep.subr.mxu0 0.0
        %6375 = vmatpush1.msra.mxu0 0.0
        %6376 = vmatprep.subr.mxu0 0.0
        %6377 = vmatpush1.msra.mxu0 0.0
        %6378 = vmatprep.subr.mxu0 0.0
        %6379 = vmatpush1.msra.mxu0 0.0
        %6380 = vmatprep.subr.mxu0 0.0
        %6381 = vmatpush1.msra.mxu0 0.0
        %6382 = vmatprep.subr.mxu0 0.0
        %6383 = vmatpush1.msra.mxu0 0.0
        %6384 = vmatprep.subr.mxu0 0.0
        %6385 = vmatpush1.msra.mxu0 0.0
        %6386 = vmatprep.subr.mxu0 0.0
        %6387 = vmatpush1.msra.mxu0 0.0
        %6388 = vmatprep.subr.mxu0 0.0
        %6389 = vmatpush1.msra.mxu0 0.0
        %6390 = vmatprep.subr.mxu0 0.0
        %6391 = vmatpush1.msra.mxu0 0.0
        %6392 = vmatprep.subr.mxu0 0.0
        %6393 = vmatpush1.msra.mxu0 0.0
        %6394 = vmatprep.subr.mxu0 0.0
        %6395 = vmatpush1.msra.mxu0 0.0
        %6396 = vmatprep.subr.mxu0 0.0
        %6397 = vmatpush1.msra.mxu0 0.0
        %6398 = vmatprep.subr.mxu0 0.0
        %6399 = vmatpush1.msra.mxu0 0.0
        %6400 = vmatprep.subr.mxu0 0.0
        %6401 = vmatpush1.msra.mxu0 0.0
        %6402 = vmatprep.subr.mxu0 0.0
        %6403 = vmatpush1.msra.mxu0 0.0
        %6404 = vmatprep.subr.mxu0 0.0
        %6405 = vmatpush1.msra.mxu0 0.0
        %6406 = vmatprep.subr.mxu0 0.0
        %6407 = vmatpush1.msra.mxu0 0.0
        %6408 = vmatprep.subr.mxu0 0.0
        %6409 = vmatpush1.msra.mxu0 0.0
        %6410 = vmatprep.subr.mxu0 0.0
        %6411 = vmatpush1.msra.mxu0 0.0
        %6412 = vmatprep.subr.mxu0 0.0
        %6413 = vmatpush1.msra.mxu0 0.0
        %6414 = vmatprep.subr.mxu0 0.0
        %6415 = vmatpush1.msra.mxu0 0.0
        %6416 = vmatprep.subr.mxu0 0.0
        %6417 = vmatpush1.msra.mxu0 0.0
        %6418 = vmatprep.mubr.f32.mxu0 0.0
        %6419 = vmatmul.mubr.f32.gmra.mrb[0].mxu0 %v6295
        %v6420 = vpop.f32.mrb[0].mxu0
        %v6421 = vadd.f32 0.0, %v6420
        %v6422 = vpop.f32.mrb[0].mxu0
        %v6423 = vadd.f32 0.0, %v6422
        %6424 = vmatprep.mubr.f32.mxu0 0.0
        %6425 = vmatmul.mubr.f32.gmra.mrb[0].mxu0 %v6298
        %v6426 = vpop.f32.mrb[0].mxu0
        %v6427 = vadd.f32 0.0, %v6426
        %v6428 = vpop.f32.mrb[0].mxu0
        %v6429 = vadd.f32 0.0, %v6428
        %6430 = vmatprep.mubr.f32.mxu0 0.0
        %6431 = vmatmul.mubr.f32.gmra.mrb[0].mxu0 %v6301
        %v6432 = vpop.f32.mrb[0].mxu0
        %v6433 = vadd.f32 0.0, %v6432
        %v6434 = vpop.f32.mrb[0].mxu0
        %v6435 = vadd.f32 0.0, %v6434
        %6436 = vmatprep.mubr.f32.mxu0 0.0
        %6437 = vmatmul.mubr.f32.gmra.mrb[0].mxu0 %v6304
        %v6438 = vpop.f32.mrb[0].mxu0
        %v6439 = vadd.f32 0.0, %v6438
        %v6440 = vpop.f32.mrb[0].mxu0
        %v6441 = vadd.f32 0.0, %v6440
        %6442 = vmatprep.mubr.f32.mxu0 0.0
        %6443 = vmatmul.mubr.f32.gmra.mrb[0].mxu0 %v6307
        %v6444 = vpop.f32.mrb[0].mxu0
        %v6445 = vadd.f32 0.0, %v6444
        %v6446 = vpop.f32.mrb[0].mxu0
        %v6447 = vadd.f32 0.0, %v6446
        %6448 = vmatprep.mubr.f32.mxu0 0.0
        %6449 = vmatmul.mubr.f32.gmra.mrb[0].mxu0 %v6310
        %v6450 = vpop.f32.mrb[0].mxu0
        %v6451 = vadd.f32 0.0, %v6450
        %v6452 = vpop.f32.mrb[0].mxu0
        %v6453 = vadd.f32 0.0, %v6452
        %6454 = vmatprep.mubr.f32.mxu0 0.0
        %6455 = vmatmul.mubr.f32.gmra.mrb[0].mxu0 %v6313
        %v6456 = vpop.f32.mrb[0].mxu0
        %v6457 = vadd.f32 0.0, %v6456
        %v6458 = vpop.f32.mrb[0].mxu0
        %v6459 = vadd.f32 0.0, %v6458
        %6460 = vmatprep.mubr.f32.mxu0 0.0
        %6461 = vmatmul.mubr.f32.gmra.mrb[0].mxu0 %v6316
        %v6462 = vpop.f32.mrb[0].mxu0
        %v6463 = vadd.f32 0.0, %v6462
        %v6464 = vpop.f32.mrb[0].mxu0
        %v6465 = vadd.f32 0.0, %v6464
        %6466 = vmatprep.mubr.f32.mxu0 0.0
        %6467 = vmatmul.mubr.f32.gmra.mrb[0].mxu0 %v6319
        %v6468 = vpop.f32.mrb[0].mxu0
        %v6469 = vadd.f32 0.0, %v6468
        %v6470 = vpop.f32.mrb[0].mxu0
        %v6471 = vadd.f32 0.0, %v6470
        %6472 = vmatprep.mubr.f32.mxu0 0.0
        %6473 = vmatmul.mubr.f32.gmra.mrb[0].mxu0 %v6322
        %v6474 = vpop.f32.mrb[0].mxu0
        %v6475 = vadd.f32 0.0, %v6474
        %v6476 = vpop.f32.mrb[0].mxu0
        %v6477 = vadd.f32 0.0, %v6476
        %6478 = vmatprep.mubr.f32.mxu0 0.0
        %6479 = vmatmul.mubr.f32.gmra.mrb[0].mxu0 %v6325
        %v6480 = vpop.f32.mrb[0].mxu0
        %v6481 = vadd.f32 0.0, %v6480
        %v6482 = vpop.f32.mrb[0].mxu0
        %v6483 = vadd.f32 0.0, %v6482
        %6484 = vmatprep.mubr.f32.mxu0 0.0
        %6485 = vmatmul.mubr.f32.gmra.mrb[0].mxu0 %v6328
        %v6486 = vpop.f32.mrb[0].mxu0
        %v6487 = vadd.f32 0.0, %v6486
        %v6488 = vpop.f32.mrb[0].mxu0
        %v6489 = vadd.f32 0.0, %v6488
        %6490 = vmatprep.mubr.f32.mxu0 0.0
        %6491 = vmatmul.mubr.f32.gmra.mrb[0].mxu0 %v6331
        %v6492 = vpop.f32.mrb[0].mxu0
        %v6493 = vadd.f32 0.0, %v6492
        %v6494 = vpop.f32.mrb[0].mxu0
        %v6495 = vadd.f32 0.0, %v6494
        %6496 = vmatprep.mubr.f32.mxu0 0.0
        %6497 = vmatmul.mubr.f32.gmra.mrb[0].mxu0 %v6334
        %v6498 = vpop.f32.mrb[0].mxu0
        %v6499 = vadd.f32 0.0, %v6498
        %v6500 = vpop.f32.mrb[0].mxu0
        %v6501 = vadd.f32 0.0, %v6500
        %6502 = vmatprep.mubr.f32.mxu0 0.0
        %6503 = vmatmul.mubr.f32.gmra.mrb[0].mxu0 %v6337
        %v6504 = vpop.f32.mrb[0].mxu0
        %v6505 = vadd.f32 0.0, %v6504
        %v6506 = vpop.f32.mrb[0].mxu0
        %v6507 = vadd.f32 0.0, %v6506
        %6508 = vmatprep.mubr.f32.mxu0 0.0
        %6509 = vmatmul.mubr.f32.gmra.mrb[0].mxu0 %v6340
        %v6510 = vpop.f32.mrb[0].mxu0
        %v6511 = vadd.f32 0.0, %v6510
        %v6512 = vpop.f32.mrb[0].mxu0
        %v6513 = vadd.f32 0.0, %v6512
        %6514 = vmatprep.mubr.f32.mxu0 0.0
        %6515 = vmatmul.mubr.f32.gmra.mrb[0].mxu0 %v6343
        %v6516 = vpop.f32.mrb[0].mxu0
        %v6517 = vadd.f32 0.0, %v6516
        %v6518 = vpop.f32.mrb[0].mxu0
        %v6519 = vadd.f32 0.0, %v6518
        %6520 = vmatprep.mubr.f32.mxu0 0.0
        %6521 = vmatmul.mubr.f32.gmra.mrb[0].mxu0 %v6346
        %v6522 = vpop.f32.mrb[0].mxu0
        %v6523 = vadd.f32 0.0, %v6522
        %v6524 = vpop.f32.mrb[0].mxu0
        %v6525 = vadd.f32 0.0, %v6524
        %6526 = vmatprep.mubr.f32.mxu0 0.0
        %6527 = vmatmul.mubr.f32.gmra.mrb[0].mxu0 %v6349
        %v6528 = vpop.f32.mrb[0].mxu0
        %v6529 = vadd.f32 0.0, %v6528
        %v6530 = vpop.f32.mrb[0].mxu0
        %v6531 = vadd.f32 0.0, %v6530
        %6532 = vmatprep.mubr.f32.mxu0 0.0
        %6533 = vmatmul.mubr.f32.gmra.mrb[0].mxu0 %v6352
        %v6534 = vpop.f32.mrb[0].mxu0
        %v6535 = vadd.f32 0.0, %v6534
        %v6536 = vpop.f32.mrb[0].mxu0
        %v6537 = vadd.f32 0.0, %v6536
        %6538 = vdwg.mxu0
        %v6540 = vsel %vm1647, %v6254, 0
        %v6543 = vsel %vm1647, %v6255, 0
        %v6546 = vsel %vm1647, %v6256, 0
        %v6549 = vsel %vm1647, %v6257, 0
        %v6552 = vsel %vm1647, %v6258, 0
        %v6555 = vsel %vm1647, %v6259, 0
        %v6558 = vsel %vm1647, %v6260, 0
        %v6561 = vsel %vm1647, %v6261, 0
        %v6564 = vsel %vm1647, %v6262, 0
        %v6567 = vsel %vm1647, %v6263, 0
        %v6570 = vsel %vm1647, %v6264, 0
        %v6573 = vsel %vm1647, %v6265, 0
        %v6576 = vsel %vm1647, %v6266, 0
        %v6579 = vsel %vm1647, %v6267, 0
        %v6582 = vsel %vm1647, %v6268, 0
        %v6585 = vsel %vm1647, %v6269, 0
        %v6588 = vsel %vm1647, %v6270, 0
        %v6591 = vsel %vm1647, %v6271, 0
        %v6594 = vsel %vm1647, %v6272, 0
        %v6597 = vsel %vm1647, %v6273, 0
        %6599 = vmatprep.subr.mxu0 %v6163
        %6600 = vmatpush1.msra.mxu0 %v6162
        %6601 = vmatprep.subr.mxu0 %v6173
        %6602 = vmatpush1.msra.mxu0 %v6172
        %6603 = vmatprep.subr.mxu0 %v6183
        %6604 = vmatpush1.msra.mxu0 %v6182
        %6605 = vmatprep.subr.mxu0 %v6193
        %6606 = vmatpush1.msra.mxu0 %v6192
        %6607 = vmatprep.subr.mxu0 %v6203
        %6608 = vmatpush1.msra.mxu0 %v6202
        %6609 = vmatprep.subr.mxu0 %v6213
        %6610 = vmatpush1.msra.mxu0 %v6212
        %6611 = vmatprep.subr.mxu0 %v6223
        %6612 = vmatpush1.msra.mxu0 %v6222
        %6613 = vmatprep.subr.mxu0 %v6233
        %6614 = vmatpush1.msra.mxu0 %v6232
        %6615 = vmatprep.subr.mxu0 %v6243
        %6616 = vmatpush1.msra.mxu0 %v6242
        %6617 = vmatprep.subr.mxu0 %v6253
        %6618 = vmatpush1.msra.mxu0 %v6252
        %6619 = vmatprep.subr.mxu0 0.0
        %6620 = vmatpush1.msra.mxu0 0.0
        %6621 = vmatprep.subr.mxu0 0.0
        %6622 = vmatpush1.msra.mxu0 0.0
        %6623 = vmatprep.subr.mxu0 0.0
        %6624 = vmatpush1.msra.mxu0 0.0
        %6625 = vmatprep.subr.mxu0 0.0
        %6626 = vmatpush1.msra.mxu0 0.0
        %6627 = vmatprep.subr.mxu0 0.0
        %6628 = vmatpush1.msra.mxu0 0.0
        %6629 = vmatprep.subr.mxu0 0.0
        %6630 = vmatpush1.msra.mxu0 0.0
        %6631 = vmatprep.subr.mxu0 0.0
        %6632 = vmatpush1.msra.mxu0 0.0
        %6633 = vmatprep.subr.mxu0 0.0
        %6634 = vmatpush1.msra.mxu0 0.0
        %6635 = vmatprep.subr.mxu0 0.0
        %6636 = vmatpush1.msra.mxu0 0.0
        %6637 = vmatprep.subr.mxu0 0.0
        %6638 = vmatpush1.msra.mxu0 0.0
        %6639 = vmatprep.subr.mxu0 0.0
        %6640 = vmatpush1.msra.mxu0 0.0
        %6641 = vmatprep.subr.mxu0 0.0
        %6642 = vmatpush1.msra.mxu0 0.0
        %6643 = vmatprep.subr.mxu0 0.0
        %6644 = vmatpush1.msra.mxu0 0.0
        %6645 = vmatprep.subr.mxu0 0.0
        %6646 = vmatpush1.msra.mxu0 0.0
        %6647 = vmatprep.subr.mxu0 0.0
        %6648 = vmatpush1.msra.mxu0 0.0
        %6649 = vmatprep.subr.mxu0 0.0
        %6650 = vmatpush1.msra.mxu0 0.0
        %6651 = vmatprep.subr.mxu0 0.0
        %6652 = vmatpush1.msra.mxu0 0.0
        %6653 = vmatprep.subr.mxu0 0.0
        %6654 = vmatpush1.msra.mxu0 0.0
        %6655 = vmatprep.subr.mxu0 0.0
        %6656 = vmatpush1.msra.mxu0 0.0
        %6657 = vmatprep.subr.mxu0 0.0
        %6658 = vmatpush1.msra.mxu0 0.0
        %6659 = vmatprep.subr.mxu0 0.0
        %6660 = vmatpush1.msra.mxu0 0.0
        %6661 = vmatprep.subr.mxu0 0.0
        %6662 = vmatpush1.msra.mxu0 0.0
        %6663 = vmatprep.mubr.f32.mxu0 0.0
        %6664 = vmatmul.mubr.f32.gmra.mrb[0].mxu0 %v6540
        %v6665 = vpop.f32.mrb[0].mxu0
        %v6666 = vadd.f32 %v6421, %v6665
        %v6667 = vpop.f32.mrb[0].mxu0
        %v6668 = vadd.f32 %v6423, %v6667
        %6669 = vmatprep.mubr.f32.mxu0 0.0
        %6670 = vmatmul.mubr.f32.gmra.mrb[0].mxu0 %v6543
        %v6671 = vpop.f32.mrb[0].mxu0
        %v6672 = vadd.f32 %v6427, %v6671
        %v6673 = vpop.f32.mrb[0].mxu0
        %v6674 = vadd.f32 %v6429, %v6673
        %6675 = vmatprep.mubr.f32.mxu0 0.0
        %6676 = vmatmul.mubr.f32.gmra.mrb[0].mxu0 %v6546
        %v6677 = vpop.f32.mrb[0].mxu0
        %v6678 = vadd.f32 %v6433, %v6677
        %v6679 = vpop.f32.mrb[0].mxu0
        %v6680 = vadd.f32 %v6435, %v6679
        %6681 = vmatprep.mubr.f32.mxu0 0.0
        %6682 = vmatmul.mubr.f32.gmra.mrb[0].mxu0 %v6549
        %v6683 = vpop.f32.mrb[0].mxu0
        %v6684 = vadd.f32 %v6439, %v6683
        %v6685 = vpop.f32.mrb[0].mxu0
        %v6686 = vadd.f32 %v6441, %v6685
        %6687 = vmatprep.mubr.f32.mxu0 0.0
        %6688 = vmatmul.mubr.f32.gmra.mrb[0].mxu0 %v6552
        %v6689 = vpop.f32.mrb[0].mxu0
        %v6690 = vadd.f32 %v6445, %v6689
        %v6691 = vpop.f32.mrb[0].mxu0
        %v6692 = vadd.f32 %v6447, %v6691
        %6693 = vmatprep.mubr.f32.mxu0 0.0
        %6694 = vmatmul.mubr.f32.gmra.mrb[0].mxu0 %v6555
        %v6695 = vpop.f32.mrb[0].mxu0
        %v6696 = vadd.f32 %v6451, %v6695
        %v6697 = vpop.f32.mrb[0].mxu0
        %v6698 = vadd.f32 %v6453, %v6697
        %6699 = vmatprep.mubr.f32.mxu0 0.0
        %6700 = vmatmul.mubr.f32.gmra.mrb[0].mxu0 %v6558
        %v6701 = vpop.f32.mrb[0].mxu0
        %v6702 = vadd.f32 %v6457, %v6701
        %v6703 = vpop.f32.mrb[0].mxu0
        %v6704 = vadd.f32 %v6459, %v6703
        %6705 = vmatprep.mubr.f32.mxu0 0.0
        %6706 = vmatmul.mubr.f32.gmra.mrb[0].mxu0 %v6561
        %v6707 = vpop.f32.mrb[0].mxu0
        %v6708 = vadd.f32 %v6463, %v6707
        %v6709 = vpop.f32.mrb[0].mxu0
        %v6710 = vadd.f32 %v6465, %v6709
        %6711 = vmatprep.mubr.f32.mxu0 0.0
        %6712 = vmatmul.mubr.f32.gmra.mrb[0].mxu0 %v6564
        %v6713 = vpop.f32.mrb[0].mxu0
        %v6714 = vadd.f32 %v6469, %v6713
        %v6715 = vpop.f32.mrb[0].mxu0
        %v6716 = vadd.f32 %v6471, %v6715
        %6717 = vmatprep.mubr.f32.mxu0 0.0
        %6718 = vmatmul.mubr.f32.gmra.mrb[0].mxu0 %v6567
        %v6719 = vpop.f32.mrb[0].mxu0
        %v6720 = vadd.f32 %v6475, %v6719
        %v6721 = vpop.f32.mrb[0].mxu0
        %v6722 = vadd.f32 %v6477, %v6721
        %6723 = vmatprep.mubr.f32.mxu0 0.0
        %6724 = vmatmul.mubr.f32.gmra.mrb[0].mxu0 %v6570
        %v6725 = vpop.f32.mrb[0].mxu0
        %v6726 = vadd.f32 %v6481, %v6725
        %v6727 = vpop.f32.mrb[0].mxu0
        %v6728 = vadd.f32 %v6483, %v6727
        %6729 = vmatprep.mubr.f32.mxu0 0.0
        %6730 = vmatmul.mubr.f32.gmra.mrb[0].mxu0 %v6573
        %v6731 = vpop.f32.mrb[0].mxu0
        %v6732 = vadd.f32 %v6487, %v6731
        %v6733 = vpop.f32.mrb[0].mxu0
        %v6734 = vadd.f32 %v6489, %v6733
        %6735 = vmatprep.mubr.f32.mxu0 0.0
        %6736 = vmatmul.mubr.f32.gmra.mrb[0].mxu0 %v6576
        %v6737 = vpop.f32.mrb[0].mxu0
        %v6738 = vadd.f32 %v6493, %v6737
        %v6739 = vpop.f32.mrb[0].mxu0
        %v6740 = vadd.f32 %v6495, %v6739
        %6741 = vmatprep.mubr.f32.mxu0 0.0
        %6742 = vmatmul.mubr.f32.gmra.mrb[0].mxu0 %v6579
        %v6743 = vpop.f32.mrb[0].mxu0
        %v6744 = vadd.f32 %v6499, %v6743
        %v6745 = vpop.f32.mrb[0].mxu0
        %v6746 = vadd.f32 %v6501, %v6745
        %6747 = vmatprep.mubr.f32.mxu0 0.0
        %6748 = vmatmul.mubr.f32.gmra.mrb[0].mxu0 %v6582
        %v6749 = vpop.f32.mrb[0].mxu0
        %v6750 = vadd.f32 %v6505, %v6749
        %v6751 = vpop.f32.mrb[0].mxu0
        %v6752 = vadd.f32 %v6507, %v6751
        %6753 = vmatprep.mubr.f32.mxu0 0.0
        %6754 = vmatmul.mubr.f32.gmra.mrb[0].mxu0 %v6585
        %v6755 = vpop.f32.mrb[0].mxu0
        %v6756 = vadd.f32 %v6511, %v6755
        %v6757 = vpop.f32.mrb[0].mxu0
        %v6758 = vadd.f32 %v6513, %v6757
        %6759 = vmatprep.mubr.f32.mxu0 0.0
        %6760 = vmatmul.mubr.f32.gmra.mrb[0].mxu0 %v6588
        %v6761 = vpop.f32.mrb[0].mxu0
        %v6762 = vadd.f32 %v6517, %v6761
        %v6763 = vpop.f32.mrb[0].mxu0
        %v6764 = vadd.f32 %v6519, %v6763
        %6765 = vmatprep.mubr.f32.mxu0 0.0
        %6766 = vmatmul.mubr.f32.gmra.mrb[0].mxu0 %v6591
        %v6767 = vpop.f32.mrb[0].mxu0
        %v6768 = vadd.f32 %v6523, %v6767
        %v6769 = vpop.f32.mrb[0].mxu0
        %v6770 = vadd.f32 %v6525, %v6769
        %6771 = vmatprep.mubr.f32.mxu0 0.0
        %6772 = vmatmul.mubr.f32.gmra.mrb[0].mxu0 %v6594
        %v6773 = vpop.f32.mrb[0].mxu0
        %v6774 = vadd.f32 %v6529, %v6773
        %v6775 = vpop.f32.mrb[0].mxu0
        %v6776 = vadd.f32 %v6531, %v6775
        %6777 = vmatprep.mubr.f32.mxu0 0.0
        %6778 = vmatmul.mubr.f32.gmra.mrb[0].mxu0 %v6597
        %v6779 = vpop.f32.mrb[0].mxu0
        %v6780 = vadd.f32 %v6535, %v6779
        %v6781 = vpop.f32.mrb[0].mxu0
        %v6782 = vadd.f32 %v6537, %v6781
        %6783 = vdwg.mxu0
        %v6784 = vmax.f32 %v6666, 0.0
        %v6785 = vmax.f32 %v6668, 0.0
        %v6786 = vmax.f32 %v6672, 0.0
        %v6787 = vmax.f32 %v6674, 0.0
        %v6788 = vmax.f32 %v6678, 0.0
        %v6789 = vmax.f32 %v6680, 0.0
        %v6790 = vmax.f32 %v6684, 0.0
        %v6791 = vmax.f32 %v6686, 0.0
        %v6792 = vmax.f32 %v6690, 0.0
        %v6793 = vmax.f32 %v6692, 0.0
        %v6794 = vmax.f32 %v6696, 0.0
        %v6795 = vmax.f32 %v6698, 0.0
        %v6796 = vmax.f32 %v6702, 0.0
        %v6797 = vmax.f32 %v6704, 0.0
        %v6798 = vmax.f32 %v6708, 0.0
        %v6799 = vmax.f32 %v6710, 0.0
        %v6800 = vmax.f32 %v6714, 0.0
        %v6801 = vmax.f32 %v6716, 0.0
        %v6802 = vmax.f32 %v6720, 0.0
        %v6803 = vmax.f32 %v6722, 0.0
        %v6804 = vmax.f32 %v6726, 0.0
        %v6805 = vmax.f32 %v6728, 0.0
        %v6806 = vmax.f32 %v6732, 0.0
        %v6807 = vmax.f32 %v6734, 0.0
        %v6808 = vmax.f32 %v6738, 0.0
        %v6809 = vmax.f32 %v6740, 0.0
        %v6810 = vmax.f32 %v6744, 0.0
        %v6811 = vmax.f32 %v6746, 0.0
        %v6812 = vmax.f32 %v6750, 0.0
        %v6813 = vmax.f32 %v6752, 0.0
        %v6814 = vmax.f32 %v6756, 0.0
        %v6815 = vmax.f32 %v6758, 0.0
        %v6816 = vmax.f32 %v6762, 0.0
        %v6817 = vmax.f32 %v6764, 0.0
        %v6818 = vmax.f32 %v6768, 0.0
        %v6819 = vmax.f32 %v6770, 0.0
        %v6820 = vmax.f32 %v6774, 0.0
        %v6821 = vmax.f32 %v6776, 0.0
        %v6822 = vmax.f32 %v6780, 0.0
        %v6823 = vmax.f32 %v6782, 0.0
        %v6824 = vld [vmem:[%s67] sm:$0xff]
        %v6825 = vld [vmem:[%s67 + $0x8] sm:$0xff]
        %v6826 = vld [vmem:[%s67 + $0x10] sm:$0xff]
        %v6827 = vld [vmem:[%s67 + $0x18] sm:$0xff]
        %v6828 = vld [vmem:[%s67 + $0x20] sm:$0xff]
        %v6829 = vld [vmem:[%s67 + $0x28] sm:$0xff]
        %v6830 = vld [vmem:[%s67 + $0x30] sm:$0xff]
        %v6831 = vld [vmem:[%s67 + $0x38] sm:$0xff]
        %v6832 = vld [vmem:[%s67 + $0x40] sm:$0xff]
        %v6833 = vld [vmem:[%s67 + $0x48] sm:$0xff]
        %v6834 = vld [vmem:[%s67 + $0x50] sm:$0xff]
        %v6835 = vld [vmem:[%s67 + $0x58] sm:$0xff]
        %v6836 = vld [vmem:[%s67 + $0x60] sm:$0xff]
        %v6837 = vld [vmem:[%s67 + $0x68] sm:$0xff]
        %v6838 = vld [vmem:[%s67 + $0x70] sm:$0xff]
        %v6839 = vld [vmem:[%s67 + $0x78] sm:$0xff]
        %v6840 = vld [vmem:[%s67 + $0x80] sm:$0xff]
        %v6841 = vld [vmem:[%s67 + $0x88] sm:$0xff]
        %v6842 = vld [vmem:[%s67 + $0x90] sm:$0xff]
        %v6843 = vld [vmem:[%s67 + $0x98] sm:$0xff]
        %v6845 = vsel %vm2076, %v6825, 0
        %v6848 = vsel %vm2076, %v6827, 0
        %v6851 = vsel %vm2076, %v6829, 0
        %v6854 = vsel %vm2076, %v6831, 0
        %v6857 = vsel %vm2076, %v6833, 0
        %v6860 = vsel %vm2076, %v6835, 0
        %v6863 = vsel %vm2076, %v6837, 0
        %v6866 = vsel %vm2076, %v6839, 0
        %v6869 = vsel %vm2076, %v6841, 0
        %v6872 = vsel %vm2076, %v6843, 0
        %6874 = vmatprep.subr.mxu0 %v6785
        %6875 = vmatpush1.msra.mxu0 %v6784
        %6876 = vmatprep.subr.mxu0 %v6787
        %6877 = vmatpush1.msra.mxu0 %v6786
        %6878 = vmatprep.subr.mxu0 %v6789
        %6879 = vmatpush1.msra.mxu0 %v6788
        %6880 = vmatprep.subr.mxu0 %v6791
        %6881 = vmatpush1.msra.mxu0 %v6790
        %6882 = vmatprep.subr.mxu0 %v6793
        %6883 = vmatpush1.msra.mxu0 %v6792
        %6884 = vmatprep.subr.mxu0 %v6795
        %6885 = vmatpush1.msra.mxu0 %v6794
        %6886 = vmatprep.subr.mxu0 %v6797
        %6887 = vmatpush1.msra.mxu0 %v6796
        %6888 = vmatprep.subr.mxu0 %v6799
        %6889 = vmatpush1.msra.mxu0 %v6798
        %6890 = vmatprep.subr.mxu0 %v6801
        %6891 = vmatpush1.msra.mxu0 %v6800
        %6892 = vmatprep.subr.mxu0 %v6803
        %6893 = vmatpush1.msra.mxu0 %v6802
        %6894 = vmatprep.subr.mxu0 %v6805
        %6895 = vmatpush1.msra.mxu0 %v6804
        %6896 = vmatprep.subr.mxu0 %v6807
        %6897 = vmatpush1.msra.mxu0 %v6806
        %6898 = vmatprep.subr.mxu0 %v6809
        %6899 = vmatpush1.msra.mxu0 %v6808
        %6900 = vmatprep.subr.mxu0 %v6811
        %6901 = vmatpush1.msra.mxu0 %v6810
        %6902 = vmatprep.subr.mxu0 %v6813
        %6903 = vmatpush1.msra.mxu0 %v6812
        %6904 = vmatprep.subr.mxu0 %v6815
        %6905 = vmatpush1.msra.mxu0 %v6814
        %6906 = vmatprep.subr.mxu0 %v6817
        %6907 = vmatpush1.msra.mxu0 %v6816
        %6908 = vmatprep.subr.mxu0 %v6819
        %6909 = vmatpush1.msra.mxu0 %v6818
        %6910 = vmatprep.subr.mxu0 %v6821
        %6911 = vmatpush1.msra.mxu0 %v6820
        %6912 = vmatprep.subr.mxu0 %v6823
        %6913 = vmatpush1.msra.mxu0 %v6822
        %6914 = vmatprep.subr.mxu0 0.0
        %6915 = vmatpush1.msra.mxu0 0.0
        %6916 = vmatprep.subr.mxu0 0.0
        %6917 = vmatpush1.msra.mxu0 0.0
        %6918 = vmatprep.subr.mxu0 0.0
        %6919 = vmatpush1.msra.mxu0 0.0
        %6920 = vmatprep.subr.mxu0 0.0
        %6921 = vmatpush1.msra.mxu0 0.0
        %6922 = vmatprep.subr.mxu0 0.0
        %6923 = vmatpush1.msra.mxu0 0.0
        %6924 = vmatprep.subr.mxu0 0.0
        %6925 = vmatpush1.msra.mxu0 0.0
        %6926 = vmatprep.subr.mxu0 0.0
        %6927 = vmatpush1.msra.mxu0 0.0
        %6928 = vmatprep.subr.mxu0 0.0
        %6929 = vmatpush1.msra.mxu0 0.0
        %6930 = vmatprep.subr.mxu0 0.0
        %6931 = vmatpush1.msra.mxu0 0.0
        %6932 = vmatprep.subr.mxu0 0.0
        %6933 = vmatpush1.msra.mxu0 0.0
        %6934 = vmatprep.subr.mxu0 0.0
        %6935 = vmatpush1.msra.mxu0 0.0
        %6936 = vmatprep.subr.mxu0 0.0
        %6937 = vmatpush1.msra.mxu0 0.0
        %6938 = vmatprep.mubr.f32.mxu0 %v6845
        %6939 = vmatmul.mubr.f32.gmra.mrb[0].mxu0 %v6824
        %v6940 = vpop.f32.mrb[0].mxu0
        %v6941 = vadd.f32 0.0, %v6940
        %v6942 = vpop.f32.mrb[0].mxu0
        %v6943 = vadd.f32 0.0, %v6942
        %6944 = vmatprep.mubr.f32.mxu0 %v6848
        %6945 = vmatmul.mubr.f32.gmra.mrb[0].mxu0 %v6826
        %v6946 = vpop.f32.mrb[0].mxu0
        %v6947 = vadd.f32 0.0, %v6946
        %v6948 = vpop.f32.mrb[0].mxu0
        %v6949 = vadd.f32 0.0, %v6948
        %6950 = vmatprep.mubr.f32.mxu0 %v6851
        %6951 = vmatmul.mubr.f32.gmra.mrb[0].mxu0 %v6828
        %v6952 = vpop.f32.mrb[0].mxu0
        %v6953 = vadd.f32 0.0, %v6952
        %v6954 = vpop.f32.mrb[0].mxu0
        %v6955 = vadd.f32 0.0, %v6954
        %6956 = vmatprep.mubr.f32.mxu0 %v6854
        %6957 = vmatmul.mubr.f32.gmra.mrb[0].mxu0 %v6830
        %v6958 = vpop.f32.mrb[0].mxu0
        %v6959 = vadd.f32 0.0, %v6958
        %v6960 = vpop.f32.mrb[0].mxu0
        %v6961 = vadd.f32 0.0, %v6960
        %6962 = vmatprep.mubr.f32.mxu0 %v6857
        %6963 = vmatmul.mubr.f32.gmra.mrb[0].mxu0 %v6832
        %v6964 = vpop.f32.mrb[0].mxu0
        %v6965 = vadd.f32 0.0, %v6964
        %v6966 = vpop.f32.mrb[0].mxu0
        %v6967 = vadd.f32 0.0, %v6966
        %6968 = vmatprep.mubr.f32.mxu0 %v6860
        %6969 = vmatmul.mubr.f32.gmra.mrb[0].mxu0 %v6834
        %v6970 = vpop.f32.mrb[0].mxu0
        %v6971 = vadd.f32 0.0, %v6970
        %v6972 = vpop.f32.mrb[0].mxu0
        %v6973 = vadd.f32 0.0, %v6972
        %6974 = vmatprep.mubr.f32.mxu0 %v6863
        %6975 = vmatmul.mubr.f32.gmra.mrb[0].mxu0 %v6836
        %v6976 = vpop.f32.mrb[0].mxu0
        %v6977 = vadd.f32 0.0, %v6976
        %v6978 = vpop.f32.mrb[0].mxu0
        %v6979 = vadd.f32 0.0, %v6978
        %6980 = vmatprep.mubr.f32.mxu0 %v6866
        %6981 = vmatmul.mubr.f32.gmra.mrb[0].mxu0 %v6838
        %v6982 = vpop.f32.mrb[0].mxu0
        %v6983 = vadd.f32 0.0, %v6982
        %v6984 = vpop.f32.mrb[0].mxu0
        %v6985 = vadd.f32 0.0, %v6984
        %6986 = vmatprep.mubr.f32.mxu0 %v6869
        %6987 = vmatmul.mubr.f32.gmra.mrb[0].mxu0 %v6840
        %v6988 = vpop.f32.mrb[0].mxu0
        %v6989 = vadd.f32 0.0, %v6988
        %v6990 = vpop.f32.mrb[0].mxu0
        %v6991 = vadd.f32 0.0, %v6990
        %6992 = vmatprep.mubr.f32.mxu0 %v6872
        %6993 = vmatmul.mubr.f32.gmra.mrb[0].mxu0 %v6842
        %v6994 = vpop.f32.mrb[0].mxu0
        %v6995 = vadd.f32 0.0, %v6994
        %v6996 = vpop.f32.mrb[0].mxu0
        %v6997 = vadd.f32 0.0, %v6996
        %6998 = vdwg.mxu0
        %v6999 = vmax.f32 %v6941, 0.0
        %v7000 = vmax.f32 %v6943, 0.0
        %v7001 = vmax.f32 %v6947, 0.0
        %v7002 = vmax.f32 %v6949, 0.0
        %v7003 = vmax.f32 %v6953, 0.0
        %v7004 = vmax.f32 %v6955, 0.0
        %v7005 = vmax.f32 %v6959, 0.0
        %v7006 = vmax.f32 %v6961, 0.0
        %v7007 = vmax.f32 %v6965, 0.0
        %v7008 = vmax.f32 %v6967, 0.0
        %v7009 = vmax.f32 %v6971, 0.0
        %v7010 = vmax.f32 %v6973, 0.0
        %v7011 = vmax.f32 %v6977, 0.0
        %v7012 = vmax.f32 %v6979, 0.0
        %v7013 = vmax.f32 %v6983, 0.0
        %v7014 = vmax.f32 %v6985, 0.0
        %v7015 = vmax.f32 %v6989, 0.0
        %v7016 = vmax.f32 %v6991, 0.0
        %v7017 = vmax.f32 %v6995, 0.0
        %v7018 = vmax.f32 %v6997, 0.0
        %v7019 = vld [vmem:[%s69] sm:$0xff]
        %v7020 = vld [vmem:[%s69 + $0x8] sm:$0xff]
        %v7021 = vld [vmem:[%s69 + $0x10] sm:$0xff]
        %v7022 = vld [vmem:[%s69 + $0x18] sm:$0xff]
        %v7023 = vld [vmem:[%s69 + $0x20] sm:$0xff]
        %v7024 = vld [vmem:[%s69 + $0x28] sm:$0xff]
        %v7026 = vsel %vm1647, %v7019, 0
        %v7029 = vsel %vm1647, %v7020, 0
        %v7032 = vsel %vm1647, %v7021, 0
        %v7035 = vsel %vm1647, %v7022, 0
        %v7038 = vsel %vm1647, %v7023, 0
        %v7041 = vsel %vm1647, %v7024, 0
        %7043 = vmatprep.subr.mxu0 %v7000
        %7044 = vmatpush1.msra.mxu0 %v6999
        %7045 = vmatprep.subr.mxu0 %v7002
        %7046 = vmatpush1.msra.mxu0 %v7001
        %7047 = vmatprep.subr.mxu0 %v7004
        %7048 = vmatpush1.msra.mxu0 %v7003
        %7049 = vmatprep.subr.mxu0 %v7006
        %7050 = vmatpush1.msra.mxu0 %v7005
        %7051 = vmatprep.subr.mxu0 %v7008
        %7052 = vmatpush1.msra.mxu0 %v7007
        %7053 = vmatprep.subr.mxu0 %v7010
        %7054 = vmatpush1.msra.mxu0 %v7009
        %7055 = vmatprep.subr.mxu0 %v7012
        %7056 = vmatpush1.msra.mxu0 %v7011
        %7057 = vmatprep.subr.mxu0 %v7014
        %7058 = vmatpush1.msra.mxu0 %v7013
        %7059 = vmatprep.subr.mxu0 %v7016
        %7060 = vmatpush1.msra.mxu0 %v7015
        %7061 = vmatprep.subr.mxu0 %v7018
        %7062 = vmatpush1.msra.mxu0 %v7017
        %7063 = vmatprep.subr.mxu0 0.0
        %7064 = vmatpush1.msra.mxu0 0.0
        %7065 = vmatprep.subr.mxu0 0.0
        %7066 = vmatpush1.msra.mxu0 0.0
        %7067 = vmatprep.subr.mxu0 0.0
        %7068 = vmatpush1.msra.mxu0 0.0
        %7069 = vmatprep.subr.mxu0 0.0
        %7070 = vmatpush1.msra.mxu0 0.0
        %7071 = vmatprep.subr.mxu0 0.0
        %7072 = vmatpush1.msra.mxu0 0.0
        %7073 = vmatprep.subr.mxu0 0.0
        %7074 = vmatpush1.msra.mxu0 0.0
        %7075 = vmatprep.subr.mxu0 0.0
        %7076 = vmatpush1.msra.mxu0 0.0
        %7077 = vmatprep.subr.mxu0 0.0
        %7078 = vmatpush1.msra.mxu0 0.0
        %7079 = vmatprep.subr.mxu0 0.0
        %7080 = vmatpush1.msra.mxu0 0.0
        %7081 = vmatprep.subr.mxu0 0.0
        %7082 = vmatpush1.msra.mxu0 0.0
        %7083 = vmatprep.subr.mxu0 0.0
        %7084 = vmatpush1.msra.mxu0 0.0
        %7085 = vmatprep.subr.mxu0 0.0
        %7086 = vmatpush1.msra.mxu0 0.0
        %7087 = vmatprep.subr.mxu0 0.0
        %7088 = vmatpush1.msra.mxu0 0.0
        %7089 = vmatprep.subr.mxu0 0.0
        %7090 = vmatpush1.msra.mxu0 0.0
        %7091 = vmatprep.subr.mxu0 0.0
        %7092 = vmatpush1.msra.mxu0 0.0
        %7093 = vmatprep.subr.mxu0 0.0
        %7094 = vmatpush1.msra.mxu0 0.0
        %7095 = vmatprep.subr.mxu0 0.0
        %7096 = vmatpush1.msra.mxu0 0.0
        %7097 = vmatprep.subr.mxu0 0.0
        %7098 = vmatpush1.msra.mxu0 0.0
        %7099 = vmatprep.subr.mxu0 0.0
        %7100 = vmatpush1.msra.mxu0 0.0
        %7101 = vmatprep.subr.mxu0 0.0
        %7102 = vmatpush1.msra.mxu0 0.0
        %7103 = vmatprep.subr.mxu0 0.0
        %7104 = vmatpush1.msra.mxu0 0.0
        %7105 = vmatprep.subr.mxu0 0.0
        %7106 = vmatpush1.msra.mxu0 0.0
        %7107 = vmatprep.mubr.f32.mxu0 0.0
        %7108 = vmatmul.mubr.f32.gmra.mrb[0].mxu0 %v7026
        %v7109 = vpop.f32.mrb[0].mxu0
        %v7110 = vadd.f32 0.0, %v7109
        %v7111 = vpop.f32.mrb[0].mxu0
        %v7112 = vadd.f32 0.0, %v7111
        %7113 = vmatprep.mubr.f32.mxu0 0.0
        %7114 = vmatmul.mubr.f32.gmra.mrb[0].mxu0 %v7029
        %v7115 = vpop.f32.mrb[0].mxu0
        %v7116 = vadd.f32 0.0, %v7115
        %v7117 = vpop.f32.mrb[0].mxu0
        %v7118 = vadd.f32 0.0, %v7117
        %7119 = vmatprep.mubr.f32.mxu0 0.0
        %7120 = vmatmul.mubr.f32.gmra.mrb[0].mxu0 %v7032
        %v7121 = vpop.f32.mrb[0].mxu0
        %v7122 = vadd.f32 0.0, %v7121
        %v7123 = vpop.f32.mrb[0].mxu0
        %v7124 = vadd.f32 0.0, %v7123
        %7125 = vmatprep.mubr.f32.mxu0 0.0
        %7126 = vmatmul.mubr.f32.gmra.mrb[0].mxu0 %v7035
        %v7127 = vpop.f32.mrb[0].mxu0
        %v7128 = vadd.f32 0.0, %v7127
        %v7129 = vpop.f32.mrb[0].mxu0
        %v7130 = vadd.f32 0.0, %v7129
        %7131 = vmatprep.mubr.f32.mxu0 0.0
        %7132 = vmatmul.mubr.f32.gmra.mrb[0].mxu0 %v7038
        %v7133 = vpop.f32.mrb[0].mxu0
        %v7134 = vadd.f32 0.0, %v7133
        %v7135 = vpop.f32.mrb[0].mxu0
        %v7136 = vadd.f32 0.0, %v7135
        %7137 = vmatprep.mubr.f32.mxu0 0.0
        %7138 = vmatmul.mubr.f32.gmra.mrb[0].mxu0 %v7041
        %v7139 = vpop.f32.mrb[0].mxu0
        %v7140 = vadd.f32 0.0, %v7139
        %v7141 = vpop.f32.mrb[0].mxu0
        %v7142 = vadd.f32 0.0, %v7141
        %7143 = vdwg.mxu0
        %v7144 = vld [vmem:[%s79] sm:$0xff]
        %v7145 = vld [vmem:[%s79 + $0x8] sm:$0xff]
        %v7146 = vld [vmem:[%s79 + $0x10] sm:$0xff]
        %v7147 = vld [vmem:[%s79 + $0x18] sm:$0xff]
        %v7148 = vld [vmem:[%s79 + $0x20] sm:$0xff]
        %v7149 = vld [vmem:[%s79 + $0x28] sm:$0xff]
        %v7150 = vld [vmem:[%s81] sm:$0xff]
        %v7151 = vld [vmem:[%s81 + $0x8] sm:$0xff]
        %v7152 = vld [vmem:[%s81 + $0x10] sm:$0xff]
        %7154 = vset.pattern.permute.xlu0 0
        %7155 = vperm.xlu0 %7154, %v7150
        %v7156 = vpop.permute.xlu0 %7155
        %7159 = vset.pattern.permute.xlu0 0
        %7160 = vperm.xlu0 %7159, %v7151
        %v7161 = vpop.permute.xlu0 %7160
        %7164 = vset.pattern.permute.xlu0 0
        %7165 = vperm.xlu0 %7164, %v7152
        %v7166 = vpop.permute.xlu0 %7165
        %v7169 = vsel %vm1864, %v7145, 0
        %v7172 = vsel %vm1864, %v7147, 0
        %v7175 = vsel %vm1864, %v7149, 0
        %7177 = vmatprep.subr.mxu0 %v4320
        %7178 = vmatpush1.msra.mxu0 %v4319
        %7179 = vmatprep.subr.mxu0 %v4322
        %7180 = vmatpush1.msra.mxu0 %v4321
        %7181 = vmatprep.subr.mxu0 %v4324
        %7182 = vmatpush1.msra.mxu0 %v4323
        %7183 = vmatprep.subr.mxu0 %v4326
        %7184 = vmatpush1.msra.mxu0 %v4325
        %7185 = vmatprep.subr.mxu0 %v4651
        %7186 = vmatpush1.msra.mxu0 %v4650
        %7187 = vmatprep.subr.mxu0 %v4653
        %7188 = vmatpush1.msra.mxu0 %v4652
        %7189 = vmatprep.subr.mxu0 %v7112
        %7190 = vmatpush1.msra.mxu0 %v7110
        %7191 = vmatprep.subr.mxu0 %v7118
        %7192 = vmatpush1.msra.mxu0 %v7116
        %7193 = vmatprep.subr.mxu0 %v7124
        %7194 = vmatpush1.msra.mxu0 %v7122
        %7195 = vmatprep.subr.mxu0 %v7130
        %7196 = vmatpush1.msra.mxu0 %v7128
        %7197 = vmatprep.subr.mxu0 %v7136
        %7198 = vmatpush1.msra.mxu0 %v7134
        %7199 = vmatprep.subr.mxu0 %v7142
        %7200 = vmatpush1.msra.mxu0 %v7140
        %7201 = vmatprep.subr.mxu0 %v1616
        %7202 = vmatpush1.msra.mxu0 %v1615
        %7203 = vmatprep.subr.mxu0 %v1618
        %7204 = vmatpush1.msra.mxu0 %v1617
        %7205 = vmatprep.subr.mxu0 %v1620
        %7206 = vmatpush1.msra.mxu0 %v1619
        %7207 = vmatprep.subr.mxu0 %v1622
        %7208 = vmatpush1.msra.mxu0 %v1621
        %7209 = vmatprep.subr.mxu0 %v1624
        %7210 = vmatpush1.msra.mxu0 %v1623
        %7211 = vmatprep.subr.mxu0 %v1626
        %7212 = vmatpush1.msra.mxu0 %v1625
        %7213 = vmatprep.subr.mxu0 0.0
        %7214 = vmatpush1.msra.mxu0 0.0
        %7215 = vmatprep.subr.mxu0 0.0
        %7216 = vmatpush1.msra.mxu0 0.0
        %7217 = vmatprep.subr.mxu0 0.0
        %7218 = vmatpush1.msra.mxu0 0.0
        %7219 = vmatprep.subr.mxu0 0.0
        %7220 = vmatpush1.msra.mxu0 0.0
        %7221 = vmatprep.subr.mxu0 0.0
        %7222 = vmatpush1.msra.mxu0 0.0
        %7223 = vmatprep.subr.mxu0 0.0
        %7224 = vmatpush1.msra.mxu0 0.0
        %7225 = vmatprep.subr.mxu0 0.0
        %7226 = vmatpush1.msra.mxu0 0.0
        %7227 = vmatprep.subr.mxu0 0.0
        %7228 = vmatpush1.msra.mxu0 0.0
        %7229 = vmatprep.subr.mxu0 0.0
        %7230 = vmatpush1.msra.mxu0 0.0
        %7231 = vmatprep.subr.mxu0 0.0
        %7232 = vmatpush1.msra.mxu0 0.0
        %7233 = vmatprep.subr.mxu0 0.0
        %7234 = vmatpush1.msra.mxu0 0.0
        %7235 = vmatprep.subr.mxu0 0.0
        %7236 = vmatpush1.msra.mxu0 0.0
        %7237 = vmatprep.subr.mxu0 0.0
        %7238 = vmatpush1.msra.mxu0 0.0
        %7239 = vmatprep.subr.mxu0 0.0
        %7240 = vmatpush1.msra.mxu0 0.0
        %7241 = vmatprep.mubr.f32.mxu0 %v7169
        %7242 = vmatmul.mubr.f32.gmra.mrb[0].mxu0 %v7144
        %v7243 = vpop.f32.mrb[0].mxu0
        %v7244 = vadd.f32 %v7156, %v7243
        %v7245 = vpop.f32.mrb[0].mxu0
        %v7246 = vadd.f32 %v7156, %v7245
        %7247 = vmatprep.mubr.f32.mxu0 %v7172
        %7248 = vmatmul.mubr.f32.gmra.mrb[0].mxu0 %v7146
        %v7249 = vpop.f32.mrb[0].mxu0
        %v7250 = vadd.f32 %v7161, %v7249
        %v7251 = vpop.f32.mrb[0].mxu0
        %v7252 = vadd.f32 %v7161, %v7251
        %7253 = vmatprep.mubr.f32.mxu0 %v7175
        %7254 = vmatmul.mubr.f32.gmra.mrb[0].mxu0 %v7148
        %v7255 = vpop.f32.mrb[0].mxu0
        %v7256 = vadd.f32 %v7166, %v7255
        %v7257 = vpop.f32.mrb[0].mxu0
        %v7258 = vadd.f32 %v7166, %v7257
        %7259 = vdwg.mxu0
        %v7260 = vsub.f32 0.0, %v7244
        %v7261 = vsub.f32 0.0, %v7246
        %v7262 = vsub.f32 0.0, %v7250
        %v7263 = vsub.f32 0.0, %v7252
        %v7264 = vsub.f32 0.0, %v7256
        %v7265 = vsub.f32 0.0, %v7258
        %v7266 = vmul.f32 %v7260, 1.442695
        %v7267 = vpow.pop %v7266
        %v7268 = vmul.f32 %v7261, 1.442695
        %v7269 = vpow.pop %v7268
        %v7270 = vmul.f32 %v7262, 1.442695
        %v7271 = vpow.pop %v7270
        %v7272 = vmul.f32 %v7263, 1.442695
        %v7273 = vpow.pop %v7272
        %v7274 = vmul.f32 %v7264, 1.442695
        %v7275 = vpow.pop %v7274
        %v7276 = vmul.f32 %v7265, 1.442695
        %v7277 = vpow.pop %v7276
        %v7278 = vadd.f32 %v7267, 1.0
        %v7279 = vadd.f32 %v7269, 1.0
        %v7280 = vadd.f32 %v7271, 1.0
        %v7281 = vadd.f32 %v7273, 1.0
        %v7282 = vadd.f32 %v7275, 1.0
        %v7283 = vadd.f32 %v7277, 1.0
        %v7284 = vrcp.pop %v7278
        %v7285 = vrcp.pop %v7279
        %v7286 = vrcp.pop %v7280
        %v7287 = vrcp.pop %v7281
        %v7288 = vrcp.pop %v7282
        %v7289 = vrcp.pop %v7283
        %s7290 = sld [smem:[#allocation5 + $0x5]]
        %s7291 = sld [smem:[#allocation5 + $0x6]]
        %v7292 = vsub.f32 1.0, %v7284
        %v7293 = vsub.f32 1.0, %v7285
        %v7294 = vlaneseq
        %v7295 = vshrl.u32 %v7294, 7
        %v7296 = vsub.s32 2, %v7295
        %v7297 = vrot.slane %v7292, %v7296
        %v7298 = vlaneseq
        %v7299 = vshrl.u32 %v7298, 7
        %v7300 = vsub.s32 2, %v7299
        %v7301 = vrot.slane %v7293, %v7300
        %v7302 = vmul.f32 %v1615, %v7297
        %v7303 = vmul.f32 %v1616, %v7301
        %v7304 = vlaneseq
        %v7305 = vshrl.u32 %v7304, 7
        %v7306 = vsub.s32 0, %v7305
        %v7307 = vrot.slane %v7284, %v7306
        %v7308 = vlaneseq
        %v7309 = vshrl.u32 %v7308, 7
        %v7310 = vsub.s32 0, %v7309
        %v7311 = vrot.slane %v7285, %v7310
        %v7312 = vmul.f32 %v4319, %v7307
        %v7313 = vmul.f32 %v4320, %v7311
        %v7314 = vstv %s7290
        %v7315 = vmul.f32 %v7312, %v7314
        %v7316 = vmul.f32 %v7313, %v7314
        %v7317 = vadd.f32 %v7302, %v7315
        %v7318 = vadd.f32 %v7303, %v7316
        %v7319 = vlaneseq
        %v7320 = vshrl.u32 %v7319, 7
        %v7321 = vsub.s32 1, %v7320
        %v7322 = vrot.slane %v7284, %v7321
        %v7323 = vlaneseq
        %v7324 = vshrl.u32 %v7323, 7
        %v7325 = vsub.s32 1, %v7324
        %v7326 = vrot.slane %v7285, %v7325
        %v7327 = vmul.f32 %v7110, %v7322
        %v7328 = vmul.f32 %v7112, %v7326
        %v7329 = vstv %s7291
        %v7330 = vmul.f32 %v7327, %v7329
        %v7331 = vmul.f32 %v7328, %v7329
        %v7332 = vadd.f32 %v7317, %v7330
        %v7333 = vadd.f32 %v7318, %v7331
        %v7334 = vlaneseq
        %v7335 = vshrl.u32 %v7334, 7
        %v7336 = vsub.s32 3, %v7335
        %v7337 = vrot.slane %v7292, %v7336
        %v7338 = vlaneseq
        %v7339 = vshrl.u32 %v7338, 7
        %v7340 = vsub.s32 3, %v7339
        %v7341 = vrot.slane %v7293, %v7340
        %v7342 = vmul.f32 %v7337, %v1615
        %v7343 = vmul.f32 %v7341, %v1616
        %v7344 = vtanh.pop %v7332
        %v7345 = vtanh.pop %v7333
        %v7346 = vlaneseq
        %v7347 = vshrl.u32 %v7346, 7
        %v7348 = vsub.s32 3, %v7347
        %v7349 = vrot.slane %v7284, %v7348
        %v7350 = vlaneseq
        %v7351 = vshrl.u32 %v7350, 7
        %v7352 = vsub.s32 3, %v7351
        %v7353 = vrot.slane %v7285, %v7352
        %v7354 = vmul.f32 %v7349, %v7344
        %v7355 = vmul.f32 %v7353, %v7345
        %v7356 = vadd.f32 %v7342, %v7354
        %v7357 = vadd.f32 %v7343, %v7355
        %s7358 = sld [smem:[#allocation5 + $0x7]]
        %s7359 = sld [smem:[#allocation5 + $0x8]]
        %v7360 = vlaneseq
        %v7361 = vshrl.u32 %v7360, 7
        %v7362 = vsub.s32 6, %v7361
        %v7363 = vrot.slane %v7292, %v7362
        %v7364 = vlaneseq
        %v7365 = vshrl.u32 %v7364, 7
        %v7366 = vsub.s32 6, %v7365
        %v7367 = vrot.slane %v7293, %v7366
        %v7368 = vmul.f32 %v1617, %v7363
        %v7369 = vmul.f32 %v1618, %v7367
        %v7370 = vlaneseq
        %v7371 = vshrl.u32 %v7370, 7
        %v7372 = vsub.s32 4, %v7371
        %v7373 = vrot.slane %v7284, %v7372
        %v7374 = vlaneseq
        %v7375 = vshrl.u32 %v7374, 7
        %v7376 = vsub.s32 4, %v7375
        %v7377 = vrot.slane %v7285, %v7376
        %v7378 = vmul.f32 %v4321, %v7373
        %v7379 = vmul.f32 %v4322, %v7377
        %v7380 = vstv %s7358
        %v7381 = vmul.f32 %v7378, %v7380
        %v7382 = vmul.f32 %v7379, %v7380
        %v7383 = vadd.f32 %v7368, %v7381
        %v7384 = vadd.f32 %v7369, %v7382
        %v7385 = vlaneseq
        %v7386 = vshrl.u32 %v7385, 7
        %v7387 = vsub.s32 5, %v7386
        %v7388 = vrot.slane %v7284, %v7387
        %v7389 = vlaneseq
        %v7390 = vshrl.u32 %v7389, 7
        %v7391 = vsub.s32 5, %v7390
        %v7392 = vrot.slane %v7285, %v7391
        %v7393 = vmul.f32 %v7116, %v7388
        %v7394 = vmul.f32 %v7118, %v7392
        %v7395 = vstv %s7359
        %v7396 = vmul.f32 %v7393, %v7395
        %v7397 = vmul.f32 %v7394, %v7395
        %v7398 = vadd.f32 %v7383, %v7396
        %v7399 = vadd.f32 %v7384, %v7397
        %v7400 = vlaneseq
        %v7401 = vshrl.u32 %v7400, 7
        %v7402 = vsub.s32 7, %v7401
        %v7403 = vrot.slane %v7292, %v7402
        %v7404 = vlaneseq
        %v7405 = vshrl.u32 %v7404, 7
        %v7406 = vsub.s32 7, %v7405
        %v7407 = vrot.slane %v7293, %v7406
        %v7408 = vmul.f32 %v7403, %v1617
        %v7409 = vmul.f32 %v7407, %v1618
        %v7410 = vtanh.pop %v7398
        %v7411 = vtanh.pop %v7399
        %v7412 = vlaneseq
        %v7413 = vshrl.u32 %v7412, 7
        %v7414 = vsub.s32 7, %v7413
        %v7415 = vrot.slane %v7284, %v7414
        %v7416 = vlaneseq
        %v7417 = vshrl.u32 %v7416, 7
        %v7418 = vsub.s32 7, %v7417
        %v7419 = vrot.slane %v7285, %v7418
        %v7420 = vmul.f32 %v7415, %v7410
        %v7421 = vmul.f32 %v7419, %v7411
        %v7422 = vadd.f32 %v7408, %v7420
        %v7423 = vadd.f32 %v7409, %v7421
        %s7424 = sld [smem:[#allocation5 + $0x9]]
        %s7425 = sld [smem:[#allocation5 + $0xa]]
        %v7426 = vsub.f32 1.0, %v7286
        %v7427 = vsub.f32 1.0, %v7287
        %v7428 = vlaneseq
        %v7429 = vshrl.u32 %v7428, 7
        %v7430 = vsub.s32 2, %v7429
        %v7431 = vrot.slane %v7426, %v7430
        %v7432 = vlaneseq
        %v7433 = vshrl.u32 %v7432, 7
        %v7434 = vsub.s32 2, %v7433
        %v7435 = vrot.slane %v7427, %v7434
        %v7436 = vmul.f32 %v1619, %v7431
        %v7437 = vmul.f32 %v1620, %v7435
        %v7438 = vlaneseq
        %v7439 = vshrl.u32 %v7438, 7
        %v7440 = vsub.s32 0, %v7439
        %v7441 = vrot.slane %v7286, %v7440
        %v7442 = vlaneseq
        %v7443 = vshrl.u32 %v7442, 7
        %v7444 = vsub.s32 0, %v7443
        %v7445 = vrot.slane %v7287, %v7444
        %v7446 = vmul.f32 %v4323, %v7441
        %v7447 = vmul.f32 %v4324, %v7445
        %v7448 = vstv %s7424
        %v7449 = vmul.f32 %v7446, %v7448
        %v7450 = vmul.f32 %v7447, %v7448
        %v7451 = vadd.f32 %v7436, %v7449
        %v7452 = vadd.f32 %v7437, %v7450
        %v7453 = vlaneseq
        %v7454 = vshrl.u32 %v7453, 7
        %v7455 = vsub.s32 1, %v7454
        %v7456 = vrot.slane %v7286, %v7455
        %v7457 = vlaneseq
        %v7458 = vshrl.u32 %v7457, 7
        %v7459 = vsub.s32 1, %v7458
        %v7460 = vrot.slane %v7287, %v7459
        %v7461 = vmul.f32 %v7122, %v7456
        %v7462 = vmul.f32 %v7124, %v7460
        %v7463 = vstv %s7425
        %v7464 = vmul.f32 %v7461, %v7463
        %v7465 = vmul.f32 %v7462, %v7463
        %v7466 = vadd.f32 %v7451, %v7464
        %v7467 = vadd.f32 %v7452, %v7465
        %v7468 = vlaneseq
        %v7469 = vshrl.u32 %v7468, 7
        %v7470 = vsub.s32 3, %v7469
        %v7471 = vrot.slane %v7426, %v7470
        %v7472 = vlaneseq
        %v7473 = vshrl.u32 %v7472, 7
        %v7474 = vsub.s32 3, %v7473
        %v7475 = vrot.slane %v7427, %v7474
        %v7476 = vmul.f32 %v7471, %v1619
        %v7477 = vmul.f32 %v7475, %v1620
        %v7478 = vtanh.pop %v7466
        %v7479 = vtanh.pop %v7467
        %v7480 = vlaneseq
        %v7481 = vshrl.u32 %v7480, 7
        %v7482 = vsub.s32 3, %v7481
        %v7483 = vrot.slane %v7286, %v7482
        %v7484 = vlaneseq
        %v7485 = vshrl.u32 %v7484, 7
        %v7486 = vsub.s32 3, %v7485
        %v7487 = vrot.slane %v7287, %v7486
        %v7488 = vmul.f32 %v7483, %v7478
        %v7489 = vmul.f32 %v7487, %v7479
        %v7490 = vadd.f32 %v7476, %v7488
        %v7491 = vadd.f32 %v7477, %v7489
        %s7492 = sld [smem:[#allocation5 + $0xb]]
        %s7493 = sld [smem:[#allocation5 + $0xc]]
        %v7494 = vlaneseq
        %v7495 = vshrl.u32 %v7494, 7
        %v7496 = vsub.s32 6, %v7495
        %v7497 = vrot.slane %v7426, %v7496
        %v7498 = vlaneseq
        %v7499 = vshrl.u32 %v7498, 7
        %v7500 = vsub.s32 6, %v7499
        %v7501 = vrot.slane %v7427, %v7500
        %v7502 = vmul.f32 %v1621, %v7497
        %v7503 = vmul.f32 %v1622, %v7501
        %v7504 = vlaneseq
        %v7505 = vshrl.u32 %v7504, 7
        %v7506 = vsub.s32 4, %v7505
        %v7507 = vrot.slane %v7286, %v7506
        %v7508 = vlaneseq
        %v7509 = vshrl.u32 %v7508, 7
        %v7510 = vsub.s32 4, %v7509
        %v7511 = vrot.slane %v7287, %v7510
        %v7512 = vmul.f32 %v4325, %v7507
        %v7513 = vmul.f32 %v4326, %v7511
        %v7514 = vstv %s7492
        %v7515 = vmul.f32 %v7512, %v7514
        %v7516 = vmul.f32 %v7513, %v7514
        %v7517 = vadd.f32 %v7502, %v7515
        %v7518 = vadd.f32 %v7503, %v7516
        %v7519 = vlaneseq
        %v7520 = vshrl.u32 %v7519, 7
        %v7521 = vsub.s32 5, %v7520
        %v7522 = vrot.slane %v7286, %v7521
        %v7523 = vlaneseq
        %v7524 = vshrl.u32 %v7523, 7
        %v7525 = vsub.s32 5, %v7524
        %v7526 = vrot.slane %v7287, %v7525
        %v7527 = vmul.f32 %v7128, %v7522
        %v7528 = vmul.f32 %v7130, %v7526
        %v7529 = vstv %s7493
        %v7530 = vmul.f32 %v7527, %v7529
        %v7531 = vmul.f32 %v7528, %v7529
        %v7532 = vadd.f32 %v7517, %v7530
        %v7533 = vadd.f32 %v7518, %v7531
        %v7534 = vlaneseq
        %v7535 = vshrl.u32 %v7534, 7
        %v7536 = vsub.s32 7, %v7535
        %v7537 = vrot.slane %v7426, %v7536
        %v7538 = vlaneseq
        %v7539 = vshrl.u32 %v7538, 7
        %v7540 = vsub.s32 7, %v7539
        %v7541 = vrot.slane %v7427, %v7540
        %v7542 = vmul.f32 %v7537, %v1621
        %v7543 = vmul.f32 %v7541, %v1622
        %v7544 = vtanh.pop %v7532
        %v7545 = vtanh.pop %v7533
        %v7546 = vlaneseq
        %v7547 = vshrl.u32 %v7546, 7
        %v7548 = vsub.s32 7, %v7547
        %v7549 = vrot.slane %v7286, %v7548
        %v7550 = vlaneseq
        %v7551 = vshrl.u32 %v7550, 7
        %v7552 = vsub.s32 7, %v7551
        %v7553 = vrot.slane %v7287, %v7552
        %v7554 = vmul.f32 %v7549, %v7544
        %v7555 = vmul.f32 %v7553, %v7545
        %v7556 = vadd.f32 %v7542, %v7554
        %v7557 = vadd.f32 %v7543, %v7555
        %s7558 = sld [smem:[#allocation5 + $0xd]]
        %s7559 = sld [smem:[#allocation5 + $0xe]]
        %v7560 = vsub.f32 1.0, %v7288
        %v7561 = vsub.f32 1.0, %v7289
        %v7562 = vlaneseq
        %v7563 = vshrl.u32 %v7562, 7
        %v7564 = vsub.s32 2, %v7563
        %v7565 = vrot.slane %v7560, %v7564
        %v7566 = vlaneseq
        %v7567 = vshrl.u32 %v7566, 7
        %v7568 = vsub.s32 2, %v7567
        %v7569 = vrot.slane %v7561, %v7568
        %v7570 = vmul.f32 %v1623, %v7565
        %v7571 = vmul.f32 %v1624, %v7569
        %v7572 = vlaneseq
        %v7573 = vshrl.u32 %v7572, 7
        %v7574 = vsub.s32 0, %v7573
        %v7575 = vrot.slane %v7288, %v7574
        %v7576 = vlaneseq
        %v7577 = vshrl.u32 %v7576, 7
        %v7578 = vsub.s32 0, %v7577
        %v7579 = vrot.slane %v7289, %v7578
        %v7580 = vmul.f32 %v4650, %v7575
        %v7581 = vmul.f32 %v4651, %v7579
        %v7582 = vstv %s7558
        %v7583 = vmul.f32 %v7580, %v7582
        %v7584 = vmul.f32 %v7581, %v7582
        %v7585 = vadd.f32 %v7570, %v7583
        %v7586 = vadd.f32 %v7571, %v7584
        %v7587 = vlaneseq
        %v7588 = vshrl.u32 %v7587, 7
        %v7589 = vsub.s32 1, %v7588
        %v7590 = vrot.slane %v7288, %v7589
        %v7591 = vlaneseq
        %v7592 = vshrl.u32 %v7591, 7
        %v7593 = vsub.s32 1, %v7592
        %v7594 = vrot.slane %v7289, %v7593
        %v7595 = vmul.f32 %v7134, %v7590
        %v7596 = vmul.f32 %v7136, %v7594
        %v7597 = vstv %s7559
        %v7598 = vmul.f32 %v7595, %v7597
        %v7599 = vmul.f32 %v7596, %v7597
        %v7600 = vadd.f32 %v7585, %v7598
        %v7601 = vadd.f32 %v7586, %v7599
        %v7602 = vlaneseq
        %v7603 = vshrl.u32 %v7602, 7
        %v7604 = vsub.s32 3, %v7603
        %v7605 = vrot.slane %v7560, %v7604
        %v7606 = vlaneseq
        %v7607 = vshrl.u32 %v7606, 7
        %v7608 = vsub.s32 3, %v7607
        %v7609 = vrot.slane %v7561, %v7608
        %v7610 = vmul.f32 %v7605, %v1623
        %v7611 = vmul.f32 %v7609, %v1624
        %v7612 = vtanh.pop %v7600
        %v7613 = vtanh.pop %v7601
        %v7614 = vlaneseq
        %v7615 = vshrl.u32 %v7614, 7
        %v7616 = vsub.s32 3, %v7615
        %v7617 = vrot.slane %v7288, %v7616
        %v7618 = vlaneseq
        %v7619 = vshrl.u32 %v7618, 7
        %v7620 = vsub.s32 3, %v7619
        %v7621 = vrot.slane %v7289, %v7620
        %v7622 = vmul.f32 %v7617, %v7612
        %v7623 = vmul.f32 %v7621, %v7613
        %v7624 = vadd.f32 %v7610, %v7622
        %v7625 = vadd.f32 %v7611, %v7623
        %s7626 = sld [smem:[#allocation5 + $0xf]]
        %s7627 = sld [smem:[#allocation5 + $0x10]]
        %v7628 = vlaneseq
        %v7629 = vshrl.u32 %v7628, 7
        %v7630 = vsub.s32 6, %v7629
        %v7631 = vrot.slane %v7560, %v7630
        %v7632 = vlaneseq
        %v7633 = vshrl.u32 %v7632, 7
        %v7634 = vsub.s32 6, %v7633
        %v7635 = vrot.slane %v7561, %v7634
        %v7636 = vmul.f32 %v1625, %v7631
        %v7637 = vmul.f32 %v1626, %v7635
        %v7638 = vlaneseq
        %v7639 = vshrl.u32 %v7638, 7
        %v7640 = vsub.s32 4, %v7639
        %v7641 = vrot.slane %v7288, %v7640
        %v7642 = vlaneseq
        %v7643 = vshrl.u32 %v7642, 7
        %v7644 = vsub.s32 4, %v7643
        %v7645 = vrot.slane %v7289, %v7644
        %v7646 = vmul.f32 %v4652, %v7641
        %v7647 = vmul.f32 %v4653, %v7645
        %v7648 = vstv %s7626
        %v7649 = vmul.f32 %v7646, %v7648
        %v7650 = vmul.f32 %v7647, %v7648
        %v7651 = vadd.f32 %v7636, %v7649
        %v7652 = vadd.f32 %v7637, %v7650
        %v7653 = vlaneseq
        %v7654 = vshrl.u32 %v7653, 7
        %v7655 = vsub.s32 5, %v7654
        %v7656 = vrot.slane %v7288, %v7655
        %v7657 = vlaneseq
        %v7658 = vshrl.u32 %v7657, 7
        %v7659 = vsub.s32 5, %v7658
        %v7660 = vrot.slane %v7289, %v7659
        %v7661 = vmul.f32 %v7140, %v7656
        %v7662 = vmul.f32 %v7142, %v7660
        %v7663 = vstv %s7627
        %v7664 = vmul.f32 %v7661, %v7663
        %v7665 = vmul.f32 %v7662, %v7663
        %v7666 = vadd.f32 %v7651, %v7664
        %v7667 = vadd.f32 %v7652, %v7665
        %v7668 = vlaneseq
        %v7669 = vshrl.u32 %v7668, 7
        %v7670 = vsub.s32 7, %v7669
        %v7671 = vrot.slane %v7560, %v7670
        %v7672 = vlaneseq
        %v7673 = vshrl.u32 %v7672, 7
        %v7674 = vsub.s32 7, %v7673
        %v7675 = vrot.slane %v7561, %v7674
        %v7676 = vmul.f32 %v7671, %v1625
        %v7677 = vmul.f32 %v7675, %v1626
        %v7678 = vtanh.pop %v7666
        %v7679 = vtanh.pop %v7667
        %v7680 = vlaneseq
        %v7681 = vshrl.u32 %v7680, 7
        %v7682 = vsub.s32 7, %v7681
        %v7683 = vrot.slane %v7288, %v7682
        %v7684 = vlaneseq
        %v7685 = vshrl.u32 %v7684, 7
        %v7686 = vsub.s32 7, %v7685
        %v7687 = vrot.slane %v7289, %v7686
        %v7688 = vmul.f32 %v7683, %v7678
        %v7689 = vmul.f32 %v7687, %v7679
        %v7690 = vadd.f32 %v7676, %v7688
        %v7691 = vadd.f32 %v7677, %v7689
        %7692 = vmatprep.subr.mxu0 %v1614
        %7693 = vmatpush1.msra.mxu0 %v1613
        %7694 = vmatprep.subr.mxu0 %v7357
        %7695 = vmatpush1.msra.mxu0 %v7356
        %7696 = vmatprep.subr.mxu0 %v7423
        %7697 = vmatpush1.msra.mxu0 %v7422
        %7698 = vmatprep.subr.mxu0 %v7491
        %7699 = vmatpush1.msra.mxu0 %v7490
        %7700 = vmatprep.subr.mxu0 %v7557
        %7701 = vmatpush1.msra.mxu0 %v7556
        %7702 = vmatprep.subr.mxu0 %v7625
        %7703 = vmatpush1.msra.mxu0 %v7624
        %7704 = vmatprep.subr.mxu0 %v7691
        %7705 = vmatpush1.msra.mxu0 %v7690
        %7706 = vmatprep.subr.mxu0 %v3801
        %7707 = vmatpush1.msra.mxu0 %v3800
        %7708 = vmatprep.subr.mxu0 %v3867
        %7709 = vmatpush1.msra.mxu0 %v3866
        %7710 = vmatprep.subr.mxu0 %v2308
        %7711 = vmatpush1.msra.mxu0 %v2307
        %7712 = vmatprep.subr.mxu0 0.0
        %7713 = vmatpush1.msra.mxu0 0.0
        %7714 = vmatprep.subr.mxu0 0.0
        %7715 = vmatpush1.msra.mxu0 0.0
        %7716 = vmatprep.subr.mxu0 0.0
        %7717 = vmatpush1.msra.mxu0 0.0
        %7718 = vmatprep.subr.mxu0 0.0
        %7719 = vmatpush1.msra.mxu0 0.0
        %7720 = vmatprep.subr.mxu0 0.0
        %7721 = vmatpush1.msra.mxu0 0.0
        %7722 = vmatprep.subr.mxu0 0.0
        %7723 = vmatpush1.msra.mxu0 0.0
        %7724 = vmatprep.subr.mxu0 0.0
        %7725 = vmatpush1.msra.mxu0 0.0
        %7726 = vmatprep.subr.mxu0 0.0
        %7727 = vmatpush1.msra.mxu0 0.0
        %7728 = vmatprep.subr.mxu0 0.0
        %7729 = vmatpush1.msra.mxu0 0.0
        %7730 = vmatprep.subr.mxu0 0.0
        %7731 = vmatpush1.msra.mxu0 0.0
        %7732 = vmatprep.subr.mxu0 0.0
        %7733 = vmatpush1.msra.mxu0 0.0
        %7734 = vmatprep.subr.mxu0 0.0
        %7735 = vmatpush1.msra.mxu0 0.0
        %7736 = vmatprep.subr.mxu0 0.0
        %7737 = vmatpush1.msra.mxu0 0.0
        %7738 = vmatprep.subr.mxu0 0.0
        %7739 = vmatpush1.msra.mxu0 0.0
        %7740 = vmatprep.subr.mxu0 0.0
        %7741 = vmatpush1.msra.mxu0 0.0
        %7742 = vmatprep.subr.mxu0 0.0
        %7743 = vmatpush1.msra.mxu0 0.0
        %7744 = vmatprep.subr.mxu0 0.0
        %7745 = vmatpush1.msra.mxu0 0.0
        %7746 = vmatprep.subr.mxu0 0.0
        %7747 = vmatpush1.msra.mxu0 0.0
        %7748 = vmatprep.subr.mxu0 0.0
        %7749 = vmatpush1.msra.mxu0 0.0
        %7750 = vmatprep.subr.mxu0 0.0
        %7751 = vmatpush1.msra.mxu0 0.0
        %7752 = vmatprep.subr.mxu0 0.0
        %7753 = vmatpush1.msra.mxu0 0.0
        %7754 = vmatprep.subr.mxu0 0.0
        %7755 = vmatpush1.msra.mxu0 0.0
        %7756 = vmatprep.mubr.f32.mxu0 0.0
        %7757 = vmatmul.mubr.f32.gmra.mrb[0].mxu0 %v1649
        %v7758 = vpop.f32.mrb[0].mxu0
        %v7759 = vadd.f32 %v1640, %v7758
        %v7760 = vpop.f32.mrb[0].mxu0
        %v7761 = vadd.f32 %v1640, %v7760
        %7762 = vmatprep.mubr.f32.mxu0 0.0
        %7763 = vmatmul.mubr.f32.gmra.mrb[0].mxu0 %v1652
        %v7764 = vpop.f32.mrb[0].mxu0
        %v7765 = vadd.f32 %v1645, %v7764
        %v7766 = vpop.f32.mrb[0].mxu0
        %v7767 = vadd.f32 %v1645, %v7766
        %7768 = vdwg.mxu0
        %7769 = vst [vmem:[%s1416] sm:$0xff] 0.0
        %7770 = vst [vmem:[%s1416 + $0x8] sm:$0xff] 0.0
        %7771 = vst [vmem:[%s1416 + $0x10] sm:$0xff] 0.0
        %7772 = vst [vmem:[%s1416 + $0x18] sm:$0xff] 0.0
        %7773 = vst [vmem:[%s1416 + $0x20] sm:$0xff] 0.0
        %7774 = vst [vmem:[%s1416 + $0x28] sm:$0xff] 0.0
        %7775 = vst [vmem:[%s1416 + $0x30] sm:$0xff] 0.0
        %7776 = vst [vmem:[%s1416 + $0x38] sm:$0xff] 0.0
        %7777 = vst [vmem:[%s1416 + $0x40] sm:$0xff] 0.0
        %7778 = vst [vmem:[%s1416 + $0x48] sm:$0xff] 0.0
        %7779 = vst [vmem:[%s1416 + $0x50] sm:$0xff] 0.0
        %7780 = vst [vmem:[%s1416 + $0x58] sm:$0xff] 0.0
        %7781 = vst [vmem:[%s1416 + $0x60] sm:$0xff] 0.0
        %7782 = vst [vmem:[%s1416 + $0x68] sm:$0xff] 0.0
        %7783 = vst [vmem:[%s1416 + $0x70] sm:$0xff] 0.0
        %7784 = vst [vmem:[%s1416 + $0x78] sm:$0xff] 0.0
        %7785 = vst [vmem:[%s1416 + $0x80] sm:$0xff] 0.0
        %7786 = vst [vmem:[%s1416 + $0x88] sm:$0xff] 0.0
        %7787 = vst [vmem:[%s1416] sm:$0xff] %v1721
        %7788 = vst [vmem:[%s1416 + $0x8] sm:$0xff] %v1723
        %7789 = vst [vmem:[%s1416 + $0x10] sm:$0xf] %v1727
        %7790 = vst [vmem:[%s1416 + $0x18] sm:$0xf] %v1729
        %7791 = vst [vmem:[%s1416 + $0x20] sm:$0xff] %v7759
        %7792 = vst [vmem:[%s1416 + $0x28] sm:$0xff] %v7761
        %7793 = vst [vmem:[%s1416 + $0x30] sm:$0xf] %v7765
        %7794 = vst [vmem:[%s1416 + $0x38] sm:$0xf] %v7767
        %7795 = vst [vmem:[%s1416 + $0x40] sm:$0xff] %v2397
        %7796 = vst [vmem:[%s1416 + $0x48] sm:$0xff] %v2399
        %7797 = vst [vmem:[%s1416 + $0x50] sm:$0x7] %v2403
        %7798 = vst [vmem:[%s1416 + $0x58] sm:$0x7] %v2405
        %7799 = vst [vmem:[%s1416 + $0x60] sm:$0xff] %v5846
        %7800 = vst [vmem:[%s1416 + $0x68] sm:$0xff] %v5848
        %7801 = vst [vmem:[%s1416 + $0x70] sm:$0xff] %v5852
        %7802 = vst [vmem:[%s1416 + $0x78] sm:$0xff] %v5854
        %7803 = vst [vmem:[%s1416 + $0x80] sm:$0x3f] %v5858
        %7804 = vst [vmem:[%s1416 + $0x88] sm:$0x3f] %v5860
        %s7805 = sand.u32 %s1002, 1
        %s7806 = sand.u32 %s1002, 1
        %s7807 = smul.addr %s7806, 144
        %s7808 = scalar_lea.vmem [#allocation7], %s7807
        // Predicated region
        $region262: #{gnn_infer_forward.1} parent=244 // pred_check
          %p7809 = pneg %p1012
        $region263: #{gnn_infer_forward.1} parent=244 // pred_check_branch
          %7811 = sbr.rel (%p7809) target = $region265
        $region264: #{gnn_infer_forward.1} parent=244 // pred_region
          %s7812 = smul.u32 2, %s97
          %s7813 = smul.addr %s7812, 8
          %s7814 = scalar_lea.vmem %s85, %s7813
          // Predicated region
          $region266: #{gnn_infer_forward.1} parent=264 // pred_check
            _
          $region267: #{gnn_infer_forward.1} parent=264 // pred_check_branch
            %7816 = sbr.rel (0) target = $region269
          $region268: #{gnn_infer_forward.1} parent=264 // pred_region
            // Predicated region
            $region270: #{gnn_infer_forward.1} parent=268 // pred_check
              _
            $region271: #{gnn_infer_forward.1} parent=268 // pred_check_branch
              %7818 = sbr.rel (0) target = $region273
            $region272: #{gnn_infer_forward.1} parent=268 // pred_region
              loop: start=0, step=1, limit=1
              $region274: #{gnn_infer_forward.1} parent=272 // loop_pre_header
                _
              $region275: #{gnn_infer_forward.1} parent=272 // loop_header
                %s7820 = sphi 0, %s7824
                %p7821 = scmp.ge.s32.totalorder %s7820, 1
                %s7825 = sphi %s7808, %s7808
                %s7826 = sphi %s7814, %s7814
              $region276: #{gnn_infer_forward.1} parent=272 // loop_header_branch
                %7823 = sbr.rel (%p7821) target = $region280
              $region277: #{gnn_infer_forward.1} parent=272 // loop_body
                %v7827 = vld [vmem:[%s7825] sm:$0xff]
                %7828 = vst [vmem:[%s7826] sm:$0xff] %v7827
                %v7829 = vld [vmem:[%s7825 + $0x8] sm:$0xff]
                %7830 = vst [vmem:[%s7826 + $0x8] sm:$0xff] %v7829
                %v7831 = vld [vmem:[%s7825 + $0x10] sm:$0xff]
                %7832 = vst [vmem:[%s7826 + $0x20] sm:$0xff] %v7831
                %v7833 = vld [vmem:[%s7825 + $0x18] sm:$0xff]
                %7834 = vst [vmem:[%s7826 + $0x28] sm:$0xff] %v7833
                %v7835 = vld [vmem:[%s7825 + $0x20] sm:$0xff]
                %7836 = vst [vmem:[%s7826 + $0x40] sm:$0xff] %v7835
                %v7837 = vld [vmem:[%s7825 + $0x28] sm:$0xff]
                %7838 = vst [vmem:[%s7826 + $0x48] sm:$0xff] %v7837
                %v7839 = vld [vmem:[%s7825 + $0x30] sm:$0xff]
                %7840 = vst [vmem:[%s7826 + $0x60] sm:$0xff] %v7839
                %v7841 = vld [vmem:[%s7825 + $0x38] sm:$0xff]
                %7842 = vst [vmem:[%s7826 + $0x68] sm:$0xff] %v7841
                %v7843 = vld [vmem:[%s7825 + $0x40] sm:$0xff]
                %7844 = vst [vmem:[%s7826 + $0x80] sm:$0xff] %v7843
                %v7845 = vld [vmem:[%s7825 + $0x48] sm:$0xff]
                %7846 = vst [vmem:[%s7826 + $0x88] sm:$0xff] %v7845
                %v7847 = vld [vmem:[%s7825 + $0x50] sm:$0xff]
                %7848 = vst [vmem:[%s7826 + $0xa0] sm:$0xff] %v7847
                %v7849 = vld [vmem:[%s7825 + $0x58] sm:$0xff]
                %7850 = vst [vmem:[%s7826 + $0xa8] sm:$0xff] %v7849
                %v7851 = vld [vmem:[%s7825 + $0x60] sm:$0xff]
                %7852 = vst [vmem:[%s7826 + $0xc0] sm:$0xff] %v7851
                %v7853 = vld [vmem:[%s7825 + $0x68] sm:$0xff]
                %7854 = vst [vmem:[%s7826 + $0xc8] sm:$0xff] %v7853
                %v7855 = vld [vmem:[%s7825 + $0x70] sm:$0xff]
                %7856 = vst [vmem:[%s7826 + $0xe0] sm:$0xff] %v7855
                %v7857 = vld [vmem:[%s7825 + $0x78] sm:$0xff]
                %7858 = vst [vmem:[%s7826 + $0xe8] sm:$0xff] %v7857
                %v7859 = vld [vmem:[%s7825 + $0x80] sm:$0xff]
                %7860 = vst [vmem:[%s7826 + $0x100] sm:$0xff] %v7859
                %v7861 = vld [vmem:[%s7825 + $0x88] sm:$0xff]
                %7862 = vst [vmem:[%s7826 + $0x108] sm:$0xff] %v7861
              $region278: #{gnn_infer_forward.1} parent=272 // loop_footer
                %s7824 = sadd.s32 1, %s7820
              $region279: #{gnn_infer_forward.1} parent=272 // loop_footer_branch
                %7819 = sbr.rel target = $region275
              $region280: #{gnn_infer_forward.1} parent=272 // loop_exit
                _
            $region273: #{gnn_infer_forward.1} parent=268 // pred_fallthru
              _
            // Predicated region
            $region281: #{gnn_infer_forward.1} parent=268 // pred_check
              _
            $region282: #{gnn_infer_forward.1} parent=268 // pred_check_branch
              %7864 = sbr.rel target = $region284
            $region283: #{gnn_infer_forward.1} parent=268 // pred_region
              _
            $region284: #{gnn_infer_forward.1} parent=268 // pred_fallthru
              _
          $region269: #{gnn_infer_forward.1} parent=264 // pred_fallthru
            _
          %7865 = vnop
        $region265: #{gnn_infer_forward.1} parent=244 // pred_fallthru
          _
      $region245: #{gnn_infer_forward.1} parent=5 // pred_fallthru
        _
      %p7866 = scmp.le.s32.totalorder 2, %s92
      // Predicated region
      $region285: #{gnn_infer_forward.1} parent=5 // pred_check
        %p7867 = pneg %p7866
      $region286: #{gnn_infer_forward.1} parent=5 // pred_check_branch
        %7869 = sbr.rel (%p7867) target = $region288
      $region287: #{gnn_infer_forward.1} parent=5 // pred_region
        %s7870 = ssub.s32 %s92, 2
        // Predicated region
        $region289: #{gnn_infer_forward.1} parent=287 // pred_check
          %p7871 = pneg %p1018
        $region290: #{gnn_infer_forward.1} parent=287 // pred_check_branch
          %7873 = sbr.rel (%p7871) target = $region292
        $region291: #{gnn_infer_forward.1} parent=287 // pred_region
          %s7874 = sand.u32 %s1003, 1
          %s7875 = sand.u32 %s1003, 1
          %s7876 = smul.addr %s7875, 144
          %s7877 = scalar_lea.vmem [#allocation7], %s7876
        $region292: #{gnn_infer_forward.1} parent=287 // pred_fallthru
          _
      $region288: #{gnn_infer_forward.1} parent=5 // pred_fallthru
        _
    $region6: #{gnn_infer_forward.1} parent=1 // loop_footer
      %s96 = sadd.s32 1, %s92
    $region7: #{gnn_infer_forward.1} parent=1 // loop_footer_branch
      %91 = sbr.rel target = $region3
    $region8: #{gnn_infer_forward.1} parent=1 // loop_exit
      _
    %7878 = vsyncpa [#allocation6], 1
    %s7879 = scalar_lea.sflag [#allocation6], 1
    %7880 = vsyncpa %s7879, 1

</llo_original>
